<compile_context>
chip_gen: v7x
topology: tpu7x:2x2x1
jax: 0.10.0
libtpu: 0.0.40
codegen_flags: <defaults>
</compile_context>

<pallas_src>
import functools

import jax
import jax.numpy as jnp
from jax.experimental import pallas as pl
from jax.experimental.pallas import tpu as pltpu

LEAKY_SLOPE = 0.2
BN_EPS = 1e-5
KSIZE = 4          # conv kernel size
STRIDE = 2
PAD = 1
COUT_PAD = 128     # lane-dense padded output channels for every conv GEMM
VMEM_LIMIT = 32 * 1024 * 1024   # safe on v5e / v6e / v7x


# ----------------------------------------------------------------------------
# Helpers
# ----------------------------------------------------------------------------
def _round_up(x, m):
    return ((x + m - 1) // m) * m


def _compiler_params(semantics):
    return pltpu.CompilerParams(dimension_semantics=semantics,
                                vmem_limit_bytes=VMEM_LIMIT)


def _leaky(x):
    return jnp.where(x >= 0, x, LEAKY_SLOPE * x)


# ----------------------------------------------------------------------------
# Pallas kernels
# ----------------------------------------------------------------------------
def _conv_tap_kernel(*refs, ho, wo, with_bias, emit_stats):
    """4x4/stride-2 conv on one image: 16-tap in-kernel reduction.

    x_ref:  (4, Ho+1, Wo+1, Cin)   stride-2 phases of the padded input (bf16)
    w_ref:  (16, Cin, COUT_PAD)    tap-major packed weights (bf16)
    o_ref:  (1, Ho*Wo, COUT_PAD)   raw conv out (f32) or bias+leaky out (bf16)
    stats_ref (optional): (1, 2, COUT_PAD) per-image channel sum / sum-of-sq
    """
    if with_bias:
        x_ref, w_ref, b_ref, o_ref = refs
        stats_ref = None
    elif emit_stats:
        x_ref, w_ref, o_ref, stats_ref = refs
        b_ref = None
    else:
        x_ref, w_ref, o_ref = refs
        b_ref = stats_ref = None

    cin = x_ref.shape[-1]
    coutp = o_ref.shape[-1]
    acc = jnp.zeros((ho * wo, coutp), jnp.float32)

    # Fully unrolled 16-tap reduction.  Tap (kh, kw) reads phase
    # p = 2*(kh%2)+(kw%2) at element offset (kh//2, kw//2): static slices only.
    for kh in range(KSIZE):
        for kw in range(KSIZE):
            p = (kh % 2) * 2 + (kw % 2)
            qh, qw = kh // 2, kw // 2
            slab = x_ref[p, qh:qh + ho, qw:qw + wo, :]          # (ho, wo, cin)
            acc = acc + jnp.dot(slab.reshape(ho * wo, cin),
                                w_ref[kh * KSIZE + kw],
                                preferred_element_type=jnp.float32)

    if with_bias:                      # layer 1: bias + LeakyReLU fused
        acc = _leaky(acc + b_ref[...])
    o_ref[0] = acc.astype(o_ref.dtype)

    if emit_stats:                     # exact partials from the f32 accumulator
        s = jnp.sum(acc, axis=0, keepdims=True)
        ss = jnp.sum(acc * acc, axis=0, keepdims=True)
        stats_ref[0] = jnp.concatenate([s, ss], axis=0)         # (2, coutp)


def _linear_sigmoid_kernel(x_ref, w_ref, b_ref, o_ref):
    y = jnp.dot(x_ref[...], w_ref[...],
                preferred_element_type=jnp.float32) + b_ref[...]
    z = jnp.exp(-jnp.abs(y))                       # numerically stable sigmoid
    r = pl.reciprocal(1.0 + z, approx=True)        # EUP slot, free under MXU
    o_ref[...] = jnp.where(y >= 0, r, z * r).astype(o_ref.dtype)


# ----------------------------------------------------------------------------
# Pallas wrappers
# ----------------------------------------------------------------------------
def conv4x4_s2(xph, w_packed, bias=None, *, emit_stats, out_dtype):
    """Conv via in-kernel 16-tap reduction over phase-decomposed input.

    xph:      (N*4, Ho+1, Wo+1, Cin) bf16   (4 stride-2 phases per image)
    w_packed: (16, Cin, COUT_PAD)    bf16
    returns   y (N, Ho*Wo, COUT_PAD) [, stats (N, 2, COUT_PAD) f32]
    """
    n4, hq, wq, cin = xph.shape
    n = n4 // 4
    ho, wo = hq - 1, wq - 1
    m = ho * wo

    kernel = functools.partial(_conv_tap_kernel, ho=ho, wo=wo,
                               with_bias=bias is not None,
                               emit_stats=emit_stats)

    in_specs = [
        pl.BlockSpec((4, hq, wq, cin), lambda b: (b, 0, 0, 0)),
        pl.BlockSpec((KSIZE * KSIZE, cin, COUT_PAD), lambda b: (0, 0, 0)),
    ]
    args = [xph, w_packed]
    if bias is not None:
        bp = jnp.pad(bias.astype(jnp.float32),
                     (0, COUT_PAD - bias.shape[0])).reshape(1, COUT_PAD)
        in_specs.append(pl.BlockSpec((1, COUT_PAD), lambda b: (0, 0)))
        args.append(bp)

    y_shape = jax.ShapeDtypeStruct((n, m, COUT_PAD), out_dtype)
    y_spec = pl.BlockSpec((1, m, COUT_PAD), lambda b: (b, 0, 0))
    if emit_stats:
        out_shape = (y_shape,
                     jax.ShapeDtypeStruct((n, 2, COUT_PAD), jnp.float32))
        out_specs = (y_spec,
                     pl.BlockSpec((1, 2, COUT_PAD), lambda b: (b, 0, 0)))
    else:
        out_shape = y_shape
        out_specs = y_spec

    return pl.pallas_call(
        kernel,
        out_shape=out_shape,
        grid_spec=pltpu.PrefetchScalarGridSpec(
            num_scalar_prefetch=0,
            grid=(n,),
            in_specs=in_specs,
            out_specs=out_specs),
        compiler_params=_compiler_params(("parallel",)),
    )(*args)


def linear_sigmoid(x, w, b):
    """sigmoid(x @ w + b); x (N, F), w (F, 1), b (1,). Returns (N, 1) f32."""
    n, feat = x.shape
    fpad = _round_up(feat, 128)
    xp = jnp.pad(x.astype(jnp.bfloat16), ((0, 0), (0, fpad - feat)))
    wp = jnp.pad(w.astype(jnp.bfloat16),
                 ((0, fpad - feat), (0, 128 - w.shape[1])))
    bp = jnp.pad(b.astype(jnp.float32).reshape(1, -1),
                 ((0, 0), (0, 128 - b.shape[0])))
    out = pl.pallas_call(
        _linear_sigmoid_kernel,
        out_shape=jax.ShapeDtypeStruct((n, 128), jnp.float32),
        grid_spec=pltpu.PrefetchScalarGridSpec(
            num_scalar_prefetch=0,
            grid=(1,),
            in_specs=[pl.BlockSpec((n, fpad), lambda i: (0, 0)),
                      pl.BlockSpec((fpad, 128), lambda i: (0, 0)),
                      pl.BlockSpec((1, 128), lambda i: (0, 0))],
            out_specs=pl.BlockSpec((n, 128), lambda i: (0, 0))),
        compiler_params=_compiler_params(("arbitrary",)),
    )(xp, wp, bp)
    return out[:, :1]


# ----------------------------------------------------------------------------
# Thin JAX glue (all fused by XLA into the layout passes it must do anyway)
# ----------------------------------------------------------------------------
def phase_decompose(a_nhwc):
    """Zero-pad (pad=1) and split into the 4 stride-2 phases.

    a_nhwc: (N, H, W, C) activated input (post bias/BN/LeakyReLU).
    returns (N*4, H//2+1, W//2+1, C) bf16; row n*4 + (2*(r%2)+(s%2)).
    """
    n = a_nhwc.shape[0]
    ap = jnp.pad(a_nhwc, ((0, 0), (PAD, PAD), (PAD, PAD), (0, 0)))
    phases = [ap[:, ph::STRIDE, pw::STRIDE, :]
              for ph in range(2) for pw in range(2)]
    x = jnp.stack(phases, axis=1)                 # (N, 4, Ho+1, Wo+1, C)
    return x.reshape((n * 4,) + x.shape[2:]).astype(jnp.bfloat16)


def pack_conv_w(w_oihw):
    """(Cout, Cin, 4, 4) -> (16, Cin, COUT_PAD) bf16, tap index = kh*4 + kw."""
    cout, cin, kh, kw = w_oihw.shape
    w = jnp.transpose(w_oihw, (2, 3, 1, 0)).reshape(kh * kw, cin, cout)
    return jnp.pad(w, ((0, 0), (0, 0), (0, COUT_PAD - cout))).astype(jnp.bfloat16)


def bn_fold(stats, gamma, beta, count, cout):
    """Fold per-image (sum, sumsq) partials into per-channel scale/shift."""
    s = jnp.sum(stats[:, 0, :cout], axis=0)
    ss = jnp.sum(stats[:, 1, :cout], axis=0)
    mean = s / count
    var = ss / count - mean * mean                # biased (training-mode)
    scale = gamma * jax.lax.rsqrt(var + BN_EPS)
    shift = beta - mean * scale
    return scale, shift


# ----------------------------------------------------------------------------
# Parameters (deterministic, synthetic)
# ----------------------------------------------------------------------------
def make_params(img_shape, ndf, key):
    channels, img_h, img_w = img_shape
    final = img_h // 2 ** 4
    cins = [channels, ndf, ndf * 2, ndf * 4]
    couts = [ndf, ndf * 2, ndf * 4, ndf * 8]
    keys = jax.random.split(key, 16)
    p = {}
    ki = 0
    for i, (cin, cout) in enumerate(zip(cins, couts), start=1):
        p[f"w{i}"] = 0.05 * jax.random.normal(keys[ki], (cout, cin, KSIZE, KSIZE),
                                              jnp.float32); ki += 1
        if i == 4:
            p[f"b{i}"] = jnp.zeros((cout,), jnp.float32)     # bias=False
        else:
            p[f"b{i}"] = 0.05 * jax.random.normal(keys[ki], (cout,),
                                                  jnp.float32); ki += 1
        if i >= 2:  # BatchNorm params
            p[f"g{i}"] = 1.0 + 0.1 * jax.random.normal(keys[ki], (cout,),
                                                       jnp.float32); ki += 1
            p[f"be{i}"] = 0.1 * jax.random.normal(keys[ki], (cout,),
                                                  jnp.float32); ki += 1
    feat = ndf * 8 * final * final
    p["wl"] = 0.05 * jax.random.normal(keys[ki], (1, feat), jnp.float32); ki += 1
    p["bl"] = 0.05 * jax.random.normal(keys[ki], (1,), jnp.float32)
    return p


# ----------------------------------------------------------------------------
# Forward pass (Pallas)
# ----------------------------------------------------------------------------
def dcgan_discriminator_forward(img_nchw, params):
    n = img_nchw.shape[0]
    act = jnp.transpose(img_nchw, (0, 2, 3, 1)).astype(jnp.float32)   # NHWC

    # ---- layer 1: conv + bias + LeakyReLU (single fused kernel) ----
    ho, wo = act.shape[1] // 2, act.shape[2] // 2
    cout = params["w1"].shape[0]
    y1 = conv4x4_s2(phase_decompose(act), pack_conv_w(params["w1"]),
                    bias=params["b1"], emit_stats=False, out_dtype=jnp.bfloat16)
    act = y1[:, :, :cout].reshape(n, ho, wo, cout)

    # ---- layers 2..4: conv + fused BN partial stats; BN scale/shift + leaky
    #      is applied as the (XLA-fused) x-prologue of the next stage ----
    for i in (2, 3, 4):
        ho, wo = act.shape[1] // 2, act.shape[2] // 2
        cout = params[f"w{i}"].shape[0]
        y_raw, stats = conv4x4_s2(phase_decompose(act),
                                  pack_conv_w(params[f"w{i}"]),
                                  bias=None, emit_stats=True,
                                  out_dtype=jnp.float32)
        scale, shift = bn_fold(stats, params[f"g{i}"], params[f"be{i}"],
                               count=float(n * ho * wo), cout=cout)
        act = _leaky(y_raw[:, :, :cout] * scale + shift).reshape(n, ho, wo, cout)

    # ---- flatten in NHWC order (no activation transpose); permute the
    #      weight-sized Linear matrix from NCHW-flatten order instead ----
    fh, fw, c4 = act.shape[1], act.shape[2], act.shape[3]
    flat = act.reshape(n, fh * fw * c4)
    wl = params["wl"].reshape(1, c4, fh, fw).transpose(0, 2, 3, 1).reshape(1, -1)
    return linear_sigmoid(flat, wl.T, params["bl"])                  # (N, 1)


# ----------------------------------------------------------------------------
# Pure-JAX reference (f32, for correctness check)
# ----------------------------------------------------------------------------
def reference_forward(img_nchw, params):
    def conv(x, w, b):
        y = jax.lax.conv_general_dilated(
            x, w, (STRIDE, STRIDE), ((PAD, PAD), (PAD, PAD)),
            dimension_numbers=("NCHW", "OIHW", "NCHW"))
        return y + b.reshape(1, -1, 1, 1)

    def bn(x, g, be):
        mean = jnp.mean(x, axis=(0, 2, 3), keepdims=True)
        var = jnp.mean((x - mean) ** 2, axis=(0, 2, 3), keepdims=True)
        return ((x - mean) * jax.lax.rsqrt(var + BN_EPS)
                * g.reshape(1, -1, 1, 1) + be.reshape(1, -1, 1, 1))

    x = img_nchw.astype(jnp.float32)
    x = _leaky(conv(x, params["w1"], params["b1"]))
    for i in (2, 3, 4):
        x = _leaky(bn(conv(x, params[f"w{i}"], params[f"b{i}"]),
                      params[f"g{i}"], params[f"be{i}"]))
    flat = x.reshape(x.shape[0], -1)
    logits = flat @ params["wl"].T + params["bl"]
    return jax.nn.sigmoid(logits)


# ----------------------------------------------------------------------------
if __name__ == "__main__":
    img_shape = (3, 16, 16)   # (C, H, W); 16 // 2**4 == 1 final conv size
    ndf = 8
    batch = 2

    key = jax.random.PRNGKey(0)
    k_img, k_param = jax.random.split(key)
    img = jax.random.normal(k_img, (batch,) + img_shape, jnp.float32)
    params = make_params(img_shape, ndf, k_param)

    fwd = jax.jit(dcgan_discriminator_forward)
    out = jax.block_until_ready(fwd(img, params))
    assert out.shape == (batch, 1), out.shape

    ref = jax.block_until_ready(reference_forward(img, params))
    # bf16 MXU operands (f32 accumulation) -> relaxed tolerance vs f32 reference
    assert jnp.allclose(out, ref, atol=3e-2, rtol=3e-2), (out, ref)

    print("KERNEL_OK")
</pallas_src>

<mosaic_0001>
module attributes {stable_mosaic.version = 11 : i64} {
  func.func @_conv_tap_kernel(%arg0: i32, %arg1: memref<4x9x9x3xbf16, #tpu.memory_space<vmem>>, %arg2: memref<16x3x128xbf16, #tpu.memory_space<vmem>>, %arg3: memref<1x128xf32, #tpu.memory_space<vmem>>, %arg4: memref<1x64x128xbf16, #tpu.memory_space<vmem>>) attributes {dimension_semantics = [#tpu.dimension_semantics<parallel>], iteration_bounds = array<i64: 2>, scalar_prefetch = 0 : i64, scratch_operands = 0 : i64, tpu.core_type = #tpu.core_type<tc>, window_params = [{transform_indices = @transform_0, window_bounds = array<i64: 4, 9, 9, 3>}, {pipeline_mode = #tpu.pipeline_mode<synchronous>, transform_indices = @transform_1, window_bounds = array<i64: 16, 3, 128>}, {pipeline_mode = #tpu.pipeline_mode<synchronous>, transform_indices = @transform_2, window_bounds = array<i64: 1, 128>}, {transform_indices = @transform_3, window_bounds = array<i64: 1, 64, 128>}]} {
    %cst = arith.constant 0.000000e+00 : f32
    %0 = vector.broadcast %cst : f32 to vector<64x128xf32>
    %c0 = arith.constant 0 : index
    %c0_0 = arith.constant 0 : index
    %c0_1 = arith.constant 0 : index
    %c0_2 = arith.constant 0 : index
    %1 = vector.load %arg1[%c0, %c0_0, %c0_1, %c0_2] : memref<4x9x9x3xbf16, #tpu.memory_space<vmem>>, vector<1x8x8x3xbf16>
    %2 = vector.shape_cast %1 : vector<1x8x8x3xbf16> to vector<8x8x3xbf16>
    %3 = vector.shape_cast %2 : vector<8x8x3xbf16> to vector<64x3xbf16>
    %c0_3 = arith.constant 0 : index
    %c0_4 = arith.constant 0 : index
    %c0_5 = arith.constant 0 : index
    %4 = vector.load %arg2[%c0_3, %c0_4, %c0_5] : memref<16x3x128xbf16, #tpu.memory_space<vmem>>, vector<1x3x128xbf16>
    %5 = vector.shape_cast %4 : vector<1x3x128xbf16> to vector<3x128xbf16>
    %cst_6 = arith.constant dense<0.000000e+00> : vector<64x128xf32>
    %6 = tpu.matmul %3, %5, %cst_6 {dimension_numbers = #tpu.dot_dimension_numbers<[1], [0], [0], [1], [0, 0, 1, 1], [], []>} : vector<64x3xbf16>, vector<3x128xbf16>, vector<64x128xf32> -> vector<64x128xf32>
    %7 = arith.addf %0, %6 : vector<64x128xf32>
    %c1 = arith.constant 1 : index
    %c0_7 = arith.constant 0 : index
    %c0_8 = arith.constant 0 : index
    %c0_9 = arith.constant 0 : index
    %8 = vector.load %arg1[%c1, %c0_7, %c0_8, %c0_9] : memref<4x9x9x3xbf16, #tpu.memory_space<vmem>>, vector<1x8x8x3xbf16>
    %9 = vector.shape_cast %8 : vector<1x8x8x3xbf16> to vector<8x8x3xbf16>
    %10 = vector.shape_cast %9 : vector<8x8x3xbf16> to vector<64x3xbf16>
    %c1_10 = arith.constant 1 : index
    %c0_11 = arith.constant 0 : index
    %c0_12 = arith.constant 0 : index
    %11 = vector.load %arg2[%c1_10, %c0_11, %c0_12] : memref<16x3x128xbf16, #tpu.memory_space<vmem>>, vector<1x3x128xbf16>
    %12 = vector.shape_cast %11 : vector<1x3x128xbf16> to vector<3x128xbf16>
    %cst_13 = arith.constant dense<0.000000e+00> : vector<64x128xf32>
    %13 = tpu.matmul %10, %12, %cst_13 {dimension_numbers = #tpu.dot_dimension_numbers<[1], [0], [0], [1], [0, 0, 1, 1], [], []>} : vector<64x3xbf16>, vector<3x128xbf16>, vector<64x128xf32> -> vector<64x128xf32>
    %14 = arith.addf %7, %13 : vector<64x128xf32>
    %c0_14 = arith.constant 0 : index
    %c0_15 = arith.constant 0 : index
    %c1_16 = arith.constant 1 : index
    %c0_17 = arith.constant 0 : index
    %15 = vector.load %arg1[%c0_14, %c0_15, %c1_16, %c0_17] : memref<4x9x9x3xbf16, #tpu.memory_space<vmem>>, vector<1x8x8x3xbf16>
    %16 = vector.shape_cast %15 : vector<1x8x8x3xbf16> to vector<8x8x3xbf16>
    %17 = vector.shape_cast %16 : vector<8x8x3xbf16> to vector<64x3xbf16>
    %c2 = arith.constant 2 : index
    %c0_18 = arith.constant 0 : index
    %c0_19 = arith.constant 0 : index
    %18 = vector.load %arg2[%c2, %c0_18, %c0_19] : memref<16x3x128xbf16, #tpu.memory_space<vmem>>, vector<1x3x128xbf16>
    %19 = vector.shape_cast %18 : vector<1x3x128xbf16> to vector<3x128xbf16>
    %cst_20 = arith.constant dense<0.000000e+00> : vector<64x128xf32>
    %20 = tpu.matmul %17, %19, %cst_20 {dimension_numbers = #tpu.dot_dimension_numbers<[1], [0], [0], [1], [0, 0, 1, 1], [], []>} : vector<64x3xbf16>, vector<3x128xbf16>, vector<64x128xf32> -> vector<64x128xf32>
    %21 = arith.addf %14, %20 : vector<64x128xf32>
    %c1_21 = arith.constant 1 : index
    %c0_22 = arith.constant 0 : index
    %c1_23 = arith.constant 1 : index
    %c0_24 = arith.constant 0 : index
    %22 = vector.load %arg1[%c1_21, %c0_22, %c1_23, %c0_24] : memref<4x9x9x3xbf16, #tpu.memory_space<vmem>>, vector<1x8x8x3xbf16>
    %23 = vector.shape_cast %22 : vector<1x8x8x3xbf16> to vector<8x8x3xbf16>
    %24 = vector.shape_cast %23 : vector<8x8x3xbf16> to vector<64x3xbf16>
    %c3 = arith.constant 3 : index
    %c0_25 = arith.constant 0 : index
    %c0_26 = arith.constant 0 : index
    %25 = vector.load %arg2[%c3, %c0_25, %c0_26] : memref<16x3x128xbf16, #tpu.memory_space<vmem>>, vector<1x3x128xbf16>
    %26 = vector.shape_cast %25 : vector<1x3x128xbf16> to vector<3x128xbf16>
    %cst_27 = arith.constant dense<0.000000e+00> : vector<64x128xf32>
    %27 = tpu.matmul %24, %26, %cst_27 {dimension_numbers = #tpu.dot_dimension_numbers<[1], [0], [0], [1], [0, 0, 1, 1], [], []>} : vector<64x3xbf16>, vector<3x128xbf16>, vector<64x128xf32> -> vector<64x128xf32>
    %28 = arith.addf %21, %27 : vector<64x128xf32>
    %c2_28 = arith.constant 2 : index
    %c0_29 = arith.constant 0 : index
    %c0_30 = arith.constant 0 : index
    %c0_31 = arith.constant 0 : index
    %29 = vector.load %arg1[%c2_28, %c0_29, %c0_30, %c0_31] : memref<4x9x9x3xbf16, #tpu.memory_space<vmem>>, vector<1x8x8x3xbf16>
    %30 = vector.shape_cast %29 : vector<1x8x8x3xbf16> to vector<8x8x3xbf16>
    %31 = vector.shape_cast %30 : vector<8x8x3xbf16> to vector<64x3xbf16>
    %c4 = arith.constant 4 : index
    %c0_32 = arith.constant 0 : index
    %c0_33 = arith.constant 0 : index
    %32 = vector.load %arg2[%c4, %c0_32, %c0_33] : memref<16x3x128xbf16, #tpu.memory_space<vmem>>, vector<1x3x128xbf16>
    %33 = vector.shape_cast %32 : vector<1x3x128xbf16> to vector<3x128xbf16>
    %cst_34 = arith.constant dense<0.000000e+00> : vector<64x128xf32>
    %34 = tpu.matmul %31, %33, %cst_34 {dimension_numbers = #tpu.dot_dimension_numbers<[1], [0], [0], [1], [0, 0, 1, 1], [], []>} : vector<64x3xbf16>, vector<3x128xbf16>, vector<64x128xf32> -> vector<64x128xf32>
    %35 = arith.addf %28, %34 : vector<64x128xf32>
    %c3_35 = arith.constant 3 : index
    %c0_36 = arith.constant 0 : index
    %c0_37 = arith.constant 0 : index
    %c0_38 = arith.constant 0 : index
    %36 = vector.load %arg1[%c3_35, %c0_36, %c0_37, %c0_38] : memref<4x9x9x3xbf16, #tpu.memory_space<vmem>>, vector<1x8x8x3xbf16>
    %37 = vector.shape_cast %36 : vector<1x8x8x3xbf16> to vector<8x8x3xbf16>
    %38 = vector.shape_cast %37 : vector<8x8x3xbf16> to vector<64x3xbf16>
    %c5 = arith.constant 5 : index
    %c0_39 = arith.constant 0 : index
    %c0_40 = arith.constant 0 : index
    %39 = vector.load %arg2[%c5, %c0_39, %c0_40] : memref<16x3x128xbf16, #tpu.memory_space<vmem>>, vector<1x3x128xbf16>
    %40 = vector.shape_cast %39 : vector<1x3x128xbf16> to vector<3x128xbf16>
    %cst_41 = arith.constant dense<0.000000e+00> : vector<64x128xf32>
    %41 = tpu.matmul %38, %40, %cst_41 {dimension_numbers = #tpu.dot_dimension_numbers<[1], [0], [0], [1], [0, 0, 1, 1], [], []>} : vector<64x3xbf16>, vector<3x128xbf16>, vector<64x128xf32> -> vector<64x128xf32>
    %42 = arith.addf %35, %41 : vector<64x128xf32>
    %c2_42 = arith.constant 2 : index
    %c0_43 = arith.constant 0 : index
    %c1_44 = arith.constant 1 : index
    %c0_45 = arith.constant 0 : index
    %43 = vector.load %arg1[%c2_42, %c0_43, %c1_44, %c0_45] : memref<4x9x9x3xbf16, #tpu.memory_space<vmem>>, vector<1x8x8x3xbf16>
    %44 = vector.shape_cast %43 : vector<1x8x8x3xbf16> to vector<8x8x3xbf16>
    %45 = vector.shape_cast %44 : vector<8x8x3xbf16> to vector<64x3xbf16>
    %c6 = arith.constant 6 : index
    %c0_46 = arith.constant 0 : index
    %c0_47 = arith.constant 0 : index
    %46 = vector.load %arg2[%c6, %c0_46, %c0_47] : memref<16x3x128xbf16, #tpu.memory_space<vmem>>, vector<1x3x128xbf16>
    %47 = vector.shape_cast %46 : vector<1x3x128xbf16> to vector<3x128xbf16>
    %cst_48 = arith.constant dense<0.000000e+00> : vector<64x128xf32>
    %48 = tpu.matmul %45, %47, %cst_48 {dimension_numbers = #tpu.dot_dimension_numbers<[1], [0], [0], [1], [0, 0, 1, 1], [], []>} : vector<64x3xbf16>, vector<3x128xbf16>, vector<64x128xf32> -> vector<64x128xf32>
    %49 = arith.addf %42, %48 : vector<64x128xf32>
    %c3_49 = arith.constant 3 : index
    %c0_50 = arith.constant 0 : index
    %c1_51 = arith.constant 1 : index
    %c0_52 = arith.constant 0 : index
    %50 = vector.load %arg1[%c3_49, %c0_50, %c1_51, %c0_52] : memref<4x9x9x3xbf16, #tpu.memory_space<vmem>>, vector<1x8x8x3xbf16>
    %51 = vector.shape_cast %50 : vector<1x8x8x3xbf16> to vector<8x8x3xbf16>
    %52 = vector.shape_cast %51 : vector<8x8x3xbf16> to vector<64x3xbf16>
    %c7 = arith.constant 7 : index
    %c0_53 = arith.constant 0 : index
    %c0_54 = arith.constant 0 : index
    %53 = vector.load %arg2[%c7, %c0_53, %c0_54] : memref<16x3x128xbf16, #tpu.memory_space<vmem>>, vector<1x3x128xbf16>
    %54 = vector.shape_cast %53 : vector<1x3x128xbf16> to vector<3x128xbf16>
    %cst_55 = arith.constant dense<0.000000e+00> : vector<64x128xf32>
    %55 = tpu.matmul %52, %54, %cst_55 {dimension_numbers = #tpu.dot_dimension_numbers<[1], [0], [0], [1], [0, 0, 1, 1], [], []>} : vector<64x3xbf16>, vector<3x128xbf16>, vector<64x128xf32> -> vector<64x128xf32>
    %56 = arith.addf %49, %55 : vector<64x128xf32>
    %c0_56 = arith.constant 0 : index
    %c1_57 = arith.constant 1 : index
    %c0_58 = arith.constant 0 : index
    %c0_59 = arith.constant 0 : index
    %57 = vector.load %arg1[%c0_56, %c1_57, %c0_58, %c0_59] : memref<4x9x9x3xbf16, #tpu.memory_space<vmem>>, vector<1x8x8x3xbf16>
    %58 = vector.shape_cast %57 : vector<1x8x8x3xbf16> to vector<8x8x3xbf16>
    %59 = vector.shape_cast %58 : vector<8x8x3xbf16> to vector<64x3xbf16>
    %c8 = arith.constant 8 : index
    %c0_60 = arith.constant 0 : index
    %c0_61 = arith.constant 0 : index
    %60 = vector.load %arg2[%c8, %c0_60, %c0_61] : memref<16x3x128xbf16, #tpu.memory_space<vmem>>, vector<1x3x128xbf16>
    %61 = vector.shape_cast %60 : vector<1x3x128xbf16> to vector<3x128xbf16>
    %cst_62 = arith.constant dense<0.000000e+00> : vector<64x128xf32>
    %62 = tpu.matmul %59, %61, %cst_62 {dimension_numbers = #tpu.dot_dimension_numbers<[1], [0], [0], [1], [0, 0, 1, 1], [], []>} : vector<64x3xbf16>, vector<3x128xbf16>, vector<64x128xf32> -> vector<64x128xf32>
    %63 = arith.addf %56, %62 : vector<64x128xf32>
    %c1_63 = arith.constant 1 : index
    %c1_64 = arith.constant 1 : index
    %c0_65 = arith.constant 0 : index
    %c0_66 = arith.constant 0 : index
    %64 = vector.load %arg1[%c1_63, %c1_64, %c0_65, %c0_66] : memref<4x9x9x3xbf16, #tpu.memory_space<vmem>>, vector<1x8x8x3xbf16>
    %65 = vector.shape_cast %64 : vector<1x8x8x3xbf16> to vector<8x8x3xbf16>
    %66 = vector.shape_cast %65 : vector<8x8x3xbf16> to vector<64x3xbf16>
    %c9 = arith.constant 9 : index
    %c0_67 = arith.constant 0 : index
    %c0_68 = arith.constant 0 : index
    %67 = vector.load %arg2[%c9, %c0_67, %c0_68] : memref<16x3x128xbf16, #tpu.memory_space<vmem>>, vector<1x3x128xbf16>
    %68 = vector.shape_cast %67 : vector<1x3x128xbf16> to vector<3x128xbf16>
    %cst_69 = arith.constant dense<0.000000e+00> : vector<64x128xf32>
    %69 = tpu.matmul %66, %68, %cst_69 {dimension_numbers = #tpu.dot_dimension_numbers<[1], [0], [0], [1], [0, 0, 1, 1], [], []>} : vector<64x3xbf16>, vector<3x128xbf16>, vector<64x128xf32> -> vector<64x128xf32>
    %70 = arith.addf %63, %69 : vector<64x128xf32>
    %c0_70 = arith.constant 0 : index
    %c1_71 = arith.constant 1 : index
    %c1_72 = arith.constant 1 : index
    %c0_73 = arith.constant 0 : index
    %71 = vector.load %arg1[%c0_70, %c1_71, %c1_72, %c0_73] : memref<4x9x9x3xbf16, #tpu.memory_space<vmem>>, vector<1x8x8x3xbf16>
    %72 = vector.shape_cast %71 : vector<1x8x8x3xbf16> to vector<8x8x3xbf16>
    %73 = vector.shape_cast %72 : vector<8x8x3xbf16> to vector<64x3xbf16>
    %c10 = arith.constant 10 : index
    %c0_74 = arith.constant 0 : index
    %c0_75 = arith.constant 0 : index
    %74 = vector.load %arg2[%c10, %c0_74, %c0_75] : memref<16x3x128xbf16, #tpu.memory_space<vmem>>, vector<1x3x128xbf16>
    %75 = vector.shape_cast %74 : vector<1x3x128xbf16> to vector<3x128xbf16>
    %cst_76 = arith.constant dense<0.000000e+00> : vector<64x128xf32>
    %76 = tpu.matmul %73, %75, %cst_76 {dimension_numbers = #tpu.dot_dimension_numbers<[1], [0], [0], [1], [0, 0, 1, 1], [], []>} : vector<64x3xbf16>, vector<3x128xbf16>, vector<64x128xf32> -> vector<64x128xf32>
    %77 = arith.addf %70, %76 : vector<64x128xf32>
    %c1_77 = arith.constant 1 : index
    %c1_78 = arith.constant 1 : index
    %c1_79 = arith.constant 1 : index
    %c0_80 = arith.constant 0 : index
    %78 = vector.load %arg1[%c1_77, %c1_78, %c1_79, %c0_80] : memref<4x9x9x3xbf16, #tpu.memory_space<vmem>>, vector<1x8x8x3xbf16>
    %79 = vector.shape_cast %78 : vector<1x8x8x3xbf16> to vector<8x8x3xbf16>
    %80 = vector.shape_cast %79 : vector<8x8x3xbf16> to vector<64x3xbf16>
    %c11 = arith.constant 11 : index
    %c0_81 = arith.constant 0 : index
    %c0_82 = arith.constant 0 : index
    %81 = vector.load %arg2[%c11, %c0_81, %c0_82] : memref<16x3x128xbf16, #tpu.memory_space<vmem>>, vector<1x3x128xbf16>
    %82 = vector.shape_cast %81 : vector<1x3x128xbf16> to vector<3x128xbf16>
    %cst_83 = arith.constant dense<0.000000e+00> : vector<64x128xf32>
    %83 = tpu.matmul %80, %82, %cst_83 {dimension_numbers = #tpu.dot_dimension_numbers<[1], [0], [0], [1], [0, 0, 1, 1], [], []>} : vector<64x3xbf16>, vector<3x128xbf16>, vector<64x128xf32> -> vector<64x128xf32>
    %84 = arith.addf %77, %83 : vector<64x128xf32>
    %c2_84 = arith.constant 2 : index
    %c1_85 = arith.constant 1 : index
    %c0_86 = arith.constant 0 : index
    %c0_87 = arith.constant 0 : index
    %85 = vector.load %arg1[%c2_84, %c1_85, %c0_86, %c0_87] : memref<4x9x9x3xbf16, #tpu.memory_space<vmem>>, vector<1x8x8x3xbf16>
    %86 = vector.shape_cast %85 : vector<1x8x8x3xbf16> to vector<8x8x3xbf16>
    %87 = vector.shape_cast %86 : vector<8x8x3xbf16> to vector<64x3xbf16>
    %c12 = arith.constant 12 : index
    %c0_88 = arith.constant 0 : index
    %c0_89 = arith.constant 0 : index
    %88 = vector.load %arg2[%c12, %c0_88, %c0_89] : memref<16x3x128xbf16, #tpu.memory_space<vmem>>, vector<1x3x128xbf16>
    %89 = vector.shape_cast %88 : vector<1x3x128xbf16> to vector<3x128xbf16>
    %cst_90 = arith.constant dense<0.000000e+00> : vector<64x128xf32>
    %90 = tpu.matmul %87, %89, %cst_90 {dimension_numbers = #tpu.dot_dimension_numbers<[1], [0], [0], [1], [0, 0, 1, 1], [], []>} : vector<64x3xbf16>, vector<3x128xbf16>, vector<64x128xf32> -> vector<64x128xf32>
    %91 = arith.addf %84, %90 : vector<64x128xf32>
    %c3_91 = arith.constant 3 : index
    %c1_92 = arith.constant 1 : index
    %c0_93 = arith.constant 0 : index
    %c0_94 = arith.constant 0 : index
    %92 = vector.load %arg1[%c3_91, %c1_92, %c0_93, %c0_94] : memref<4x9x9x3xbf16, #tpu.memory_space<vmem>>, vector<1x8x8x3xbf16>
    %93 = vector.shape_cast %92 : vector<1x8x8x3xbf16> to vector<8x8x3xbf16>
    %94 = vector.shape_cast %93 : vector<8x8x3xbf16> to vector<64x3xbf16>
    %c13 = arith.constant 13 : index
    %c0_95 = arith.constant 0 : index
    %c0_96 = arith.constant 0 : index
    %95 = vector.load %arg2[%c13, %c0_95, %c0_96] : memref<16x3x128xbf16, #tpu.memory_space<vmem>>, vector<1x3x128xbf16>
    %96 = vector.shape_cast %95 : vector<1x3x128xbf16> to vector<3x128xbf16>
    %cst_97 = arith.constant dense<0.000000e+00> : vector<64x128xf32>
    %97 = tpu.matmul %94, %96, %cst_97 {dimension_numbers = #tpu.dot_dimension_numbers<[1], [0], [0], [1], [0, 0, 1, 1], [], []>} : vector<64x3xbf16>, vector<3x128xbf16>, vector<64x128xf32> -> vector<64x128xf32>
    %98 = arith.addf %91, %97 : vector<64x128xf32>
    %c2_98 = arith.constant 2 : index
    %c1_99 = arith.constant 1 : index
    %c1_100 = arith.constant 1 : index
    %c0_101 = arith.constant 0 : index
    %99 = vector.load %arg1[%c2_98, %c1_99, %c1_100, %c0_101] : memref<4x9x9x3xbf16, #tpu.memory_space<vmem>>, vector<1x8x8x3xbf16>
    %100 = vector.shape_cast %99 : vector<1x8x8x3xbf16> to vector<8x8x3xbf16>
    %101 = vector.shape_cast %100 : vector<8x8x3xbf16> to vector<64x3xbf16>
    %c14 = arith.constant 14 : index
    %c0_102 = arith.constant 0 : index
    %c0_103 = arith.constant 0 : index
    %102 = vector.load %arg2[%c14, %c0_102, %c0_103] : memref<16x3x128xbf16, #tpu.memory_space<vmem>>, vector<1x3x128xbf16>
    %103 = vector.shape_cast %102 : vector<1x3x128xbf16> to vector<3x128xbf16>
    %cst_104 = arith.constant dense<0.000000e+00> : vector<64x128xf32>
    %104 = tpu.matmul %101, %103, %cst_104 {dimension_numbers = #tpu.dot_dimension_numbers<[1], [0], [0], [1], [0, 0, 1, 1], [], []>} : vector<64x3xbf16>, vector<3x128xbf16>, vector<64x128xf32> -> vector<64x128xf32>
    %105 = arith.addf %98, %104 : vector<64x128xf32>
    %c3_105 = arith.constant 3 : index
    %c1_106 = arith.constant 1 : index
    %c1_107 = arith.constant 1 : index
    %c0_108 = arith.constant 0 : index
    %106 = vector.load %arg1[%c3_105, %c1_106, %c1_107, %c0_108] : memref<4x9x9x3xbf16, #tpu.memory_space<vmem>>, vector<1x8x8x3xbf16>
    %107 = vector.shape_cast %106 : vector<1x8x8x3xbf16> to vector<8x8x3xbf16>
    %108 = vector.shape_cast %107 : vector<8x8x3xbf16> to vector<64x3xbf16>
    %c15 = arith.constant 15 : index
    %c0_109 = arith.constant 0 : index
    %c0_110 = arith.constant 0 : index
    %109 = vector.load %arg2[%c15, %c0_109, %c0_110] : memref<16x3x128xbf16, #tpu.memory_space<vmem>>, vector<1x3x128xbf16>
    %110 = vector.shape_cast %109 : vector<1x3x128xbf16> to vector<3x128xbf16>
    %cst_111 = arith.constant dense<0.000000e+00> : vector<64x128xf32>
    %111 = tpu.matmul %108, %110, %cst_111 {dimension_numbers = #tpu.dot_dimension_numbers<[1], [0], [0], [1], [0, 0, 1, 1], [], []>} : vector<64x3xbf16>, vector<3x128xbf16>, vector<64x128xf32> -> vector<64x128xf32>
    %112 = arith.addf %105, %111 : vector<64x128xf32>
    %c0_112 = arith.constant 0 : index
    %c0_113 = arith.constant 0 : index
    %113 = vector.load %arg3[%c0_112, %c0_113] : memref<1x128xf32, #tpu.memory_space<vmem>>, vector<1x128xf32>
    %114 = vector.broadcast %113 : vector<1x128xf32> to vector<64x128xf32>
    %115 = arith.addf %112, %114 : vector<64x128xf32>
    %cst_114 = arith.constant 0.000000e+00 : f32
    %116 = vector.broadcast %cst_114 : f32 to vector<64x128xf32>
    %117 = arith.cmpf oge, %115, %116 : vector<64x128xf32>
    %cst_115 = arith.constant 2.000000e-01 : f32
    %118 = vector.broadcast %cst_115 : f32 to vector<64x128xf32>
    %119 = arith.mulf %118, %115 : vector<64x128xf32>
    %120 = arith.select %117, %115, %119 : vector<64x128xi1>, vector<64x128xf32>
    %121 = arith.truncf %120 : vector<64x128xf32> to vector<64x128xbf16>
    %c0_116 = arith.constant 0 : index
    %c0_117 = arith.constant 0 : index
    %c0_118 = arith.constant 0 : index
    %122 = vector.load %arg4[%c0_116, %c0_117, %c0_118] : memref<1x64x128xbf16, #tpu.memory_space<vmem>>, vector<1x64x128xbf16>
    %123 = vector.shape_cast %122 : vector<1x64x128xbf16> to vector<64x128xbf16>
    %124 = vector.shape_cast %121 : vector<64x128xbf16> to vector<1x64x128xbf16>
    tpu.vector_store %arg4[%c0_116, %c0_117, %c0_118], %124 {strides = array<i32>} : memref<1x64x128xbf16, #tpu.memory_space<vmem>>, vector<1x64x128xbf16>,
    return
  }
  func.func @transform_0(%arg0: i32) -> (i32, i32, i32, i32) {
    %c0_i32 = arith.constant 0 : i32
    %c0_i32_0 = arith.constant 0 : i32
    %c0_i32_1 = arith.constant 0 : i32
    %c0_i32_2 = arith.constant 0 : i32
    return %arg0, %c0_i32, %c0_i32_0, %c0_i32_1 : i32, i32, i32, i32
  }
  func.func @transform_1(%arg0: i32) -> (i32, i32, i32) {
    %c0_i32 = arith.constant 0 : i32
    %c0_i32_0 = arith.constant 0 : i32
    %c0_i32_1 = arith.constant 0 : i32
    %c0_i32_2 = arith.constant 0 : i32
    return %c0_i32, %c0_i32_0, %c0_i32_1 : i32, i32, i32
  }
  func.func @transform_2(%arg0: i32) -> (i32, i32) {
    %c0_i32 = arith.constant 0 : i32
    %c0_i32_0 = arith.constant 0 : i32
    %c0_i32_1 = arith.constant 0 : i32
    return %c0_i32, %c0_i32_0 : i32, i32
  }
  func.func @transform_3(%arg0: i32) -> (i32, i32, i32) {
    %c0_i32 = arith.constant 0 : i32
    %c0_i32_0 = arith.constant 0 : i32
    %c0_i32_1 = arith.constant 0 : i32
    return %arg0, %c0_i32, %c0_i32_0 : i32, i32, i32
  }
}

module attributes {stable_mosaic.version = 11 : i64} {
  func.func @_conv_tap_kernel(%arg0: i32, %arg1: memref<4x5x5x8xbf16, #tpu.memory_space<vmem>>, %arg2: memref<16x8x128xbf16, #tpu.memory_space<vmem>>, %arg3: memref<1x16x128xf32, #tpu.memory_space<vmem>>, %arg4: memref<1x2x128xf32, #tpu.memory_space<vmem>>) attributes {dimension_semantics = [#tpu.dimension_semantics<parallel>], iteration_bounds = array<i64: 2>, scalar_prefetch = 0 : i64, scratch_operands = 0 : i64, tpu.core_type = #tpu.core_type<tc>, window_params = [{transform_indices = @transform_0, window_bounds = array<i64: 4, 5, 5, 8>}, {pipeline_mode = #tpu.pipeline_mode<synchronous>, transform_indices = @transform_1, window_bounds = array<i64: 16, 8, 128>}, {transform_indices = @transform_2, window_bounds = array<i64: 1, 16, 128>}, {transform_indices = @transform_3, window_bounds = array<i64: 1, 2, 128>}]} {
    %cst = arith.constant 0.000000e+00 : f32
    %0 = vector.broadcast %cst : f32 to vector<16x128xf32>
    %c0 = arith.constant 0 : index
    %c0_0 = arith.constant 0 : index
    %c0_1 = arith.constant 0 : index
    %c0_2 = arith.constant 0 : index
    %1 = vector.load %arg1[%c0, %c0_0, %c0_1, %c0_2] : memref<4x5x5x8xbf16, #tpu.memory_space<vmem>>, vector<1x4x4x8xbf16>
    %2 = vector.shape_cast %1 : vector<1x4x4x8xbf16> to vector<4x4x8xbf16>
    %3 = vector.shape_cast %2 : vector<4x4x8xbf16> to vector<16x8xbf16>
    %c0_3 = arith.constant 0 : index
    %c0_4 = arith.constant 0 : index
    %c0_5 = arith.constant 0 : index
    %4 = vector.load %arg2[%c0_3, %c0_4, %c0_5] : memref<16x8x128xbf16, #tpu.memory_space<vmem>>, vector<1x8x128xbf16>
    %5 = vector.shape_cast %4 : vector<1x8x128xbf16> to vector<8x128xbf16>
    %cst_6 = arith.constant dense<0.000000e+00> : vector<16x128xf32>
    %6 = tpu.matmul %3, %5, %cst_6 {dimension_numbers = #tpu.dot_dimension_numbers<[1], [0], [0], [1], [0, 0, 1, 1], [], []>} : vector<16x8xbf16>, vector<8x128xbf16>, vector<16x128xf32> -> vector<16x128xf32>
    %7 = arith.addf %0, %6 : vector<16x128xf32>
    %c1 = arith.constant 1 : index
    %c0_7 = arith.constant 0 : index
    %c0_8 = arith.constant 0 : index
    %c0_9 = arith.constant 0 : index
    %8 = vector.load %arg1[%c1, %c0_7, %c0_8, %c0_9] : memref<4x5x5x8xbf16, #tpu.memory_space<vmem>>, vector<1x4x4x8xbf16>
    %9 = vector.shape_cast %8 : vector<1x4x4x8xbf16> to vector<4x4x8xbf16>
    %10 = vector.shape_cast %9 : vector<4x4x8xbf16> to vector<16x8xbf16>
    %c1_10 = arith.constant 1 : index
    %c0_11 = arith.constant 0 : index
    %c0_12 = arith.constant 0 : index
    %11 = vector.load %arg2[%c1_10, %c0_11, %c0_12] : memref<16x8x128xbf16, #tpu.memory_space<vmem>>, vector<1x8x128xbf16>
    %12 = vector.shape_cast %11 : vector<1x8x128xbf16> to vector<8x128xbf16>
    %cst_13 = arith.constant dense<0.000000e+00> : vector<16x128xf32>
    %13 = tpu.matmul %10, %12, %cst_13 {dimension_numbers = #tpu.dot_dimension_numbers<[1], [0], [0], [1], [0, 0, 1, 1], [], []>} : vector<16x8xbf16>, vector<8x128xbf16>, vector<16x128xf32> -> vector<16x128xf32>
    %14 = arith.addf %7, %13 : vector<16x128xf32>
    %c0_14 = arith.constant 0 : index
    %c0_15 = arith.constant 0 : index
    %c1_16 = arith.constant 1 : index
    %c0_17 = arith.constant 0 : index
    %15 = vector.load %arg1[%c0_14, %c0_15, %c1_16, %c0_17] : memref<4x5x5x8xbf16, #tpu.memory_space<vmem>>, vector<1x4x4x8xbf16>
    %16 = vector.shape_cast %15 : vector<1x4x4x8xbf16> to vector<4x4x8xbf16>
    %17 = vector.shape_cast %16 : vector<4x4x8xbf16> to vector<16x8xbf16>
    %c2 = arith.constant 2 : index
    %c0_18 = arith.constant 0 : index
    %c0_19 = arith.constant 0 : index
    %18 = vector.load %arg2[%c2, %c0_18, %c0_19] : memref<16x8x128xbf16, #tpu.memory_space<vmem>>, vector<1x8x128xbf16>
    %19 = vector.shape_cast %18 : vector<1x8x128xbf16> to vector<8x128xbf16>
    %cst_20 = arith.constant dense<0.000000e+00> : vector<16x128xf32>
    %20 = tpu.matmul %17, %19, %cst_20 {dimension_numbers = #tpu.dot_dimension_numbers<[1], [0], [0], [1], [0, 0, 1, 1], [], []>} : vector<16x8xbf16>, vector<8x128xbf16>, vector<16x128xf32> -> vector<16x128xf32>
    %21 = arith.addf %14, %20 : vector<16x128xf32>
    %c1_21 = arith.constant 1 : index
    %c0_22 = arith.constant 0 : index
    %c1_23 = arith.constant 1 : index
    %c0_24 = arith.constant 0 : index
    %22 = vector.load %arg1[%c1_21, %c0_22, %c1_23, %c0_24] : memref<4x5x5x8xbf16, #tpu.memory_space<vmem>>, vector<1x4x4x8xbf16>
    %23 = vector.shape_cast %22 : vector<1x4x4x8xbf16> to vector<4x4x8xbf16>
    %24 = vector.shape_cast %23 : vector<4x4x8xbf16> to vector<16x8xbf16>
    %c3 = arith.constant 3 : index
    %c0_25 = arith.constant 0 : index
    %c0_26 = arith.constant 0 : index
    %25 = vector.load %arg2[%c3, %c0_25, %c0_26] : memref<16x8x128xbf16, #tpu.memory_space<vmem>>, vector<1x8x128xbf16>
    %26 = vector.shape_cast %25 : vector<1x8x128xbf16> to vector<8x128xbf16>
    %cst_27 = arith.constant dense<0.000000e+00> : vector<16x128xf32>
    %27 = tpu.matmul %24, %26, %cst_27 {dimension_numbers = #tpu.dot_dimension_numbers<[1], [0], [0], [1], [0, 0, 1, 1], [], []>} : vector<16x8xbf16>, vector<8x128xbf16>, vector<16x128xf32> -> vector<16x128xf32>
    %28 = arith.addf %21, %27 : vector<16x128xf32>
    %c2_28 = arith.constant 2 : index
    %c0_29 = arith.constant 0 : index
    %c0_30 = arith.constant 0 : index
    %c0_31 = arith.constant 0 : index
    %29 = vector.load %arg1[%c2_28, %c0_29, %c0_30, %c0_31] : memref<4x5x5x8xbf16, #tpu.memory_space<vmem>>, vector<1x4x4x8xbf16>
    %30 = vector.shape_cast %29 : vector<1x4x4x8xbf16> to vector<4x4x8xbf16>
    %31 = vector.shape_cast %30 : vector<4x4x8xbf16> to vector<16x8xbf16>
    %c4 = arith.constant 4 : index
    %c0_32 = arith.constant 0 : index
    %c0_33 = arith.constant 0 : index
    %32 = vector.load %arg2[%c4, %c0_32, %c0_33] : memref<16x8x128xbf16, #tpu.memory_space<vmem>>, vector<1x8x128xbf16>
    %33 = vector.shape_cast %32 : vector<1x8x128xbf16> to vector<8x128xbf16>
    %cst_34 = arith.constant dense<0.000000e+00> : vector<16x128xf32>
    %34 = tpu.matmul %31, %33, %cst_34 {dimension_numbers = #tpu.dot_dimension_numbers<[1], [0], [0], [1], [0, 0, 1, 1], [], []>} : vector<16x8xbf16>, vector<8x128xbf16>, vector<16x128xf32> -> vector<16x128xf32>
    %35 = arith.addf %28, %34 : vector<16x128xf32>
    %c3_35 = arith.constant 3 : index
    %c0_36 = arith.constant 0 : index
    %c0_37 = arith.constant 0 : index
    %c0_38 = arith.constant 0 : index
    %36 = vector.load %arg1[%c3_35, %c0_36, %c0_37, %c0_38] : memref<4x5x5x8xbf16, #tpu.memory_space<vmem>>, vector<1x4x4x8xbf16>
    %37 = vector.shape_cast %36 : vector<1x4x4x8xbf16> to vector<4x4x8xbf16>
    %38 = vector.shape_cast %37 : vector<4x4x8xbf16> to vector<16x8xbf16>
    %c5 = arith.constant 5 : index
    %c0_39 = arith.constant 0 : index
    %c0_40 = arith.constant 0 : index
    %39 = vector.load %arg2[%c5, %c0_39, %c0_40] : memref<16x8x128xbf16, #tpu.memory_space<vmem>>, vector<1x8x128xbf16>
    %40 = vector.shape_cast %39 : vector<1x8x128xbf16> to vector<8x128xbf16>
    %cst_41 = arith.constant dense<0.000000e+00> : vector<16x128xf32>
    %41 = tpu.matmul %38, %40, %cst_41 {dimension_numbers = #tpu.dot_dimension_numbers<[1], [0], [0], [1], [0, 0, 1, 1], [], []>} : vector<16x8xbf16>, vector<8x128xbf16>, vector<16x128xf32> -> vector<16x128xf32>
    %42 = arith.addf %35, %41 : vector<16x128xf32>
    %c2_42 = arith.constant 2 : index
    %c0_43 = arith.constant 0 : index
    %c1_44 = arith.constant 1 : index
    %c0_45 = arith.constant 0 : index
    %43 = vector.load %arg1[%c2_42, %c0_43, %c1_44, %c0_45] : memref<4x5x5x8xbf16, #tpu.memory_space<vmem>>, vector<1x4x4x8xbf16>
    %44 = vector.shape_cast %43 : vector<1x4x4x8xbf16> to vector<4x4x8xbf16>
    %45 = vector.shape_cast %44 : vector<4x4x8xbf16> to vector<16x8xbf16>
    %c6 = arith.constant 6 : index
    %c0_46 = arith.constant 0 : index
    %c0_47 = arith.constant 0 : index
    %46 = vector.load %arg2[%c6, %c0_46, %c0_47] : memref<16x8x128xbf16, #tpu.memory_space<vmem>>, vector<1x8x128xbf16>
    %47 = vector.shape_cast %46 : vector<1x8x128xbf16> to vector<8x128xbf16>
    %cst_48 = arith.constant dense<0.000000e+00> : vector<16x128xf32>
    %48 = tpu.matmul %45, %47, %cst_48 {dimension_numbers = #tpu.dot_dimension_numbers<[1], [0], [0], [1], [0, 0, 1, 1], [], []>} : vector<16x8xbf16>, vector<8x128xbf16>, vector<16x128xf32> -> vector<16x128xf32>
    %49 = arith.addf %42, %48 : vector<16x128xf32>
    %c3_49 = arith.constant 3 : index
    %c0_50 = arith.constant 0 : index
    %c1_51 = arith.constant 1 : index
    %c0_52 = arith.constant 0 : index
    %50 = vector.load %arg1[%c3_49, %c0_50, %c1_51, %c0_52] : memref<4x5x5x8xbf16, #tpu.memory_space<vmem>>, vector<1x4x4x8xbf16>
    %51 = vector.shape_cast %50 : vector<1x4x4x8xbf16> to vector<4x4x8xbf16>
    %52 = vector.shape_cast %51 : vector<4x4x8xbf16> to vector<16x8xbf16>
    %c7 = arith.constant 7 : index
    %c0_53 = arith.constant 0 : index
    %c0_54 = arith.constant 0 : index
    %53 = vector.load %arg2[%c7, %c0_53, %c0_54] : memref<16x8x128xbf16, #tpu.memory_space<vmem>>, vector<1x8x128xbf16>
    %54 = vector.shape_cast %53 : vector<1x8x128xbf16> to vector<8x128xbf16>
    %cst_55 = arith.constant dense<0.000000e+00> : vector<16x128xf32>
    %55 = tpu.matmul %52, %54, %cst_55 {dimension_numbers = #tpu.dot_dimension_numbers<[1], [0], [0], [1], [0, 0, 1, 1], [], []>} : vector<16x8xbf16>, vector<8x128xbf16>, vector<16x128xf32> -> vector<16x128xf32>
    %56 = arith.addf %49, %55 : vector<16x128xf32>
    %c0_56 = arith.constant 0 : index
    %c1_57 = arith.constant 1 : index
    %c0_58 = arith.constant 0 : index
    %c0_59 = arith.constant 0 : index
    %57 = vector.load %arg1[%c0_56, %c1_57, %c0_58, %c0_59] : memref<4x5x5x8xbf16, #tpu.memory_space<vmem>>, vector<1x4x4x8xbf16>
    %58 = vector.shape_cast %57 : vector<1x4x4x8xbf16> to vector<4x4x8xbf16>
    %59 = vector.shape_cast %58 : vector<4x4x8xbf16> to vector<16x8xbf16>
    %c8 = arith.constant 8 : index
    %c0_60 = arith.constant 0 : index
    %c0_61 = arith.constant 0 : index
    %60 = vector.load %arg2[%c8, %c0_60, %c0_61] : memref<16x8x128xbf16, #tpu.memory_space<vmem>>, vector<1x8x128xbf16>
    %61 = vector.shape_cast %60 : vector<1x8x128xbf16> to vector<8x128xbf16>
    %cst_62 = arith.constant dense<0.000000e+00> : vector<16x128xf32>
    %62 = tpu.matmul %59, %61, %cst_62 {dimension_numbers = #tpu.dot_dimension_numbers<[1], [0], [0], [1], [0, 0, 1, 1], [], []>} : vector<16x8xbf16>, vector<8x128xbf16>, vector<16x128xf32> -> vector<16x128xf32>
    %63 = arith.addf %56, %62 : vector<16x128xf32>
    %c1_63 = arith.constant 1 : index
    %c1_64 = arith.constant 1 : index
    %c0_65 = arith.constant 0 : index
    %c0_66 = arith.constant 0 : index
    %64 = vector.load %arg1[%c1_63, %c1_64, %c0_65, %c0_66] : memref<4x5x5x8xbf16, #tpu.memory_space<vmem>>, vector<1x4x4x8xbf16>
    %65 = vector.shape_cast %64 : vector<1x4x4x8xbf16> to vector<4x4x8xbf16>
    %66 = vector.shape_cast %65 : vector<4x4x8xbf16> to vector<16x8xbf16>
    %c9 = arith.constant 9 : index
    %c0_67 = arith.constant 0 : index
    %c0_68 = arith.constant 0 : index
    %67 = vector.load %arg2[%c9, %c0_67, %c0_68] : memref<16x8x128xbf16, #tpu.memory_space<vmem>>, vector<1x8x128xbf16>
    %68 = vector.shape_cast %67 : vector<1x8x128xbf16> to vector<8x128xbf16>
    %cst_69 = arith.constant dense<0.000000e+00> : vector<16x128xf32>
    %69 = tpu.matmul %66, %68, %cst_69 {dimension_numbers = #tpu.dot_dimension_numbers<[1], [0], [0], [1], [0, 0, 1, 1], [], []>} : vector<16x8xbf16>, vector<8x128xbf16>, vector<16x128xf32> -> vector<16x128xf32>
    %70 = arith.addf %63, %69 : vector<16x128xf32>
    %c0_70 = arith.constant 0 : index
    %c1_71 = arith.constant 1 : index
    %c1_72 = arith.constant 1 : index
    %c0_73 = arith.constant 0 : index
    %71 = vector.load %arg1[%c0_70, %c1_71, %c1_72, %c0_73] : memref<4x5x5x8xbf16, #tpu.memory_space<vmem>>, vector<1x4x4x8xbf16>
    %72 = vector.shape_cast %71 : vector<1x4x4x8xbf16> to vector<4x4x8xbf16>
    %73 = vector.shape_cast %72 : vector<4x4x8xbf16> to vector<16x8xbf16>
    %c10 = arith.constant 10 : index
    %c0_74 = arith.constant 0 : index
    %c0_75 = arith.constant 0 : index
    %74 = vector.load %arg2[%c10, %c0_74, %c0_75] : memref<16x8x128xbf16, #tpu.memory_space<vmem>>, vector<1x8x128xbf16>
    %75 = vector.shape_cast %74 : vector<1x8x128xbf16> to vector<8x128xbf16>
    %cst_76 = arith.constant dense<0.000000e+00> : vector<16x128xf32>
    %76 = tpu.matmul %73, %75, %cst_76 {dimension_numbers = #tpu.dot_dimension_numbers<[1], [0], [0], [1], [0, 0, 1, 1], [], []>} : vector<16x8xbf16>, vector<8x128xbf16>, vector<16x128xf32> -> vector<16x128xf32>
    %77 = arith.addf %70, %76 : vector<16x128xf32>
    %c1_77 = arith.constant 1 : index
    %c1_78 = arith.constant 1 : index
    %c1_79 = arith.constant 1 : index
    %c0_80 = arith.constant 0 : index
    %78 = vector.load %arg1[%c1_77, %c1_78, %c1_79, %c0_80] : memref<4x5x5x8xbf16, #tpu.memory_space<vmem>>, vector<1x4x4x8xbf16>
    %79 = vector.shape_cast %78 : vector<1x4x4x8xbf16> to vector<4x4x8xbf16>
    %80 = vector.shape_cast %79 : vector<4x4x8xbf16> to vector<16x8xbf16>
    %c11 = arith.constant 11 : index
    %c0_81 = arith.constant 0 : index
    %c0_82 = arith.constant 0 : index
    %81 = vector.load %arg2[%c11, %c0_81, %c0_82] : memref<16x8x128xbf16, #tpu.memory_space<vmem>>, vector<1x8x128xbf16>
    %82 = vector.shape_cast %81 : vector<1x8x128xbf16> to vector<8x128xbf16>
    %cst_83 = arith.constant dense<0.000000e+00> : vector<16x128xf32>
    %83 = tpu.matmul %80, %82, %cst_83 {dimension_numbers = #tpu.dot_dimension_numbers<[1], [0], [0], [1], [0, 0, 1, 1], [], []>} : vector<16x8xbf16>, vector<8x128xbf16>, vector<16x128xf32> -> vector<16x128xf32>
    %84 = arith.addf %77, %83 : vector<16x128xf32>
    %c2_84 = arith.constant 2 : index
    %c1_85 = arith.constant 1 : index
    %c0_86 = arith.constant 0 : index
    %c0_87 = arith.constant 0 : index
    %85 = vector.load %arg1[%c2_84, %c1_85, %c0_86, %c0_87] : memref<4x5x5x8xbf16, #tpu.memory_space<vmem>>, vector<1x4x4x8xbf16>
    %86 = vector.shape_cast %85 : vector<1x4x4x8xbf16> to vector<4x4x8xbf16>
    %87 = vector.shape_cast %86 : vector<4x4x8xbf16> to vector<16x8xbf16>
    %c12 = arith.constant 12 : index
    %c0_88 = arith.constant 0 : index
    %c0_89 = arith.constant 0 : index
    %88 = vector.load %arg2[%c12, %c0_88, %c0_89] : memref<16x8x128xbf16, #tpu.memory_space<vmem>>, vector<1x8x128xbf16>
    %89 = vector.shape_cast %88 : vector<1x8x128xbf16> to vector<8x128xbf16>
    %cst_90 = arith.constant dense<0.000000e+00> : vector<16x128xf32>
    %90 = tpu.matmul %87, %89, %cst_90 {dimension_numbers = #tpu.dot_dimension_numbers<[1], [0], [0], [1], [0, 0, 1, 1], [], []>} : vector<16x8xbf16>, vector<8x128xbf16>, vector<16x128xf32> -> vector<16x128xf32>
    %91 = arith.addf %84, %90 : vector<16x128xf32>
    %c3_91 = arith.constant 3 : index
    %c1_92 = arith.constant 1 : index
    %c0_93 = arith.constant 0 : index
    %c0_94 = arith.constant 0 : index
    %92 = vector.load %arg1[%c3_91, %c1_92, %c0_93, %c0_94] : memref<4x5x5x8xbf16, #tpu.memory_space<vmem>>, vector<1x4x4x8xbf16>
    %93 = vector.shape_cast %92 : vector<1x4x4x8xbf16> to vector<4x4x8xbf16>
    %94 = vector.shape_cast %93 : vector<4x4x8xbf16> to vector<16x8xbf16>
    %c13 = arith.constant 13 : index
    %c0_95 = arith.constant 0 : index
    %c0_96 = arith.constant 0 : index
    %95 = vector.load %arg2[%c13, %c0_95, %c0_96] : memref<16x8x128xbf16, #tpu.memory_space<vmem>>, vector<1x8x128xbf16>
    %96 = vector.shape_cast %95 : vector<1x8x128xbf16> to vector<8x128xbf16>
    %cst_97 = arith.constant dense<0.000000e+00> : vector<16x128xf32>
    %97 = tpu.matmul %94, %96, %cst_97 {dimension_numbers = #tpu.dot_dimension_numbers<[1], [0], [0], [1], [0, 0, 1, 1], [], []>} : vector<16x8xbf16>, vector<8x128xbf16>, vector<16x128xf32> -> vector<16x128xf32>
    %98 = arith.addf %91, %97 : vector<16x128xf32>
    %c2_98 = arith.constant 2 : index
    %c1_99 = arith.constant 1 : index
    %c1_100 = arith.constant 1 : index
    %c0_101 = arith.constant 0 : index
    %99 = vector.load %arg1[%c2_98, %c1_99, %c1_100, %c0_101] : memref<4x5x5x8xbf16, #tpu.memory_space<vmem>>, vector<1x4x4x8xbf16>
    %100 = vector.shape_cast %99 : vector<1x4x4x8xbf16> to vector<4x4x8xbf16>
    %101 = vector.shape_cast %100 : vector<4x4x8xbf16> to vector<16x8xbf16>
    %c14 = arith.constant 14 : index
    %c0_102 = arith.constant 0 : index
    %c0_103 = arith.constant 0 : index
    %102 = vector.load %arg2[%c14, %c0_102, %c0_103] : memref<16x8x128xbf16, #tpu.memory_space<vmem>>, vector<1x8x128xbf16>
    %103 = vector.shape_cast %102 : vector<1x8x128xbf16> to vector<8x128xbf16>
    %cst_104 = arith.constant dense<0.000000e+00> : vector<16x128xf32>
    %104 = tpu.matmul %101, %103, %cst_104 {dimension_numbers = #tpu.dot_dimension_numbers<[1], [0], [0], [1], [0, 0, 1, 1], [], []>} : vector<16x8xbf16>, vector<8x128xbf16>, vector<16x128xf32> -> vector<16x128xf32>
    %105 = arith.addf %98, %104 : vector<16x128xf32>
    %c3_105 = arith.constant 3 : index
    %c1_106 = arith.constant 1 : index
    %c1_107 = arith.constant 1 : index
    %c0_108 = arith.constant 0 : index
    %106 = vector.load %arg1[%c3_105, %c1_106, %c1_107, %c0_108] : memref<4x5x5x8xbf16, #tpu.memory_space<vmem>>, vector<1x4x4x8xbf16>
    %107 = vector.shape_cast %106 : vector<1x4x4x8xbf16> to vector<4x4x8xbf16>
    %108 = vector.shape_cast %107 : vector<4x4x8xbf16> to vector<16x8xbf16>
    %c15 = arith.constant 15 : index
    %c0_109 = arith.constant 0 : index
    %c0_110 = arith.constant 0 : index
    %109 = vector.load %arg2[%c15, %c0_109, %c0_110] : memref<16x8x128xbf16, #tpu.memory_space<vmem>>, vector<1x8x128xbf16>
    %110 = vector.shape_cast %109 : vector<1x8x128xbf16> to vector<8x128xbf16>
    %cst_111 = arith.constant dense<0.000000e+00> : vector<16x128xf32>
    %111 = tpu.matmul %108, %110, %cst_111 {dimension_numbers = #tpu.dot_dimension_numbers<[1], [0], [0], [1], [0, 0, 1, 1], [], []>} : vector<16x8xbf16>, vector<8x128xbf16>, vector<16x128xf32> -> vector<16x128xf32>
    %112 = arith.addf %105, %111 : vector<16x128xf32>
    %c0_112 = arith.constant 0 : index
    %c0_113 = arith.constant 0 : index
    %c0_114 = arith.constant 0 : index
    %113 = vector.load %arg3[%c0_112, %c0_113, %c0_114] : memref<1x16x128xf32, #tpu.memory_space<vmem>>, vector<1x16x128xf32>
    %114 = vector.shape_cast %113 : vector<1x16x128xf32> to vector<16x128xf32>
    %115 = vector.shape_cast %112 : vector<16x128xf32> to vector<1x16x128xf32>
    tpu.vector_store %arg3[%c0_112, %c0_113, %c0_114], %115 {strides = array<i32>} : memref<1x16x128xf32, #tpu.memory_space<vmem>>, vector<1x16x128xf32>,
    %cst_115 = arith.constant dense<0.000000e+00> : vector<128xf32>
    %116 = vector.multi_reduction <add>, %112, %cst_115 [0] : vector<16x128xf32> to vector<128xf32>
    %117 = vector.shape_cast %116 : vector<128xf32> to vector<1x128xf32>
    %118 = arith.mulf %112, %112 : vector<16x128xf32>
    %cst_116 = arith.constant dense<0.000000e+00> : vector<128xf32>
    %119 = vector.multi_reduction <add>, %118, %cst_116 [0] : vector<16x128xf32> to vector<128xf32>
    %120 = vector.shape_cast %119 : vector<128xf32> to vector<1x128xf32>
    %121 = tpu.concatenate %117, %120 in 0 : vector<1x128xf32>, vector<1x128xf32> -> vector<2x128xf32>
    %c0_117 = arith.constant 0 : index
    %c0_118 = arith.constant 0 : index
    %c0_119 = arith.constant 0 : index
    %122 = vector.load %arg4[%c0_117, %c0_118, %c0_119] : memref<1x2x128xf32, #tpu.memory_space<vmem>>, vector<1x2x128xf32>
    %123 = vector.shape_cast %122 : vector<1x2x128xf32> to vector<2x128xf32>
    %124 = vector.shape_cast %121 : vector<2x128xf32> to vector<1x2x128xf32>
    tpu.vector_store %arg4[%c0_117, %c0_118, %c0_119], %124 {strides = array<i32>} : memref<1x2x128xf32, #tpu.memory_space<vmem>>, vector<1x2x128xf32>,
    return
  }
  func.func @transform_0(%arg0: i32) -> (i32, i32, i32, i32) {
    %c0_i32 = arith.constant 0 : i32
    %c0_i32_0 = arith.constant 0 : i32
    %c0_i32_1 = arith.constant 0 : i32
    %c0_i32_2 = arith.constant 0 : i32
    return %arg0, %c0_i32, %c0_i32_0, %c0_i32_1 : i32, i32, i32, i32
  }
  func.func @transform_1(%arg0: i32) -> (i32, i32, i32) {
    %c0_i32 = arith.constant 0 : i32
    %c0_i32_0 = arith.constant 0 : i32
    %c0_i32_1 = arith.constant 0 : i32
    %c0_i32_2 = arith.constant 0 : i32
    return %c0_i32, %c0_i32_0, %c0_i32_1 : i32, i32, i32
  }
  func.func @transform_2(%arg0: i32) -> (i32, i32, i32) {
    %c0_i32 = arith.constant 0 : i32
    %c0_i32_0 = arith.constant 0 : i32
    %c0_i32_1 = arith.constant 0 : i32
    return %arg0, %c0_i32, %c0_i32_0 : i32, i32, i32
  }
  func.func @transform_3(%arg0: i32) -> (i32, i32, i32) {
    %c0_i32 = arith.constant 0 : i32
    %c0_i32_0 = arith.constant 0 : i32
    %c0_i32_1 = arith.constant 0 : i32
    return %arg0, %c0_i32, %c0_i32_0 : i32, i32, i32
  }
}

module attributes {stable_mosaic.version = 11 : i64} {
  func.func @_conv_tap_kernel(%arg0: i32, %arg1: memref<4x3x3x16xbf16, #tpu.memory_space<vmem>>, %arg2: memref<16x16x128xbf16, #tpu.memory_space<vmem>>, %arg3: memref<1x4x128xf32, #tpu.memory_space<vmem>>, %arg4: memref<1x2x128xf32, #tpu.memory_space<vmem>>) attributes {dimension_semantics = [#tpu.dimension_semantics<parallel>], iteration_bounds = array<i64: 2>, scalar_prefetch = 0 : i64, scratch_operands = 0 : i64, tpu.core_type = #tpu.core_type<tc>, window_params = [{transform_indices = @transform_0, window_bounds = array<i64: 4, 3, 3, 16>}, {pipeline_mode = #tpu.pipeline_mode<synchronous>, transform_indices = @transform_1, window_bounds = array<i64: 16, 16, 128>}, {transform_indices = @transform_2, window_bounds = array<i64: 1, 4, 128>}, {transform_indices = @transform_3, window_bounds = array<i64: 1, 2, 128>}]} {
    %cst = arith.constant 0.000000e+00 : f32
    %0 = vector.broadcast %cst : f32 to vector<4x128xf32>
    %c0 = arith.constant 0 : index
    %c0_0 = arith.constant 0 : index
    %c0_1 = arith.constant 0 : index
    %c0_2 = arith.constant 0 : index
    %1 = vector.load %arg1[%c0, %c0_0, %c0_1, %c0_2] : memref<4x3x3x16xbf16, #tpu.memory_space<vmem>>, vector<1x2x2x16xbf16>
    %2 = vector.shape_cast %1 : vector<1x2x2x16xbf16> to vector<2x2x16xbf16>
    %3 = vector.shape_cast %2 : vector<2x2x16xbf16> to vector<4x16xbf16>
    %c0_3 = arith.constant 0 : index
    %c0_4 = arith.constant 0 : index
    %c0_5 = arith.constant 0 : index
    %4 = vector.load %arg2[%c0_3, %c0_4, %c0_5] : memref<16x16x128xbf16, #tpu.memory_space<vmem>>, vector<1x16x128xbf16>
    %5 = vector.shape_cast %4 : vector<1x16x128xbf16> to vector<16x128xbf16>
    %cst_6 = arith.constant dense<0.000000e+00> : vector<4x128xf32>
    %6 = tpu.matmul %3, %5, %cst_6 {dimension_numbers = #tpu.dot_dimension_numbers<[1], [0], [0], [1], [0, 0, 1, 1], [], []>} : vector<4x16xbf16>, vector<16x128xbf16>, vector<4x128xf32> -> vector<4x128xf32>
    %7 = arith.addf %0, %6 : vector<4x128xf32>
    %c1 = arith.constant 1 : index
    %c0_7 = arith.constant 0 : index
    %c0_8 = arith.constant 0 : index
    %c0_9 = arith.constant 0 : index
    %8 = vector.load %arg1[%c1, %c0_7, %c0_8, %c0_9] : memref<4x3x3x16xbf16, #tpu.memory_space<vmem>>, vector<1x2x2x16xbf16>
    %9 = vector.shape_cast %8 : vector<1x2x2x16xbf16> to vector<2x2x16xbf16>
    %10 = vector.shape_cast %9 : vector<2x2x16xbf16> to vector<4x16xbf16>
    %c1_10 = arith.constant 1 : index
    %c0_11 = arith.constant 0 : index
    %c0_12 = arith.constant 0 : index
    %11 = vector.load %arg2[%c1_10, %c0_11, %c0_12] : memref<16x16x128xbf16, #tpu.memory_space<vmem>>, vector<1x16x128xbf16>
    %12 = vector.shape_cast %11 : vector<1x16x128xbf16> to vector<16x128xbf16>
    %cst_13 = arith.constant dense<0.000000e+00> : vector<4x128xf32>
    %13 = tpu.matmul %10, %12, %cst_13 {dimension_numbers = #tpu.dot_dimension_numbers<[1], [0], [0], [1], [0, 0, 1, 1], [], []>} : vector<4x16xbf16>, vector<16x128xbf16>, vector<4x128xf32> -> vector<4x128xf32>
    %14 = arith.addf %7, %13 : vector<4x128xf32>
    %c0_14 = arith.constant 0 : index
    %c0_15 = arith.constant 0 : index
    %c1_16 = arith.constant 1 : index
    %c0_17 = arith.constant 0 : index
    %15 = vector.load %arg1[%c0_14, %c0_15, %c1_16, %c0_17] : memref<4x3x3x16xbf16, #tpu.memory_space<vmem>>, vector<1x2x2x16xbf16>
    %16 = vector.shape_cast %15 : vector<1x2x2x16xbf16> to vector<2x2x16xbf16>
    %17 = vector.shape_cast %16 : vector<2x2x16xbf16> to vector<4x16xbf16>
    %c2 = arith.constant 2 : index
    %c0_18 = arith.constant 0 : index
    %c0_19 = arith.constant 0 : index
    %18 = vector.load %arg2[%c2, %c0_18, %c0_19] : memref<16x16x128xbf16, #tpu.memory_space<vmem>>, vector<1x16x128xbf16>
    %19 = vector.shape_cast %18 : vector<1x16x128xbf16> to vector<16x128xbf16>
    %cst_20 = arith.constant dense<0.000000e+00> : vector<4x128xf32>
    %20 = tpu.matmul %17, %19, %cst_20 {dimension_numbers = #tpu.dot_dimension_numbers<[1], [0], [0], [1], [0, 0, 1, 1], [], []>} : vector<4x16xbf16>, vector<16x128xbf16>, vector<4x128xf32> -> vector<4x128xf32>
    %21 = arith.addf %14, %20 : vector<4x128xf32>
    %c1_21 = arith.constant 1 : index
    %c0_22 = arith.constant 0 : index
    %c1_23 = arith.constant 1 : index
    %c0_24 = arith.constant 0 : index
    %22 = vector.load %arg1[%c1_21, %c0_22, %c1_23, %c0_24] : memref<4x3x3x16xbf16, #tpu.memory_space<vmem>>, vector<1x2x2x16xbf16>
    %23 = vector.shape_cast %22 : vector<1x2x2x16xbf16> to vector<2x2x16xbf16>
    %24 = vector.shape_cast %23 : vector<2x2x16xbf16> to vector<4x16xbf16>
    %c3 = arith.constant 3 : index
    %c0_25 = arith.constant 0 : index
    %c0_26 = arith.constant 0 : index
    %25 = vector.load %arg2[%c3, %c0_25, %c0_26] : memref<16x16x128xbf16, #tpu.memory_space<vmem>>, vector<1x16x128xbf16>
    %26 = vector.shape_cast %25 : vector<1x16x128xbf16> to vector<16x128xbf16>
    %cst_27 = arith.constant dense<0.000000e+00> : vector<4x128xf32>
    %27 = tpu.matmul %24, %26, %cst_27 {dimension_numbers = #tpu.dot_dimension_numbers<[1], [0], [0], [1], [0, 0, 1, 1], [], []>} : vector<4x16xbf16>, vector<16x128xbf16>, vector<4x128xf32> -> vector<4x128xf32>
    %28 = arith.addf %21, %27 : vector<4x128xf32>
    %c2_28 = arith.constant 2 : index
    %c0_29 = arith.constant 0 : index
    %c0_30 = arith.constant 0 : index
    %c0_31 = arith.constant 0 : index
    %29 = vector.load %arg1[%c2_28, %c0_29, %c0_30, %c0_31] : memref<4x3x3x16xbf16, #tpu.memory_space<vmem>>, vector<1x2x2x16xbf16>
    %30 = vector.shape_cast %29 : vector<1x2x2x16xbf16> to vector<2x2x16xbf16>
    %31 = vector.shape_cast %30 : vector<2x2x16xbf16> to vector<4x16xbf16>
    %c4 = arith.constant 4 : index
    %c0_32 = arith.constant 0 : index
    %c0_33 = arith.constant 0 : index
    %32 = vector.load %arg2[%c4, %c0_32, %c0_33] : memref<16x16x128xbf16, #tpu.memory_space<vmem>>, vector<1x16x128xbf16>
    %33 = vector.shape_cast %32 : vector<1x16x128xbf16> to vector<16x128xbf16>
    %cst_34 = arith.constant dense<0.000000e+00> : vector<4x128xf32>
    %34 = tpu.matmul %31, %33, %cst_34 {dimension_numbers = #tpu.dot_dimension_numbers<[1], [0], [0], [1], [0, 0, 1, 1], [], []>} : vector<4x16xbf16>, vector<16x128xbf16>, vector<4x128xf32> -> vector<4x128xf32>
    %35 = arith.addf %28, %34 : vector<4x128xf32>
    %c3_35 = arith.constant 3 : index
    %c0_36 = arith.constant 0 : index
    %c0_37 = arith.constant 0 : index
    %c0_38 = arith.constant 0 : index
    %36 = vector.load %arg1[%c3_35, %c0_36, %c0_37, %c0_38] : memref<4x3x3x16xbf16, #tpu.memory_space<vmem>>, vector<1x2x2x16xbf16>
    %37 = vector.shape_cast %36 : vector<1x2x2x16xbf16> to vector<2x2x16xbf16>
    %38 = vector.shape_cast %37 : vector<2x2x16xbf16> to vector<4x16xbf16>
    %c5 = arith.constant 5 : index
    %c0_39 = arith.constant 0 : index
    %c0_40 = arith.constant 0 : index
    %39 = vector.load %arg2[%c5, %c0_39, %c0_40] : memref<16x16x128xbf16, #tpu.memory_space<vmem>>, vector<1x16x128xbf16>
    %40 = vector.shape_cast %39 : vector<1x16x128xbf16> to vector<16x128xbf16>
    %cst_41 = arith.constant dense<0.000000e+00> : vector<4x128xf32>
    %41 = tpu.matmul %38, %40, %cst_41 {dimension_numbers = #tpu.dot_dimension_numbers<[1], [0], [0], [1], [0, 0, 1, 1], [], []>} : vector<4x16xbf16>, vector<16x128xbf16>, vector<4x128xf32> -> vector<4x128xf32>
    %42 = arith.addf %35, %41 : vector<4x128xf32>
    %c2_42 = arith.constant 2 : index
    %c0_43 = arith.constant 0 : index
    %c1_44 = arith.constant 1 : index
    %c0_45 = arith.constant 0 : index
    %43 = vector.load %arg1[%c2_42, %c0_43, %c1_44, %c0_45] : memref<4x3x3x16xbf16, #tpu.memory_space<vmem>>, vector<1x2x2x16xbf16>
    %44 = vector.shape_cast %43 : vector<1x2x2x16xbf16> to vector<2x2x16xbf16>
    %45 = vector.shape_cast %44 : vector<2x2x16xbf16> to vector<4x16xbf16>
    %c6 = arith.constant 6 : index
    %c0_46 = arith.constant 0 : index
    %c0_47 = arith.constant 0 : index
    %46 = vector.load %arg2[%c6, %c0_46, %c0_47] : memref<16x16x128xbf16, #tpu.memory_space<vmem>>, vector<1x16x128xbf16>
    %47 = vector.shape_cast %46 : vector<1x16x128xbf16> to vector<16x128xbf16>
    %cst_48 = arith.constant dense<0.000000e+00> : vector<4x128xf32>
    %48 = tpu.matmul %45, %47, %cst_48 {dimension_numbers = #tpu.dot_dimension_numbers<[1], [0], [0], [1], [0, 0, 1, 1], [], []>} : vector<4x16xbf16>, vector<16x128xbf16>, vector<4x128xf32> -> vector<4x128xf32>
    %49 = arith.addf %42, %48 : vector<4x128xf32>
    %c3_49 = arith.constant 3 : index
    %c0_50 = arith.constant 0 : index
    %c1_51 = arith.constant 1 : index
    %c0_52 = arith.constant 0 : index
    %50 = vector.load %arg1[%c3_49, %c0_50, %c1_51, %c0_52] : memref<4x3x3x16xbf16, #tpu.memory_space<vmem>>, vector<1x2x2x16xbf16>
    %51 = vector.shape_cast %50 : vector<1x2x2x16xbf16> to vector<2x2x16xbf16>
    %52 = vector.shape_cast %51 : vector<2x2x16xbf16> to vector<4x16xbf16>
    %c7 = arith.constant 7 : index
    %c0_53 = arith.constant 0 : index
    %c0_54 = arith.constant 0 : index
    %53 = vector.load %arg2[%c7, %c0_53, %c0_54] : memref<16x16x128xbf16, #tpu.memory_space<vmem>>, vector<1x16x128xbf16>
    %54 = vector.shape_cast %53 : vector<1x16x128xbf16> to vector<16x128xbf16>
    %cst_55 = arith.constant dense<0.000000e+00> : vector<4x128xf32>
    %55 = tpu.matmul %52, %54, %cst_55 {dimension_numbers = #tpu.dot_dimension_numbers<[1], [0], [0], [1], [0, 0, 1, 1], [], []>} : vector<4x16xbf16>, vector<16x128xbf16>, vector<4x128xf32> -> vector<4x128xf32>
    %56 = arith.addf %49, %55 : vector<4x128xf32>
    %c0_56 = arith.constant 0 : index
    %c1_57 = arith.constant 1 : index
    %c0_58 = arith.constant 0 : index
    %c0_59 = arith.constant 0 : index
    %57 = vector.load %arg1[%c0_56, %c1_57, %c0_58, %c0_59] : memref<4x3x3x16xbf16, #tpu.memory_space<vmem>>, vector<1x2x2x16xbf16>
    %58 = vector.shape_cast %57 : vector<1x2x2x16xbf16> to vector<2x2x16xbf16>
    %59 = vector.shape_cast %58 : vector<2x2x16xbf16> to vector<4x16xbf16>
    %c8 = arith.constant 8 : index
    %c0_60 = arith.constant 0 : index
    %c0_61 = arith.constant 0 : index
    %60 = vector.load %arg2[%c8, %c0_60, %c0_61] : memref<16x16x128xbf16, #tpu.memory_space<vmem>>, vector<1x16x128xbf16>
    %61 = vector.shape_cast %60 : vector<1x16x128xbf16> to vector<16x128xbf16>
    %cst_62 = arith.constant dense<0.000000e+00> : vector<4x128xf32>
    %62 = tpu.matmul %59, %61, %cst_62 {dimension_numbers = #tpu.dot_dimension_numbers<[1], [0], [0], [1], [0, 0, 1, 1], [], []>} : vector<4x16xbf16>, vector<16x128xbf16>, vector<4x128xf32> -> vector<4x128xf32>
    %63 = arith.addf %56, %62 : vector<4x128xf32>
    %c1_63 = arith.constant 1 : index
    %c1_64 = arith.constant 1 : index
    %c0_65 = arith.constant 0 : index
    %c0_66 = arith.constant 0 : index
    %64 = vector.load %arg1[%c1_63, %c1_64, %c0_65, %c0_66] : memref<4x3x3x16xbf16, #tpu.memory_space<vmem>>, vector<1x2x2x16xbf16>
    %65 = vector.shape_cast %64 : vector<1x2x2x16xbf16> to vector<2x2x16xbf16>
    %66 = vector.shape_cast %65 : vector<2x2x16xbf16> to vector<4x16xbf16>
    %c9 = arith.constant 9 : index
    %c0_67 = arith.constant 0 : index
    %c0_68 = arith.constant 0 : index
    %67 = vector.load %arg2[%c9, %c0_67, %c0_68] : memref<16x16x128xbf16, #tpu.memory_space<vmem>>, vector<1x16x128xbf16>
    %68 = vector.shape_cast %67 : vector<1x16x128xbf16> to vector<16x128xbf16>
    %cst_69 = arith.constant dense<0.000000e+00> : vector<4x128xf32>
    %69 = tpu.matmul %66, %68, %cst_69 {dimension_numbers = #tpu.dot_dimension_numbers<[1], [0], [0], [1], [0, 0, 1, 1], [], []>} : vector<4x16xbf16>, vector<16x128xbf16>, vector<4x128xf32> -> vector<4x128xf32>
    %70 = arith.addf %63, %69 : vector<4x128xf32>
    %c0_70 = arith.constant 0 : index
    %c1_71 = arith.constant 1 : index
    %c1_72 = arith.constant 1 : index
    %c0_73 = arith.constant 0 : index
    %71 = vector.load %arg1[%c0_70, %c1_71, %c1_72, %c0_73] : memref<4x3x3x16xbf16, #tpu.memory_space<vmem>>, vector<1x2x2x16xbf16>
    %72 = vector.shape_cast %71 : vector<1x2x2x16xbf16> to vector<2x2x16xbf16>
    %73 = vector.shape_cast %72 : vector<2x2x16xbf16> to vector<4x16xbf16>
    %c10 = arith.constant 10 : index
    %c0_74 = arith.constant 0 : index
    %c0_75 = arith.constant 0 : index
    %74 = vector.load %arg2[%c10, %c0_74, %c0_75] : memref<16x16x128xbf16, #tpu.memory_space<vmem>>, vector<1x16x128xbf16>
    %75 = vector.shape_cast %74 : vector<1x16x128xbf16> to vector<16x128xbf16>
    %cst_76 = arith.constant dense<0.000000e+00> : vector<4x128xf32>
    %76 = tpu.matmul %73, %75, %cst_76 {dimension_numbers = #tpu.dot_dimension_numbers<[1], [0], [0], [1], [0, 0, 1, 1], [], []>} : vector<4x16xbf16>, vector<16x128xbf16>, vector<4x128xf32> -> vector<4x128xf32>
    %77 = arith.addf %70, %76 : vector<4x128xf32>
    %c1_77 = arith.constant 1 : index
    %c1_78 = arith.constant 1 : index
    %c1_79 = arith.constant 1 : index
    %c0_80 = arith.constant 0 : index
    %78 = vector.load %arg1[%c1_77, %c1_78, %c1_79, %c0_80] : memref<4x3x3x16xbf16, #tpu.memory_space<vmem>>, vector<1x2x2x16xbf16>
    %79 = vector.shape_cast %78 : vector<1x2x2x16xbf16> to vector<2x2x16xbf16>
    %80 = vector.shape_cast %79 : vector<2x2x16xbf16> to vector<4x16xbf16>
    %c11 = arith.constant 11 : index
    %c0_81 = arith.constant 0 : index
    %c0_82 = arith.constant 0 : index
    %81 = vector.load %arg2[%c11, %c0_81, %c0_82] : memref<16x16x128xbf16, #tpu.memory_space<vmem>>, vector<1x16x128xbf16>
    %82 = vector.shape_cast %81 : vector<1x16x128xbf16> to vector<16x128xbf16>
    %cst_83 = arith.constant dense<0.000000e+00> : vector<4x128xf32>
    %83 = tpu.matmul %80, %82, %cst_83 {dimension_numbers = #tpu.dot_dimension_numbers<[1], [0], [0], [1], [0, 0, 1, 1], [], []>} : vector<4x16xbf16>, vector<16x128xbf16>, vector<4x128xf32> -> vector<4x128xf32>
    %84 = arith.addf %77, %83 : vector<4x128xf32>
    %c2_84 = arith.constant 2 : index
    %c1_85 = arith.constant 1 : index
    %c0_86 = arith.constant 0 : index
    %c0_87 = arith.constant 0 : index
    %85 = vector.load %arg1[%c2_84, %c1_85, %c0_86, %c0_87] : memref<4x3x3x16xbf16, #tpu.memory_space<vmem>>, vector<1x2x2x16xbf16>
    %86 = vector.shape_cast %85 : vector<1x2x2x16xbf16> to vector<2x2x16xbf16>
    %87 = vector.shape_cast %86 : vector<2x2x16xbf16> to vector<4x16xbf16>
    %c12 = arith.constant 12 : index
    %c0_88 = arith.constant 0 : index
    %c0_89 = arith.constant 0 : index
    %88 = vector.load %arg2[%c12, %c0_88, %c0_89] : memref<16x16x128xbf16, #tpu.memory_space<vmem>>, vector<1x16x128xbf16>
    %89 = vector.shape_cast %88 : vector<1x16x128xbf16> to vector<16x128xbf16>
    %cst_90 = arith.constant dense<0.000000e+00> : vector<4x128xf32>
    %90 = tpu.matmul %87, %89, %cst_90 {dimension_numbers = #tpu.dot_dimension_numbers<[1], [0], [0], [1], [0, 0, 1, 1], [], []>} : vector<4x16xbf16>, vector<16x128xbf16>, vector<4x128xf32> -> vector<4x128xf32>
    %91 = arith.addf %84, %90 : vector<4x128xf32>
    %c3_91 = arith.constant 3 : index
    %c1_92 = arith.constant 1 : index
    %c0_93 = arith.constant 0 : index
    %c0_94 = arith.constant 0 : index
    %92 = vector.load %arg1[%c3_91, %c1_92, %c0_93, %c0_94] : memref<4x3x3x16xbf16, #tpu.memory_space<vmem>>, vector<1x2x2x16xbf16>
    %93 = vector.shape_cast %92 : vector<1x2x2x16xbf16> to vector<2x2x16xbf16>
    %94 = vector.shape_cast %93 : vector<2x2x16xbf16> to vector<4x16xbf16>
    %c13 = arith.constant 13 : index
    %c0_95 = arith.constant 0 : index
    %c0_96 = arith.constant 0 : index
    %95 = vector.load %arg2[%c13, %c0_95, %c0_96] : memref<16x16x128xbf16, #tpu.memory_space<vmem>>, vector<1x16x128xbf16>
    %96 = vector.shape_cast %95 : vector<1x16x128xbf16> to vector<16x128xbf16>
    %cst_97 = arith.constant dense<0.000000e+00> : vector<4x128xf32>
    %97 = tpu.matmul %94, %96, %cst_97 {dimension_numbers = #tpu.dot_dimension_numbers<[1], [0], [0], [1], [0, 0, 1, 1], [], []>} : vector<4x16xbf16>, vector<16x128xbf16>, vector<4x128xf32> -> vector<4x128xf32>
    %98 = arith.addf %91, %97 : vector<4x128xf32>
    %c2_98 = arith.constant 2 : index
    %c1_99 = arith.constant 1 : index
    %c1_100 = arith.constant 1 : index
    %c0_101 = arith.constant 0 : index
    %99 = vector.load %arg1[%c2_98, %c1_99, %c1_100, %c0_101] : memref<4x3x3x16xbf16, #tpu.memory_space<vmem>>, vector<1x2x2x16xbf16>
    %100 = vector.shape_cast %99 : vector<1x2x2x16xbf16> to vector<2x2x16xbf16>
    %101 = vector.shape_cast %100 : vector<2x2x16xbf16> to vector<4x16xbf16>
    %c14 = arith.constant 14 : index
    %c0_102 = arith.constant 0 : index
    %c0_103 = arith.constant 0 : index
    %102 = vector.load %arg2[%c14, %c0_102, %c0_103] : memref<16x16x128xbf16, #tpu.memory_space<vmem>>, vector<1x16x128xbf16>
    %103 = vector.shape_cast %102 : vector<1x16x128xbf16> to vector<16x128xbf16>
    %cst_104 = arith.constant dense<0.000000e+00> : vector<4x128xf32>
    %104 = tpu.matmul %101, %103, %cst_104 {dimension_numbers = #tpu.dot_dimension_numbers<[1], [0], [0], [1], [0, 0, 1, 1], [], []>} : vector<4x16xbf16>, vector<16x128xbf16>, vector<4x128xf32> -> vector<4x128xf32>
    %105 = arith.addf %98, %104 : vector<4x128xf32>
    %c3_105 = arith.constant 3 : index
    %c1_106 = arith.constant 1 : index
    %c1_107 = arith.constant 1 : index
    %c0_108 = arith.constant 0 : index
    %106 = vector.load %arg1[%c3_105, %c1_106, %c1_107, %c0_108] : memref<4x3x3x16xbf16, #tpu.memory_space<vmem>>, vector<1x2x2x16xbf16>
    %107 = vector.shape_cast %106 : vector<1x2x2x16xbf16> to vector<2x2x16xbf16>
    %108 = vector.shape_cast %107 : vector<2x2x16xbf16> to vector<4x16xbf16>
    %c15 = arith.constant 15 : index
    %c0_109 = arith.constant 0 : index
    %c0_110 = arith.constant 0 : index
    %109 = vector.load %arg2[%c15, %c0_109, %c0_110] : memref<16x16x128xbf16, #tpu.memory_space<vmem>>, vector<1x16x128xbf16>
    %110 = vector.shape_cast %109 : vector<1x16x128xbf16> to vector<16x128xbf16>
    %cst_111 = arith.constant dense<0.000000e+00> : vector<4x128xf32>
    %111 = tpu.matmul %108, %110, %cst_111 {dimension_numbers = #tpu.dot_dimension_numbers<[1], [0], [0], [1], [0, 0, 1, 1], [], []>} : vector<4x16xbf16>, vector<16x128xbf16>, vector<4x128xf32> -> vector<4x128xf32>
    %112 = arith.addf %105, %111 : vector<4x128xf32>
    %c0_112 = arith.constant 0 : index
    %c0_113 = arith.constant 0 : index
    %c0_114 = arith.constant 0 : index
    %113 = vector.load %arg3[%c0_112, %c0_113, %c0_114] : memref<1x4x128xf32, #tpu.memory_space<vmem>>, vector<1x4x128xf32>
    %114 = vector.shape_cast %113 : vector<1x4x128xf32> to vector<4x128xf32>
    %115 = vector.shape_cast %112 : vector<4x128xf32> to vector<1x4x128xf32>
    tpu.vector_store %arg3[%c0_112, %c0_113, %c0_114], %115 {strides = array<i32>} : memref<1x4x128xf32, #tpu.memory_space<vmem>>, vector<1x4x128xf32>,
    %cst_115 = arith.constant dense<0.000000e+00> : vector<128xf32>
    %116 = vector.multi_reduction <add>, %112, %cst_115 [0] : vector<4x128xf32> to vector<128xf32>
    %117 = vector.shape_cast %116 : vector<128xf32> to vector<1x128xf32>
    %118 = arith.mulf %112, %112 : vector<4x128xf32>
    %cst_116 = arith.constant dense<0.000000e+00> : vector<128xf32>
    %119 = vector.multi_reduction <add>, %118, %cst_116 [0] : vector<4x128xf32> to vector<128xf32>
    %120 = vector.shape_cast %119 : vector<128xf32> to vector<1x128xf32>
    %121 = tpu.concatenate %117, %120 in 0 : vector<1x128xf32>, vector<1x128xf32> -> vector<2x128xf32>
    %c0_117 = arith.constant 0 : index
    %c0_118 = arith.constant 0 : index
    %c0_119 = arith.constant 0 : index
    %122 = vector.load %arg4[%c0_117, %c0_118, %c0_119] : memref<1x2x128xf32, #tpu.memory_space<vmem>>, vector<1x2x128xf32>
    %123 = vector.shape_cast %122 : vector<1x2x128xf32> to vector<2x128xf32>
    %124 = vector.shape_cast %121 : vector<2x128xf32> to vector<1x2x128xf32>
    tpu.vector_store %arg4[%c0_117, %c0_118, %c0_119], %124 {strides = array<i32>} : memref<1x2x128xf32, #tpu.memory_space<vmem>>, vector<1x2x128xf32>,
    return
  }
  func.func @transform_0(%arg0: i32) -> (i32, i32, i32, i32) {
    %c0_i32 = arith.constant 0 : i32
    %c0_i32_0 = arith.constant 0 : i32
    %c0_i32_1 = arith.constant 0 : i32
    %c0_i32_2 = arith.constant 0 : i32
    return %arg0, %c0_i32, %c0_i32_0, %c0_i32_1 : i32, i32, i32, i32
  }
  func.func @transform_1(%arg0: i32) -> (i32, i32, i32) {
    %c0_i32 = arith.constant 0 : i32
    %c0_i32_0 = arith.constant 0 : i32
    %c0_i32_1 = arith.constant 0 : i32
    %c0_i32_2 = arith.constant 0 : i32
    return %c0_i32, %c0_i32_0, %c0_i32_1 : i32, i32, i32
  }
  func.func @transform_2(%arg0: i32) -> (i32, i32, i32) {
    %c0_i32 = arith.constant 0 : i32
    %c0_i32_0 = arith.constant 0 : i32
    %c0_i32_1 = arith.constant 0 : i32
    return %arg0, %c0_i32, %c0_i32_0 : i32, i32, i32
  }
  func.func @transform_3(%arg0: i32) -> (i32, i32, i32) {
    %c0_i32 = arith.constant 0 : i32
    %c0_i32_0 = arith.constant 0 : i32
    %c0_i32_1 = arith.constant 0 : i32
    return %arg0, %c0_i32, %c0_i32_0 : i32, i32, i32
  }
}

module attributes {stable_mosaic.version = 11 : i64} {
  func.func @_linear_sigmoid_kernel(%arg0: i32, %arg1: memref<2x128xbf16, #tpu.memory_space<vmem>>, %arg2: memref<128x128xbf16, #tpu.memory_space<vmem>>, %arg3: memref<1x128xf32, #tpu.memory_space<vmem>>, %arg4: memref<2x128xf32, #tpu.memory_space<vmem>>) attributes {dimension_semantics = [#tpu.dimension_semantics<arbitrary>], iteration_bounds = array<i64: 1>, scalar_prefetch = 0 : i64, scratch_operands = 0 : i64, tpu.core_type = #tpu.core_type<tc>, window_params = [{pipeline_mode = #tpu.pipeline_mode<synchronous>, transform_indices = @transform_0, window_bounds = array<i64: 2, 128>}, {pipeline_mode = #tpu.pipeline_mode<synchronous>, transform_indices = @transform_1, window_bounds = array<i64: 128, 128>}, {pipeline_mode = #tpu.pipeline_mode<synchronous>, transform_indices = @transform_2, window_bounds = array<i64: 1, 128>}, {pipeline_mode = #tpu.pipeline_mode<synchronous>, transform_indices = @transform_3, window_bounds = array<i64: 2, 128>}]} {
    %c0 = arith.constant 0 : index
    %c0_0 = arith.constant 0 : index
    %0 = vector.load %arg1[%c0, %c0_0] : memref<2x128xbf16, #tpu.memory_space<vmem>>, vector<2x128xbf16>
    %c0_1 = arith.constant 0 : index
    %c0_2 = arith.constant 0 : index
    %1 = vector.load %arg2[%c0_1, %c0_2] : memref<128x128xbf16, #tpu.memory_space<vmem>>, vector<128x128xbf16>
    %cst = arith.constant dense<0.000000e+00> : vector<2x128xf32>
    %2 = tpu.matmul %0, %1, %cst {dimension_numbers = #tpu.dot_dimension_numbers<[1], [0], [0], [1], [0, 0, 1, 1], [], []>} : vector<2x128xbf16>, vector<128x128xbf16>, vector<2x128xf32> -> vector<2x128xf32>
    %c0_3 = arith.constant 0 : index
    %c0_4 = arith.constant 0 : index
    %3 = vector.load %arg3[%c0_3, %c0_4] : memref<1x128xf32, #tpu.memory_space<vmem>>, vector<1x128xf32>
    %4 = vector.broadcast %3 : vector<1x128xf32> to vector<2x128xf32>
    %5 = arith.addf %2, %4 : vector<2x128xf32>
    %6 = math.absf %5 : vector<2x128xf32>
    %cst_5 = arith.constant 0.000000e+00 : f32
    %7 = vector.broadcast %cst_5 : f32 to vector<2x128xf32>
    %8 = arith.subf %7, %6 : vector<2x128xf32>
    %9 = math.exp %8 : vector<2x128xf32>
    %cst_6 = arith.constant 1.000000e+00 : f32
    %10 = vector.broadcast %cst_6 : f32 to vector<2x128xf32>
    %11 = arith.addf %10, %9 : vector<2x128xf32>
    %12 = tpu.reciprocal %11 {approx = true} : vector<2x128xf32> -> vector<2x128xf32>
    %cst_7 = arith.constant 0.000000e+00 : f32
    %13 = vector.broadcast %cst_7 : f32 to vector<2x128xf32>
    %14 = arith.cmpf oge, %5, %13 : vector<2x128xf32>
    %15 = arith.mulf %9, %12 : vector<2x128xf32>
    %16 = arith.select %14, %12, %15 : vector<2x128xi1>, vector<2x128xf32>
    %c0_8 = arith.constant 0 : index
    %c0_9 = arith.constant 0 : index
    %17 = vector.load %arg4[%c0_8, %c0_9] : memref<2x128xf32, #tpu.memory_space<vmem>>, vector<2x128xf32>
    tpu.vector_store %arg4[%c0_8, %c0_9], %16 {strides = array<i32>} : memref<2x128xf32, #tpu.memory_space<vmem>>, vector<2x128xf32>,
    return
  }
  func.func @transform_0(%arg0: i32) -> (i32, i32) {
    %c0_i32 = arith.constant 0 : i32
    %c0_i32_0 = arith.constant 0 : i32
    %c0_i32_1 = arith.constant 0 : i32
    return %c0_i32, %c0_i32_0 : i32, i32
  }
  func.func @transform_1(%arg0: i32) -> (i32, i32) {
    %c0_i32 = arith.constant 0 : i32
    %c0_i32_0 = arith.constant 0 : i32
    %c0_i32_1 = arith.constant 0 : i32
    return %c0_i32, %c0_i32_0 : i32, i32
  }
  func.func @transform_2(%arg0: i32) -> (i32, i32) {
    %c0_i32 = arith.constant 0 : i32
    %c0_i32_0 = arith.constant 0 : i32
    %c0_i32_1 = arith.constant 0 : i32
    return %c0_i32, %c0_i32_0 : i32, i32
  }
  func.func @transform_3(%arg0: i32) -> (i32, i32) {
    %c0_i32 = arith.constant 0 : i32
    %c0_i32_0 = arith.constant 0 : i32
    %c0_i32_1 = arith.constant 0 : i32
    return %c0_i32, %c0_i32_0 : i32, i32
  }
}

module attributes {stable_mosaic.version = 11 : i64} {
  func.func @_conv_tap_kernel(%arg0: i32, %arg1: memref<4x2x2x32xbf16, #tpu.memory_space<vmem>>, %arg2: memref<16x32x128xbf16, #tpu.memory_space<vmem>>, %arg3: memref<1x1x128xf32, #tpu.memory_space<vmem>>, %arg4: memref<1x2x128xf32, #tpu.memory_space<vmem>>) attributes {dimension_semantics = [#tpu.dimension_semantics<parallel>], iteration_bounds = array<i64: 2>, scalar_prefetch = 0 : i64, scratch_operands = 0 : i64, tpu.core_type = #tpu.core_type<tc>, window_params = [{transform_indices = @transform_0, window_bounds = array<i64: 4, 2, 2, 32>}, {pipeline_mode = #tpu.pipeline_mode<synchronous>, transform_indices = @transform_1, window_bounds = array<i64: 16, 32, 128>}, {transform_indices = @transform_2, window_bounds = array<i64: 1, 1, 128>}, {transform_indices = @transform_3, window_bounds = array<i64: 1, 2, 128>}]} {
    %cst = arith.constant 0.000000e+00 : f32
    %0 = vector.broadcast %cst : f32 to vector<1x128xf32>
    %c0 = arith.constant 0 : index
    %c0_0 = arith.constant 0 : index
    %c0_1 = arith.constant 0 : index
    %c0_2 = arith.constant 0 : index
    %1 = vector.load %arg1[%c0, %c0_0, %c0_1, %c0_2] : memref<4x2x2x32xbf16, #tpu.memory_space<vmem>>, vector<1x1x1x32xbf16>
    %2 = vector.shape_cast %1 : vector<1x1x1x32xbf16> to vector<1x1x32xbf16>
    %3 = vector.shape_cast %2 : vector<1x1x32xbf16> to vector<1x32xbf16>
    %c0_3 = arith.constant 0 : index
    %c0_4 = arith.constant 0 : index
    %c0_5 = arith.constant 0 : index
    %4 = vector.load %arg2[%c0_3, %c0_4, %c0_5] : memref<16x32x128xbf16, #tpu.memory_space<vmem>>, vector<1x32x128xbf16>
    %5 = vector.shape_cast %4 : vector<1x32x128xbf16> to vector<32x128xbf16>
    %cst_6 = arith.constant dense<0.000000e+00> : vector<1x128xf32>
    %6 = tpu.matmul %3, %5, %cst_6 {dimension_numbers = #tpu.dot_dimension_numbers<[1], [0], [0], [1], [0, 0, 1, 1], [], []>} : vector<1x32xbf16>, vector<32x128xbf16>, vector<1x128xf32> -> vector<1x128xf32>
    %7 = arith.addf %0, %6 : vector<1x128xf32>
    %c1 = arith.constant 1 : index
    %c0_7 = arith.constant 0 : index
    %c0_8 = arith.constant 0 : index
    %c0_9 = arith.constant 0 : index
    %8 = vector.load %arg1[%c1, %c0_7, %c0_8, %c0_9] : memref<4x2x2x32xbf16, #tpu.memory_space<vmem>>, vector<1x1x1x32xbf16>
    %9 = vector.shape_cast %8 : vector<1x1x1x32xbf16> to vector<1x1x32xbf16>
    %10 = vector.shape_cast %9 : vector<1x1x32xbf16> to vector<1x32xbf16>
    %c1_10 = arith.constant 1 : index
    %c0_11 = arith.constant 0 : index
    %c0_12 = arith.constant 0 : index
    %11 = vector.load %arg2[%c1_10, %c0_11, %c0_12] : memref<16x32x128xbf16, #tpu.memory_space<vmem>>, vector<1x32x128xbf16>
    %12 = vector.shape_cast %11 : vector<1x32x128xbf16> to vector<32x128xbf16>
    %cst_13 = arith.constant dense<0.000000e+00> : vector<1x128xf32>
    %13 = tpu.matmul %10, %12, %cst_13 {dimension_numbers = #tpu.dot_dimension_numbers<[1], [0], [0], [1], [0, 0, 1, 1], [], []>} : vector<1x32xbf16>, vector<32x128xbf16>, vector<1x128xf32> -> vector<1x128xf32>
    %14 = arith.addf %7, %13 : vector<1x128xf32>
    %c0_14 = arith.constant 0 : index
    %c0_15 = arith.constant 0 : index
    %c1_16 = arith.constant 1 : index
    %c0_17 = arith.constant 0 : index
    %15 = vector.load %arg1[%c0_14, %c0_15, %c1_16, %c0_17] : memref<4x2x2x32xbf16, #tpu.memory_space<vmem>>, vector<1x1x1x32xbf16>
    %16 = vector.shape_cast %15 : vector<1x1x1x32xbf16> to vector<1x1x32xbf16>
    %17 = vector.shape_cast %16 : vector<1x1x32xbf16> to vector<1x32xbf16>
    %c2 = arith.constant 2 : index
    %c0_18 = arith.constant 0 : index
    %c0_19 = arith.constant 0 : index
    %18 = vector.load %arg2[%c2, %c0_18, %c0_19] : memref<16x32x128xbf16, #tpu.memory_space<vmem>>, vector<1x32x128xbf16>
    %19 = vector.shape_cast %18 : vector<1x32x128xbf16> to vector<32x128xbf16>
    %cst_20 = arith.constant dense<0.000000e+00> : vector<1x128xf32>
    %20 = tpu.matmul %17, %19, %cst_20 {dimension_numbers = #tpu.dot_dimension_numbers<[1], [0], [0], [1], [0, 0, 1, 1], [], []>} : vector<1x32xbf16>, vector<32x128xbf16>, vector<1x128xf32> -> vector<1x128xf32>
    %21 = arith.addf %14, %20 : vector<1x128xf32>
    %c1_21 = arith.constant 1 : index
    %c0_22 = arith.constant 0 : index
    %c1_23 = arith.constant 1 : index
    %c0_24 = arith.constant 0 : index
    %22 = vector.load %arg1[%c1_21, %c0_22, %c1_23, %c0_24] : memref<4x2x2x32xbf16, #tpu.memory_space<vmem>>, vector<1x1x1x32xbf16>
    %23 = vector.shape_cast %22 : vector<1x1x1x32xbf16> to vector<1x1x32xbf16>
    %24 = vector.shape_cast %23 : vector<1x1x32xbf16> to vector<1x32xbf16>
    %c3 = arith.constant 3 : index
    %c0_25 = arith.constant 0 : index
    %c0_26 = arith.constant 0 : index
    %25 = vector.load %arg2[%c3, %c0_25, %c0_26] : memref<16x32x128xbf16, #tpu.memory_space<vmem>>, vector<1x32x128xbf16>
    %26 = vector.shape_cast %25 : vector<1x32x128xbf16> to vector<32x128xbf16>
    %cst_27 = arith.constant dense<0.000000e+00> : vector<1x128xf32>
    %27 = tpu.matmul %24, %26, %cst_27 {dimension_numbers = #tpu.dot_dimension_numbers<[1], [0], [0], [1], [0, 0, 1, 1], [], []>} : vector<1x32xbf16>, vector<32x128xbf16>, vector<1x128xf32> -> vector<1x128xf32>
    %28 = arith.addf %21, %27 : vector<1x128xf32>
    %c2_28 = arith.constant 2 : index
    %c0_29 = arith.constant 0 : index
    %c0_30 = arith.constant 0 : index
    %c0_31 = arith.constant 0 : index
    %29 = vector.load %arg1[%c2_28, %c0_29, %c0_30, %c0_31] : memref<4x2x2x32xbf16, #tpu.memory_space<vmem>>, vector<1x1x1x32xbf16>
    %30 = vector.shape_cast %29 : vector<1x1x1x32xbf16> to vector<1x1x32xbf16>
    %31 = vector.shape_cast %30 : vector<1x1x32xbf16> to vector<1x32xbf16>
    %c4 = arith.constant 4 : index
    %c0_32 = arith.constant 0 : index
    %c0_33 = arith.constant 0 : index
    %32 = vector.load %arg2[%c4, %c0_32, %c0_33] : memref<16x32x128xbf16, #tpu.memory_space<vmem>>, vector<1x32x128xbf16>
    %33 = vector.shape_cast %32 : vector<1x32x128xbf16> to vector<32x128xbf16>
    %cst_34 = arith.constant dense<0.000000e+00> : vector<1x128xf32>
    %34 = tpu.matmul %31, %33, %cst_34 {dimension_numbers = #tpu.dot_dimension_numbers<[1], [0], [0], [1], [0, 0, 1, 1], [], []>} : vector<1x32xbf16>, vector<32x128xbf16>, vector<1x128xf32> -> vector<1x128xf32>
    %35 = arith.addf %28, %34 : vector<1x128xf32>
    %c3_35 = arith.constant 3 : index
    %c0_36 = arith.constant 0 : index
    %c0_37 = arith.constant 0 : index
    %c0_38 = arith.constant 0 : index
    %36 = vector.load %arg1[%c3_35, %c0_36, %c0_37, %c0_38] : memref<4x2x2x32xbf16, #tpu.memory_space<vmem>>, vector<1x1x1x32xbf16>
    %37 = vector.shape_cast %36 : vector<1x1x1x32xbf16> to vector<1x1x32xbf16>
    %38 = vector.shape_cast %37 : vector<1x1x32xbf16> to vector<1x32xbf16>
    %c5 = arith.constant 5 : index
    %c0_39 = arith.constant 0 : index
    %c0_40 = arith.constant 0 : index
    %39 = vector.load %arg2[%c5, %c0_39, %c0_40] : memref<16x32x128xbf16, #tpu.memory_space<vmem>>, vector<1x32x128xbf16>
    %40 = vector.shape_cast %39 : vector<1x32x128xbf16> to vector<32x128xbf16>
    %cst_41 = arith.constant dense<0.000000e+00> : vector<1x128xf32>
    %41 = tpu.matmul %38, %40, %cst_41 {dimension_numbers = #tpu.dot_dimension_numbers<[1], [0], [0], [1], [0, 0, 1, 1], [], []>} : vector<1x32xbf16>, vector<32x128xbf16>, vector<1x128xf32> -> vector<1x128xf32>
    %42 = arith.addf %35, %41 : vector<1x128xf32>
    %c2_42 = arith.constant 2 : index
    %c0_43 = arith.constant 0 : index
    %c1_44 = arith.constant 1 : index
    %c0_45 = arith.constant 0 : index
    %43 = vector.load %arg1[%c2_42, %c0_43, %c1_44, %c0_45] : memref<4x2x2x32xbf16, #tpu.memory_space<vmem>>, vector<1x1x1x32xbf16>
    %44 = vector.shape_cast %43 : vector<1x1x1x32xbf16> to vector<1x1x32xbf16>
    %45 = vector.shape_cast %44 : vector<1x1x32xbf16> to vector<1x32xbf16>
    %c6 = arith.constant 6 : index
    %c0_46 = arith.constant 0 : index
    %c0_47 = arith.constant 0 : index
    %46 = vector.load %arg2[%c6, %c0_46, %c0_47] : memref<16x32x128xbf16, #tpu.memory_space<vmem>>, vector<1x32x128xbf16>
    %47 = vector.shape_cast %46 : vector<1x32x128xbf16> to vector<32x128xbf16>
    %cst_48 = arith.constant dense<0.000000e+00> : vector<1x128xf32>
    %48 = tpu.matmul %45, %47, %cst_48 {dimension_numbers = #tpu.dot_dimension_numbers<[1], [0], [0], [1], [0, 0, 1, 1], [], []>} : vector<1x32xbf16>, vector<32x128xbf16>, vector<1x128xf32> -> vector<1x128xf32>
    %49 = arith.addf %42, %48 : vector<1x128xf32>
    %c3_49 = arith.constant 3 : index
    %c0_50 = arith.constant 0 : index
    %c1_51 = arith.constant 1 : index
    %c0_52 = arith.constant 0 : index
    %50 = vector.load %arg1[%c3_49, %c0_50, %c1_51, %c0_52] : memref<4x2x2x32xbf16, #tpu.memory_space<vmem>>, vector<1x1x1x32xbf16>
    %51 = vector.shape_cast %50 : vector<1x1x1x32xbf16> to vector<1x1x32xbf16>
    %52 = vector.shape_cast %51 : vector<1x1x32xbf16> to vector<1x32xbf16>
    %c7 = arith.constant 7 : index
    %c0_53 = arith.constant 0 : index
    %c0_54 = arith.constant 0 : index
    %53 = vector.load %arg2[%c7, %c0_53, %c0_54] : memref<16x32x128xbf16, #tpu.memory_space<vmem>>, vector<1x32x128xbf16>
    %54 = vector.shape_cast %53 : vector<1x32x128xbf16> to vector<32x128xbf16>
    %cst_55 = arith.constant dense<0.000000e+00> : vector<1x128xf32>
    %55 = tpu.matmul %52, %54, %cst_55 {dimension_numbers = #tpu.dot_dimension_numbers<[1], [0], [0], [1], [0, 0, 1, 1], [], []>} : vector<1x32xbf16>, vector<32x128xbf16>, vector<1x128xf32> -> vector<1x128xf32>
    %56 = arith.addf %49, %55 : vector<1x128xf32>
    %c0_56 = arith.constant 0 : index
    %c1_57 = arith.constant 1 : index
    %c0_58 = arith.constant 0 : index
    %c0_59 = arith.constant 0 : index
    %57 = vector.load %arg1[%c0_56, %c1_57, %c0_58, %c0_59] : memref<4x2x2x32xbf16, #tpu.memory_space<vmem>>, vector<1x1x1x32xbf16>
    %58 = vector.shape_cast %57 : vector<1x1x1x32xbf16> to vector<1x1x32xbf16>
    %59 = vector.shape_cast %58 : vector<1x1x32xbf16> to vector<1x32xbf16>
    %c8 = arith.constant 8 : index
    %c0_60 = arith.constant 0 : index
    %c0_61 = arith.constant 0 : index
    %60 = vector.load %arg2[%c8, %c0_60, %c0_61] : memref<16x32x128xbf16, #tpu.memory_space<vmem>>, vector<1x32x128xbf16>
    %61 = vector.shape_cast %60 : vector<1x32x128xbf16> to vector<32x128xbf16>
    %cst_62 = arith.constant dense<0.000000e+00> : vector<1x128xf32>
    %62 = tpu.matmul %59, %61, %cst_62 {dimension_numbers = #tpu.dot_dimension_numbers<[1], [0], [0], [1], [0, 0, 1, 1], [], []>} : vector<1x32xbf16>, vector<32x128xbf16>, vector<1x128xf32> -> vector<1x128xf32>
    %63 = arith.addf %56, %62 : vector<1x128xf32>
    %c1_63 = arith.constant 1 : index
    %c1_64 = arith.constant 1 : index
    %c0_65 = arith.constant 0 : index
    %c0_66 = arith.constant 0 : index
    %64 = vector.load %arg1[%c1_63, %c1_64, %c0_65, %c0_66] : memref<4x2x2x32xbf16, #tpu.memory_space<vmem>>, vector<1x1x1x32xbf16>
    %65 = vector.shape_cast %64 : vector<1x1x1x32xbf16> to vector<1x1x32xbf16>
    %66 = vector.shape_cast %65 : vector<1x1x32xbf16> to vector<1x32xbf16>
    %c9 = arith.constant 9 : index
    %c0_67 = arith.constant 0 : index
    %c0_68 = arith.constant 0 : index
    %67 = vector.load %arg2[%c9, %c0_67, %c0_68] : memref<16x32x128xbf16, #tpu.memory_space<vmem>>, vector<1x32x128xbf16>
    %68 = vector.shape_cast %67 : vector<1x32x128xbf16> to vector<32x128xbf16>
    %cst_69 = arith.constant dense<0.000000e+00> : vector<1x128xf32>
    %69 = tpu.matmul %66, %68, %cst_69 {dimension_numbers = #tpu.dot_dimension_numbers<[1], [0], [0], [1], [0, 0, 1, 1], [], []>} : vector<1x32xbf16>, vector<32x128xbf16>, vector<1x128xf32> -> vector<1x128xf32>
    %70 = arith.addf %63, %69 : vector<1x128xf32>
    %c0_70 = arith.constant 0 : index
    %c1_71 = arith.constant 1 : index
    %c1_72 = arith.constant 1 : index
    %c0_73 = arith.constant 0 : index
    %71 = vector.load %arg1[%c0_70, %c1_71, %c1_72, %c0_73] : memref<4x2x2x32xbf16, #tpu.memory_space<vmem>>, vector<1x1x1x32xbf16>
    %72 = vector.shape_cast %71 : vector<1x1x1x32xbf16> to vector<1x1x32xbf16>
    %73 = vector.shape_cast %72 : vector<1x1x32xbf16> to vector<1x32xbf16>
    %c10 = arith.constant 10 : index
    %c0_74 = arith.constant 0 : index
    %c0_75 = arith.constant 0 : index
    %74 = vector.load %arg2[%c10, %c0_74, %c0_75] : memref<16x32x128xbf16, #tpu.memory_space<vmem>>, vector<1x32x128xbf16>
    %75 = vector.shape_cast %74 : vector<1x32x128xbf16> to vector<32x128xbf16>
    %cst_76 = arith.constant dense<0.000000e+00> : vector<1x128xf32>
    %76 = tpu.matmul %73, %75, %cst_76 {dimension_numbers = #tpu.dot_dimension_numbers<[1], [0], [0], [1], [0, 0, 1, 1], [], []>} : vector<1x32xbf16>, vector<32x128xbf16>, vector<1x128xf32> -> vector<1x128xf32>
    %77 = arith.addf %70, %76 : vector<1x128xf32>
    %c1_77 = arith.constant 1 : index
    %c1_78 = arith.constant 1 : index
    %c1_79 = arith.constant 1 : index
    %c0_80 = arith.constant 0 : index
    %78 = vector.load %arg1[%c1_77, %c1_78, %c1_79, %c0_80] : memref<4x2x2x32xbf16, #tpu.memory_space<vmem>>, vector<1x1x1x32xbf16>
    %79 = vector.shape_cast %78 : vector<1x1x1x32xbf16> to vector<1x1x32xbf16>
    %80 = vector.shape_cast %79 : vector<1x1x32xbf16> to vector<1x32xbf16>
    %c11 = arith.constant 11 : index
    %c0_81 = arith.constant 0 : index
    %c0_82 = arith.constant 0 : index
    %81 = vector.load %arg2[%c11, %c0_81, %c0_82] : memref<16x32x128xbf16, #tpu.memory_space<vmem>>, vector<1x32x128xbf16>
    %82 = vector.shape_cast %81 : vector<1x32x128xbf16> to vector<32x128xbf16>
    %cst_83 = arith.constant dense<0.000000e+00> : vector<1x128xf32>
    %83 = tpu.matmul %80, %82, %cst_83 {dimension_numbers = #tpu.dot_dimension_numbers<[1], [0], [0], [1], [0, 0, 1, 1], [], []>} : vector<1x32xbf16>, vector<32x128xbf16>, vector<1x128xf32> -> vector<1x128xf32>
    %84 = arith.addf %77, %83 : vector<1x128xf32>
    %c2_84 = arith.constant 2 : index
    %c1_85 = arith.constant 1 : index
    %c0_86 = arith.constant 0 : index
    %c0_87 = arith.constant 0 : index
    %85 = vector.load %arg1[%c2_84, %c1_85, %c0_86, %c0_87] : memref<4x2x2x32xbf16, #tpu.memory_space<vmem>>, vector<1x1x1x32xbf16>
    %86 = vector.shape_cast %85 : vector<1x1x1x32xbf16> to vector<1x1x32xbf16>
    %87 = vector.shape_cast %86 : vector<1x1x32xbf16> to vector<1x32xbf16>
    %c12 = arith.constant 12 : index
    %c0_88 = arith.constant 0 : index
    %c0_89 = arith.constant 0 : index
    %88 = vector.load %arg2[%c12, %c0_88, %c0_89] : memref<16x32x128xbf16, #tpu.memory_space<vmem>>, vector<1x32x128xbf16>
    %89 = vector.shape_cast %88 : vector<1x32x128xbf16> to vector<32x128xbf16>
    %cst_90 = arith.constant dense<0.000000e+00> : vector<1x128xf32>
    %90 = tpu.matmul %87, %89, %cst_90 {dimension_numbers = #tpu.dot_dimension_numbers<[1], [0], [0], [1], [0, 0, 1, 1], [], []>} : vector<1x32xbf16>, vector<32x128xbf16>, vector<1x128xf32> -> vector<1x128xf32>
    %91 = arith.addf %84, %90 : vector<1x128xf32>
    %c3_91 = arith.constant 3 : index
    %c1_92 = arith.constant 1 : index
    %c0_93 = arith.constant 0 : index
    %c0_94 = arith.constant 0 : index
    %92 = vector.load %arg1[%c3_91, %c1_92, %c0_93, %c0_94] : memref<4x2x2x32xbf16, #tpu.memory_space<vmem>>, vector<1x1x1x32xbf16>
    %93 = vector.shape_cast %92 : vector<1x1x1x32xbf16> to vector<1x1x32xbf16>
    %94 = vector.shape_cast %93 : vector<1x1x32xbf16> to vector<1x32xbf16>
    %c13 = arith.constant 13 : index
    %c0_95 = arith.constant 0 : index
    %c0_96 = arith.constant 0 : index
    %95 = vector.load %arg2[%c13, %c0_95, %c0_96] : memref<16x32x128xbf16, #tpu.memory_space<vmem>>, vector<1x32x128xbf16>
    %96 = vector.shape_cast %95 : vector<1x32x128xbf16> to vector<32x128xbf16>
    %cst_97 = arith.constant dense<0.000000e+00> : vector<1x128xf32>
    %97 = tpu.matmul %94, %96, %cst_97 {dimension_numbers = #tpu.dot_dimension_numbers<[1], [0], [0], [1], [0, 0, 1, 1], [], []>} : vector<1x32xbf16>, vector<32x128xbf16>, vector<1x128xf32> -> vector<1x128xf32>
    %98 = arith.addf %91, %97 : vector<1x128xf32>
    %c2_98 = arith.constant 2 : index
    %c1_99 = arith.constant 1 : index
    %c1_100 = arith.constant 1 : index
    %c0_101 = arith.constant 0 : index
    %99 = vector.load %arg1[%c2_98, %c1_99, %c1_100, %c0_101] : memref<4x2x2x32xbf16, #tpu.memory_space<vmem>>, vector<1x1x1x32xbf16>
    %100 = vector.shape_cast %99 : vector<1x1x1x32xbf16> to vector<1x1x32xbf16>
    %101 = vector.shape_cast %100 : vector<1x1x32xbf16> to vector<1x32xbf16>
    %c14 = arith.constant 14 : index
    %c0_102 = arith.constant 0 : index
    %c0_103 = arith.constant 0 : index
    %102 = vector.load %arg2[%c14, %c0_102, %c0_103] : memref<16x32x128xbf16, #tpu.memory_space<vmem>>, vector<1x32x128xbf16>
    %103 = vector.shape_cast %102 : vector<1x32x128xbf16> to vector<32x128xbf16>
    %cst_104 = arith.constant dense<0.000000e+00> : vector<1x128xf32>
    %104 = tpu.matmul %101, %103, %cst_104 {dimension_numbers = #tpu.dot_dimension_numbers<[1], [0], [0], [1], [0, 0, 1, 1], [], []>} : vector<1x32xbf16>, vector<32x128xbf16>, vector<1x128xf32> -> vector<1x128xf32>
    %105 = arith.addf %98, %104 : vector<1x128xf32>
    %c3_105 = arith.constant 3 : index
    %c1_106 = arith.constant 1 : index
    %c1_107 = arith.constant 1 : index
    %c0_108 = arith.constant 0 : index
    %106 = vector.load %arg1[%c3_105, %c1_106, %c1_107, %c0_108] : memref<4x2x2x32xbf16, #tpu.memory_space<vmem>>, vector<1x1x1x32xbf16>
    %107 = vector.shape_cast %106 : vector<1x1x1x32xbf16> to vector<1x1x32xbf16>
    %108 = vector.shape_cast %107 : vector<1x1x32xbf16> to vector<1x32xbf16>
    %c15 = arith.constant 15 : index
    %c0_109 = arith.constant 0 : index
    %c0_110 = arith.constant 0 : index
    %109 = vector.load %arg2[%c15, %c0_109, %c0_110] : memref<16x32x128xbf16, #tpu.memory_space<vmem>>, vector<1x32x128xbf16>
    %110 = vector.shape_cast %109 : vector<1x32x128xbf16> to vector<32x128xbf16>
    %cst_111 = arith.constant dense<0.000000e+00> : vector<1x128xf32>
    %111 = tpu.matmul %108, %110, %cst_111 {dimension_numbers = #tpu.dot_dimension_numbers<[1], [0], [0], [1], [0, 0, 1, 1], [], []>} : vector<1x32xbf16>, vector<32x128xbf16>, vector<1x128xf32> -> vector<1x128xf32>
    %112 = arith.addf %105, %111 : vector<1x128xf32>
    %c0_112 = arith.constant 0 : index
    %c0_113 = arith.constant 0 : index
    %c0_114 = arith.constant 0 : index
    %113 = vector.load %arg3[%c0_112, %c0_113, %c0_114] : memref<1x1x128xf32, #tpu.memory_space<vmem>>, vector<1x1x128xf32>
    %114 = vector.shape_cast %113 : vector<1x1x128xf32> to vector<1x128xf32>
    %115 = vector.shape_cast %112 : vector<1x128xf32> to vector<1x1x128xf32>
    tpu.vector_store %arg3[%c0_112, %c0_113, %c0_114], %115 {strides = array<i32>} : memref<1x1x128xf32, #tpu.memory_space<vmem>>, vector<1x1x128xf32>,
    %cst_115 = arith.constant dense<0.000000e+00> : vector<128xf32>
    %116 = vector.multi_reduction <add>, %112, %cst_115 [0] : vector<1x128xf32> to vector<128xf32>
    %117 = vector.shape_cast %116 : vector<128xf32> to vector<1x128xf32>
    %118 = arith.mulf %112, %112 : vector<1x128xf32>
    %cst_116 = arith.constant dense<0.000000e+00> : vector<128xf32>
    %119 = vector.multi_reduction <add>, %118, %cst_116 [0] : vector<1x128xf32> to vector<128xf32>
    %120 = vector.shape_cast %119 : vector<128xf32> to vector<1x128xf32>
    %121 = tpu.concatenate %117, %120 in 0 : vector<1x128xf32>, vector<1x128xf32> -> vector<2x128xf32>
    %c0_117 = arith.constant 0 : index
    %c0_118 = arith.constant 0 : index
    %c0_119 = arith.constant 0 : index
    %122 = vector.load %arg4[%c0_117, %c0_118, %c0_119] : memref<1x2x128xf32, #tpu.memory_space<vmem>>, vector<1x2x128xf32>
    %123 = vector.shape_cast %122 : vector<1x2x128xf32> to vector<2x128xf32>
    %124 = vector.shape_cast %121 : vector<2x128xf32> to vector<1x2x128xf32>
    tpu.vector_store %arg4[%c0_117, %c0_118, %c0_119], %124 {strides = array<i32>} : memref<1x2x128xf32, #tpu.memory_space<vmem>>, vector<1x2x128xf32>,
    return
  }
  func.func @transform_0(%arg0: i32) -> (i32, i32, i32, i32) {
    %c0_i32 = arith.constant 0 : i32
    %c0_i32_0 = arith.constant 0 : i32
    %c0_i32_1 = arith.constant 0 : i32
    %c0_i32_2 = arith.constant 0 : i32
    return %arg0, %c0_i32, %c0_i32_0, %c0_i32_1 : i32, i32, i32, i32
  }
  func.func @transform_1(%arg0: i32) -> (i32, i32, i32) {
    %c0_i32 = arith.constant 0 : i32
    %c0_i32_0 = arith.constant 0 : i32
    %c0_i32_1 = arith.constant 0 : i32
    %c0_i32_2 = arith.constant 0 : i32
    return %c0_i32, %c0_i32_0, %c0_i32_1 : i32, i32, i32
  }
  func.func @transform_2(%arg0: i32) -> (i32, i32, i32) {
    %c0_i32 = arith.constant 0 : i32
    %c0_i32_0 = arith.constant 0 : i32
    %c0_i32_1 = arith.constant 0 : i32
    return %arg0, %c0_i32, %c0_i32_0 : i32, i32, i32
  }
  func.func @transform_3(%arg0: i32) -> (i32, i32, i32) {
    %c0_i32 = arith.constant 0 : i32
    %c0_i32_0 = arith.constant 0 : i32
    %c0_i32_1 = arith.constant 0 : i32
    return %arg0, %c0_i32, %c0_i32_0 : i32, i32, i32
  }
}

</mosaic_0001>

<llo_original>
// kernel: dcgan_discriminator_forward.6
$region0: #{dcgan_discriminator_forward.6}
  #allocation0 [shape = 'u32[]', space=smem, size = 0x4, offset = 0x4, fixed_abs, tag = 'smem constant byte address 0x4 - core index']
  #allocation1 [shape = 'u32[144,128]{1,0:T(1,128)}', space=vmem, size = 0x12000, scoped, tag = 'internal scratch']
  %s0 = inlined_call_operand.vmem [shape: bf16[8,5,5,8], index: 0, kind: input, shape index: {}]
  %s1 = inlined_call_operand.vmem [shape: bf16[16,8,128], index: 1, kind: input, shape index: {}]
  %s2 = inlined_call_operand.vmem [shape: f32[2,16,128], index: 2, kind: output, shape index: {0}]
  %s3 = inlined_call_operand.vmem [shape: f32[2,2,128], index: 3, kind: output, shape index: {1}]
  %4 = xla_tuple %s2, %s3
  %s5 = sld [smem:[#allocation0]]
  $region49: #{dcgan_discriminator_forward.6} parent=0
    _
  %s7 = ssub.s32 1, %s5
  %s8 = scalar_select 0, %s7, %s5
  loop: start=0, step=1, limit=4
  $region2: #{dcgan_discriminator_forward.6} parent=0 // loop_pre_header
    _
  $region3: #{dcgan_discriminator_forward.6} parent=0 // loop_header
    %s10 = sphi 0, %s14
    %p11 = scmp.ge.s32.totalorder %s10, 4
    %s20 = sphi 0, %s22
    %s23 = sphi 0, %s20
    %s24 = sphi 0, %s23
    %s40 = sphi 0, %s24
    %s44 = sphi 0, %s44
    %s46 = sphi 0, %s44
    %s47 = sphi 0, %s46
    %s61 = sphi 0, %s47
    %s67 = sphi 0, %s69
    %s70 = sphi 0, %s67
    %s71 = sphi 0, %s70
    %s87 = sphi 0, %s71
    %s93 = sphi 0, %s95
    %s96 = sphi 0, %s93
    %s97 = sphi 0, %s96
    %s113 = sphi 0, %s97
  $region4: #{dcgan_discriminator_forward.6} parent=0 // loop_header_branch
    %13 = sbr.rel (%p11) target = $region8
  $region5: #{dcgan_discriminator_forward.6} parent=0 // loop_body
    %s15 = ssub.s32 %s10, 1
    %s16 = ssub.s32 %s10, 2
    %s17 = sadd.s32 %s10, 1
    %s18 = ssub.s32 %s10, %s17
    %p19 = scmp.eq.s32.totalorder %s18, 0
    %s21 = sadd.s32 %s20, 1
    %s22 = scalar_select %p19, %s20, %s21
    %p25 = pneg %p19
    %p26 = scmp.eq.s32.totalorder %s10, 1
    %p27 = por %p25, %p26
    %p28 = scmp.ne.s32.totalorder %s20, %s23
    %p29 = scmp.eq.s32.totalorder %s10, 0
    %p30 = por %p28, %p29
    %p31 = scmp.ne.s32.totalorder %s20, %s23
    %p32 = scmp.eq.s32.totalorder %s15, 1
    %p33 = por %p31, %p32
    %p34 = scmp.ne.s32.totalorder %s23, %s24
    %p35 = scmp.eq.s32.totalorder %s15, 0
    %p36 = por %p34, %p35
    %p37 = scmp.ne.s32.totalorder %s23, %s24
    %p38 = scmp.eq.s32.totalorder %s16, 1
    %p39 = por %p37, %p38
    %p41 = scmp.ne.s32.totalorder %s24, %s40
    %p42 = scmp.eq.s32.totalorder %s16, 0
    %p43 = por %p41, %p42
    %s45 = sadd.s32 %s44, 1
    %p48 = scmp.eq.s32.totalorder %s10, 1
    %p49 = scmp.ne.s32.totalorder %s44, %s46
    %p50 = scmp.eq.s32.totalorder %s10, 0
    %p51 = por %p49, %p50
    %p52 = scmp.ne.s32.totalorder %s44, %s46
    %p53 = scmp.eq.s32.totalorder %s15, 1
    %p54 = por %p52, %p53
    %p55 = scmp.ne.s32.totalorder %s46, %s47
    %p56 = scmp.eq.s32.totalorder %s15, 0
    %p57 = por %p55, %p56
    %p58 = scmp.ne.s32.totalorder %s46, %s47
    %p59 = scmp.eq.s32.totalorder %s16, 1
    %p60 = por %p58, %p59
    %p62 = scmp.ne.s32.totalorder %s47, %s61
    %p63 = scmp.eq.s32.totalorder %s16, 0
    %p64 = por %p62, %p63
    %s65 = ssub.s32 %s10, %s17
    %p66 = scmp.eq.s32.totalorder %s65, 0
    %s68 = sadd.s32 %s67, 1
    %s69 = scalar_select %p66, %s67, %s68
    %p72 = pneg %p66
    %p73 = scmp.eq.s32.totalorder %s10, 1
    %p74 = por %p72, %p73
    %p75 = scmp.ne.s32.totalorder %s67, %s70
    %p76 = scmp.eq.s32.totalorder %s10, 0
    %p77 = por %p75, %p76
    %p78 = scmp.ne.s32.totalorder %s67, %s70
    %p79 = scmp.eq.s32.totalorder %s15, 1
    %p80 = por %p78, %p79
    %p81 = scmp.ne.s32.totalorder %s70, %s71
    %p82 = scmp.eq.s32.totalorder %s15, 0
    %p83 = por %p81, %p82
    %p84 = scmp.ne.s32.totalorder %s70, %s71
    %p85 = scmp.eq.s32.totalorder %s16, 1
    %p86 = por %p84, %p85
    %p88 = scmp.ne.s32.totalorder %s71, %s87
    %p89 = scmp.eq.s32.totalorder %s16, 0
    %p90 = por %p88, %p89
    %s91 = ssub.s32 %s10, %s17
    %p92 = scmp.eq.s32.totalorder %s91, 0
    %s94 = sadd.s32 %s93, 1
    %s95 = scalar_select %p92, %s93, %s94
    %p98 = pneg %p92
    %p99 = scmp.eq.s32.totalorder %s10, 1
    %p100 = por %p98, %p99
    %p101 = scmp.ne.s32.totalorder %s93, %s96
    %p102 = scmp.eq.s32.totalorder %s10, 0
    %p103 = por %p101, %p102
    %p104 = scmp.ne.s32.totalorder %s93, %s96
    %p105 = scmp.eq.s32.totalorder %s15, 1
    %p106 = por %p104, %p105
    %p107 = scmp.ne.s32.totalorder %s96, %s97
    %p108 = scmp.eq.s32.totalorder %s15, 0
    %p109 = por %p107, %p108
    %p110 = scmp.ne.s32.totalorder %s96, %s97
    %p111 = scmp.eq.s32.totalorder %s16, 1
    %p112 = por %p110, %p111
    %p114 = scmp.ne.s32.totalorder %s97, %s113
    %p115 = scmp.eq.s32.totalorder %s16, 0
    %p116 = por %p114, %p115
    %p117 = scmp.le.s32.totalorder 1, %s10
    %p118 = scmp.lt.s32.totalorder %s10, 3
    %p119 = pnand %p117, %p118
    %p120 = pneg %p119
    // Predicated region
    $region9: #{dcgan_discriminator_forward.6} parent=5 // pred_check
      _
    $region10: #{dcgan_discriminator_forward.6} parent=5 // pred_check_branch
      %122 = sbr.rel (%p119) target = $region12
    $region11: #{dcgan_discriminator_forward.6} parent=5 // pred_region
      %s123 = ssub.s32 %s10, 1
      // Predicated region
      $region13: #{dcgan_discriminator_forward.6} parent=11 // pred_check
        %p124 = pneg %p57
      $region14: #{dcgan_discriminator_forward.6} parent=11 // pred_check_branch
        %126 = sbr.rel (%p124) target = $region16
      $region15: #{dcgan_discriminator_forward.6} parent=11 // pred_region
        _
      $region16: #{dcgan_discriminator_forward.6} parent=11 // pred_fallthru
        _
    $region12: #{dcgan_discriminator_forward.6} parent=5 // pred_fallthru
      _
    %p127 = scmp.lt.s32.totalorder %s10, 2
    // Predicated region
    $region17: #{dcgan_discriminator_forward.6} parent=5 // pred_check
      %p128 = pneg %p127
    $region18: #{dcgan_discriminator_forward.6} parent=5 // pred_check_branch
      %130 = sbr.rel (%p128) target = $region20
    $region19: #{dcgan_discriminator_forward.6} parent=5 // pred_region
      // Predicated region
      $region21: #{dcgan_discriminator_forward.6} parent=19 // pred_check
        %p131 = pneg %p30
      $region22: #{dcgan_discriminator_forward.6} parent=19 // pred_check_branch
        %133 = sbr.rel (%p131) target = $region24
      $region23: #{dcgan_discriminator_forward.6} parent=19 // pred_region
        %s134 = smul.u32 4, %s10
        %p135 = scmp.lt.s32.totalorder %s134, 7
        %s136 = scalar_select %p135, %s134, 7
        %s137 = smul.addr %s136, 5
        %s138 = smul.addr %s137, 4
        %s139 = scalar_lea.vmem %s0, %s138
        %s140 = smul.u32 4, %s10
      $region24: #{dcgan_discriminator_forward.6} parent=19 // pred_fallthru
        _
    $region20: #{dcgan_discriminator_forward.6} parent=5 // pred_fallthru
      _
    %p141 = scmp.le.s32.totalorder 1, %s10
    %p142 = scmp.lt.s32.totalorder %s10, 3
    %p143 = pnand %p141, %p142
    %p144 = pneg %p143
    // Predicated region
    $region25: #{dcgan_discriminator_forward.6} parent=5 // pred_check
      _
    $region26: #{dcgan_discriminator_forward.6} parent=5 // pred_check_branch
      %146 = sbr.rel (%p143) target = $region28
    $region27: #{dcgan_discriminator_forward.6} parent=5 // pred_region
      %s147 = ssub.s32 %s10, 1
      %s148 = smul.u32 4, %s15
      %p149 = scmp.lt.s32.totalorder %s148, 7
      %s150 = scalar_select %p149, %s148, 7
      %s151 = smul.addr %s150, 5
      %s152 = smul.addr %s151, 4
      %s153 = scalar_lea.vmem %s0, %s152
      %p154 = pneg %p36
      %p155 = pneg %p33
      %p156 = pneg %p57
      %p157 = pneg %p54
      %p158 = pneg %p83
      %p159 = pneg %p80
      %p160 = scmp.lt.s32.totalorder %s15, 1
      %s161 = scalar_select %p160, %s15, 1
      %s162 = smul.addr %s161, 2
      %s163 = smul.addr %s162, 8
      %s164 = scalar_lea.vmem %s2, %s163
      %p165 = pneg %p109
      %p166 = pneg %p106
      %p167 = scmp.lt.s32.totalorder %s15, 1
      %s168 = scalar_select %p167, %s15, 1
      %s169 = smul.addr %s168, 2
      %s170 = scalar_lea.vmem %s3, %s169
      %s171 = smul.u32 4, %s15
      %p172 = scmp.lt.s32.totalorder %s171, 7
      %s173 = scalar_select %p172, %s171, 7
      %s174 = smul.addr %s173, 5
      %s175 = smul.addr %s174, 4
      %s176 = scalar_lea.vmem %s0, %s175
      %s177 = smul.u32 4, %s15
      %p178 = scmp.lt.s32.totalorder %s15, 1
      %s179 = scalar_select %p178, %s15, 1
      %s180 = smul.addr %s179, 2
      %s181 = smul.addr %s180, 8
      %s182 = scalar_lea.vmem %s2, %s181
      %p183 = scmp.lt.s32.totalorder %s15, 1
      %s184 = scalar_select %p183, %s15, 1
      %s185 = smul.addr %s184, 2
      %s186 = scalar_lea.vmem %s3, %s185
      %v188 = vld [vmem:[%s176] sm:$0x3]
      %v189 = vld [vmem:[%s176 + $0x4] sm:$0x3]
      %v190 = vld [vmem:[%s176 + $0x8] sm:$0x3]
      %v191 = vld [vmem:[%s176 + $0xc] sm:$0x3]
      %v192 = vld [vmem:[%s1] sm:$0xf]
      %s193 = scalar_lea.vmem %s176, 20
      %v194 = vld [vmem:[%s193] sm:$0x3]
      %v195 = vld [vmem:[%s193 + $0x4] sm:$0x3]
      %v196 = vld [vmem:[%s193 + $0x8] sm:$0x3]
      %v197 = vld [vmem:[%s193 + $0xc] sm:$0x3]
      %s198 = scalar_lea.vmem %s1, 4
      %v199 = vld [vmem:[%s198] sm:$0xf]
      %v204 = vcombine.low %v194, %v195
      %v205 = vcombine.low %v196, %v197
      %v207 = vunpack.c.l.s4 1983009808
      %v208 = vunpack.c.0.s8 %v207
      %v209 = vlaneseq
      %v210 = vshrl.u32 %v209, 7
      %v211 = vsub.s32 %v208, %v210
      %v212 = vrot.slane %v204, %v211
      %v214 = vunpack.c.l.s4 1983009808
      %v215 = vunpack.c.0.s8 %v214
      %v216 = vlaneseq
      %v217 = vshrl.u32 %v216, 7
      %v218 = vsub.s32 %v215, %v217
      %v219 = vrot.slane %v205, %v218
      %v220 = vcombine.low %v212, %v219
      %vm221 = vcmask 64512
      %v223 = vsel %vm221, %v220, 0
      %vm225 = vcmask 1043456
      %v227 = vsel %vm225, %v199, 0
      %229 = vmatprep.subr.bf16.mxu0 0
      %230 = vmatpush1.bf16.msra.mxu0 %v227
      %231 = vmatprep.subr.bf16.mxu0 0
      %232 = vmatpush1.bf16.msra.mxu0 0
      %233 = vmatprep.subr.bf16.mxu0 0
      %234 = vmatpush1.bf16.msra.mxu0 0
      %235 = vmatprep.subr.bf16.mxu0 0
      %236 = vmatpush1.bf16.msra.mxu0 0
      %237 = vmatprep.subr.bf16.mxu0 0
      %238 = vmatpush1.bf16.msra.mxu0 0
      %239 = vmatprep.subr.bf16.mxu0 0
      %240 = vmatpush1.bf16.msra.mxu0 0
      %241 = vmatprep.subr.bf16.mxu0 0
      %242 = vmatpush1.bf16.msra.mxu0 0
      %243 = vmatprep.subr.bf16.mxu0 0
      %244 = vmatpush1.bf16.msra.mxu0 0
      %245 = vmatprep.subr.bf16.mxu0 0
      %246 = vmatpush1.bf16.msra.mxu0 0
      %247 = vmatprep.subr.bf16.mxu0 0
      %248 = vmatpush1.bf16.msra.mxu0 0
      %249 = vmatprep.subr.bf16.mxu0 0
      %250 = vmatpush1.bf16.msra.mxu0 0
      %251 = vmatprep.subr.bf16.mxu0 0
      %252 = vmatpush1.bf16.msra.mxu0 0
      %253 = vmatprep.subr.bf16.mxu0 0
      %254 = vmatpush1.bf16.msra.mxu0 0
      %255 = vmatprep.subr.bf16.mxu0 0
      %256 = vmatpush1.bf16.msra.mxu0 0
      %257 = vmatprep.subr.bf16.mxu0 0
      %258 = vmatpush1.bf16.msra.mxu0 0
      %259 = vmatprep.subr.bf16.mxu0 0
      %260 = vmatpush1.bf16.msra.mxu0 0
      %261 = vmatprep.mubr.bf16.mxu0 0
      %262 = vmatmul.mubr.bf16.gmra.mrb[0].mxu0 %v223
      %v263 = vpop.f32.mrb[0].mxu0
      %v264 = vadd.f32 0.0, %v263
      %v265 = vpop.f32.mrb[0].mxu0
      %v266 = vpop.f32.mrb[0].mxu0
      %v267 = vadd.f32 0.0, %v266
      %v268 = vpop.f32.mrb[0].mxu0
      %269 = vdwg.mxu0
      %v274 = vcombine.low %v188, %v189
      %v275 = vcombine.low %v190, %v191
      %v277 = vunpack.c.l.s4 1983009808
      %v278 = vunpack.c.0.s8 %v277
      %v279 = vlaneseq
      %v280 = vshrl.u32 %v279, 7
      %v281 = vsub.s32 %v278, %v280
      %v282 = vrot.slane %v274, %v281
      %v284 = vunpack.c.l.s4 1983009808
      %v285 = vunpack.c.0.s8 %v284
      %v286 = vlaneseq
      %v287 = vshrl.u32 %v286, 7
      %v288 = vsub.s32 %v285, %v287
      %v289 = vrot.slane %v275, %v288
      %v290 = vcombine.low %v282, %v289
      %v292 = vsel %vm221, %v290, 0
      %v295 = vsel %vm225, %v192, 0
      %297 = vmatprep.subr.bf16.mxu0 0
      %298 = vmatpush1.bf16.msra.mxu0 %v295
      %299 = vmatprep.subr.bf16.mxu0 0
      %300 = vmatpush1.bf16.msra.mxu0 0
      %301 = vmatprep.subr.bf16.mxu0 0
      %302 = vmatpush1.bf16.msra.mxu0 0
      %303 = vmatprep.subr.bf16.mxu0 0
      %304 = vmatpush1.bf16.msra.mxu0 0
      %305 = vmatprep.subr.bf16.mxu0 0
      %306 = vmatpush1.bf16.msra.mxu0 0
      %307 = vmatprep.subr.bf16.mxu0 0
      %308 = vmatpush1.bf16.msra.mxu0 0
      %309 = vmatprep.subr.bf16.mxu0 0
      %310 = vmatpush1.bf16.msra.mxu0 0
      %311 = vmatprep.subr.bf16.mxu0 0
      %312 = vmatpush1.bf16.msra.mxu0 0
      %313 = vmatprep.subr.bf16.mxu0 0
      %314 = vmatpush1.bf16.msra.mxu0 0
      %315 = vmatprep.subr.bf16.mxu0 0
      %316 = vmatpush1.bf16.msra.mxu0 0
      %317 = vmatprep.subr.bf16.mxu0 0
      %318 = vmatpush1.bf16.msra.mxu0 0
      %319 = vmatprep.subr.bf16.mxu0 0
      %320 = vmatpush1.bf16.msra.mxu0 0
      %321 = vmatprep.subr.bf16.mxu0 0
      %322 = vmatpush1.bf16.msra.mxu0 0
      %323 = vmatprep.subr.bf16.mxu0 0
      %324 = vmatpush1.bf16.msra.mxu0 0
      %325 = vmatprep.subr.bf16.mxu0 0
      %326 = vmatpush1.bf16.msra.mxu0 0
      %327 = vmatprep.subr.bf16.mxu0 0
      %328 = vmatpush1.bf16.msra.mxu0 0
      %329 = vmatprep.mubr.bf16.mxu0 0
      %330 = vmatmul.mubr.bf16.gmra.mrb[0].mxu0 %v292
      %v331 = vpop.f32.mrb[0].mxu0
      %v332 = vadd.f32 %v264, %v331
      %v333 = vpop.f32.mrb[0].mxu0
      %v334 = vpop.f32.mrb[0].mxu0
      %v335 = vadd.f32 %v267, %v334
      %v336 = vpop.f32.mrb[0].mxu0
      %337 = vdwg.mxu0
      %v338 = vld [vmem:[%s176] sm:$0x7]
      %v339 = vld [vmem:[%s176 + $0x4] sm:$0x7]
      %v340 = vld [vmem:[%s176 + $0x8] sm:$0x7]
      %v341 = vld [vmem:[%s176 + $0xc] sm:$0x7]
      %v347 = vunpack.c.l.s4 1983009808
      %v348 = vunpack.c.0.s8 %v347
      %v349 = vlaneseq
      %v350 = vshrl.u32 %v349, 7
      %v351 = vsub.s32 %v348, %v350
      %v352 = vrot.slane %v338, %v351
      %v353 = vcombine.high %v352, %v352
      %v355 = vunpack.c.l.s4 1983009808
      %v356 = vunpack.c.0.s8 %v355
      %v357 = vlaneseq
      %v358 = vshrl.u32 %v357, 7
      %v359 = vsub.s32 %v356, %v358
      %v360 = vrot.slane %v339, %v359
      %v361 = vcombine.high %v360, %v360
      %v363 = vunpack.c.l.s4 1983009808
      %v364 = vunpack.c.0.s8 %v363
      %v365 = vlaneseq
      %v366 = vshrl.u32 %v365, 7
      %v367 = vsub.s32 %v364, %v366
      %v368 = vrot.slane %v340, %v367
      %v369 = vcombine.high %v368, %v368
      %v371 = vunpack.c.l.s4 1983009808
      %v372 = vunpack.c.0.s8 %v371
      %v373 = vlaneseq
      %v374 = vshrl.u32 %v373, 7
      %v375 = vsub.s32 %v372, %v374
      %v376 = vrot.slane %v341, %v375
      %v377 = vcombine.high %v376, %v376
      %vm378 = vsmask.f32 1280
      %vm379 = vsmask.f32 3336
      %vm380 = vmor %vm378, %vm379
      %vm381 = vsmask.f32 5392
      %vm382 = vmor %vm380, %vm381
      %vm383 = vsmask.f32 7448
      %vm384 = vmor %vm382, %vm383
      %v386 = vshrl.u32 %v352, 16
      %v388 = vrot.slane %v386, 6
      %v389 = vshll.u32 %v352, 16
      %v391 = vrot.slane %v389, 7
      %v392 = vor.u32 %v388, %v391
      %v393 = vrot.slane %v392, 2
      %v395 = vshll.u32 %v353, 16
      %v397 = vrot.slane %v395, 7
      %v398 = vsel %vm384, %v393, %v397
      %v400 = vshrl.u32 %v360, 16
      %v402 = vrot.slane %v400, 6
      %v403 = vshll.u32 %v360, 16
      %v405 = vrot.slane %v403, 7
      %v406 = vor.u32 %v402, %v405
      %v407 = vrot.slane %v406, 2
      %v409 = vshll.u32 %v361, 16
      %v411 = vrot.slane %v409, 7
      %v412 = vsel %vm384, %v407, %v411
      %v414 = vshrl.u32 %v368, 16
      %v416 = vrot.slane %v414, 6
      %v417 = vshll.u32 %v368, 16
      %v419 = vrot.slane %v417, 7
      %v420 = vor.u32 %v416, %v419
      %v421 = vrot.slane %v420, 2
      %v423 = vshll.u32 %v369, 16
      %v425 = vrot.slane %v423, 7
      %v426 = vsel %vm384, %v421, %v425
      %v428 = vshrl.u32 %v376, 16
      %v430 = vrot.slane %v428, 6
      %v431 = vshll.u32 %v376, 16
      %v433 = vrot.slane %v431, 7
      %v434 = vor.u32 %v430, %v433
      %v435 = vrot.slane %v434, 2
      %v437 = vshll.u32 %v377, 16
      %v439 = vrot.slane %v437, 7
      %v440 = vsel %vm384, %v435, %v439
      %s441 = scalar_lea.vmem %s1, 8
      %v442 = vld [vmem:[%s441] sm:$0xf]
      %v443 = vcombine.low %v398, %v412
      %v444 = vcombine.low %v426, %v440
      %v446 = vunpack.c.l.s4 1983009808
      %v447 = vunpack.c.0.s8 %v446
      %v448 = vlaneseq
      %v449 = vshrl.u32 %v448, 7
      %v450 = vsub.s32 %v447, %v449
      %v451 = vrot.slane %v443, %v450
      %v453 = vunpack.c.l.s4 1983009808
      %v454 = vunpack.c.0.s8 %v453
      %v455 = vlaneseq
      %v456 = vshrl.u32 %v455, 7
      %v457 = vsub.s32 %v454, %v456
      %v458 = vrot.slane %v444, %v457
      %v459 = vcombine.low %v451, %v458
      %v461 = vsel %vm221, %v459, 0
      %v464 = vsel %vm225, %v442, 0
      %466 = vmatprep.subr.bf16.mxu0 0
      %467 = vmatpush1.bf16.msra.mxu0 %v464
      %468 = vmatprep.subr.bf16.mxu0 0
      %469 = vmatpush1.bf16.msra.mxu0 0
      %470 = vmatprep.subr.bf16.mxu0 0
      %471 = vmatpush1.bf16.msra.mxu0 0
      %472 = vmatprep.subr.bf16.mxu0 0
      %473 = vmatpush1.bf16.msra.mxu0 0
      %474 = vmatprep.subr.bf16.mxu0 0
      %475 = vmatpush1.bf16.msra.mxu0 0
      %476 = vmatprep.subr.bf16.mxu0 0
      %477 = vmatpush1.bf16.msra.mxu0 0
      %478 = vmatprep.subr.bf16.mxu0 0
      %479 = vmatpush1.bf16.msra.mxu0 0
      %480 = vmatprep.subr.bf16.mxu0 0
      %481 = vmatpush1.bf16.msra.mxu0 0
      %482 = vmatprep.subr.bf16.mxu0 0
      %483 = vmatpush1.bf16.msra.mxu0 0
      %484 = vmatprep.subr.bf16.mxu0 0
      %485 = vmatpush1.bf16.msra.mxu0 0
      %486 = vmatprep.subr.bf16.mxu0 0
      %487 = vmatpush1.bf16.msra.mxu0 0
      %488 = vmatprep.subr.bf16.mxu0 0
      %489 = vmatpush1.bf16.msra.mxu0 0
      %490 = vmatprep.subr.bf16.mxu0 0
      %491 = vmatpush1.bf16.msra.mxu0 0
      %492 = vmatprep.subr.bf16.mxu0 0
      %493 = vmatpush1.bf16.msra.mxu0 0
      %494 = vmatprep.subr.bf16.mxu0 0
      %495 = vmatpush1.bf16.msra.mxu0 0
      %496 = vmatprep.subr.bf16.mxu0 0
      %497 = vmatpush1.bf16.msra.mxu0 0
      %498 = vmatprep.mubr.bf16.mxu0 0
      %499 = vmatmul.mubr.bf16.gmra.mrb[0].mxu0 %v461
      %v500 = vpop.f32.mrb[0].mxu0
      %v501 = vadd.f32 0.0, %v500
      %v502 = vpop.f32.mrb[0].mxu0
      %v503 = vpop.f32.mrb[0].mxu0
      %v504 = vadd.f32 0.0, %v503
      %v505 = vpop.f32.mrb[0].mxu0
      %506 = vdwg.mxu0
      %v507 = vadd.f32 %v332, %v501
      %v508 = vadd.f32 %v335, %v504
      %v509 = vld [vmem:[%s193] sm:$0x7]
      %v510 = vld [vmem:[%s193 + $0x4] sm:$0x7]
      %v511 = vld [vmem:[%s193 + $0x8] sm:$0x7]
      %v512 = vld [vmem:[%s193 + $0xc] sm:$0x7]
      %v518 = vunpack.c.l.s4 1983009808
      %v519 = vunpack.c.0.s8 %v518
      %v520 = vlaneseq
      %v521 = vshrl.u32 %v520, 7
      %v522 = vsub.s32 %v519, %v521
      %v523 = vrot.slane %v509, %v522
      %v524 = vcombine.high %v523, %v523
      %v526 = vunpack.c.l.s4 1983009808
      %v527 = vunpack.c.0.s8 %v526
      %v528 = vlaneseq
      %v529 = vshrl.u32 %v528, 7
      %v530 = vsub.s32 %v527, %v529
      %v531 = vrot.slane %v510, %v530
      %v532 = vcombine.high %v531, %v531
      %v534 = vunpack.c.l.s4 1983009808
      %v535 = vunpack.c.0.s8 %v534
      %v536 = vlaneseq
      %v537 = vshrl.u32 %v536, 7
      %v538 = vsub.s32 %v535, %v537
      %v539 = vrot.slane %v511, %v538
      %v540 = vcombine.high %v539, %v539
      %v542 = vunpack.c.l.s4 1983009808
      %v543 = vunpack.c.0.s8 %v542
      %v544 = vlaneseq
      %v545 = vshrl.u32 %v544, 7
      %v546 = vsub.s32 %v543, %v545
      %v547 = vrot.slane %v512, %v546
      %v548 = vcombine.high %v547, %v547
      %v550 = vshrl.u32 %v523, 16
      %v552 = vrot.slane %v550, 6
      %v553 = vshll.u32 %v523, 16
      %v555 = vrot.slane %v553, 7
      %v556 = vor.u32 %v552, %v555
      %v557 = vrot.slane %v556, 2
      %v559 = vshll.u32 %v524, 16
      %v561 = vrot.slane %v559, 7
      %v562 = vsel %vm384, %v557, %v561
      %v564 = vshrl.u32 %v531, 16
      %v566 = vrot.slane %v564, 6
      %v567 = vshll.u32 %v531, 16
      %v569 = vrot.slane %v567, 7
      %v570 = vor.u32 %v566, %v569
      %v571 = vrot.slane %v570, 2
      %v573 = vshll.u32 %v532, 16
      %v575 = vrot.slane %v573, 7
      %v576 = vsel %vm384, %v571, %v575
      %v578 = vshrl.u32 %v539, 16
      %v580 = vrot.slane %v578, 6
      %v581 = vshll.u32 %v539, 16
      %v583 = vrot.slane %v581, 7
      %v584 = vor.u32 %v580, %v583
      %v585 = vrot.slane %v584, 2
      %v587 = vshll.u32 %v540, 16
      %v589 = vrot.slane %v587, 7
      %v590 = vsel %vm384, %v585, %v589
      %v592 = vshrl.u32 %v547, 16
      %v594 = vrot.slane %v592, 6
      %v595 = vshll.u32 %v547, 16
      %v597 = vrot.slane %v595, 7
      %v598 = vor.u32 %v594, %v597
      %v599 = vrot.slane %v598, 2
      %v601 = vshll.u32 %v548, 16
      %v603 = vrot.slane %v601, 7
      %v604 = vsel %vm384, %v599, %v603
      %s605 = scalar_lea.vmem %s1, 12
      %v606 = vld [vmem:[%s605] sm:$0xf]
      %v607 = vcombine.low %v562, %v576
      %v608 = vcombine.low %v590, %v604
      %v610 = vunpack.c.l.s4 1983009808
      %v611 = vunpack.c.0.s8 %v610
      %v612 = vlaneseq
      %v613 = vshrl.u32 %v612, 7
      %v614 = vsub.s32 %v611, %v613
      %v615 = vrot.slane %v607, %v614
      %v617 = vunpack.c.l.s4 1983009808
      %v618 = vunpack.c.0.s8 %v617
      %v619 = vlaneseq
      %v620 = vshrl.u32 %v619, 7
      %v621 = vsub.s32 %v618, %v620
      %v622 = vrot.slane %v608, %v621
      %v623 = vcombine.low %v615, %v622
      %v625 = vsel %vm221, %v623, 0
      %v628 = vsel %vm225, %v606, 0
      %630 = vmatprep.subr.bf16.mxu0 0
      %631 = vmatpush1.bf16.msra.mxu0 %v628
      %632 = vmatprep.subr.bf16.mxu0 0
      %633 = vmatpush1.bf16.msra.mxu0 0
      %634 = vmatprep.subr.bf16.mxu0 0
      %635 = vmatpush1.bf16.msra.mxu0 0
      %636 = vmatprep.subr.bf16.mxu0 0
      %637 = vmatpush1.bf16.msra.mxu0 0
      %638 = vmatprep.subr.bf16.mxu0 0
      %639 = vmatpush1.bf16.msra.mxu0 0
      %640 = vmatprep.subr.bf16.mxu0 0
      %641 = vmatpush1.bf16.msra.mxu0 0
      %642 = vmatprep.subr.bf16.mxu0 0
      %643 = vmatpush1.bf16.msra.mxu0 0
      %644 = vmatprep.subr.bf16.mxu0 0
      %645 = vmatpush1.bf16.msra.mxu0 0
      %646 = vmatprep.subr.bf16.mxu0 0
      %647 = vmatpush1.bf16.msra.mxu0 0
      %648 = vmatprep.subr.bf16.mxu0 0
      %649 = vmatpush1.bf16.msra.mxu0 0
      %650 = vmatprep.subr.bf16.mxu0 0
      %651 = vmatpush1.bf16.msra.mxu0 0
      %652 = vmatprep.subr.bf16.mxu0 0
      %653 = vmatpush1.bf16.msra.mxu0 0
      %654 = vmatprep.subr.bf16.mxu0 0
      %655 = vmatpush1.bf16.msra.mxu0 0
      %656 = vmatprep.subr.bf16.mxu0 0
      %657 = vmatpush1.bf16.msra.mxu0 0
      %658 = vmatprep.subr.bf16.mxu0 0
      %659 = vmatpush1.bf16.msra.mxu0 0
      %660 = vmatprep.subr.bf16.mxu0 0
      %661 = vmatpush1.bf16.msra.mxu0 0
      %662 = vmatprep.mubr.bf16.mxu0 0
      %663 = vmatmul.mubr.bf16.gmra.mrb[0].mxu0 %v625
      %v664 = vpop.f32.mrb[0].mxu0
      %v665 = vadd.f32 0.0, %v664
      %v666 = vpop.f32.mrb[0].mxu0
      %v667 = vpop.f32.mrb[0].mxu0
      %v668 = vadd.f32 0.0, %v667
      %v669 = vpop.f32.mrb[0].mxu0
      %670 = vdwg.mxu0
      %v671 = vadd.f32 %v507, %v665
      %v672 = vadd.f32 %v508, %v668
      %s673 = scalar_lea.vmem %s176, 40
      %v674 = vld [vmem:[%s673] sm:$0x3]
      %v675 = vld [vmem:[%s673 + $0x4] sm:$0x3]
      %v676 = vld [vmem:[%s673 + $0x8] sm:$0x3]
      %v677 = vld [vmem:[%s673 + $0xc] sm:$0x3]
      %s678 = scalar_lea.vmem %s1, 16
      %v679 = vld [vmem:[%s678] sm:$0xf]
      %v684 = vcombine.low %v674, %v675
      %v685 = vcombine.low %v676, %v677
      %v687 = vunpack.c.l.s4 1983009808
      %v688 = vunpack.c.0.s8 %v687
      %v689 = vlaneseq
      %v690 = vshrl.u32 %v689, 7
      %v691 = vsub.s32 %v688, %v690
      %v692 = vrot.slane %v684, %v691
      %v694 = vunpack.c.l.s4 1983009808
      %v695 = vunpack.c.0.s8 %v694
      %v696 = vlaneseq
      %v697 = vshrl.u32 %v696, 7
      %v698 = vsub.s32 %v695, %v697
      %v699 = vrot.slane %v685, %v698
      %v700 = vcombine.low %v692, %v699
      %v702 = vsel %vm221, %v700, 0
      %v705 = vsel %vm225, %v679, 0
      %707 = vmatprep.subr.bf16.mxu0 0
      %708 = vmatpush1.bf16.msra.mxu0 %v705
      %709 = vmatprep.subr.bf16.mxu0 0
      %710 = vmatpush1.bf16.msra.mxu0 0
      %711 = vmatprep.subr.bf16.mxu0 0
      %712 = vmatpush1.bf16.msra.mxu0 0
      %713 = vmatprep.subr.bf16.mxu0 0
      %714 = vmatpush1.bf16.msra.mxu0 0
      %715 = vmatprep.subr.bf16.mxu0 0
      %716 = vmatpush1.bf16.msra.mxu0 0
      %717 = vmatprep.subr.bf16.mxu0 0
      %718 = vmatpush1.bf16.msra.mxu0 0
      %719 = vmatprep.subr.bf16.mxu0 0
      %720 = vmatpush1.bf16.msra.mxu0 0
      %721 = vmatprep.subr.bf16.mxu0 0
      %722 = vmatpush1.bf16.msra.mxu0 0
      %723 = vmatprep.subr.bf16.mxu0 0
      %724 = vmatpush1.bf16.msra.mxu0 0
      %725 = vmatprep.subr.bf16.mxu0 0
      %726 = vmatpush1.bf16.msra.mxu0 0
      %727 = vmatprep.subr.bf16.mxu0 0
      %728 = vmatpush1.bf16.msra.mxu0 0
      %729 = vmatprep.subr.bf16.mxu0 0
      %730 = vmatpush1.bf16.msra.mxu0 0
      %731 = vmatprep.subr.bf16.mxu0 0
      %732 = vmatpush1.bf16.msra.mxu0 0
      %733 = vmatprep.subr.bf16.mxu0 0
      %734 = vmatpush1.bf16.msra.mxu0 0
      %735 = vmatprep.subr.bf16.mxu0 0
      %736 = vmatpush1.bf16.msra.mxu0 0
      %737 = vmatprep.subr.bf16.mxu0 0
      %738 = vmatpush1.bf16.msra.mxu0 0
      %739 = vmatprep.mubr.bf16.mxu0 0
      %740 = vmatmul.mubr.bf16.gmra.mrb[0].mxu0 %v702
      %v741 = vpop.f32.mrb[0].mxu0
      %v742 = vadd.f32 0.0, %v741
      %v743 = vpop.f32.mrb[0].mxu0
      %v744 = vpop.f32.mrb[0].mxu0
      %v745 = vadd.f32 0.0, %v744
      %v746 = vpop.f32.mrb[0].mxu0
      %747 = vdwg.mxu0
      %v748 = vadd.f32 %v671, %v742
      %v749 = vadd.f32 %v672, %v745
      %s750 = scalar_lea.vmem %s176, 60
      %v751 = vld [vmem:[%s750] sm:$0x3]
      %v752 = vld [vmem:[%s750 + $0x4] sm:$0x3]
      %v753 = vld [vmem:[%s750 + $0x8] sm:$0x3]
      %v754 = vld [vmem:[%s750 + $0xc] sm:$0x3]
      %s755 = scalar_lea.vmem %s1, 20
      %v756 = vld [vmem:[%s755] sm:$0xf]
      %v761 = vcombine.low %v751, %v752
      %v762 = vcombine.low %v753, %v754
      %v764 = vunpack.c.l.s4 1983009808
      %v765 = vunpack.c.0.s8 %v764
      %v766 = vlaneseq
      %v767 = vshrl.u32 %v766, 7
      %v768 = vsub.s32 %v765, %v767
      %v769 = vrot.slane %v761, %v768
      %v771 = vunpack.c.l.s4 1983009808
      %v772 = vunpack.c.0.s8 %v771
      %v773 = vlaneseq
      %v774 = vshrl.u32 %v773, 7
      %v775 = vsub.s32 %v772, %v774
      %v776 = vrot.slane %v762, %v775
      %v777 = vcombine.low %v769, %v776
      %v779 = vsel %vm221, %v777, 0
      %v782 = vsel %vm225, %v756, 0
      %784 = vmatprep.subr.bf16.mxu0 0
      %785 = vmatpush1.bf16.msra.mxu0 %v782
      %786 = vmatprep.subr.bf16.mxu0 0
      %787 = vmatpush1.bf16.msra.mxu0 0
      %788 = vmatprep.subr.bf16.mxu0 0
      %789 = vmatpush1.bf16.msra.mxu0 0
      %790 = vmatprep.subr.bf16.mxu0 0
      %791 = vmatpush1.bf16.msra.mxu0 0
      %792 = vmatprep.subr.bf16.mxu0 0
      %793 = vmatpush1.bf16.msra.mxu0 0
      %794 = vmatprep.subr.bf16.mxu0 0
      %795 = vmatpush1.bf16.msra.mxu0 0
      %796 = vmatprep.subr.bf16.mxu0 0
      %797 = vmatpush1.bf16.msra.mxu0 0
      %798 = vmatprep.subr.bf16.mxu0 0
      %799 = vmatpush1.bf16.msra.mxu0 0
      %800 = vmatprep.subr.bf16.mxu0 0
      %801 = vmatpush1.bf16.msra.mxu0 0
      %802 = vmatprep.subr.bf16.mxu0 0
      %803 = vmatpush1.bf16.msra.mxu0 0
      %804 = vmatprep.subr.bf16.mxu0 0
      %805 = vmatpush1.bf16.msra.mxu0 0
      %806 = vmatprep.subr.bf16.mxu0 0
      %807 = vmatpush1.bf16.msra.mxu0 0
      %808 = vmatprep.subr.bf16.mxu0 0
      %809 = vmatpush1.bf16.msra.mxu0 0
      %810 = vmatprep.subr.bf16.mxu0 0
      %811 = vmatpush1.bf16.msra.mxu0 0
      %812 = vmatprep.subr.bf16.mxu0 0
      %813 = vmatpush1.bf16.msra.mxu0 0
      %814 = vmatprep.subr.bf16.mxu0 0
      %815 = vmatpush1.bf16.msra.mxu0 0
      %816 = vmatprep.mubr.bf16.mxu0 0
      %817 = vmatmul.mubr.bf16.gmra.mrb[0].mxu0 %v779
      %v818 = vpop.f32.mrb[0].mxu0
      %v819 = vadd.f32 0.0, %v818
      %v820 = vpop.f32.mrb[0].mxu0
      %v821 = vpop.f32.mrb[0].mxu0
      %v822 = vadd.f32 0.0, %v821
      %v823 = vpop.f32.mrb[0].mxu0
      %824 = vdwg.mxu0
      %v825 = vadd.f32 %v748, %v819
      %v826 = vadd.f32 %v749, %v822
      %v827 = vld [vmem:[%s673] sm:$0x7]
      %v828 = vld [vmem:[%s673 + $0x4] sm:$0x7]
      %v829 = vld [vmem:[%s673 + $0x8] sm:$0x7]
      %v830 = vld [vmem:[%s673 + $0xc] sm:$0x7]
      %v836 = vunpack.c.l.s4 1983009808
      %v837 = vunpack.c.0.s8 %v836
      %v838 = vlaneseq
      %v839 = vshrl.u32 %v838, 7
      %v840 = vsub.s32 %v837, %v839
      %v841 = vrot.slane %v827, %v840
      %v842 = vcombine.high %v841, %v841
      %v844 = vunpack.c.l.s4 1983009808
      %v845 = vunpack.c.0.s8 %v844
      %v846 = vlaneseq
      %v847 = vshrl.u32 %v846, 7
      %v848 = vsub.s32 %v845, %v847
      %v849 = vrot.slane %v828, %v848
      %v850 = vcombine.high %v849, %v849
      %v852 = vunpack.c.l.s4 1983009808
      %v853 = vunpack.c.0.s8 %v852
      %v854 = vlaneseq
      %v855 = vshrl.u32 %v854, 7
      %v856 = vsub.s32 %v853, %v855
      %v857 = vrot.slane %v829, %v856
      %v858 = vcombine.high %v857, %v857
      %v860 = vunpack.c.l.s4 1983009808
      %v861 = vunpack.c.0.s8 %v860
      %v862 = vlaneseq
      %v863 = vshrl.u32 %v862, 7
      %v864 = vsub.s32 %v861, %v863
      %v865 = vrot.slane %v830, %v864
      %v866 = vcombine.high %v865, %v865
      %v868 = vshrl.u32 %v841, 16
      %v870 = vrot.slane %v868, 6
      %v871 = vshll.u32 %v841, 16
      %v873 = vrot.slane %v871, 7
      %v874 = vor.u32 %v870, %v873
      %v875 = vrot.slane %v874, 2
      %v877 = vshll.u32 %v842, 16
      %v879 = vrot.slane %v877, 7
      %v880 = vsel %vm384, %v875, %v879
      %v882 = vshrl.u32 %v849, 16
      %v884 = vrot.slane %v882, 6
      %v885 = vshll.u32 %v849, 16
      %v887 = vrot.slane %v885, 7
      %v888 = vor.u32 %v884, %v887
      %v889 = vrot.slane %v888, 2
      %v891 = vshll.u32 %v850, 16
      %v893 = vrot.slane %v891, 7
      %v894 = vsel %vm384, %v889, %v893
      %v896 = vshrl.u32 %v857, 16
      %v898 = vrot.slane %v896, 6
      %v899 = vshll.u32 %v857, 16
      %v901 = vrot.slane %v899, 7
      %v902 = vor.u32 %v898, %v901
      %v903 = vrot.slane %v902, 2
      %v905 = vshll.u32 %v858, 16
      %v907 = vrot.slane %v905, 7
      %v908 = vsel %vm384, %v903, %v907
      %v910 = vshrl.u32 %v865, 16
      %v912 = vrot.slane %v910, 6
      %v913 = vshll.u32 %v865, 16
      %v915 = vrot.slane %v913, 7
      %v916 = vor.u32 %v912, %v915
      %v917 = vrot.slane %v916, 2
      %v919 = vshll.u32 %v866, 16
      %v921 = vrot.slane %v919, 7
      %v922 = vsel %vm384, %v917, %v921
      %s923 = scalar_lea.vmem %s1, 24
      %v924 = vld [vmem:[%s923] sm:$0xf]
      %v925 = vcombine.low %v880, %v894
      %v926 = vcombine.low %v908, %v922
      %v928 = vunpack.c.l.s4 1983009808
      %v929 = vunpack.c.0.s8 %v928
      %v930 = vlaneseq
      %v931 = vshrl.u32 %v930, 7
      %v932 = vsub.s32 %v929, %v931
      %v933 = vrot.slane %v925, %v932
      %v935 = vunpack.c.l.s4 1983009808
      %v936 = vunpack.c.0.s8 %v935
      %v937 = vlaneseq
      %v938 = vshrl.u32 %v937, 7
      %v939 = vsub.s32 %v936, %v938
      %v940 = vrot.slane %v926, %v939
      %v941 = vcombine.low %v933, %v940
      %v943 = vsel %vm221, %v941, 0
      %v946 = vsel %vm225, %v924, 0
      %948 = vmatprep.subr.bf16.mxu0 0
      %949 = vmatpush1.bf16.msra.mxu0 %v946
      %950 = vmatprep.subr.bf16.mxu0 0
      %951 = vmatpush1.bf16.msra.mxu0 0
      %952 = vmatprep.subr.bf16.mxu0 0
      %953 = vmatpush1.bf16.msra.mxu0 0
      %954 = vmatprep.subr.bf16.mxu0 0
      %955 = vmatpush1.bf16.msra.mxu0 0
      %956 = vmatprep.subr.bf16.mxu0 0
      %957 = vmatpush1.bf16.msra.mxu0 0
      %958 = vmatprep.subr.bf16.mxu0 0
      %959 = vmatpush1.bf16.msra.mxu0 0
      %960 = vmatprep.subr.bf16.mxu0 0
      %961 = vmatpush1.bf16.msra.mxu0 0
      %962 = vmatprep.subr.bf16.mxu0 0
      %963 = vmatpush1.bf16.msra.mxu0 0
      %964 = vmatprep.subr.bf16.mxu0 0
      %965 = vmatpush1.bf16.msra.mxu0 0
      %966 = vmatprep.subr.bf16.mxu0 0
      %967 = vmatpush1.bf16.msra.mxu0 0
      %968 = vmatprep.subr.bf16.mxu0 0
      %969 = vmatpush1.bf16.msra.mxu0 0
      %970 = vmatprep.subr.bf16.mxu0 0
      %971 = vmatpush1.bf16.msra.mxu0 0
      %972 = vmatprep.subr.bf16.mxu0 0
      %973 = vmatpush1.bf16.msra.mxu0 0
      %974 = vmatprep.subr.bf16.mxu0 0
      %975 = vmatpush1.bf16.msra.mxu0 0
      %976 = vmatprep.subr.bf16.mxu0 0
      %977 = vmatpush1.bf16.msra.mxu0 0
      %978 = vmatprep.subr.bf16.mxu0 0
      %979 = vmatpush1.bf16.msra.mxu0 0
      %980 = vmatprep.mubr.bf16.mxu0 0
      %981 = vmatmul.mubr.bf16.gmra.mrb[0].mxu0 %v943
      %v982 = vpop.f32.mrb[0].mxu0
      %v983 = vadd.f32 0.0, %v982
      %v984 = vpop.f32.mrb[0].mxu0
      %v985 = vpop.f32.mrb[0].mxu0
      %v986 = vadd.f32 0.0, %v985
      %v987 = vpop.f32.mrb[0].mxu0
      %988 = vdwg.mxu0
      %v989 = vadd.f32 %v825, %v983
      %v990 = vadd.f32 %v826, %v986
      %v991 = vld [vmem:[%s750] sm:$0x7]
      %v992 = vld [vmem:[%s750 + $0x4] sm:$0x7]
      %v993 = vld [vmem:[%s750 + $0x8] sm:$0x7]
      %v994 = vld [vmem:[%s750 + $0xc] sm:$0x7]
      %v1000 = vunpack.c.l.s4 1983009808
      %v1001 = vunpack.c.0.s8 %v1000
      %v1002 = vlaneseq
      %v1003 = vshrl.u32 %v1002, 7
      %v1004 = vsub.s32 %v1001, %v1003
      %v1005 = vrot.slane %v991, %v1004
      %v1006 = vcombine.high %v1005, %v1005
      %v1008 = vunpack.c.l.s4 1983009808
      %v1009 = vunpack.c.0.s8 %v1008
      %v1010 = vlaneseq
      %v1011 = vshrl.u32 %v1010, 7
      %v1012 = vsub.s32 %v1009, %v1011
      %v1013 = vrot.slane %v992, %v1012
      %v1014 = vcombine.high %v1013, %v1013
      %v1016 = vunpack.c.l.s4 1983009808
      %v1017 = vunpack.c.0.s8 %v1016
      %v1018 = vlaneseq
      %v1019 = vshrl.u32 %v1018, 7
      %v1020 = vsub.s32 %v1017, %v1019
      %v1021 = vrot.slane %v993, %v1020
      %v1022 = vcombine.high %v1021, %v1021
      %v1024 = vunpack.c.l.s4 1983009808
      %v1025 = vunpack.c.0.s8 %v1024
      %v1026 = vlaneseq
      %v1027 = vshrl.u32 %v1026, 7
      %v1028 = vsub.s32 %v1025, %v1027
      %v1029 = vrot.slane %v994, %v1028
      %v1030 = vcombine.high %v1029, %v1029
      %v1032 = vshrl.u32 %v1005, 16
      %v1034 = vrot.slane %v1032, 6
      %v1035 = vshll.u32 %v1005, 16
      %v1037 = vrot.slane %v1035, 7
      %v1038 = vor.u32 %v1034, %v1037
      %v1039 = vrot.slane %v1038, 2
      %v1041 = vshll.u32 %v1006, 16
      %v1043 = vrot.slane %v1041, 7
      %v1044 = vsel %vm384, %v1039, %v1043
      %v1046 = vshrl.u32 %v1013, 16
      %v1048 = vrot.slane %v1046, 6
      %v1049 = vshll.u32 %v1013, 16
      %v1051 = vrot.slane %v1049, 7
      %v1052 = vor.u32 %v1048, %v1051
      %v1053 = vrot.slane %v1052, 2
      %v1055 = vshll.u32 %v1014, 16
      %v1057 = vrot.slane %v1055, 7
      %v1058 = vsel %vm384, %v1053, %v1057
      %v1060 = vshrl.u32 %v1021, 16
      %v1062 = vrot.slane %v1060, 6
      %v1063 = vshll.u32 %v1021, 16
      %v1065 = vrot.slane %v1063, 7
      %v1066 = vor.u32 %v1062, %v1065
      %v1067 = vrot.slane %v1066, 2
      %v1069 = vshll.u32 %v1022, 16
      %v1071 = vrot.slane %v1069, 7
      %v1072 = vsel %vm384, %v1067, %v1071
      %v1074 = vshrl.u32 %v1029, 16
      %v1076 = vrot.slane %v1074, 6
      %v1077 = vshll.u32 %v1029, 16
      %v1079 = vrot.slane %v1077, 7
      %v1080 = vor.u32 %v1076, %v1079
      %v1081 = vrot.slane %v1080, 2
      %v1083 = vshll.u32 %v1030, 16
      %v1085 = vrot.slane %v1083, 7
      %v1086 = vsel %vm384, %v1081, %v1085
      %s1087 = scalar_lea.vmem %s1, 28
      %v1088 = vld [vmem:[%s1087] sm:$0xf]
      %v1089 = vcombine.low %v1044, %v1058
      %v1090 = vcombine.low %v1072, %v1086
      %v1092 = vunpack.c.l.s4 1983009808
      %v1093 = vunpack.c.0.s8 %v1092
      %v1094 = vlaneseq
      %v1095 = vshrl.u32 %v1094, 7
      %v1096 = vsub.s32 %v1093, %v1095
      %v1097 = vrot.slane %v1089, %v1096
      %v1099 = vunpack.c.l.s4 1983009808
      %v1100 = vunpack.c.0.s8 %v1099
      %v1101 = vlaneseq
      %v1102 = vshrl.u32 %v1101, 7
      %v1103 = vsub.s32 %v1100, %v1102
      %v1104 = vrot.slane %v1090, %v1103
      %v1105 = vcombine.low %v1097, %v1104
      %v1107 = vsel %vm221, %v1105, 0
      %v1110 = vsel %vm225, %v1088, 0
      %1112 = vmatprep.subr.bf16.mxu0 0
      %1113 = vmatpush1.bf16.msra.mxu0 %v1110
      %1114 = vmatprep.subr.bf16.mxu0 0
      %1115 = vmatpush1.bf16.msra.mxu0 0
      %1116 = vmatprep.subr.bf16.mxu0 0
      %1117 = vmatpush1.bf16.msra.mxu0 0
      %1118 = vmatprep.subr.bf16.mxu0 0
      %1119 = vmatpush1.bf16.msra.mxu0 0
      %1120 = vmatprep.subr.bf16.mxu0 0
      %1121 = vmatpush1.bf16.msra.mxu0 0
      %1122 = vmatprep.subr.bf16.mxu0 0
      %1123 = vmatpush1.bf16.msra.mxu0 0
      %1124 = vmatprep.subr.bf16.mxu0 0
      %1125 = vmatpush1.bf16.msra.mxu0 0
      %1126 = vmatprep.subr.bf16.mxu0 0
      %1127 = vmatpush1.bf16.msra.mxu0 0
      %1128 = vmatprep.subr.bf16.mxu0 0
      %1129 = vmatpush1.bf16.msra.mxu0 0
      %1130 = vmatprep.subr.bf16.mxu0 0
      %1131 = vmatpush1.bf16.msra.mxu0 0
      %1132 = vmatprep.subr.bf16.mxu0 0
      %1133 = vmatpush1.bf16.msra.mxu0 0
      %1134 = vmatprep.subr.bf16.mxu0 0
      %1135 = vmatpush1.bf16.msra.mxu0 0
      %1136 = vmatprep.subr.bf16.mxu0 0
      %1137 = vmatpush1.bf16.msra.mxu0 0
      %1138 = vmatprep.subr.bf16.mxu0 0
      %1139 = vmatpush1.bf16.msra.mxu0 0
      %1140 = vmatprep.subr.bf16.mxu0 0
      %1141 = vmatpush1.bf16.msra.mxu0 0
      %1142 = vmatprep.subr.bf16.mxu0 0
      %1143 = vmatpush1.bf16.msra.mxu0 0
      %1144 = vmatprep.mubr.bf16.mxu0 0
      %1145 = vmatmul.mubr.bf16.gmra.mrb[0].mxu0 %v1107
      %v1146 = vpop.f32.mrb[0].mxu0
      %v1147 = vadd.f32 0.0, %v1146
      %v1148 = vpop.f32.mrb[0].mxu0
      %v1149 = vpop.f32.mrb[0].mxu0
      %v1150 = vadd.f32 0.0, %v1149
      %v1151 = vpop.f32.mrb[0].mxu0
      %1152 = vdwg.mxu0
      %v1153 = vadd.f32 %v989, %v1147
      %v1154 = vadd.f32 %v990, %v1150
      %s1155 = scalar_lea.vmem %s176, 4
      %v1156 = vld [vmem:[%s1155] sm:$0x3]
      %v1157 = vld [vmem:[%s1155 + $0x4] sm:$0x3]
      %v1158 = vld [vmem:[%s1155 + $0x8] sm:$0x3]
      %v1159 = vld [vmem:[%s1155 + $0xc] sm:$0x3]
      %s1160 = scalar_lea.vmem %s1, 32
      %v1161 = vld [vmem:[%s1160] sm:$0xf]
      %v1166 = vcombine.low %v1156, %v1157
      %v1167 = vcombine.low %v1158, %v1159
      %v1169 = vunpack.c.l.s4 1983009808
      %v1170 = vunpack.c.0.s8 %v1169
      %v1171 = vlaneseq
      %v1172 = vshrl.u32 %v1171, 7
      %v1173 = vsub.s32 %v1170, %v1172
      %v1174 = vrot.slane %v1166, %v1173
      %v1176 = vunpack.c.l.s4 1983009808
      %v1177 = vunpack.c.0.s8 %v1176
      %v1178 = vlaneseq
      %v1179 = vshrl.u32 %v1178, 7
      %v1180 = vsub.s32 %v1177, %v1179
      %v1181 = vrot.slane %v1167, %v1180
      %v1182 = vcombine.low %v1174, %v1181
      %v1184 = vsel %vm221, %v1182, 0
      %v1187 = vsel %vm225, %v1161, 0
      %1189 = vmatprep.subr.bf16.mxu0 0
      %1190 = vmatpush1.bf16.msra.mxu0 %v1187
      %1191 = vmatprep.subr.bf16.mxu0 0
      %1192 = vmatpush1.bf16.msra.mxu0 0
      %1193 = vmatprep.subr.bf16.mxu0 0
      %1194 = vmatpush1.bf16.msra.mxu0 0
      %1195 = vmatprep.subr.bf16.mxu0 0
      %1196 = vmatpush1.bf16.msra.mxu0 0
      %1197 = vmatprep.subr.bf16.mxu0 0
      %1198 = vmatpush1.bf16.msra.mxu0 0
      %1199 = vmatprep.subr.bf16.mxu0 0
      %1200 = vmatpush1.bf16.msra.mxu0 0
      %1201 = vmatprep.subr.bf16.mxu0 0
      %1202 = vmatpush1.bf16.msra.mxu0 0
      %1203 = vmatprep.subr.bf16.mxu0 0
      %1204 = vmatpush1.bf16.msra.mxu0 0
      %1205 = vmatprep.subr.bf16.mxu0 0
      %1206 = vmatpush1.bf16.msra.mxu0 0
      %1207 = vmatprep.subr.bf16.mxu0 0
      %1208 = vmatpush1.bf16.msra.mxu0 0
      %1209 = vmatprep.subr.bf16.mxu0 0
      %1210 = vmatpush1.bf16.msra.mxu0 0
      %1211 = vmatprep.subr.bf16.mxu0 0
      %1212 = vmatpush1.bf16.msra.mxu0 0
      %1213 = vmatprep.subr.bf16.mxu0 0
      %1214 = vmatpush1.bf16.msra.mxu0 0
      %1215 = vmatprep.subr.bf16.mxu0 0
      %1216 = vmatpush1.bf16.msra.mxu0 0
      %1217 = vmatprep.subr.bf16.mxu0 0
      %1218 = vmatpush1.bf16.msra.mxu0 0
      %1219 = vmatprep.subr.bf16.mxu0 0
      %1220 = vmatpush1.bf16.msra.mxu0 0
      %1221 = vmatprep.mubr.bf16.mxu0 0
      %1222 = vmatmul.mubr.bf16.gmra.mrb[0].mxu0 %v1184
      %v1223 = vpop.f32.mrb[0].mxu0
      %v1224 = vadd.f32 0.0, %v1223
      %v1225 = vpop.f32.mrb[0].mxu0
      %v1226 = vpop.f32.mrb[0].mxu0
      %v1227 = vadd.f32 0.0, %v1226
      %v1228 = vpop.f32.mrb[0].mxu0
      %1229 = vdwg.mxu0
      %v1230 = vadd.f32 %v1153, %v1224
      %v1231 = vadd.f32 %v1154, %v1227
      %s1232 = scalar_lea.vmem %s176, 24
      %v1233 = vld [vmem:[%s1232] sm:$0x3]
      %v1234 = vld [vmem:[%s1232 + $0x4] sm:$0x3]
      %v1235 = vld [vmem:[%s1232 + $0x8] sm:$0x3]
      %v1236 = vld [vmem:[%s1232 + $0xc] sm:$0x3]
      %s1237 = scalar_lea.vmem %s1, 36
      %v1238 = vld [vmem:[%s1237] sm:$0xf]
      %v1243 = vcombine.low %v1233, %v1234
      %v1244 = vcombine.low %v1235, %v1236
      %v1246 = vunpack.c.l.s4 1983009808
      %v1247 = vunpack.c.0.s8 %v1246
      %v1248 = vlaneseq
      %v1249 = vshrl.u32 %v1248, 7
      %v1250 = vsub.s32 %v1247, %v1249
      %v1251 = vrot.slane %v1243, %v1250
      %v1253 = vunpack.c.l.s4 1983009808
      %v1254 = vunpack.c.0.s8 %v1253
      %v1255 = vlaneseq
      %v1256 = vshrl.u32 %v1255, 7
      %v1257 = vsub.s32 %v1254, %v1256
      %v1258 = vrot.slane %v1244, %v1257
      %v1259 = vcombine.low %v1251, %v1258
      %v1261 = vsel %vm221, %v1259, 0
      %v1264 = vsel %vm225, %v1238, 0
      %1266 = vmatprep.subr.bf16.mxu0 0
      %1267 = vmatpush1.bf16.msra.mxu0 %v1264
      %1268 = vmatprep.subr.bf16.mxu0 0
      %1269 = vmatpush1.bf16.msra.mxu0 0
      %1270 = vmatprep.subr.bf16.mxu0 0
      %1271 = vmatpush1.bf16.msra.mxu0 0
      %1272 = vmatprep.subr.bf16.mxu0 0
      %1273 = vmatpush1.bf16.msra.mxu0 0
      %1274 = vmatprep.subr.bf16.mxu0 0
      %1275 = vmatpush1.bf16.msra.mxu0 0
      %1276 = vmatprep.subr.bf16.mxu0 0
      %1277 = vmatpush1.bf16.msra.mxu0 0
      %1278 = vmatprep.subr.bf16.mxu0 0
      %1279 = vmatpush1.bf16.msra.mxu0 0
      %1280 = vmatprep.subr.bf16.mxu0 0
      %1281 = vmatpush1.bf16.msra.mxu0 0
      %1282 = vmatprep.subr.bf16.mxu0 0
      %1283 = vmatpush1.bf16.msra.mxu0 0
      %1284 = vmatprep.subr.bf16.mxu0 0
      %1285 = vmatpush1.bf16.msra.mxu0 0
      %1286 = vmatprep.subr.bf16.mxu0 0
      %1287 = vmatpush1.bf16.msra.mxu0 0
      %1288 = vmatprep.subr.bf16.mxu0 0
      %1289 = vmatpush1.bf16.msra.mxu0 0
      %1290 = vmatprep.subr.bf16.mxu0 0
      %1291 = vmatpush1.bf16.msra.mxu0 0
      %1292 = vmatprep.subr.bf16.mxu0 0
      %1293 = vmatpush1.bf16.msra.mxu0 0
      %1294 = vmatprep.subr.bf16.mxu0 0
      %1295 = vmatpush1.bf16.msra.mxu0 0
      %1296 = vmatprep.subr.bf16.mxu0 0
      %1297 = vmatpush1.bf16.msra.mxu0 0
      %1298 = vmatprep.mubr.bf16.mxu0 0
      %1299 = vmatmul.mubr.bf16.gmra.mrb[0].mxu0 %v1261
      %v1300 = vpop.f32.mrb[0].mxu0
      %v1301 = vadd.f32 0.0, %v1300
      %v1302 = vpop.f32.mrb[0].mxu0
      %v1303 = vpop.f32.mrb[0].mxu0
      %v1304 = vadd.f32 0.0, %v1303
      %v1305 = vpop.f32.mrb[0].mxu0
      %1306 = vdwg.mxu0
      %v1307 = vadd.f32 %v1230, %v1301
      %v1308 = vadd.f32 %v1231, %v1304
      %v1309 = vld [vmem:[%s1155] sm:$0x7]
      %v1310 = vld [vmem:[%s1155 + $0x4] sm:$0x7]
      %v1311 = vld [vmem:[%s1155 + $0x8] sm:$0x7]
      %v1312 = vld [vmem:[%s1155 + $0xc] sm:$0x7]
      %v1318 = vunpack.c.l.s4 1983009808
      %v1319 = vunpack.c.0.s8 %v1318
      %v1320 = vlaneseq
      %v1321 = vshrl.u32 %v1320, 7
      %v1322 = vsub.s32 %v1319, %v1321
      %v1323 = vrot.slane %v1309, %v1322
      %v1324 = vcombine.high %v1323, %v1323
      %v1326 = vunpack.c.l.s4 1983009808
      %v1327 = vunpack.c.0.s8 %v1326
      %v1328 = vlaneseq
      %v1329 = vshrl.u32 %v1328, 7
      %v1330 = vsub.s32 %v1327, %v1329
      %v1331 = vrot.slane %v1310, %v1330
      %v1332 = vcombine.high %v1331, %v1331
      %v1334 = vunpack.c.l.s4 1983009808
      %v1335 = vunpack.c.0.s8 %v1334
      %v1336 = vlaneseq
      %v1337 = vshrl.u32 %v1336, 7
      %v1338 = vsub.s32 %v1335, %v1337
      %v1339 = vrot.slane %v1311, %v1338
      %v1340 = vcombine.high %v1339, %v1339
      %v1342 = vunpack.c.l.s4 1983009808
      %v1343 = vunpack.c.0.s8 %v1342
      %v1344 = vlaneseq
      %v1345 = vshrl.u32 %v1344, 7
      %v1346 = vsub.s32 %v1343, %v1345
      %v1347 = vrot.slane %v1312, %v1346
      %v1348 = vcombine.high %v1347, %v1347
      %v1350 = vshrl.u32 %v1323, 16
      %v1352 = vrot.slane %v1350, 6
      %v1353 = vshll.u32 %v1323, 16
      %v1355 = vrot.slane %v1353, 7
      %v1356 = vor.u32 %v1352, %v1355
      %v1357 = vrot.slane %v1356, 2
      %v1359 = vshll.u32 %v1324, 16
      %v1361 = vrot.slane %v1359, 7
      %v1362 = vsel %vm384, %v1357, %v1361
      %v1364 = vshrl.u32 %v1331, 16
      %v1366 = vrot.slane %v1364, 6
      %v1367 = vshll.u32 %v1331, 16
      %v1369 = vrot.slane %v1367, 7
      %v1370 = vor.u32 %v1366, %v1369
      %v1371 = vrot.slane %v1370, 2
      %v1373 = vshll.u32 %v1332, 16
      %v1375 = vrot.slane %v1373, 7
      %v1376 = vsel %vm384, %v1371, %v1375
      %v1378 = vshrl.u32 %v1339, 16
      %v1380 = vrot.slane %v1378, 6
      %v1381 = vshll.u32 %v1339, 16
      %v1383 = vrot.slane %v1381, 7
      %v1384 = vor.u32 %v1380, %v1383
      %v1385 = vrot.slane %v1384, 2
      %v1387 = vshll.u32 %v1340, 16
      %v1389 = vrot.slane %v1387, 7
      %v1390 = vsel %vm384, %v1385, %v1389
      %v1392 = vshrl.u32 %v1347, 16
      %v1394 = vrot.slane %v1392, 6
      %v1395 = vshll.u32 %v1347, 16
      %v1397 = vrot.slane %v1395, 7
      %v1398 = vor.u32 %v1394, %v1397
      %v1399 = vrot.slane %v1398, 2
      %v1401 = vshll.u32 %v1348, 16
      %v1403 = vrot.slane %v1401, 7
      %v1404 = vsel %vm384, %v1399, %v1403
      %s1405 = scalar_lea.vmem %s1, 40
      %v1406 = vld [vmem:[%s1405] sm:$0xf]
      %v1407 = vcombine.low %v1362, %v1376
      %v1408 = vcombine.low %v1390, %v1404
      %v1410 = vunpack.c.l.s4 1983009808
      %v1411 = vunpack.c.0.s8 %v1410
      %v1412 = vlaneseq
      %v1413 = vshrl.u32 %v1412, 7
      %v1414 = vsub.s32 %v1411, %v1413
      %v1415 = vrot.slane %v1407, %v1414
      %v1417 = vunpack.c.l.s4 1983009808
      %v1418 = vunpack.c.0.s8 %v1417
      %v1419 = vlaneseq
      %v1420 = vshrl.u32 %v1419, 7
      %v1421 = vsub.s32 %v1418, %v1420
      %v1422 = vrot.slane %v1408, %v1421
      %v1423 = vcombine.low %v1415, %v1422
      %v1425 = vsel %vm221, %v1423, 0
      %v1428 = vsel %vm225, %v1406, 0
      %1430 = vmatprep.subr.bf16.mxu0 0
      %1431 = vmatpush1.bf16.msra.mxu0 %v1428
      %1432 = vmatprep.subr.bf16.mxu0 0
      %1433 = vmatpush1.bf16.msra.mxu0 0
      %1434 = vmatprep.subr.bf16.mxu0 0
      %1435 = vmatpush1.bf16.msra.mxu0 0
      %1436 = vmatprep.subr.bf16.mxu0 0
      %1437 = vmatpush1.bf16.msra.mxu0 0
      %1438 = vmatprep.subr.bf16.mxu0 0
      %1439 = vmatpush1.bf16.msra.mxu0 0
      %1440 = vmatprep.subr.bf16.mxu0 0
      %1441 = vmatpush1.bf16.msra.mxu0 0
      %1442 = vmatprep.subr.bf16.mxu0 0
      %1443 = vmatpush1.bf16.msra.mxu0 0
      %1444 = vmatprep.subr.bf16.mxu0 0
      %1445 = vmatpush1.bf16.msra.mxu0 0
      %1446 = vmatprep.subr.bf16.mxu0 0
      %1447 = vmatpush1.bf16.msra.mxu0 0
      %1448 = vmatprep.subr.bf16.mxu0 0
      %1449 = vmatpush1.bf16.msra.mxu0 0
      %1450 = vmatprep.subr.bf16.mxu0 0
      %1451 = vmatpush1.bf16.msra.mxu0 0
      %1452 = vmatprep.subr.bf16.mxu0 0
      %1453 = vmatpush1.bf16.msra.mxu0 0
      %1454 = vmatprep.subr.bf16.mxu0 0
      %1455 = vmatpush1.bf16.msra.mxu0 0
      %1456 = vmatprep.subr.bf16.mxu0 0
      %1457 = vmatpush1.bf16.msra.mxu0 0
      %1458 = vmatprep.subr.bf16.mxu0 0
      %1459 = vmatpush1.bf16.msra.mxu0 0
      %1460 = vmatprep.subr.bf16.mxu0 0
      %1461 = vmatpush1.bf16.msra.mxu0 0
      %1462 = vmatprep.mubr.bf16.mxu0 0
      %1463 = vmatmul.mubr.bf16.gmra.mrb[0].mxu0 %v1425
      %v1464 = vpop.f32.mrb[0].mxu0
      %v1465 = vadd.f32 0.0, %v1464
      %v1466 = vpop.f32.mrb[0].mxu0
      %v1467 = vpop.f32.mrb[0].mxu0
      %v1468 = vadd.f32 0.0, %v1467
      %v1469 = vpop.f32.mrb[0].mxu0
      %1470 = vdwg.mxu0
      %v1471 = vadd.f32 %v1307, %v1465
      %v1472 = vadd.f32 %v1308, %v1468
      %v1473 = vld [vmem:[%s1232] sm:$0x7]
      %v1474 = vld [vmem:[%s1232 + $0x4] sm:$0x7]
      %v1475 = vld [vmem:[%s1232 + $0x8] sm:$0x7]
      %v1476 = vld [vmem:[%s1232 + $0xc] sm:$0x7]
      %v1482 = vunpack.c.l.s4 1983009808
      %v1483 = vunpack.c.0.s8 %v1482
      %v1484 = vlaneseq
      %v1485 = vshrl.u32 %v1484, 7
      %v1486 = vsub.s32 %v1483, %v1485
      %v1487 = vrot.slane %v1473, %v1486
      %v1488 = vcombine.high %v1487, %v1487
      %v1490 = vunpack.c.l.s4 1983009808
      %v1491 = vunpack.c.0.s8 %v1490
      %v1492 = vlaneseq
      %v1493 = vshrl.u32 %v1492, 7
      %v1494 = vsub.s32 %v1491, %v1493
      %v1495 = vrot.slane %v1474, %v1494
      %v1496 = vcombine.high %v1495, %v1495
      %v1498 = vunpack.c.l.s4 1983009808
      %v1499 = vunpack.c.0.s8 %v1498
      %v1500 = vlaneseq
      %v1501 = vshrl.u32 %v1500, 7
      %v1502 = vsub.s32 %v1499, %v1501
      %v1503 = vrot.slane %v1475, %v1502
      %v1504 = vcombine.high %v1503, %v1503
      %v1506 = vunpack.c.l.s4 1983009808
      %v1507 = vunpack.c.0.s8 %v1506
      %v1508 = vlaneseq
      %v1509 = vshrl.u32 %v1508, 7
      %v1510 = vsub.s32 %v1507, %v1509
      %v1511 = vrot.slane %v1476, %v1510
      %v1512 = vcombine.high %v1511, %v1511
      %v1514 = vshrl.u32 %v1487, 16
      %v1516 = vrot.slane %v1514, 6
      %v1517 = vshll.u32 %v1487, 16
      %v1519 = vrot.slane %v1517, 7
      %v1520 = vor.u32 %v1516, %v1519
      %v1521 = vrot.slane %v1520, 2
      %v1523 = vshll.u32 %v1488, 16
      %v1525 = vrot.slane %v1523, 7
      %v1526 = vsel %vm384, %v1521, %v1525
      %v1528 = vshrl.u32 %v1495, 16
      %v1530 = vrot.slane %v1528, 6
      %v1531 = vshll.u32 %v1495, 16
      %v1533 = vrot.slane %v1531, 7
      %v1534 = vor.u32 %v1530, %v1533
      %v1535 = vrot.slane %v1534, 2
      %v1537 = vshll.u32 %v1496, 16
      %v1539 = vrot.slane %v1537, 7
      %v1540 = vsel %vm384, %v1535, %v1539
      %v1542 = vshrl.u32 %v1503, 16
      %v1544 = vrot.slane %v1542, 6
      %v1545 = vshll.u32 %v1503, 16
      %v1547 = vrot.slane %v1545, 7
      %v1548 = vor.u32 %v1544, %v1547
      %v1549 = vrot.slane %v1548, 2
      %v1551 = vshll.u32 %v1504, 16
      %v1553 = vrot.slane %v1551, 7
      %v1554 = vsel %vm384, %v1549, %v1553
      %v1556 = vshrl.u32 %v1511, 16
      %v1558 = vrot.slane %v1556, 6
      %v1559 = vshll.u32 %v1511, 16
      %v1561 = vrot.slane %v1559, 7
      %v1562 = vor.u32 %v1558, %v1561
      %v1563 = vrot.slane %v1562, 2
      %v1565 = vshll.u32 %v1512, 16
      %v1567 = vrot.slane %v1565, 7
      %v1568 = vsel %vm384, %v1563, %v1567
      %s1569 = scalar_lea.vmem %s1, 44
      %v1570 = vld [vmem:[%s1569] sm:$0xf]
      %v1571 = vcombine.low %v1526, %v1540
      %v1572 = vcombine.low %v1554, %v1568
      %v1574 = vunpack.c.l.s4 1983009808
      %v1575 = vunpack.c.0.s8 %v1574
      %v1576 = vlaneseq
      %v1577 = vshrl.u32 %v1576, 7
      %v1578 = vsub.s32 %v1575, %v1577
      %v1579 = vrot.slane %v1571, %v1578
      %v1581 = vunpack.c.l.s4 1983009808
      %v1582 = vunpack.c.0.s8 %v1581
      %v1583 = vlaneseq
      %v1584 = vshrl.u32 %v1583, 7
      %v1585 = vsub.s32 %v1582, %v1584
      %v1586 = vrot.slane %v1572, %v1585
      %v1587 = vcombine.low %v1579, %v1586
      %v1589 = vsel %vm221, %v1587, 0
      %v1592 = vsel %vm225, %v1570, 0
      %1594 = vmatprep.subr.bf16.mxu0 0
      %1595 = vmatpush1.bf16.msra.mxu0 %v1592
      %1596 = vmatprep.subr.bf16.mxu0 0
      %1597 = vmatpush1.bf16.msra.mxu0 0
      %1598 = vmatprep.subr.bf16.mxu0 0
      %1599 = vmatpush1.bf16.msra.mxu0 0
      %1600 = vmatprep.subr.bf16.mxu0 0
      %1601 = vmatpush1.bf16.msra.mxu0 0
      %1602 = vmatprep.subr.bf16.mxu0 0
      %1603 = vmatpush1.bf16.msra.mxu0 0
      %1604 = vmatprep.subr.bf16.mxu0 0
      %1605 = vmatpush1.bf16.msra.mxu0 0
      %1606 = vmatprep.subr.bf16.mxu0 0
      %1607 = vmatpush1.bf16.msra.mxu0 0
      %1608 = vmatprep.subr.bf16.mxu0 0
      %1609 = vmatpush1.bf16.msra.mxu0 0
      %1610 = vmatprep.subr.bf16.mxu0 0
      %1611 = vmatpush1.bf16.msra.mxu0 0
      %1612 = vmatprep.subr.bf16.mxu0 0
      %1613 = vmatpush1.bf16.msra.mxu0 0
      %1614 = vmatprep.subr.bf16.mxu0 0
      %1615 = vmatpush1.bf16.msra.mxu0 0
      %1616 = vmatprep.subr.bf16.mxu0 0
      %1617 = vmatpush1.bf16.msra.mxu0 0
      %1618 = vmatprep.subr.bf16.mxu0 0
      %1619 = vmatpush1.bf16.msra.mxu0 0
      %1620 = vmatprep.subr.bf16.mxu0 0
      %1621 = vmatpush1.bf16.msra.mxu0 0
      %1622 = vmatprep.subr.bf16.mxu0 0
      %1623 = vmatpush1.bf16.msra.mxu0 0
      %1624 = vmatprep.subr.bf16.mxu0 0
      %1625 = vmatpush1.bf16.msra.mxu0 0
      %1626 = vmatprep.mubr.bf16.mxu0 0
      %1627 = vmatmul.mubr.bf16.gmra.mrb[0].mxu0 %v1589
      %v1628 = vpop.f32.mrb[0].mxu0
      %v1629 = vadd.f32 0.0, %v1628
      %v1630 = vpop.f32.mrb[0].mxu0
      %v1631 = vpop.f32.mrb[0].mxu0
      %v1632 = vadd.f32 0.0, %v1631
      %v1633 = vpop.f32.mrb[0].mxu0
      %1634 = vdwg.mxu0
      %v1635 = vadd.f32 %v1471, %v1629
      %v1636 = vadd.f32 %v1472, %v1632
      %s1637 = scalar_lea.vmem %s176, 44
      %v1638 = vld [vmem:[%s1637] sm:$0x3]
      %v1639 = vld [vmem:[%s1637 + $0x4] sm:$0x3]
      %v1640 = vld [vmem:[%s1637 + $0x8] sm:$0x3]
      %v1641 = vld [vmem:[%s1637 + $0xc] sm:$0x3]
      %s1642 = scalar_lea.vmem %s1, 48
      %v1643 = vld [vmem:[%s1642] sm:$0xf]
      %v1648 = vcombine.low %v1638, %v1639
      %v1649 = vcombine.low %v1640, %v1641
      %v1651 = vunpack.c.l.s4 1983009808
      %v1652 = vunpack.c.0.s8 %v1651
      %v1653 = vlaneseq
      %v1654 = vshrl.u32 %v1653, 7
      %v1655 = vsub.s32 %v1652, %v1654
      %v1656 = vrot.slane %v1648, %v1655
      %v1658 = vunpack.c.l.s4 1983009808
      %v1659 = vunpack.c.0.s8 %v1658
      %v1660 = vlaneseq
      %v1661 = vshrl.u32 %v1660, 7
      %v1662 = vsub.s32 %v1659, %v1661
      %v1663 = vrot.slane %v1649, %v1662
      %v1664 = vcombine.low %v1656, %v1663
      %v1666 = vsel %vm221, %v1664, 0
      %v1669 = vsel %vm225, %v1643, 0
      %1671 = vmatprep.subr.bf16.mxu0 0
      %1672 = vmatpush1.bf16.msra.mxu0 %v1669
      %1673 = vmatprep.subr.bf16.mxu0 0
      %1674 = vmatpush1.bf16.msra.mxu0 0
      %1675 = vmatprep.subr.bf16.mxu0 0
      %1676 = vmatpush1.bf16.msra.mxu0 0
      %1677 = vmatprep.subr.bf16.mxu0 0
      %1678 = vmatpush1.bf16.msra.mxu0 0
      %1679 = vmatprep.subr.bf16.mxu0 0
      %1680 = vmatpush1.bf16.msra.mxu0 0
      %1681 = vmatprep.subr.bf16.mxu0 0
      %1682 = vmatpush1.bf16.msra.mxu0 0
      %1683 = vmatprep.subr.bf16.mxu0 0
      %1684 = vmatpush1.bf16.msra.mxu0 0
      %1685 = vmatprep.subr.bf16.mxu0 0
      %1686 = vmatpush1.bf16.msra.mxu0 0
      %1687 = vmatprep.subr.bf16.mxu0 0
      %1688 = vmatpush1.bf16.msra.mxu0 0
      %1689 = vmatprep.subr.bf16.mxu0 0
      %1690 = vmatpush1.bf16.msra.mxu0 0
      %1691 = vmatprep.subr.bf16.mxu0 0
      %1692 = vmatpush1.bf16.msra.mxu0 0
      %1693 = vmatprep.subr.bf16.mxu0 0
      %1694 = vmatpush1.bf16.msra.mxu0 0
      %1695 = vmatprep.subr.bf16.mxu0 0
      %1696 = vmatpush1.bf16.msra.mxu0 0
      %1697 = vmatprep.subr.bf16.mxu0 0
      %1698 = vmatpush1.bf16.msra.mxu0 0
      %1699 = vmatprep.subr.bf16.mxu0 0
      %1700 = vmatpush1.bf16.msra.mxu0 0
      %1701 = vmatprep.subr.bf16.mxu0 0
      %1702 = vmatpush1.bf16.msra.mxu0 0
      %1703 = vmatprep.mubr.bf16.mxu0 0
      %1704 = vmatmul.mubr.bf16.gmra.mrb[0].mxu0 %v1666
      %v1705 = vpop.f32.mrb[0].mxu0
      %v1706 = vadd.f32 0.0, %v1705
      %v1707 = vpop.f32.mrb[0].mxu0
      %v1708 = vpop.f32.mrb[0].mxu0
      %v1709 = vadd.f32 0.0, %v1708
      %v1710 = vpop.f32.mrb[0].mxu0
      %1711 = vdwg.mxu0
      %v1712 = vadd.f32 %v1635, %v1706
      %v1713 = vadd.f32 %v1636, %v1709
      %s1714 = scalar_lea.vmem %s176, 64
      %v1715 = vld [vmem:[%s1714] sm:$0x3]
      %v1716 = vld [vmem:[%s1714 + $0x4] sm:$0x3]
      %v1717 = vld [vmem:[%s1714 + $0x8] sm:$0x3]
      %v1718 = vld [vmem:[%s1714 + $0xc] sm:$0x3]
      %s1719 = scalar_lea.vmem %s1, 52
      %v1720 = vld [vmem:[%s1719] sm:$0xf]
      %v1725 = vcombine.low %v1715, %v1716
      %v1726 = vcombine.low %v1717, %v1718
      %v1728 = vunpack.c.l.s4 1983009808
      %v1729 = vunpack.c.0.s8 %v1728
      %v1730 = vlaneseq
      %v1731 = vshrl.u32 %v1730, 7
      %v1732 = vsub.s32 %v1729, %v1731
      %v1733 = vrot.slane %v1725, %v1732
      %v1735 = vunpack.c.l.s4 1983009808
      %v1736 = vunpack.c.0.s8 %v1735
      %v1737 = vlaneseq
      %v1738 = vshrl.u32 %v1737, 7
      %v1739 = vsub.s32 %v1736, %v1738
      %v1740 = vrot.slane %v1726, %v1739
      %v1741 = vcombine.low %v1733, %v1740
      %v1743 = vsel %vm221, %v1741, 0
      %v1746 = vsel %vm225, %v1720, 0
      %1748 = vmatprep.subr.bf16.mxu0 0
      %1749 = vmatpush1.bf16.msra.mxu0 %v1746
      %1750 = vmatprep.subr.bf16.mxu0 0
      %1751 = vmatpush1.bf16.msra.mxu0 0
      %1752 = vmatprep.subr.bf16.mxu0 0
      %1753 = vmatpush1.bf16.msra.mxu0 0
      %1754 = vmatprep.subr.bf16.mxu0 0
      %1755 = vmatpush1.bf16.msra.mxu0 0
      %1756 = vmatprep.subr.bf16.mxu0 0
      %1757 = vmatpush1.bf16.msra.mxu0 0
      %1758 = vmatprep.subr.bf16.mxu0 0
      %1759 = vmatpush1.bf16.msra.mxu0 0
      %1760 = vmatprep.subr.bf16.mxu0 0
      %1761 = vmatpush1.bf16.msra.mxu0 0
      %1762 = vmatprep.subr.bf16.mxu0 0
      %1763 = vmatpush1.bf16.msra.mxu0 0
      %1764 = vmatprep.subr.bf16.mxu0 0
      %1765 = vmatpush1.bf16.msra.mxu0 0
      %1766 = vmatprep.subr.bf16.mxu0 0
      %1767 = vmatpush1.bf16.msra.mxu0 0
      %1768 = vmatprep.subr.bf16.mxu0 0
      %1769 = vmatpush1.bf16.msra.mxu0 0
      %1770 = vmatprep.subr.bf16.mxu0 0
      %1771 = vmatpush1.bf16.msra.mxu0 0
      %1772 = vmatprep.subr.bf16.mxu0 0
      %1773 = vmatpush1.bf16.msra.mxu0 0
      %1774 = vmatprep.subr.bf16.mxu0 0
      %1775 = vmatpush1.bf16.msra.mxu0 0
      %1776 = vmatprep.subr.bf16.mxu0 0
      %1777 = vmatpush1.bf16.msra.mxu0 0
      %1778 = vmatprep.subr.bf16.mxu0 0
      %1779 = vmatpush1.bf16.msra.mxu0 0
      %1780 = vmatprep.mubr.bf16.mxu0 0
      %1781 = vmatmul.mubr.bf16.gmra.mrb[0].mxu0 %v1743
      %v1782 = vpop.f32.mrb[0].mxu0
      %v1783 = vadd.f32 0.0, %v1782
      %v1784 = vpop.f32.mrb[0].mxu0
      %v1785 = vpop.f32.mrb[0].mxu0
      %v1786 = vadd.f32 0.0, %v1785
      %v1787 = vpop.f32.mrb[0].mxu0
      %1788 = vdwg.mxu0
      %v1789 = vadd.f32 %v1712, %v1783
      %v1790 = vadd.f32 %v1713, %v1786
      %v1791 = vld [vmem:[%s1637] sm:$0x7]
      %v1792 = vld [vmem:[%s1637 + $0x4] sm:$0x7]
      %v1793 = vld [vmem:[%s1637 + $0x8] sm:$0x7]
      %v1794 = vld [vmem:[%s1637 + $0xc] sm:$0x7]
      %v1800 = vunpack.c.l.s4 1983009808
      %v1801 = vunpack.c.0.s8 %v1800
      %v1802 = vlaneseq
      %v1803 = vshrl.u32 %v1802, 7
      %v1804 = vsub.s32 %v1801, %v1803
      %v1805 = vrot.slane %v1791, %v1804
      %v1806 = vcombine.high %v1805, %v1805
      %v1808 = vunpack.c.l.s4 1983009808
      %v1809 = vunpack.c.0.s8 %v1808
      %v1810 = vlaneseq
      %v1811 = vshrl.u32 %v1810, 7
      %v1812 = vsub.s32 %v1809, %v1811
      %v1813 = vrot.slane %v1792, %v1812
      %v1814 = vcombine.high %v1813, %v1813
      %v1816 = vunpack.c.l.s4 1983009808
      %v1817 = vunpack.c.0.s8 %v1816
      %v1818 = vlaneseq
      %v1819 = vshrl.u32 %v1818, 7
      %v1820 = vsub.s32 %v1817, %v1819
      %v1821 = vrot.slane %v1793, %v1820
      %v1822 = vcombine.high %v1821, %v1821
      %v1824 = vunpack.c.l.s4 1983009808
      %v1825 = vunpack.c.0.s8 %v1824
      %v1826 = vlaneseq
      %v1827 = vshrl.u32 %v1826, 7
      %v1828 = vsub.s32 %v1825, %v1827
      %v1829 = vrot.slane %v1794, %v1828
      %v1830 = vcombine.high %v1829, %v1829
      %v1832 = vshrl.u32 %v1805, 16
      %v1834 = vrot.slane %v1832, 6
      %v1835 = vshll.u32 %v1805, 16
      %v1837 = vrot.slane %v1835, 7
      %v1838 = vor.u32 %v1834, %v1837
      %v1839 = vrot.slane %v1838, 2
      %v1841 = vshll.u32 %v1806, 16
      %v1843 = vrot.slane %v1841, 7
      %v1844 = vsel %vm384, %v1839, %v1843
      %v1846 = vshrl.u32 %v1813, 16
      %v1848 = vrot.slane %v1846, 6
      %v1849 = vshll.u32 %v1813, 16
      %v1851 = vrot.slane %v1849, 7
      %v1852 = vor.u32 %v1848, %v1851
      %v1853 = vrot.slane %v1852, 2
      %v1855 = vshll.u32 %v1814, 16
      %v1857 = vrot.slane %v1855, 7
      %v1858 = vsel %vm384, %v1853, %v1857
      %v1860 = vshrl.u32 %v1821, 16
      %v1862 = vrot.slane %v1860, 6
      %v1863 = vshll.u32 %v1821, 16
      %v1865 = vrot.slane %v1863, 7
      %v1866 = vor.u32 %v1862, %v1865
      %v1867 = vrot.slane %v1866, 2
      %v1869 = vshll.u32 %v1822, 16
      %v1871 = vrot.slane %v1869, 7
      %v1872 = vsel %vm384, %v1867, %v1871
      %v1874 = vshrl.u32 %v1829, 16
      %v1876 = vrot.slane %v1874, 6
      %v1877 = vshll.u32 %v1829, 16
      %v1879 = vrot.slane %v1877, 7
      %v1880 = vor.u32 %v1876, %v1879
      %v1881 = vrot.slane %v1880, 2
      %v1883 = vshll.u32 %v1830, 16
      %v1885 = vrot.slane %v1883, 7
      %v1886 = vsel %vm384, %v1881, %v1885
      %s1887 = scalar_lea.vmem %s1, 56
      %v1888 = vld [vmem:[%s1887] sm:$0xf]
      %v1889 = vcombine.low %v1844, %v1858
      %v1890 = vcombine.low %v1872, %v1886
      %v1892 = vunpack.c.l.s4 1983009808
      %v1893 = vunpack.c.0.s8 %v1892
      %v1894 = vlaneseq
      %v1895 = vshrl.u32 %v1894, 7
      %v1896 = vsub.s32 %v1893, %v1895
      %v1897 = vrot.slane %v1889, %v1896
      %v1899 = vunpack.c.l.s4 1983009808
      %v1900 = vunpack.c.0.s8 %v1899
      %v1901 = vlaneseq
      %v1902 = vshrl.u32 %v1901, 7
      %v1903 = vsub.s32 %v1900, %v1902
      %v1904 = vrot.slane %v1890, %v1903
      %v1905 = vcombine.low %v1897, %v1904
      %v1907 = vsel %vm221, %v1905, 0
      %v1910 = vsel %vm225, %v1888, 0
      %1912 = vmatprep.subr.bf16.mxu0 0
      %1913 = vmatpush1.bf16.msra.mxu0 %v1910
      %1914 = vmatprep.subr.bf16.mxu0 0
      %1915 = vmatpush1.bf16.msra.mxu0 0
      %1916 = vmatprep.subr.bf16.mxu0 0
      %1917 = vmatpush1.bf16.msra.mxu0 0
      %1918 = vmatprep.subr.bf16.mxu0 0
      %1919 = vmatpush1.bf16.msra.mxu0 0
      %1920 = vmatprep.subr.bf16.mxu0 0
      %1921 = vmatpush1.bf16.msra.mxu0 0
      %1922 = vmatprep.subr.bf16.mxu0 0
      %1923 = vmatpush1.bf16.msra.mxu0 0
      %1924 = vmatprep.subr.bf16.mxu0 0
      %1925 = vmatpush1.bf16.msra.mxu0 0
      %1926 = vmatprep.subr.bf16.mxu0 0
      %1927 = vmatpush1.bf16.msra.mxu0 0
      %1928 = vmatprep.subr.bf16.mxu0 0
      %1929 = vmatpush1.bf16.msra.mxu0 0
      %1930 = vmatprep.subr.bf16.mxu0 0
      %1931 = vmatpush1.bf16.msra.mxu0 0
      %1932 = vmatprep.subr.bf16.mxu0 0
      %1933 = vmatpush1.bf16.msra.mxu0 0
      %1934 = vmatprep.subr.bf16.mxu0 0
      %1935 = vmatpush1.bf16.msra.mxu0 0
      %1936 = vmatprep.subr.bf16.mxu0 0
      %1937 = vmatpush1.bf16.msra.mxu0 0
      %1938 = vmatprep.subr.bf16.mxu0 0
      %1939 = vmatpush1.bf16.msra.mxu0 0
      %1940 = vmatprep.subr.bf16.mxu0 0
      %1941 = vmatpush1.bf16.msra.mxu0 0
      %1942 = vmatprep.subr.bf16.mxu0 0
      %1943 = vmatpush1.bf16.msra.mxu0 0
      %1944 = vmatprep.mubr.bf16.mxu0 0
      %1945 = vmatmul.mubr.bf16.gmra.mrb[0].mxu0 %v1907
      %v1946 = vpop.f32.mrb[0].mxu0
      %v1947 = vadd.f32 0.0, %v1946
      %v1948 = vpop.f32.mrb[0].mxu0
      %v1949 = vpop.f32.mrb[0].mxu0
      %v1950 = vadd.f32 0.0, %v1949
      %v1951 = vpop.f32.mrb[0].mxu0
      %1952 = vdwg.mxu0
      %v1953 = vadd.f32 %v1789, %v1947
      %v1954 = vadd.f32 %v1790, %v1950
      %v1955 = vld [vmem:[%s1714] sm:$0x7]
      %v1956 = vld [vmem:[%s1714 + $0x4] sm:$0x7]
      %v1957 = vld [vmem:[%s1714 + $0x8] sm:$0x7]
      %v1958 = vld [vmem:[%s1714 + $0xc] sm:$0x7]
      %v1964 = vunpack.c.l.s4 1983009808
      %v1965 = vunpack.c.0.s8 %v1964
      %v1966 = vlaneseq
      %v1967 = vshrl.u32 %v1966, 7
      %v1968 = vsub.s32 %v1965, %v1967
      %v1969 = vrot.slane %v1955, %v1968
      %v1970 = vcombine.high %v1969, %v1969
      %v1972 = vunpack.c.l.s4 1983009808
      %v1973 = vunpack.c.0.s8 %v1972
      %v1974 = vlaneseq
      %v1975 = vshrl.u32 %v1974, 7
      %v1976 = vsub.s32 %v1973, %v1975
      %v1977 = vrot.slane %v1956, %v1976
      %v1978 = vcombine.high %v1977, %v1977
      %v1980 = vunpack.c.l.s4 1983009808
      %v1981 = vunpack.c.0.s8 %v1980
      %v1982 = vlaneseq
      %v1983 = vshrl.u32 %v1982, 7
      %v1984 = vsub.s32 %v1981, %v1983
      %v1985 = vrot.slane %v1957, %v1984
      %v1986 = vcombine.high %v1985, %v1985
      %v1988 = vunpack.c.l.s4 1983009808
      %v1989 = vunpack.c.0.s8 %v1988
      %v1990 = vlaneseq
      %v1991 = vshrl.u32 %v1990, 7
      %v1992 = vsub.s32 %v1989, %v1991
      %v1993 = vrot.slane %v1958, %v1992
      %v1994 = vcombine.high %v1993, %v1993
      %v1996 = vshrl.u32 %v1969, 16
      %v1998 = vrot.slane %v1996, 6
      %v1999 = vshll.u32 %v1969, 16
      %v2001 = vrot.slane %v1999, 7
      %v2002 = vor.u32 %v1998, %v2001
      %v2003 = vrot.slane %v2002, 2
      %v2005 = vshll.u32 %v1970, 16
      %v2007 = vrot.slane %v2005, 7
      %v2008 = vsel %vm384, %v2003, %v2007
      %v2010 = vshrl.u32 %v1977, 16
      %v2012 = vrot.slane %v2010, 6
      %v2013 = vshll.u32 %v1977, 16
      %v2015 = vrot.slane %v2013, 7
      %v2016 = vor.u32 %v2012, %v2015
      %v2017 = vrot.slane %v2016, 2
      %v2019 = vshll.u32 %v1978, 16
      %v2021 = vrot.slane %v2019, 7
      %v2022 = vsel %vm384, %v2017, %v2021
      %v2024 = vshrl.u32 %v1985, 16
      %v2026 = vrot.slane %v2024, 6
      %v2027 = vshll.u32 %v1985, 16
      %v2029 = vrot.slane %v2027, 7
      %v2030 = vor.u32 %v2026, %v2029
      %v2031 = vrot.slane %v2030, 2
      %v2033 = vshll.u32 %v1986, 16
      %v2035 = vrot.slane %v2033, 7
      %v2036 = vsel %vm384, %v2031, %v2035
      %v2038 = vshrl.u32 %v1993, 16
      %v2040 = vrot.slane %v2038, 6
      %v2041 = vshll.u32 %v1993, 16
      %v2043 = vrot.slane %v2041, 7
      %v2044 = vor.u32 %v2040, %v2043
      %v2045 = vrot.slane %v2044, 2
      %v2047 = vshll.u32 %v1994, 16
      %v2049 = vrot.slane %v2047, 7
      %v2050 = vsel %vm384, %v2045, %v2049
      %s2051 = scalar_lea.vmem %s1, 60
      %v2052 = vld [vmem:[%s2051] sm:$0xf]
      %v2053 = vcombine.low %v2008, %v2022
      %v2054 = vcombine.low %v2036, %v2050
      %v2056 = vunpack.c.l.s4 1983009808
      %v2057 = vunpack.c.0.s8 %v2056
      %v2058 = vlaneseq
      %v2059 = vshrl.u32 %v2058, 7
      %v2060 = vsub.s32 %v2057, %v2059
      %v2061 = vrot.slane %v2053, %v2060
      %v2063 = vunpack.c.l.s4 1983009808
      %v2064 = vunpack.c.0.s8 %v2063
      %v2065 = vlaneseq
      %v2066 = vshrl.u32 %v2065, 7
      %v2067 = vsub.s32 %v2064, %v2066
      %v2068 = vrot.slane %v2054, %v2067
      %v2069 = vcombine.low %v2061, %v2068
      %v2071 = vsel %vm221, %v2069, 0
      %v2074 = vsel %vm225, %v2052, 0
      %2076 = vmatprep.subr.bf16.mxu0 0
      %2077 = vmatpush1.bf16.msra.mxu0 %v2074
      %2078 = vmatprep.subr.bf16.mxu0 0
      %2079 = vmatpush1.bf16.msra.mxu0 0
      %2080 = vmatprep.subr.bf16.mxu0 0
      %2081 = vmatpush1.bf16.msra.mxu0 0
      %2082 = vmatprep.subr.bf16.mxu0 0
      %2083 = vmatpush1.bf16.msra.mxu0 0
      %2084 = vmatprep.subr.bf16.mxu0 0
      %2085 = vmatpush1.bf16.msra.mxu0 0
      %2086 = vmatprep.subr.bf16.mxu0 0
      %2087 = vmatpush1.bf16.msra.mxu0 0
      %2088 = vmatprep.subr.bf16.mxu0 0
      %2089 = vmatpush1.bf16.msra.mxu0 0
      %2090 = vmatprep.subr.bf16.mxu0 0
      %2091 = vmatpush1.bf16.msra.mxu0 0
      %2092 = vmatprep.subr.bf16.mxu0 0
      %2093 = vmatpush1.bf16.msra.mxu0 0
      %2094 = vmatprep.subr.bf16.mxu0 0
      %2095 = vmatpush1.bf16.msra.mxu0 0
      %2096 = vmatprep.subr.bf16.mxu0 0
      %2097 = vmatpush1.bf16.msra.mxu0 0
      %2098 = vmatprep.subr.bf16.mxu0 0
      %2099 = vmatpush1.bf16.msra.mxu0 0
      %2100 = vmatprep.subr.bf16.mxu0 0
      %2101 = vmatpush1.bf16.msra.mxu0 0
      %2102 = vmatprep.subr.bf16.mxu0 0
      %2103 = vmatpush1.bf16.msra.mxu0 0
      %2104 = vmatprep.subr.bf16.mxu0 0
      %2105 = vmatpush1.bf16.msra.mxu0 0
      %2106 = vmatprep.subr.bf16.mxu0 0
      %2107 = vmatpush1.bf16.msra.mxu0 0
      %2108 = vmatprep.mubr.bf16.mxu0 0
      %2109 = vmatmul.mubr.bf16.gmra.mrb[0].mxu0 %v2071
      %v2110 = vpop.f32.mrb[0].mxu0
      %v2111 = vadd.f32 0.0, %v2110
      %v2112 = vpop.f32.mrb[0].mxu0
      %v2113 = vpop.f32.mrb[0].mxu0
      %v2114 = vadd.f32 0.0, %v2113
      %v2115 = vpop.f32.mrb[0].mxu0
      %2116 = vdwg.mxu0
      %v2117 = vadd.f32 %v1953, %v2111
      %v2118 = vadd.f32 %v1954, %v2114
      %2119 = vst [vmem:[%s182] sm:$0xff] %v2117
      %2120 = vst [vmem:[%s182 + $0x8] sm:$0xff] %v2118
      %v2121 = vadd.f32 %v2117, %v2118
      %v2122 = vrot.slane %v2121, 4
      %v2123 = vadd.f32 %v2121, %v2122
      %v2124 = vrot.slane %v2123, 2
      %v2125 = vadd.f32 %v2123, %v2124
      %v2126 = vrot.slane %v2125, 1
      %v2127 = vadd.f32 %v2125, %v2126
      %v2128 = vmul.f32 %v2117, %v2117
      %v2129 = vmul.f32 %v2118, %v2118
      %v2130 = vadd.f32 %v2128, %v2129
      %v2131 = vrot.slane %v2130, 4
      %v2132 = vadd.f32 %v2130, %v2131
      %v2133 = vrot.slane %v2132, 2
      %v2134 = vadd.f32 %v2132, %v2133
      %v2135 = vrot.slane %v2134, 1
      %v2136 = vadd.f32 %v2134, %v2135
      %vm2137 = vcmask 1040384
      %v2138 = vsel %vm2137, %v2127, %v2136
      %2139 = vst [vmem:[%s186] sm:$0x3] %v2138
      %p2140 = scmp.lt.s32.totalorder %s15, 1
      %s2141 = scalar_select %p2140, %s15, 1
      %s2142 = smul.addr %s2141, 2
      %s2143 = smul.addr %s2142, 8
      %s2144 = scalar_lea.vmem %s2, %s2143
      %p2145 = scmp.lt.s32.totalorder %s15, 1
      %s2146 = scalar_select %p2145, %s15, 1
      %s2147 = smul.addr %s2146, 2
      %s2148 = scalar_lea.vmem %s3, %s2147
      // Predicated region
      $region29: #{dcgan_discriminator_forward.6} parent=27 // pred_check
        %p2149 = pneg %p80
      $region30: #{dcgan_discriminator_forward.6} parent=27 // pred_check_branch
        %2151 = sbr.rel (%p2149) target = $region32
      $region31: #{dcgan_discriminator_forward.6} parent=27 // pred_region
        _
      $region32: #{dcgan_discriminator_forward.6} parent=27 // pred_fallthru
        _
      // Predicated region
      $region33: #{dcgan_discriminator_forward.6} parent=27 // pred_check
        %p2152 = pneg %p106
      $region34: #{dcgan_discriminator_forward.6} parent=27 // pred_check_branch
        %2154 = sbr.rel (%p2152) target = $region36
      $region35: #{dcgan_discriminator_forward.6} parent=27 // pred_region
        _
      $region36: #{dcgan_discriminator_forward.6} parent=27 // pred_fallthru
        _
    $region28: #{dcgan_discriminator_forward.6} parent=5 // pred_fallthru
      _
    %p2155 = scmp.le.s32.totalorder 2, %s10
    // Predicated region
    $region37: #{dcgan_discriminator_forward.6} parent=5 // pred_check
      %p2156 = pneg %p2155
    $region38: #{dcgan_discriminator_forward.6} parent=5 // pred_check_branch
      %2158 = sbr.rel (%p2156) target = $region40
    $region39: #{dcgan_discriminator_forward.6} parent=5 // pred_region
      %s2159 = ssub.s32 %s10, 2
      // Predicated region
      $region41: #{dcgan_discriminator_forward.6} parent=39 // pred_check
        %p2160 = pneg %p86
      $region42: #{dcgan_discriminator_forward.6} parent=39 // pred_check_branch
        %2162 = sbr.rel (%p2160) target = $region44
      $region43: #{dcgan_discriminator_forward.6} parent=39 // pred_region
        %p2163 = scmp.lt.s32.totalorder %s16, 1
        %s2164 = scalar_select %p2163, %s16, 1
        %s2165 = smul.addr %s2164, 2
        %s2166 = smul.addr %s2165, 8
        %s2167 = scalar_lea.vmem %s2, %s2166
      $region44: #{dcgan_discriminator_forward.6} parent=39 // pred_fallthru
        _
      // Predicated region
      $region45: #{dcgan_discriminator_forward.6} parent=39 // pred_check
        %p2168 = pneg %p112
      $region46: #{dcgan_discriminator_forward.6} parent=39 // pred_check_branch
        %2170 = sbr.rel (%p2168) target = $region48
      $region47: #{dcgan_discriminator_forward.6} parent=39 // pred_region
        %p2171 = scmp.lt.s32.totalorder %s16, 1
        %s2172 = scalar_select %p2171, %s16, 1
        %s2173 = smul.addr %s2172, 2
        %s2174 = scalar_lea.vmem %s3, %s2173
      $region48: #{dcgan_discriminator_forward.6} parent=39 // pred_fallthru
        _
    $region40: #{dcgan_discriminator_forward.6} parent=5 // pred_fallthru
      _
  $region6: #{dcgan_discriminator_forward.6} parent=0 // loop_footer
    %s14 = sadd.s32 1, %s10
  $region7: #{dcgan_discriminator_forward.6} parent=0 // loop_footer_branch
    %9 = sbr.rel target = $region3
  $region8: #{dcgan_discriminator_forward.6} parent=0 // loop_exit
    _

// kernel: dcgan_discriminator_forward.7
$region0: #{dcgan_discriminator_forward.7}
  #allocation0 [shape = 'u32[]', space=smem, size = 0x4, offset = 0x4, fixed_abs, tag = 'smem constant byte address 0x4 - core index']
  #allocation1 [shape = 'u32[144,128]{1,0:T(1,128)}', space=vmem, size = 0x12000, scoped, tag = 'internal scratch']
  %s0 = inlined_call_operand.vmem [shape: bf16[8,3,3,16], index: 0, kind: input, shape index: {}]
  %s1 = inlined_call_operand.vmem [shape: bf16[16,16,128], index: 1, kind: input, shape index: {}]
  %s2 = inlined_call_operand.vmem [shape: f32[2,4,128], index: 2, kind: output, shape index: {0}]
  %s3 = inlined_call_operand.vmem [shape: f32[2,2,128], index: 3, kind: output, shape index: {1}]
  %4 = xla_tuple %s2, %s3
  %s5 = sld [smem:[#allocation0]]
  $region49: #{dcgan_discriminator_forward.7} parent=0
    _
  %s7 = ssub.s32 1, %s5
  %s8 = scalar_select 0, %s7, %s5
  loop: start=0, step=1, limit=4
  $region2: #{dcgan_discriminator_forward.7} parent=0 // loop_pre_header
    _
  $region3: #{dcgan_discriminator_forward.7} parent=0 // loop_header
    %s10 = sphi 0, %s14
    %p11 = scmp.ge.s32.totalorder %s10, 4
    %s20 = sphi 0, %s22
    %s23 = sphi 0, %s20
    %s24 = sphi 0, %s23
    %s40 = sphi 0, %s24
    %s44 = sphi 0, %s44
    %s46 = sphi 0, %s44
    %s47 = sphi 0, %s46
    %s61 = sphi 0, %s47
    %s67 = sphi 0, %s69
    %s70 = sphi 0, %s67
    %s71 = sphi 0, %s70
    %s87 = sphi 0, %s71
    %s93 = sphi 0, %s95
    %s96 = sphi 0, %s93
    %s97 = sphi 0, %s96
    %s113 = sphi 0, %s97
  $region4: #{dcgan_discriminator_forward.7} parent=0 // loop_header_branch
    %13 = sbr.rel (%p11) target = $region8
  $region5: #{dcgan_discriminator_forward.7} parent=0 // loop_body
    %s15 = ssub.s32 %s10, 1
    %s16 = ssub.s32 %s10, 2
    %s17 = sadd.s32 %s10, 1
    %s18 = ssub.s32 %s10, %s17
    %p19 = scmp.eq.s32.totalorder %s18, 0
    %s21 = sadd.s32 %s20, 1
    %s22 = scalar_select %p19, %s20, %s21
    %p25 = pneg %p19
    %p26 = scmp.eq.s32.totalorder %s10, 1
    %p27 = por %p25, %p26
    %p28 = scmp.ne.s32.totalorder %s20, %s23
    %p29 = scmp.eq.s32.totalorder %s10, 0
    %p30 = por %p28, %p29
    %p31 = scmp.ne.s32.totalorder %s20, %s23
    %p32 = scmp.eq.s32.totalorder %s15, 1
    %p33 = por %p31, %p32
    %p34 = scmp.ne.s32.totalorder %s23, %s24
    %p35 = scmp.eq.s32.totalorder %s15, 0
    %p36 = por %p34, %p35
    %p37 = scmp.ne.s32.totalorder %s23, %s24
    %p38 = scmp.eq.s32.totalorder %s16, 1
    %p39 = por %p37, %p38
    %p41 = scmp.ne.s32.totalorder %s24, %s40
    %p42 = scmp.eq.s32.totalorder %s16, 0
    %p43 = por %p41, %p42
    %s45 = sadd.s32 %s44, 1
    %p48 = scmp.eq.s32.totalorder %s10, 1
    %p49 = scmp.ne.s32.totalorder %s44, %s46
    %p50 = scmp.eq.s32.totalorder %s10, 0
    %p51 = por %p49, %p50
    %p52 = scmp.ne.s32.totalorder %s44, %s46
    %p53 = scmp.eq.s32.totalorder %s15, 1
    %p54 = por %p52, %p53
    %p55 = scmp.ne.s32.totalorder %s46, %s47
    %p56 = scmp.eq.s32.totalorder %s15, 0
    %p57 = por %p55, %p56
    %p58 = scmp.ne.s32.totalorder %s46, %s47
    %p59 = scmp.eq.s32.totalorder %s16, 1
    %p60 = por %p58, %p59
    %p62 = scmp.ne.s32.totalorder %s47, %s61
    %p63 = scmp.eq.s32.totalorder %s16, 0
    %p64 = por %p62, %p63
    %s65 = ssub.s32 %s10, %s17
    %p66 = scmp.eq.s32.totalorder %s65, 0
    %s68 = sadd.s32 %s67, 1
    %s69 = scalar_select %p66, %s67, %s68
    %p72 = pneg %p66
    %p73 = scmp.eq.s32.totalorder %s10, 1
    %p74 = por %p72, %p73
    %p75 = scmp.ne.s32.totalorder %s67, %s70
    %p76 = scmp.eq.s32.totalorder %s10, 0
    %p77 = por %p75, %p76
    %p78 = scmp.ne.s32.totalorder %s67, %s70
    %p79 = scmp.eq.s32.totalorder %s15, 1
    %p80 = por %p78, %p79
    %p81 = scmp.ne.s32.totalorder %s70, %s71
    %p82 = scmp.eq.s32.totalorder %s15, 0
    %p83 = por %p81, %p82
    %p84 = scmp.ne.s32.totalorder %s70, %s71
    %p85 = scmp.eq.s32.totalorder %s16, 1
    %p86 = por %p84, %p85
    %p88 = scmp.ne.s32.totalorder %s71, %s87
    %p89 = scmp.eq.s32.totalorder %s16, 0
    %p90 = por %p88, %p89
    %s91 = ssub.s32 %s10, %s17
    %p92 = scmp.eq.s32.totalorder %s91, 0
    %s94 = sadd.s32 %s93, 1
    %s95 = scalar_select %p92, %s93, %s94
    %p98 = pneg %p92
    %p99 = scmp.eq.s32.totalorder %s10, 1
    %p100 = por %p98, %p99
    %p101 = scmp.ne.s32.totalorder %s93, %s96
    %p102 = scmp.eq.s32.totalorder %s10, 0
    %p103 = por %p101, %p102
    %p104 = scmp.ne.s32.totalorder %s93, %s96
    %p105 = scmp.eq.s32.totalorder %s15, 1
    %p106 = por %p104, %p105
    %p107 = scmp.ne.s32.totalorder %s96, %s97
    %p108 = scmp.eq.s32.totalorder %s15, 0
    %p109 = por %p107, %p108
    %p110 = scmp.ne.s32.totalorder %s96, %s97
    %p111 = scmp.eq.s32.totalorder %s16, 1
    %p112 = por %p110, %p111
    %p114 = scmp.ne.s32.totalorder %s97, %s113
    %p115 = scmp.eq.s32.totalorder %s16, 0
    %p116 = por %p114, %p115
    %p117 = scmp.le.s32.totalorder 1, %s10
    %p118 = scmp.lt.s32.totalorder %s10, 3
    %p119 = pnand %p117, %p118
    %p120 = pneg %p119
    // Predicated region
    $region9: #{dcgan_discriminator_forward.7} parent=5 // pred_check
      _
    $region10: #{dcgan_discriminator_forward.7} parent=5 // pred_check_branch
      %122 = sbr.rel (%p119) target = $region12
    $region11: #{dcgan_discriminator_forward.7} parent=5 // pred_region
      %s123 = ssub.s32 %s10, 1
      // Predicated region
      $region13: #{dcgan_discriminator_forward.7} parent=11 // pred_check
        %p124 = pneg %p57
      $region14: #{dcgan_discriminator_forward.7} parent=11 // pred_check_branch
        %126 = sbr.rel (%p124) target = $region16
      $region15: #{dcgan_discriminator_forward.7} parent=11 // pred_region
        _
      $region16: #{dcgan_discriminator_forward.7} parent=11 // pred_fallthru
        _
    $region12: #{dcgan_discriminator_forward.7} parent=5 // pred_fallthru
      _
    %p127 = scmp.lt.s32.totalorder %s10, 2
    // Predicated region
    $region17: #{dcgan_discriminator_forward.7} parent=5 // pred_check
      %p128 = pneg %p127
    $region18: #{dcgan_discriminator_forward.7} parent=5 // pred_check_branch
      %130 = sbr.rel (%p128) target = $region20
    $region19: #{dcgan_discriminator_forward.7} parent=5 // pred_region
      // Predicated region
      $region21: #{dcgan_discriminator_forward.7} parent=19 // pred_check
        %p131 = pneg %p30
      $region22: #{dcgan_discriminator_forward.7} parent=19 // pred_check_branch
        %133 = sbr.rel (%p131) target = $region24
      $region23: #{dcgan_discriminator_forward.7} parent=19 // pred_region
        %s134 = smul.u32 4, %s10
        %p135 = scmp.lt.s32.totalorder %s134, 7
        %s136 = scalar_select %p135, %s134, 7
        %s137 = smul.addr %s136, 3
        %s138 = smul.addr %s137, 2
        %s139 = scalar_lea.vmem %s0, %s138
        %s140 = smul.u32 4, %s10
      $region24: #{dcgan_discriminator_forward.7} parent=19 // pred_fallthru
        _
    $region20: #{dcgan_discriminator_forward.7} parent=5 // pred_fallthru
      _
    %p141 = scmp.le.s32.totalorder 1, %s10
    %p142 = scmp.lt.s32.totalorder %s10, 3
    %p143 = pnand %p141, %p142
    %p144 = pneg %p143
    // Predicated region
    $region25: #{dcgan_discriminator_forward.7} parent=5 // pred_check
      _
    $region26: #{dcgan_discriminator_forward.7} parent=5 // pred_check_branch
      %146 = sbr.rel (%p143) target = $region28
    $region27: #{dcgan_discriminator_forward.7} parent=5 // pred_region
      %s147 = ssub.s32 %s10, 1
      %s148 = smul.u32 4, %s15
      %p149 = scmp.lt.s32.totalorder %s148, 7
      %s150 = scalar_select %p149, %s148, 7
      %s151 = smul.addr %s150, 3
      %s152 = smul.addr %s151, 2
      %s153 = scalar_lea.vmem %s0, %s152
      %p154 = pneg %p36
      %p155 = pneg %p33
      %p156 = pneg %p57
      %p157 = pneg %p54
      %p158 = pneg %p83
      %p159 = pneg %p80
      %p160 = scmp.lt.s32.totalorder %s15, 1
      %s161 = scalar_select %p160, %s15, 1
      %s162 = smul.addr %s161, 4
      %s163 = scalar_lea.vmem %s2, %s162
      %p164 = pneg %p109
      %p165 = pneg %p106
      %p166 = scmp.lt.s32.totalorder %s15, 1
      %s167 = scalar_select %p166, %s15, 1
      %s168 = smul.addr %s167, 2
      %s169 = scalar_lea.vmem %s3, %s168
      %s170 = smul.u32 4, %s15
      %p171 = scmp.lt.s32.totalorder %s170, 7
      %s172 = scalar_select %p171, %s170, 7
      %s173 = smul.addr %s172, 3
      %s174 = smul.addr %s173, 2
      %s175 = scalar_lea.vmem %s0, %s174
      %s176 = smul.u32 4, %s15
      %p177 = scmp.lt.s32.totalorder %s15, 1
      %s178 = scalar_select %p177, %s15, 1
      %s179 = smul.addr %s178, 4
      %s180 = scalar_lea.vmem %s2, %s179
      %p181 = scmp.lt.s32.totalorder %s15, 1
      %s182 = scalar_select %p181, %s15, 1
      %s183 = smul.addr %s182, 2
      %s184 = scalar_lea.vmem %s3, %s183
      %v186 = vld [vmem:[%s175] sm:$0x1]
      %v187 = vld [vmem:[%s175 + $0x2] sm:$0x1]
      %v188 = vld [vmem:[%s1] sm:$0xf]
      %v189 = vld [vmem:[%s1 + $0x4] sm:$0xf]
      %s190 = scalar_lea.vmem %s175, 6
      %v191 = vld [vmem:[%s190] sm:$0x1]
      %v192 = vld [vmem:[%s190 + $0x2] sm:$0x1]
      %s193 = scalar_lea.vmem %s1, 8
      %v194 = vld [vmem:[%s193] sm:$0xf]
      %v195 = vld [vmem:[%s193 + $0x4] sm:$0xf]
      %v198 = vcombine.low %v191, %v192
      %v200 = vunpack.c.l.s4 1966171168
      %v201 = vunpack.c.0.s8 %v200
      %v202 = vlaneseq
      %v203 = vshrl.u32 %v202, 7
      %v204 = vsub.s32 %v201, %v203
      %v205 = vrot.slane %v198, %v204
      %v207 = vunpack.c.l.s4 1966171168
      %v208 = vunpack.c.0.s8 %v207
      %v209 = vlaneseq
      %v210 = vshrl.u32 %v209, 7
      %v211 = vsub.s32 %v208, %v210
      %v212 = vrot.slane %v205, %v211
      %v215 = vunpack.c.l.b16 %v194
      %v216 = vunpack.c.l.b16 %v195
      %v217 = vpack.c.b16 %v216, %v215
      %vm219 = vcmask 130048
      %v221 = vsel %vm219, %v212, 0
      %223 = vmatprep.subr.bf16.mxu0 0
      %224 = vmatpush1.bf16.msra.mxu0 %v217
      %225 = vmatprep.subr.bf16.mxu0 0
      %226 = vmatpush1.bf16.msra.mxu0 0
      %227 = vmatprep.subr.bf16.mxu0 0
      %228 = vmatpush1.bf16.msra.mxu0 0
      %229 = vmatprep.subr.bf16.mxu0 0
      %230 = vmatpush1.bf16.msra.mxu0 0
      %231 = vmatprep.subr.bf16.mxu0 0
      %232 = vmatpush1.bf16.msra.mxu0 0
      %233 = vmatprep.subr.bf16.mxu0 0
      %234 = vmatpush1.bf16.msra.mxu0 0
      %235 = vmatprep.subr.bf16.mxu0 0
      %236 = vmatpush1.bf16.msra.mxu0 0
      %237 = vmatprep.subr.bf16.mxu0 0
      %238 = vmatpush1.bf16.msra.mxu0 0
      %239 = vmatprep.subr.bf16.mxu0 0
      %240 = vmatpush1.bf16.msra.mxu0 0
      %241 = vmatprep.subr.bf16.mxu0 0
      %242 = vmatpush1.bf16.msra.mxu0 0
      %243 = vmatprep.subr.bf16.mxu0 0
      %244 = vmatpush1.bf16.msra.mxu0 0
      %245 = vmatprep.subr.bf16.mxu0 0
      %246 = vmatpush1.bf16.msra.mxu0 0
      %247 = vmatprep.subr.bf16.mxu0 0
      %248 = vmatpush1.bf16.msra.mxu0 0
      %249 = vmatprep.subr.bf16.mxu0 0
      %250 = vmatpush1.bf16.msra.mxu0 0
      %251 = vmatprep.subr.bf16.mxu0 0
      %252 = vmatpush1.bf16.msra.mxu0 0
      %253 = vmatprep.subr.bf16.mxu0 0
      %254 = vmatpush1.bf16.msra.mxu0 0
      %255 = vmatprep.mubr.bf16.mxu0 0
      %256 = vmatmul.mubr.bf16.gmra.mrb[0].mxu0 %v221
      %v257 = vpop.f32.mrb[0].mxu0
      %v258 = vadd.f32 0.0, %v257
      %v259 = vpop.f32.mrb[0].mxu0
      %v260 = vpop.f32.mrb[0].mxu0
      %v261 = vpop.f32.mrb[0].mxu0
      %262 = vdwg.mxu0
      %v265 = vcombine.low %v186, %v187
      %v267 = vunpack.c.l.s4 1966171168
      %v268 = vunpack.c.0.s8 %v267
      %v269 = vlaneseq
      %v270 = vshrl.u32 %v269, 7
      %v271 = vsub.s32 %v268, %v270
      %v272 = vrot.slane %v265, %v271
      %v274 = vunpack.c.l.s4 1966171168
      %v275 = vunpack.c.0.s8 %v274
      %v276 = vlaneseq
      %v277 = vshrl.u32 %v276, 7
      %v278 = vsub.s32 %v275, %v277
      %v279 = vrot.slane %v272, %v278
      %v282 = vunpack.c.l.b16 %v188
      %v283 = vunpack.c.l.b16 %v189
      %v284 = vpack.c.b16 %v283, %v282
      %v287 = vsel %vm219, %v279, 0
      %289 = vmatprep.subr.bf16.mxu0 0
      %290 = vmatpush1.bf16.msra.mxu0 %v284
      %291 = vmatprep.subr.bf16.mxu0 0
      %292 = vmatpush1.bf16.msra.mxu0 0
      %293 = vmatprep.subr.bf16.mxu0 0
      %294 = vmatpush1.bf16.msra.mxu0 0
      %295 = vmatprep.subr.bf16.mxu0 0
      %296 = vmatpush1.bf16.msra.mxu0 0
      %297 = vmatprep.subr.bf16.mxu0 0
      %298 = vmatpush1.bf16.msra.mxu0 0
      %299 = vmatprep.subr.bf16.mxu0 0
      %300 = vmatpush1.bf16.msra.mxu0 0
      %301 = vmatprep.subr.bf16.mxu0 0
      %302 = vmatpush1.bf16.msra.mxu0 0
      %303 = vmatprep.subr.bf16.mxu0 0
      %304 = vmatpush1.bf16.msra.mxu0 0
      %305 = vmatprep.subr.bf16.mxu0 0
      %306 = vmatpush1.bf16.msra.mxu0 0
      %307 = vmatprep.subr.bf16.mxu0 0
      %308 = vmatpush1.bf16.msra.mxu0 0
      %309 = vmatprep.subr.bf16.mxu0 0
      %310 = vmatpush1.bf16.msra.mxu0 0
      %311 = vmatprep.subr.bf16.mxu0 0
      %312 = vmatpush1.bf16.msra.mxu0 0
      %313 = vmatprep.subr.bf16.mxu0 0
      %314 = vmatpush1.bf16.msra.mxu0 0
      %315 = vmatprep.subr.bf16.mxu0 0
      %316 = vmatpush1.bf16.msra.mxu0 0
      %317 = vmatprep.subr.bf16.mxu0 0
      %318 = vmatpush1.bf16.msra.mxu0 0
      %319 = vmatprep.subr.bf16.mxu0 0
      %320 = vmatpush1.bf16.msra.mxu0 0
      %321 = vmatprep.mubr.bf16.mxu0 0
      %322 = vmatmul.mubr.bf16.gmra.mrb[0].mxu0 %v287
      %v323 = vpop.f32.mrb[0].mxu0
      %v324 = vadd.f32 %v258, %v323
      %v325 = vpop.f32.mrb[0].mxu0
      %v326 = vpop.f32.mrb[0].mxu0
      %v327 = vpop.f32.mrb[0].mxu0
      %328 = vdwg.mxu0
      %v329 = vld [vmem:[%s175] sm:$0x3]
      %v330 = vld [vmem:[%s175 + $0x2] sm:$0x3]
      %v334 = vunpack.c.l.s4 1966171168
      %v335 = vunpack.c.0.s8 %v334
      %v336 = vlaneseq
      %v337 = vshrl.u32 %v336, 7
      %v338 = vsub.s32 %v335, %v337
      %v339 = vrot.slane %v329, %v338
      %v340 = vcombine.high %v339, %v339
      %v342 = vunpack.c.l.s4 1966171168
      %v343 = vunpack.c.0.s8 %v342
      %v344 = vlaneseq
      %v345 = vshrl.u32 %v344, 7
      %v346 = vsub.s32 %v343, %v345
      %v347 = vrot.slane %v330, %v346
      %v348 = vcombine.high %v347, %v347
      %vm349 = vsmask.f32 256
      %vm350 = vsmask.f32 1284
      %vm351 = vmor %vm349, %vm350
      %vm352 = vsmask.f32 2312
      %vm353 = vmor %vm351, %vm352
      %vm354 = vsmask.f32 3340
      %vm355 = vmor %vm353, %vm354
      %vm356 = vsmask.f32 4368
      %vm357 = vmor %vm355, %vm356
      %vm358 = vsmask.f32 5396
      %vm359 = vmor %vm357, %vm358
      %vm360 = vsmask.f32 6424
      %vm361 = vmor %vm359, %vm360
      %vm362 = vsmask.f32 7452
      %vm363 = vmor %vm361, %vm362
      %v365 = vshrl.u32 %v339, 16
      %v367 = vrot.slane %v365, 7
      %v368 = vrot.slane %v367, 1
      %v370 = vshll.u32 %v340, 16
      %v372 = vsel %vm363, %v368, %v370
      %v374 = vshrl.u32 %v347, 16
      %v376 = vrot.slane %v374, 7
      %v377 = vrot.slane %v376, 1
      %v379 = vshll.u32 %v348, 16
      %v381 = vsel %vm363, %v377, %v379
      %s382 = scalar_lea.vmem %s1, 16
      %v383 = vld [vmem:[%s382] sm:$0xf]
      %v384 = vld [vmem:[%s382 + $0x4] sm:$0xf]
      %v385 = vcombine.low %v372, %v381
      %v387 = vunpack.c.l.s4 1966171168
      %v388 = vunpack.c.0.s8 %v387
      %v389 = vlaneseq
      %v390 = vshrl.u32 %v389, 7
      %v391 = vsub.s32 %v388, %v390
      %v392 = vrot.slane %v385, %v391
      %v394 = vunpack.c.l.s4 1966171168
      %v395 = vunpack.c.0.s8 %v394
      %v396 = vlaneseq
      %v397 = vshrl.u32 %v396, 7
      %v398 = vsub.s32 %v395, %v397
      %v399 = vrot.slane %v392, %v398
      %v402 = vunpack.c.l.b16 %v383
      %v403 = vunpack.c.l.b16 %v384
      %v404 = vpack.c.b16 %v403, %v402
      %v407 = vsel %vm219, %v399, 0
      %409 = vmatprep.subr.bf16.mxu0 0
      %410 = vmatpush1.bf16.msra.mxu0 %v404
      %411 = vmatprep.subr.bf16.mxu0 0
      %412 = vmatpush1.bf16.msra.mxu0 0
      %413 = vmatprep.subr.bf16.mxu0 0
      %414 = vmatpush1.bf16.msra.mxu0 0
      %415 = vmatprep.subr.bf16.mxu0 0
      %416 = vmatpush1.bf16.msra.mxu0 0
      %417 = vmatprep.subr.bf16.mxu0 0
      %418 = vmatpush1.bf16.msra.mxu0 0
      %419 = vmatprep.subr.bf16.mxu0 0
      %420 = vmatpush1.bf16.msra.mxu0 0
      %421 = vmatprep.subr.bf16.mxu0 0
      %422 = vmatpush1.bf16.msra.mxu0 0
      %423 = vmatprep.subr.bf16.mxu0 0
      %424 = vmatpush1.bf16.msra.mxu0 0
      %425 = vmatprep.subr.bf16.mxu0 0
      %426 = vmatpush1.bf16.msra.mxu0 0
      %427 = vmatprep.subr.bf16.mxu0 0
      %428 = vmatpush1.bf16.msra.mxu0 0
      %429 = vmatprep.subr.bf16.mxu0 0
      %430 = vmatpush1.bf16.msra.mxu0 0
      %431 = vmatprep.subr.bf16.mxu0 0
      %432 = vmatpush1.bf16.msra.mxu0 0
      %433 = vmatprep.subr.bf16.mxu0 0
      %434 = vmatpush1.bf16.msra.mxu0 0
      %435 = vmatprep.subr.bf16.mxu0 0
      %436 = vmatpush1.bf16.msra.mxu0 0
      %437 = vmatprep.subr.bf16.mxu0 0
      %438 = vmatpush1.bf16.msra.mxu0 0
      %439 = vmatprep.subr.bf16.mxu0 0
      %440 = vmatpush1.bf16.msra.mxu0 0
      %441 = vmatprep.mubr.bf16.mxu0 0
      %442 = vmatmul.mubr.bf16.gmra.mrb[0].mxu0 %v407
      %v443 = vpop.f32.mrb[0].mxu0
      %v444 = vadd.f32 0.0, %v443
      %v445 = vpop.f32.mrb[0].mxu0
      %v446 = vpop.f32.mrb[0].mxu0
      %v447 = vpop.f32.mrb[0].mxu0
      %448 = vdwg.mxu0
      %v449 = vadd.f32 %v324, %v444
      %v450 = vld [vmem:[%s190] sm:$0x3]
      %v451 = vld [vmem:[%s190 + $0x2] sm:$0x3]
      %v455 = vunpack.c.l.s4 1966171168
      %v456 = vunpack.c.0.s8 %v455
      %v457 = vlaneseq
      %v458 = vshrl.u32 %v457, 7
      %v459 = vsub.s32 %v456, %v458
      %v460 = vrot.slane %v450, %v459
      %v461 = vcombine.high %v460, %v460
      %v463 = vunpack.c.l.s4 1966171168
      %v464 = vunpack.c.0.s8 %v463
      %v465 = vlaneseq
      %v466 = vshrl.u32 %v465, 7
      %v467 = vsub.s32 %v464, %v466
      %v468 = vrot.slane %v451, %v467
      %v469 = vcombine.high %v468, %v468
      %v471 = vshrl.u32 %v460, 16
      %v473 = vrot.slane %v471, 7
      %v474 = vrot.slane %v473, 1
      %v476 = vshll.u32 %v461, 16
      %v478 = vsel %vm363, %v474, %v476
      %v480 = vshrl.u32 %v468, 16
      %v482 = vrot.slane %v480, 7
      %v483 = vrot.slane %v482, 1
      %v485 = vshll.u32 %v469, 16
      %v487 = vsel %vm363, %v483, %v485
      %s488 = scalar_lea.vmem %s1, 24
      %v489 = vld [vmem:[%s488] sm:$0xf]
      %v490 = vld [vmem:[%s488 + $0x4] sm:$0xf]
      %v491 = vcombine.low %v478, %v487
      %v493 = vunpack.c.l.s4 1966171168
      %v494 = vunpack.c.0.s8 %v493
      %v495 = vlaneseq
      %v496 = vshrl.u32 %v495, 7
      %v497 = vsub.s32 %v494, %v496
      %v498 = vrot.slane %v491, %v497
      %v500 = vunpack.c.l.s4 1966171168
      %v501 = vunpack.c.0.s8 %v500
      %v502 = vlaneseq
      %v503 = vshrl.u32 %v502, 7
      %v504 = vsub.s32 %v501, %v503
      %v505 = vrot.slane %v498, %v504
      %v508 = vunpack.c.l.b16 %v489
      %v509 = vunpack.c.l.b16 %v490
      %v510 = vpack.c.b16 %v509, %v508
      %v513 = vsel %vm219, %v505, 0
      %515 = vmatprep.subr.bf16.mxu0 0
      %516 = vmatpush1.bf16.msra.mxu0 %v510
      %517 = vmatprep.subr.bf16.mxu0 0
      %518 = vmatpush1.bf16.msra.mxu0 0
      %519 = vmatprep.subr.bf16.mxu0 0
      %520 = vmatpush1.bf16.msra.mxu0 0
      %521 = vmatprep.subr.bf16.mxu0 0
      %522 = vmatpush1.bf16.msra.mxu0 0
      %523 = vmatprep.subr.bf16.mxu0 0
      %524 = vmatpush1.bf16.msra.mxu0 0
      %525 = vmatprep.subr.bf16.mxu0 0
      %526 = vmatpush1.bf16.msra.mxu0 0
      %527 = vmatprep.subr.bf16.mxu0 0
      %528 = vmatpush1.bf16.msra.mxu0 0
      %529 = vmatprep.subr.bf16.mxu0 0
      %530 = vmatpush1.bf16.msra.mxu0 0
      %531 = vmatprep.subr.bf16.mxu0 0
      %532 = vmatpush1.bf16.msra.mxu0 0
      %533 = vmatprep.subr.bf16.mxu0 0
      %534 = vmatpush1.bf16.msra.mxu0 0
      %535 = vmatprep.subr.bf16.mxu0 0
      %536 = vmatpush1.bf16.msra.mxu0 0
      %537 = vmatprep.subr.bf16.mxu0 0
      %538 = vmatpush1.bf16.msra.mxu0 0
      %539 = vmatprep.subr.bf16.mxu0 0
      %540 = vmatpush1.bf16.msra.mxu0 0
      %541 = vmatprep.subr.bf16.mxu0 0
      %542 = vmatpush1.bf16.msra.mxu0 0
      %543 = vmatprep.subr.bf16.mxu0 0
      %544 = vmatpush1.bf16.msra.mxu0 0
      %545 = vmatprep.subr.bf16.mxu0 0
      %546 = vmatpush1.bf16.msra.mxu0 0
      %547 = vmatprep.mubr.bf16.mxu0 0
      %548 = vmatmul.mubr.bf16.gmra.mrb[0].mxu0 %v513
      %v549 = vpop.f32.mrb[0].mxu0
      %v550 = vadd.f32 0.0, %v549
      %v551 = vpop.f32.mrb[0].mxu0
      %v552 = vpop.f32.mrb[0].mxu0
      %v553 = vpop.f32.mrb[0].mxu0
      %554 = vdwg.mxu0
      %v555 = vadd.f32 %v449, %v550
      %s556 = scalar_lea.vmem %s175, 12
      %v557 = vld [vmem:[%s556] sm:$0x1]
      %v558 = vld [vmem:[%s556 + $0x2] sm:$0x1]
      %s559 = scalar_lea.vmem %s1, 32
      %v560 = vld [vmem:[%s559] sm:$0xf]
      %v561 = vld [vmem:[%s559 + $0x4] sm:$0xf]
      %v564 = vcombine.low %v557, %v558
      %v566 = vunpack.c.l.s4 1966171168
      %v567 = vunpack.c.0.s8 %v566
      %v568 = vlaneseq
      %v569 = vshrl.u32 %v568, 7
      %v570 = vsub.s32 %v567, %v569
      %v571 = vrot.slane %v564, %v570
      %v573 = vunpack.c.l.s4 1966171168
      %v574 = vunpack.c.0.s8 %v573
      %v575 = vlaneseq
      %v576 = vshrl.u32 %v575, 7
      %v577 = vsub.s32 %v574, %v576
      %v578 = vrot.slane %v571, %v577
      %v581 = vunpack.c.l.b16 %v560
      %v582 = vunpack.c.l.b16 %v561
      %v583 = vpack.c.b16 %v582, %v581
      %v586 = vsel %vm219, %v578, 0
      %588 = vmatprep.subr.bf16.mxu0 0
      %589 = vmatpush1.bf16.msra.mxu0 %v583
      %590 = vmatprep.subr.bf16.mxu0 0
      %591 = vmatpush1.bf16.msra.mxu0 0
      %592 = vmatprep.subr.bf16.mxu0 0
      %593 = vmatpush1.bf16.msra.mxu0 0
      %594 = vmatprep.subr.bf16.mxu0 0
      %595 = vmatpush1.bf16.msra.mxu0 0
      %596 = vmatprep.subr.bf16.mxu0 0
      %597 = vmatpush1.bf16.msra.mxu0 0
      %598 = vmatprep.subr.bf16.mxu0 0
      %599 = vmatpush1.bf16.msra.mxu0 0
      %600 = vmatprep.subr.bf16.mxu0 0
      %601 = vmatpush1.bf16.msra.mxu0 0
      %602 = vmatprep.subr.bf16.mxu0 0
      %603 = vmatpush1.bf16.msra.mxu0 0
      %604 = vmatprep.subr.bf16.mxu0 0
      %605 = vmatpush1.bf16.msra.mxu0 0
      %606 = vmatprep.subr.bf16.mxu0 0
      %607 = vmatpush1.bf16.msra.mxu0 0
      %608 = vmatprep.subr.bf16.mxu0 0
      %609 = vmatpush1.bf16.msra.mxu0 0
      %610 = vmatprep.subr.bf16.mxu0 0
      %611 = vmatpush1.bf16.msra.mxu0 0
      %612 = vmatprep.subr.bf16.mxu0 0
      %613 = vmatpush1.bf16.msra.mxu0 0
      %614 = vmatprep.subr.bf16.mxu0 0
      %615 = vmatpush1.bf16.msra.mxu0 0
      %616 = vmatprep.subr.bf16.mxu0 0
      %617 = vmatpush1.bf16.msra.mxu0 0
      %618 = vmatprep.subr.bf16.mxu0 0
      %619 = vmatpush1.bf16.msra.mxu0 0
      %620 = vmatprep.mubr.bf16.mxu0 0
      %621 = vmatmul.mubr.bf16.gmra.mrb[0].mxu0 %v586
      %v622 = vpop.f32.mrb[0].mxu0
      %v623 = vadd.f32 0.0, %v622
      %v624 = vpop.f32.mrb[0].mxu0
      %v625 = vpop.f32.mrb[0].mxu0
      %v626 = vpop.f32.mrb[0].mxu0
      %627 = vdwg.mxu0
      %v628 = vadd.f32 %v555, %v623
      %s629 = scalar_lea.vmem %s175, 18
      %v630 = vld [vmem:[%s629] sm:$0x1]
      %v631 = vld [vmem:[%s629 + $0x2] sm:$0x1]
      %s632 = scalar_lea.vmem %s1, 40
      %v633 = vld [vmem:[%s632] sm:$0xf]
      %v634 = vld [vmem:[%s632 + $0x4] sm:$0xf]
      %v637 = vcombine.low %v630, %v631
      %v639 = vunpack.c.l.s4 1966171168
      %v640 = vunpack.c.0.s8 %v639
      %v641 = vlaneseq
      %v642 = vshrl.u32 %v641, 7
      %v643 = vsub.s32 %v640, %v642
      %v644 = vrot.slane %v637, %v643
      %v646 = vunpack.c.l.s4 1966171168
      %v647 = vunpack.c.0.s8 %v646
      %v648 = vlaneseq
      %v649 = vshrl.u32 %v648, 7
      %v650 = vsub.s32 %v647, %v649
      %v651 = vrot.slane %v644, %v650
      %v654 = vunpack.c.l.b16 %v633
      %v655 = vunpack.c.l.b16 %v634
      %v656 = vpack.c.b16 %v655, %v654
      %v659 = vsel %vm219, %v651, 0
      %661 = vmatprep.subr.bf16.mxu0 0
      %662 = vmatpush1.bf16.msra.mxu0 %v656
      %663 = vmatprep.subr.bf16.mxu0 0
      %664 = vmatpush1.bf16.msra.mxu0 0
      %665 = vmatprep.subr.bf16.mxu0 0
      %666 = vmatpush1.bf16.msra.mxu0 0
      %667 = vmatprep.subr.bf16.mxu0 0
      %668 = vmatpush1.bf16.msra.mxu0 0
      %669 = vmatprep.subr.bf16.mxu0 0
      %670 = vmatpush1.bf16.msra.mxu0 0
      %671 = vmatprep.subr.bf16.mxu0 0
      %672 = vmatpush1.bf16.msra.mxu0 0
      %673 = vmatprep.subr.bf16.mxu0 0
      %674 = vmatpush1.bf16.msra.mxu0 0
      %675 = vmatprep.subr.bf16.mxu0 0
      %676 = vmatpush1.bf16.msra.mxu0 0
      %677 = vmatprep.subr.bf16.mxu0 0
      %678 = vmatpush1.bf16.msra.mxu0 0
      %679 = vmatprep.subr.bf16.mxu0 0
      %680 = vmatpush1.bf16.msra.mxu0 0
      %681 = vmatprep.subr.bf16.mxu0 0
      %682 = vmatpush1.bf16.msra.mxu0 0
      %683 = vmatprep.subr.bf16.mxu0 0
      %684 = vmatpush1.bf16.msra.mxu0 0
      %685 = vmatprep.subr.bf16.mxu0 0
      %686 = vmatpush1.bf16.msra.mxu0 0
      %687 = vmatprep.subr.bf16.mxu0 0
      %688 = vmatpush1.bf16.msra.mxu0 0
      %689 = vmatprep.subr.bf16.mxu0 0
      %690 = vmatpush1.bf16.msra.mxu0 0
      %691 = vmatprep.subr.bf16.mxu0 0
      %692 = vmatpush1.bf16.msra.mxu0 0
      %693 = vmatprep.mubr.bf16.mxu0 0
      %694 = vmatmul.mubr.bf16.gmra.mrb[0].mxu0 %v659
      %v695 = vpop.f32.mrb[0].mxu0
      %v696 = vadd.f32 0.0, %v695
      %v697 = vpop.f32.mrb[0].mxu0
      %v698 = vpop.f32.mrb[0].mxu0
      %v699 = vpop.f32.mrb[0].mxu0
      %700 = vdwg.mxu0
      %v701 = vadd.f32 %v628, %v696
      %v702 = vld [vmem:[%s556] sm:$0x3]
      %v703 = vld [vmem:[%s556 + $0x2] sm:$0x3]
      %v707 = vunpack.c.l.s4 1966171168
      %v708 = vunpack.c.0.s8 %v707
      %v709 = vlaneseq
      %v710 = vshrl.u32 %v709, 7
      %v711 = vsub.s32 %v708, %v710
      %v712 = vrot.slane %v702, %v711
      %v713 = vcombine.high %v712, %v712
      %v715 = vunpack.c.l.s4 1966171168
      %v716 = vunpack.c.0.s8 %v715
      %v717 = vlaneseq
      %v718 = vshrl.u32 %v717, 7
      %v719 = vsub.s32 %v716, %v718
      %v720 = vrot.slane %v703, %v719
      %v721 = vcombine.high %v720, %v720
      %v723 = vshrl.u32 %v712, 16
      %v725 = vrot.slane %v723, 7
      %v726 = vrot.slane %v725, 1
      %v728 = vshll.u32 %v713, 16
      %v730 = vsel %vm363, %v726, %v728
      %v732 = vshrl.u32 %v720, 16
      %v734 = vrot.slane %v732, 7
      %v735 = vrot.slane %v734, 1
      %v737 = vshll.u32 %v721, 16
      %v739 = vsel %vm363, %v735, %v737
      %s740 = scalar_lea.vmem %s1, 48
      %v741 = vld [vmem:[%s740] sm:$0xf]
      %v742 = vld [vmem:[%s740 + $0x4] sm:$0xf]
      %v743 = vcombine.low %v730, %v739
      %v745 = vunpack.c.l.s4 1966171168
      %v746 = vunpack.c.0.s8 %v745
      %v747 = vlaneseq
      %v748 = vshrl.u32 %v747, 7
      %v749 = vsub.s32 %v746, %v748
      %v750 = vrot.slane %v743, %v749
      %v752 = vunpack.c.l.s4 1966171168
      %v753 = vunpack.c.0.s8 %v752
      %v754 = vlaneseq
      %v755 = vshrl.u32 %v754, 7
      %v756 = vsub.s32 %v753, %v755
      %v757 = vrot.slane %v750, %v756
      %v760 = vunpack.c.l.b16 %v741
      %v761 = vunpack.c.l.b16 %v742
      %v762 = vpack.c.b16 %v761, %v760
      %v765 = vsel %vm219, %v757, 0
      %767 = vmatprep.subr.bf16.mxu0 0
      %768 = vmatpush1.bf16.msra.mxu0 %v762
      %769 = vmatprep.subr.bf16.mxu0 0
      %770 = vmatpush1.bf16.msra.mxu0 0
      %771 = vmatprep.subr.bf16.mxu0 0
      %772 = vmatpush1.bf16.msra.mxu0 0
      %773 = vmatprep.subr.bf16.mxu0 0
      %774 = vmatpush1.bf16.msra.mxu0 0
      %775 = vmatprep.subr.bf16.mxu0 0
      %776 = vmatpush1.bf16.msra.mxu0 0
      %777 = vmatprep.subr.bf16.mxu0 0
      %778 = vmatpush1.bf16.msra.mxu0 0
      %779 = vmatprep.subr.bf16.mxu0 0
      %780 = vmatpush1.bf16.msra.mxu0 0
      %781 = vmatprep.subr.bf16.mxu0 0
      %782 = vmatpush1.bf16.msra.mxu0 0
      %783 = vmatprep.subr.bf16.mxu0 0
      %784 = vmatpush1.bf16.msra.mxu0 0
      %785 = vmatprep.subr.bf16.mxu0 0
      %786 = vmatpush1.bf16.msra.mxu0 0
      %787 = vmatprep.subr.bf16.mxu0 0
      %788 = vmatpush1.bf16.msra.mxu0 0
      %789 = vmatprep.subr.bf16.mxu0 0
      %790 = vmatpush1.bf16.msra.mxu0 0
      %791 = vmatprep.subr.bf16.mxu0 0
      %792 = vmatpush1.bf16.msra.mxu0 0
      %793 = vmatprep.subr.bf16.mxu0 0
      %794 = vmatpush1.bf16.msra.mxu0 0
      %795 = vmatprep.subr.bf16.mxu0 0
      %796 = vmatpush1.bf16.msra.mxu0 0
      %797 = vmatprep.subr.bf16.mxu0 0
      %798 = vmatpush1.bf16.msra.mxu0 0
      %799 = vmatprep.mubr.bf16.mxu0 0
      %800 = vmatmul.mubr.bf16.gmra.mrb[0].mxu0 %v765
      %v801 = vpop.f32.mrb[0].mxu0
      %v802 = vadd.f32 0.0, %v801
      %v803 = vpop.f32.mrb[0].mxu0
      %v804 = vpop.f32.mrb[0].mxu0
      %v805 = vpop.f32.mrb[0].mxu0
      %806 = vdwg.mxu0
      %v807 = vadd.f32 %v701, %v802
      %v808 = vld [vmem:[%s629] sm:$0x3]
      %v809 = vld [vmem:[%s629 + $0x2] sm:$0x3]
      %v813 = vunpack.c.l.s4 1966171168
      %v814 = vunpack.c.0.s8 %v813
      %v815 = vlaneseq
      %v816 = vshrl.u32 %v815, 7
      %v817 = vsub.s32 %v814, %v816
      %v818 = vrot.slane %v808, %v817
      %v819 = vcombine.high %v818, %v818
      %v821 = vunpack.c.l.s4 1966171168
      %v822 = vunpack.c.0.s8 %v821
      %v823 = vlaneseq
      %v824 = vshrl.u32 %v823, 7
      %v825 = vsub.s32 %v822, %v824
      %v826 = vrot.slane %v809, %v825
      %v827 = vcombine.high %v826, %v826
      %v829 = vshrl.u32 %v818, 16
      %v831 = vrot.slane %v829, 7
      %v832 = vrot.slane %v831, 1
      %v834 = vshll.u32 %v819, 16
      %v836 = vsel %vm363, %v832, %v834
      %v838 = vshrl.u32 %v826, 16
      %v840 = vrot.slane %v838, 7
      %v841 = vrot.slane %v840, 1
      %v843 = vshll.u32 %v827, 16
      %v845 = vsel %vm363, %v841, %v843
      %s846 = scalar_lea.vmem %s1, 56
      %v847 = vld [vmem:[%s846] sm:$0xf]
      %v848 = vld [vmem:[%s846 + $0x4] sm:$0xf]
      %v849 = vcombine.low %v836, %v845
      %v851 = vunpack.c.l.s4 1966171168
      %v852 = vunpack.c.0.s8 %v851
      %v853 = vlaneseq
      %v854 = vshrl.u32 %v853, 7
      %v855 = vsub.s32 %v852, %v854
      %v856 = vrot.slane %v849, %v855
      %v858 = vunpack.c.l.s4 1966171168
      %v859 = vunpack.c.0.s8 %v858
      %v860 = vlaneseq
      %v861 = vshrl.u32 %v860, 7
      %v862 = vsub.s32 %v859, %v861
      %v863 = vrot.slane %v856, %v862
      %v866 = vunpack.c.l.b16 %v847
      %v867 = vunpack.c.l.b16 %v848
      %v868 = vpack.c.b16 %v867, %v866
      %v871 = vsel %vm219, %v863, 0
      %873 = vmatprep.subr.bf16.mxu0 0
      %874 = vmatpush1.bf16.msra.mxu0 %v868
      %875 = vmatprep.subr.bf16.mxu0 0
      %876 = vmatpush1.bf16.msra.mxu0 0
      %877 = vmatprep.subr.bf16.mxu0 0
      %878 = vmatpush1.bf16.msra.mxu0 0
      %879 = vmatprep.subr.bf16.mxu0 0
      %880 = vmatpush1.bf16.msra.mxu0 0
      %881 = vmatprep.subr.bf16.mxu0 0
      %882 = vmatpush1.bf16.msra.mxu0 0
      %883 = vmatprep.subr.bf16.mxu0 0
      %884 = vmatpush1.bf16.msra.mxu0 0
      %885 = vmatprep.subr.bf16.mxu0 0
      %886 = vmatpush1.bf16.msra.mxu0 0
      %887 = vmatprep.subr.bf16.mxu0 0
      %888 = vmatpush1.bf16.msra.mxu0 0
      %889 = vmatprep.subr.bf16.mxu0 0
      %890 = vmatpush1.bf16.msra.mxu0 0
      %891 = vmatprep.subr.bf16.mxu0 0
      %892 = vmatpush1.bf16.msra.mxu0 0
      %893 = vmatprep.subr.bf16.mxu0 0
      %894 = vmatpush1.bf16.msra.mxu0 0
      %895 = vmatprep.subr.bf16.mxu0 0
      %896 = vmatpush1.bf16.msra.mxu0 0
      %897 = vmatprep.subr.bf16.mxu0 0
      %898 = vmatpush1.bf16.msra.mxu0 0
      %899 = vmatprep.subr.bf16.mxu0 0
      %900 = vmatpush1.bf16.msra.mxu0 0
      %901 = vmatprep.subr.bf16.mxu0 0
      %902 = vmatpush1.bf16.msra.mxu0 0
      %903 = vmatprep.subr.bf16.mxu0 0
      %904 = vmatpush1.bf16.msra.mxu0 0
      %905 = vmatprep.mubr.bf16.mxu0 0
      %906 = vmatmul.mubr.bf16.gmra.mrb[0].mxu0 %v871
      %v907 = vpop.f32.mrb[0].mxu0
      %v908 = vadd.f32 0.0, %v907
      %v909 = vpop.f32.mrb[0].mxu0
      %v910 = vpop.f32.mrb[0].mxu0
      %v911 = vpop.f32.mrb[0].mxu0
      %912 = vdwg.mxu0
      %v913 = vadd.f32 %v807, %v908
      %s914 = scalar_lea.vmem %s175, 2
      %v915 = vld [vmem:[%s914] sm:$0x1]
      %v916 = vld [vmem:[%s914 + $0x2] sm:$0x1]
      %s917 = scalar_lea.vmem %s1, 64
      %v918 = vld [vmem:[%s917] sm:$0xf]
      %v919 = vld [vmem:[%s917 + $0x4] sm:$0xf]
      %v922 = vcombine.low %v915, %v916
      %v924 = vunpack.c.l.s4 1966171168
      %v925 = vunpack.c.0.s8 %v924
      %v926 = vlaneseq
      %v927 = vshrl.u32 %v926, 7
      %v928 = vsub.s32 %v925, %v927
      %v929 = vrot.slane %v922, %v928
      %v931 = vunpack.c.l.s4 1966171168
      %v932 = vunpack.c.0.s8 %v931
      %v933 = vlaneseq
      %v934 = vshrl.u32 %v933, 7
      %v935 = vsub.s32 %v932, %v934
      %v936 = vrot.slane %v929, %v935
      %v939 = vunpack.c.l.b16 %v918
      %v940 = vunpack.c.l.b16 %v919
      %v941 = vpack.c.b16 %v940, %v939
      %v944 = vsel %vm219, %v936, 0
      %946 = vmatprep.subr.bf16.mxu0 0
      %947 = vmatpush1.bf16.msra.mxu0 %v941
      %948 = vmatprep.subr.bf16.mxu0 0
      %949 = vmatpush1.bf16.msra.mxu0 0
      %950 = vmatprep.subr.bf16.mxu0 0
      %951 = vmatpush1.bf16.msra.mxu0 0
      %952 = vmatprep.subr.bf16.mxu0 0
      %953 = vmatpush1.bf16.msra.mxu0 0
      %954 = vmatprep.subr.bf16.mxu0 0
      %955 = vmatpush1.bf16.msra.mxu0 0
      %956 = vmatprep.subr.bf16.mxu0 0
      %957 = vmatpush1.bf16.msra.mxu0 0
      %958 = vmatprep.subr.bf16.mxu0 0
      %959 = vmatpush1.bf16.msra.mxu0 0
      %960 = vmatprep.subr.bf16.mxu0 0
      %961 = vmatpush1.bf16.msra.mxu0 0
      %962 = vmatprep.subr.bf16.mxu0 0
      %963 = vmatpush1.bf16.msra.mxu0 0
      %964 = vmatprep.subr.bf16.mxu0 0
      %965 = vmatpush1.bf16.msra.mxu0 0
      %966 = vmatprep.subr.bf16.mxu0 0
      %967 = vmatpush1.bf16.msra.mxu0 0
      %968 = vmatprep.subr.bf16.mxu0 0
      %969 = vmatpush1.bf16.msra.mxu0 0
      %970 = vmatprep.subr.bf16.mxu0 0
      %971 = vmatpush1.bf16.msra.mxu0 0
      %972 = vmatprep.subr.bf16.mxu0 0
      %973 = vmatpush1.bf16.msra.mxu0 0
      %974 = vmatprep.subr.bf16.mxu0 0
      %975 = vmatpush1.bf16.msra.mxu0 0
      %976 = vmatprep.subr.bf16.mxu0 0
      %977 = vmatpush1.bf16.msra.mxu0 0
      %978 = vmatprep.mubr.bf16.mxu0 0
      %979 = vmatmul.mubr.bf16.gmra.mrb[0].mxu0 %v944
      %v980 = vpop.f32.mrb[0].mxu0
      %v981 = vadd.f32 0.0, %v980
      %v982 = vpop.f32.mrb[0].mxu0
      %v983 = vpop.f32.mrb[0].mxu0
      %v984 = vpop.f32.mrb[0].mxu0
      %985 = vdwg.mxu0
      %v986 = vadd.f32 %v913, %v981
      %s987 = scalar_lea.vmem %s175, 8
      %v988 = vld [vmem:[%s987] sm:$0x1]
      %v989 = vld [vmem:[%s987 + $0x2] sm:$0x1]
      %s990 = scalar_lea.vmem %s1, 72
      %v991 = vld [vmem:[%s990] sm:$0xf]
      %v992 = vld [vmem:[%s990 + $0x4] sm:$0xf]
      %v995 = vcombine.low %v988, %v989
      %v997 = vunpack.c.l.s4 1966171168
      %v998 = vunpack.c.0.s8 %v997
      %v999 = vlaneseq
      %v1000 = vshrl.u32 %v999, 7
      %v1001 = vsub.s32 %v998, %v1000
      %v1002 = vrot.slane %v995, %v1001
      %v1004 = vunpack.c.l.s4 1966171168
      %v1005 = vunpack.c.0.s8 %v1004
      %v1006 = vlaneseq
      %v1007 = vshrl.u32 %v1006, 7
      %v1008 = vsub.s32 %v1005, %v1007
      %v1009 = vrot.slane %v1002, %v1008
      %v1012 = vunpack.c.l.b16 %v991
      %v1013 = vunpack.c.l.b16 %v992
      %v1014 = vpack.c.b16 %v1013, %v1012
      %v1017 = vsel %vm219, %v1009, 0
      %1019 = vmatprep.subr.bf16.mxu0 0
      %1020 = vmatpush1.bf16.msra.mxu0 %v1014
      %1021 = vmatprep.subr.bf16.mxu0 0
      %1022 = vmatpush1.bf16.msra.mxu0 0
      %1023 = vmatprep.subr.bf16.mxu0 0
      %1024 = vmatpush1.bf16.msra.mxu0 0
      %1025 = vmatprep.subr.bf16.mxu0 0
      %1026 = vmatpush1.bf16.msra.mxu0 0
      %1027 = vmatprep.subr.bf16.mxu0 0
      %1028 = vmatpush1.bf16.msra.mxu0 0
      %1029 = vmatprep.subr.bf16.mxu0 0
      %1030 = vmatpush1.bf16.msra.mxu0 0
      %1031 = vmatprep.subr.bf16.mxu0 0
      %1032 = vmatpush1.bf16.msra.mxu0 0
      %1033 = vmatprep.subr.bf16.mxu0 0
      %1034 = vmatpush1.bf16.msra.mxu0 0
      %1035 = vmatprep.subr.bf16.mxu0 0
      %1036 = vmatpush1.bf16.msra.mxu0 0
      %1037 = vmatprep.subr.bf16.mxu0 0
      %1038 = vmatpush1.bf16.msra.mxu0 0
      %1039 = vmatprep.subr.bf16.mxu0 0
      %1040 = vmatpush1.bf16.msra.mxu0 0
      %1041 = vmatprep.subr.bf16.mxu0 0
      %1042 = vmatpush1.bf16.msra.mxu0 0
      %1043 = vmatprep.subr.bf16.mxu0 0
      %1044 = vmatpush1.bf16.msra.mxu0 0
      %1045 = vmatprep.subr.bf16.mxu0 0
      %1046 = vmatpush1.bf16.msra.mxu0 0
      %1047 = vmatprep.subr.bf16.mxu0 0
      %1048 = vmatpush1.bf16.msra.mxu0 0
      %1049 = vmatprep.subr.bf16.mxu0 0
      %1050 = vmatpush1.bf16.msra.mxu0 0
      %1051 = vmatprep.mubr.bf16.mxu0 0
      %1052 = vmatmul.mubr.bf16.gmra.mrb[0].mxu0 %v1017
      %v1053 = vpop.f32.mrb[0].mxu0
      %v1054 = vadd.f32 0.0, %v1053
      %v1055 = vpop.f32.mrb[0].mxu0
      %v1056 = vpop.f32.mrb[0].mxu0
      %v1057 = vpop.f32.mrb[0].mxu0
      %1058 = vdwg.mxu0
      %v1059 = vadd.f32 %v986, %v1054
      %v1060 = vld [vmem:[%s914] sm:$0x3]
      %v1061 = vld [vmem:[%s914 + $0x2] sm:$0x3]
      %v1065 = vunpack.c.l.s4 1966171168
      %v1066 = vunpack.c.0.s8 %v1065
      %v1067 = vlaneseq
      %v1068 = vshrl.u32 %v1067, 7
      %v1069 = vsub.s32 %v1066, %v1068
      %v1070 = vrot.slane %v1060, %v1069
      %v1071 = vcombine.high %v1070, %v1070
      %v1073 = vunpack.c.l.s4 1966171168
      %v1074 = vunpack.c.0.s8 %v1073
      %v1075 = vlaneseq
      %v1076 = vshrl.u32 %v1075, 7
      %v1077 = vsub.s32 %v1074, %v1076
      %v1078 = vrot.slane %v1061, %v1077
      %v1079 = vcombine.high %v1078, %v1078
      %v1081 = vshrl.u32 %v1070, 16
      %v1083 = vrot.slane %v1081, 7
      %v1084 = vrot.slane %v1083, 1
      %v1086 = vshll.u32 %v1071, 16
      %v1088 = vsel %vm363, %v1084, %v1086
      %v1090 = vshrl.u32 %v1078, 16
      %v1092 = vrot.slane %v1090, 7
      %v1093 = vrot.slane %v1092, 1
      %v1095 = vshll.u32 %v1079, 16
      %v1097 = vsel %vm363, %v1093, %v1095
      %s1098 = scalar_lea.vmem %s1, 80
      %v1099 = vld [vmem:[%s1098] sm:$0xf]
      %v1100 = vld [vmem:[%s1098 + $0x4] sm:$0xf]
      %v1101 = vcombine.low %v1088, %v1097
      %v1103 = vunpack.c.l.s4 1966171168
      %v1104 = vunpack.c.0.s8 %v1103
      %v1105 = vlaneseq
      %v1106 = vshrl.u32 %v1105, 7
      %v1107 = vsub.s32 %v1104, %v1106
      %v1108 = vrot.slane %v1101, %v1107
      %v1110 = vunpack.c.l.s4 1966171168
      %v1111 = vunpack.c.0.s8 %v1110
      %v1112 = vlaneseq
      %v1113 = vshrl.u32 %v1112, 7
      %v1114 = vsub.s32 %v1111, %v1113
      %v1115 = vrot.slane %v1108, %v1114
      %v1118 = vunpack.c.l.b16 %v1099
      %v1119 = vunpack.c.l.b16 %v1100
      %v1120 = vpack.c.b16 %v1119, %v1118
      %v1123 = vsel %vm219, %v1115, 0
      %1125 = vmatprep.subr.bf16.mxu0 0
      %1126 = vmatpush1.bf16.msra.mxu0 %v1120
      %1127 = vmatprep.subr.bf16.mxu0 0
      %1128 = vmatpush1.bf16.msra.mxu0 0
      %1129 = vmatprep.subr.bf16.mxu0 0
      %1130 = vmatpush1.bf16.msra.mxu0 0
      %1131 = vmatprep.subr.bf16.mxu0 0
      %1132 = vmatpush1.bf16.msra.mxu0 0
      %1133 = vmatprep.subr.bf16.mxu0 0
      %1134 = vmatpush1.bf16.msra.mxu0 0
      %1135 = vmatprep.subr.bf16.mxu0 0
      %1136 = vmatpush1.bf16.msra.mxu0 0
      %1137 = vmatprep.subr.bf16.mxu0 0
      %1138 = vmatpush1.bf16.msra.mxu0 0
      %1139 = vmatprep.subr.bf16.mxu0 0
      %1140 = vmatpush1.bf16.msra.mxu0 0
      %1141 = vmatprep.subr.bf16.mxu0 0
      %1142 = vmatpush1.bf16.msra.mxu0 0
      %1143 = vmatprep.subr.bf16.mxu0 0
      %1144 = vmatpush1.bf16.msra.mxu0 0
      %1145 = vmatprep.subr.bf16.mxu0 0
      %1146 = vmatpush1.bf16.msra.mxu0 0
      %1147 = vmatprep.subr.bf16.mxu0 0
      %1148 = vmatpush1.bf16.msra.mxu0 0
      %1149 = vmatprep.subr.bf16.mxu0 0
      %1150 = vmatpush1.bf16.msra.mxu0 0
      %1151 = vmatprep.subr.bf16.mxu0 0
      %1152 = vmatpush1.bf16.msra.mxu0 0
      %1153 = vmatprep.subr.bf16.mxu0 0
      %1154 = vmatpush1.bf16.msra.mxu0 0
      %1155 = vmatprep.subr.bf16.mxu0 0
      %1156 = vmatpush1.bf16.msra.mxu0 0
      %1157 = vmatprep.mubr.bf16.mxu0 0
      %1158 = vmatmul.mubr.bf16.gmra.mrb[0].mxu0 %v1123
      %v1159 = vpop.f32.mrb[0].mxu0
      %v1160 = vadd.f32 0.0, %v1159
      %v1161 = vpop.f32.mrb[0].mxu0
      %v1162 = vpop.f32.mrb[0].mxu0
      %v1163 = vpop.f32.mrb[0].mxu0
      %1164 = vdwg.mxu0
      %v1165 = vadd.f32 %v1059, %v1160
      %v1166 = vld [vmem:[%s987] sm:$0x3]
      %v1167 = vld [vmem:[%s987 + $0x2] sm:$0x3]
      %v1171 = vunpack.c.l.s4 1966171168
      %v1172 = vunpack.c.0.s8 %v1171
      %v1173 = vlaneseq
      %v1174 = vshrl.u32 %v1173, 7
      %v1175 = vsub.s32 %v1172, %v1174
      %v1176 = vrot.slane %v1166, %v1175
      %v1177 = vcombine.high %v1176, %v1176
      %v1179 = vunpack.c.l.s4 1966171168
      %v1180 = vunpack.c.0.s8 %v1179
      %v1181 = vlaneseq
      %v1182 = vshrl.u32 %v1181, 7
      %v1183 = vsub.s32 %v1180, %v1182
      %v1184 = vrot.slane %v1167, %v1183
      %v1185 = vcombine.high %v1184, %v1184
      %v1187 = vshrl.u32 %v1176, 16
      %v1189 = vrot.slane %v1187, 7
      %v1190 = vrot.slane %v1189, 1
      %v1192 = vshll.u32 %v1177, 16
      %v1194 = vsel %vm363, %v1190, %v1192
      %v1196 = vshrl.u32 %v1184, 16
      %v1198 = vrot.slane %v1196, 7
      %v1199 = vrot.slane %v1198, 1
      %v1201 = vshll.u32 %v1185, 16
      %v1203 = vsel %vm363, %v1199, %v1201
      %s1204 = scalar_lea.vmem %s1, 88
      %v1205 = vld [vmem:[%s1204] sm:$0xf]
      %v1206 = vld [vmem:[%s1204 + $0x4] sm:$0xf]
      %v1207 = vcombine.low %v1194, %v1203
      %v1209 = vunpack.c.l.s4 1966171168
      %v1210 = vunpack.c.0.s8 %v1209
      %v1211 = vlaneseq
      %v1212 = vshrl.u32 %v1211, 7
      %v1213 = vsub.s32 %v1210, %v1212
      %v1214 = vrot.slane %v1207, %v1213
      %v1216 = vunpack.c.l.s4 1966171168
      %v1217 = vunpack.c.0.s8 %v1216
      %v1218 = vlaneseq
      %v1219 = vshrl.u32 %v1218, 7
      %v1220 = vsub.s32 %v1217, %v1219
      %v1221 = vrot.slane %v1214, %v1220
      %v1224 = vunpack.c.l.b16 %v1205
      %v1225 = vunpack.c.l.b16 %v1206
      %v1226 = vpack.c.b16 %v1225, %v1224
      %v1229 = vsel %vm219, %v1221, 0
      %1231 = vmatprep.subr.bf16.mxu0 0
      %1232 = vmatpush1.bf16.msra.mxu0 %v1226
      %1233 = vmatprep.subr.bf16.mxu0 0
      %1234 = vmatpush1.bf16.msra.mxu0 0
      %1235 = vmatprep.subr.bf16.mxu0 0
      %1236 = vmatpush1.bf16.msra.mxu0 0
      %1237 = vmatprep.subr.bf16.mxu0 0
      %1238 = vmatpush1.bf16.msra.mxu0 0
      %1239 = vmatprep.subr.bf16.mxu0 0
      %1240 = vmatpush1.bf16.msra.mxu0 0
      %1241 = vmatprep.subr.bf16.mxu0 0
      %1242 = vmatpush1.bf16.msra.mxu0 0
      %1243 = vmatprep.subr.bf16.mxu0 0
      %1244 = vmatpush1.bf16.msra.mxu0 0
      %1245 = vmatprep.subr.bf16.mxu0 0
      %1246 = vmatpush1.bf16.msra.mxu0 0
      %1247 = vmatprep.subr.bf16.mxu0 0
      %1248 = vmatpush1.bf16.msra.mxu0 0
      %1249 = vmatprep.subr.bf16.mxu0 0
      %1250 = vmatpush1.bf16.msra.mxu0 0
      %1251 = vmatprep.subr.bf16.mxu0 0
      %1252 = vmatpush1.bf16.msra.mxu0 0
      %1253 = vmatprep.subr.bf16.mxu0 0
      %1254 = vmatpush1.bf16.msra.mxu0 0
      %1255 = vmatprep.subr.bf16.mxu0 0
      %1256 = vmatpush1.bf16.msra.mxu0 0
      %1257 = vmatprep.subr.bf16.mxu0 0
      %1258 = vmatpush1.bf16.msra.mxu0 0
      %1259 = vmatprep.subr.bf16.mxu0 0
      %1260 = vmatpush1.bf16.msra.mxu0 0
      %1261 = vmatprep.subr.bf16.mxu0 0
      %1262 = vmatpush1.bf16.msra.mxu0 0
      %1263 = vmatprep.mubr.bf16.mxu0 0
      %1264 = vmatmul.mubr.bf16.gmra.mrb[0].mxu0 %v1229
      %v1265 = vpop.f32.mrb[0].mxu0
      %v1266 = vadd.f32 0.0, %v1265
      %v1267 = vpop.f32.mrb[0].mxu0
      %v1268 = vpop.f32.mrb[0].mxu0
      %v1269 = vpop.f32.mrb[0].mxu0
      %1270 = vdwg.mxu0
      %v1271 = vadd.f32 %v1165, %v1266
      %s1272 = scalar_lea.vmem %s175, 14
      %v1273 = vld [vmem:[%s1272] sm:$0x1]
      %v1274 = vld [vmem:[%s1272 + $0x2] sm:$0x1]
      %s1275 = scalar_lea.vmem %s1, 96
      %v1276 = vld [vmem:[%s1275] sm:$0xf]
      %v1277 = vld [vmem:[%s1275 + $0x4] sm:$0xf]
      %v1280 = vcombine.low %v1273, %v1274
      %v1282 = vunpack.c.l.s4 1966171168
      %v1283 = vunpack.c.0.s8 %v1282
      %v1284 = vlaneseq
      %v1285 = vshrl.u32 %v1284, 7
      %v1286 = vsub.s32 %v1283, %v1285
      %v1287 = vrot.slane %v1280, %v1286
      %v1289 = vunpack.c.l.s4 1966171168
      %v1290 = vunpack.c.0.s8 %v1289
      %v1291 = vlaneseq
      %v1292 = vshrl.u32 %v1291, 7
      %v1293 = vsub.s32 %v1290, %v1292
      %v1294 = vrot.slane %v1287, %v1293
      %v1297 = vunpack.c.l.b16 %v1276
      %v1298 = vunpack.c.l.b16 %v1277
      %v1299 = vpack.c.b16 %v1298, %v1297
      %v1302 = vsel %vm219, %v1294, 0
      %1304 = vmatprep.subr.bf16.mxu0 0
      %1305 = vmatpush1.bf16.msra.mxu0 %v1299
      %1306 = vmatprep.subr.bf16.mxu0 0
      %1307 = vmatpush1.bf16.msra.mxu0 0
      %1308 = vmatprep.subr.bf16.mxu0 0
      %1309 = vmatpush1.bf16.msra.mxu0 0
      %1310 = vmatprep.subr.bf16.mxu0 0
      %1311 = vmatpush1.bf16.msra.mxu0 0
      %1312 = vmatprep.subr.bf16.mxu0 0
      %1313 = vmatpush1.bf16.msra.mxu0 0
      %1314 = vmatprep.subr.bf16.mxu0 0
      %1315 = vmatpush1.bf16.msra.mxu0 0
      %1316 = vmatprep.subr.bf16.mxu0 0
      %1317 = vmatpush1.bf16.msra.mxu0 0
      %1318 = vmatprep.subr.bf16.mxu0 0
      %1319 = vmatpush1.bf16.msra.mxu0 0
      %1320 = vmatprep.subr.bf16.mxu0 0
      %1321 = vmatpush1.bf16.msra.mxu0 0
      %1322 = vmatprep.subr.bf16.mxu0 0
      %1323 = vmatpush1.bf16.msra.mxu0 0
      %1324 = vmatprep.subr.bf16.mxu0 0
      %1325 = vmatpush1.bf16.msra.mxu0 0
      %1326 = vmatprep.subr.bf16.mxu0 0
      %1327 = vmatpush1.bf16.msra.mxu0 0
      %1328 = vmatprep.subr.bf16.mxu0 0
      %1329 = vmatpush1.bf16.msra.mxu0 0
      %1330 = vmatprep.subr.bf16.mxu0 0
      %1331 = vmatpush1.bf16.msra.mxu0 0
      %1332 = vmatprep.subr.bf16.mxu0 0
      %1333 = vmatpush1.bf16.msra.mxu0 0
      %1334 = vmatprep.subr.bf16.mxu0 0
      %1335 = vmatpush1.bf16.msra.mxu0 0
      %1336 = vmatprep.mubr.bf16.mxu0 0
      %1337 = vmatmul.mubr.bf16.gmra.mrb[0].mxu0 %v1302
      %v1338 = vpop.f32.mrb[0].mxu0
      %v1339 = vadd.f32 0.0, %v1338
      %v1340 = vpop.f32.mrb[0].mxu0
      %v1341 = vpop.f32.mrb[0].mxu0
      %v1342 = vpop.f32.mrb[0].mxu0
      %1343 = vdwg.mxu0
      %v1344 = vadd.f32 %v1271, %v1339
      %s1345 = scalar_lea.vmem %s175, 20
      %v1346 = vld [vmem:[%s1345] sm:$0x1]
      %v1347 = vld [vmem:[%s1345 + $0x2] sm:$0x1]
      %s1348 = scalar_lea.vmem %s1, 104
      %v1349 = vld [vmem:[%s1348] sm:$0xf]
      %v1350 = vld [vmem:[%s1348 + $0x4] sm:$0xf]
      %v1353 = vcombine.low %v1346, %v1347
      %v1355 = vunpack.c.l.s4 1966171168
      %v1356 = vunpack.c.0.s8 %v1355
      %v1357 = vlaneseq
      %v1358 = vshrl.u32 %v1357, 7
      %v1359 = vsub.s32 %v1356, %v1358
      %v1360 = vrot.slane %v1353, %v1359
      %v1362 = vunpack.c.l.s4 1966171168
      %v1363 = vunpack.c.0.s8 %v1362
      %v1364 = vlaneseq
      %v1365 = vshrl.u32 %v1364, 7
      %v1366 = vsub.s32 %v1363, %v1365
      %v1367 = vrot.slane %v1360, %v1366
      %v1370 = vunpack.c.l.b16 %v1349
      %v1371 = vunpack.c.l.b16 %v1350
      %v1372 = vpack.c.b16 %v1371, %v1370
      %v1375 = vsel %vm219, %v1367, 0
      %1377 = vmatprep.subr.bf16.mxu0 0
      %1378 = vmatpush1.bf16.msra.mxu0 %v1372
      %1379 = vmatprep.subr.bf16.mxu0 0
      %1380 = vmatpush1.bf16.msra.mxu0 0
      %1381 = vmatprep.subr.bf16.mxu0 0
      %1382 = vmatpush1.bf16.msra.mxu0 0
      %1383 = vmatprep.subr.bf16.mxu0 0
      %1384 = vmatpush1.bf16.msra.mxu0 0
      %1385 = vmatprep.subr.bf16.mxu0 0
      %1386 = vmatpush1.bf16.msra.mxu0 0
      %1387 = vmatprep.subr.bf16.mxu0 0
      %1388 = vmatpush1.bf16.msra.mxu0 0
      %1389 = vmatprep.subr.bf16.mxu0 0
      %1390 = vmatpush1.bf16.msra.mxu0 0
      %1391 = vmatprep.subr.bf16.mxu0 0
      %1392 = vmatpush1.bf16.msra.mxu0 0
      %1393 = vmatprep.subr.bf16.mxu0 0
      %1394 = vmatpush1.bf16.msra.mxu0 0
      %1395 = vmatprep.subr.bf16.mxu0 0
      %1396 = vmatpush1.bf16.msra.mxu0 0
      %1397 = vmatprep.subr.bf16.mxu0 0
      %1398 = vmatpush1.bf16.msra.mxu0 0
      %1399 = vmatprep.subr.bf16.mxu0 0
      %1400 = vmatpush1.bf16.msra.mxu0 0
      %1401 = vmatprep.subr.bf16.mxu0 0
      %1402 = vmatpush1.bf16.msra.mxu0 0
      %1403 = vmatprep.subr.bf16.mxu0 0
      %1404 = vmatpush1.bf16.msra.mxu0 0
      %1405 = vmatprep.subr.bf16.mxu0 0
      %1406 = vmatpush1.bf16.msra.mxu0 0
      %1407 = vmatprep.subr.bf16.mxu0 0
      %1408 = vmatpush1.bf16.msra.mxu0 0
      %1409 = vmatprep.mubr.bf16.mxu0 0
      %1410 = vmatmul.mubr.bf16.gmra.mrb[0].mxu0 %v1375
      %v1411 = vpop.f32.mrb[0].mxu0
      %v1412 = vadd.f32 0.0, %v1411
      %v1413 = vpop.f32.mrb[0].mxu0
      %v1414 = vpop.f32.mrb[0].mxu0
      %v1415 = vpop.f32.mrb[0].mxu0
      %1416 = vdwg.mxu0
      %v1417 = vadd.f32 %v1344, %v1412
      %v1418 = vld [vmem:[%s1272] sm:$0x3]
      %v1419 = vld [vmem:[%s1272 + $0x2] sm:$0x3]
      %v1423 = vunpack.c.l.s4 1966171168
      %v1424 = vunpack.c.0.s8 %v1423
      %v1425 = vlaneseq
      %v1426 = vshrl.u32 %v1425, 7
      %v1427 = vsub.s32 %v1424, %v1426
      %v1428 = vrot.slane %v1418, %v1427
      %v1429 = vcombine.high %v1428, %v1428
      %v1431 = vunpack.c.l.s4 1966171168
      %v1432 = vunpack.c.0.s8 %v1431
      %v1433 = vlaneseq
      %v1434 = vshrl.u32 %v1433, 7
      %v1435 = vsub.s32 %v1432, %v1434
      %v1436 = vrot.slane %v1419, %v1435
      %v1437 = vcombine.high %v1436, %v1436
      %v1439 = vshrl.u32 %v1428, 16
      %v1441 = vrot.slane %v1439, 7
      %v1442 = vrot.slane %v1441, 1
      %v1444 = vshll.u32 %v1429, 16
      %v1446 = vsel %vm363, %v1442, %v1444
      %v1448 = vshrl.u32 %v1436, 16
      %v1450 = vrot.slane %v1448, 7
      %v1451 = vrot.slane %v1450, 1
      %v1453 = vshll.u32 %v1437, 16
      %v1455 = vsel %vm363, %v1451, %v1453
      %s1456 = scalar_lea.vmem %s1, 112
      %v1457 = vld [vmem:[%s1456] sm:$0xf]
      %v1458 = vld [vmem:[%s1456 + $0x4] sm:$0xf]
      %v1459 = vcombine.low %v1446, %v1455
      %v1461 = vunpack.c.l.s4 1966171168
      %v1462 = vunpack.c.0.s8 %v1461
      %v1463 = vlaneseq
      %v1464 = vshrl.u32 %v1463, 7
      %v1465 = vsub.s32 %v1462, %v1464
      %v1466 = vrot.slane %v1459, %v1465
      %v1468 = vunpack.c.l.s4 1966171168
      %v1469 = vunpack.c.0.s8 %v1468
      %v1470 = vlaneseq
      %v1471 = vshrl.u32 %v1470, 7
      %v1472 = vsub.s32 %v1469, %v1471
      %v1473 = vrot.slane %v1466, %v1472
      %v1476 = vunpack.c.l.b16 %v1457
      %v1477 = vunpack.c.l.b16 %v1458
      %v1478 = vpack.c.b16 %v1477, %v1476
      %v1481 = vsel %vm219, %v1473, 0
      %1483 = vmatprep.subr.bf16.mxu0 0
      %1484 = vmatpush1.bf16.msra.mxu0 %v1478
      %1485 = vmatprep.subr.bf16.mxu0 0
      %1486 = vmatpush1.bf16.msra.mxu0 0
      %1487 = vmatprep.subr.bf16.mxu0 0
      %1488 = vmatpush1.bf16.msra.mxu0 0
      %1489 = vmatprep.subr.bf16.mxu0 0
      %1490 = vmatpush1.bf16.msra.mxu0 0
      %1491 = vmatprep.subr.bf16.mxu0 0
      %1492 = vmatpush1.bf16.msra.mxu0 0
      %1493 = vmatprep.subr.bf16.mxu0 0
      %1494 = vmatpush1.bf16.msra.mxu0 0
      %1495 = vmatprep.subr.bf16.mxu0 0
      %1496 = vmatpush1.bf16.msra.mxu0 0
      %1497 = vmatprep.subr.bf16.mxu0 0
      %1498 = vmatpush1.bf16.msra.mxu0 0
      %1499 = vmatprep.subr.bf16.mxu0 0
      %1500 = vmatpush1.bf16.msra.mxu0 0
      %1501 = vmatprep.subr.bf16.mxu0 0
      %1502 = vmatpush1.bf16.msra.mxu0 0
      %1503 = vmatprep.subr.bf16.mxu0 0
      %1504 = vmatpush1.bf16.msra.mxu0 0
      %1505 = vmatprep.subr.bf16.mxu0 0
      %1506 = vmatpush1.bf16.msra.mxu0 0
      %1507 = vmatprep.subr.bf16.mxu0 0
      %1508 = vmatpush1.bf16.msra.mxu0 0
      %1509 = vmatprep.subr.bf16.mxu0 0
      %1510 = vmatpush1.bf16.msra.mxu0 0
      %1511 = vmatprep.subr.bf16.mxu0 0
      %1512 = vmatpush1.bf16.msra.mxu0 0
      %1513 = vmatprep.subr.bf16.mxu0 0
      %1514 = vmatpush1.bf16.msra.mxu0 0
      %1515 = vmatprep.mubr.bf16.mxu0 0
      %1516 = vmatmul.mubr.bf16.gmra.mrb[0].mxu0 %v1481
      %v1517 = vpop.f32.mrb[0].mxu0
      %v1518 = vadd.f32 0.0, %v1517
      %v1519 = vpop.f32.mrb[0].mxu0
      %v1520 = vpop.f32.mrb[0].mxu0
      %v1521 = vpop.f32.mrb[0].mxu0
      %1522 = vdwg.mxu0
      %v1523 = vadd.f32 %v1417, %v1518
      %v1524 = vld [vmem:[%s1345] sm:$0x3]
      %v1525 = vld [vmem:[%s1345 + $0x2] sm:$0x3]
      %v1529 = vunpack.c.l.s4 1966171168
      %v1530 = vunpack.c.0.s8 %v1529
      %v1531 = vlaneseq
      %v1532 = vshrl.u32 %v1531, 7
      %v1533 = vsub.s32 %v1530, %v1532
      %v1534 = vrot.slane %v1524, %v1533
      %v1535 = vcombine.high %v1534, %v1534
      %v1537 = vunpack.c.l.s4 1966171168
      %v1538 = vunpack.c.0.s8 %v1537
      %v1539 = vlaneseq
      %v1540 = vshrl.u32 %v1539, 7
      %v1541 = vsub.s32 %v1538, %v1540
      %v1542 = vrot.slane %v1525, %v1541
      %v1543 = vcombine.high %v1542, %v1542
      %v1545 = vshrl.u32 %v1534, 16
      %v1547 = vrot.slane %v1545, 7
      %v1548 = vrot.slane %v1547, 1
      %v1550 = vshll.u32 %v1535, 16
      %v1552 = vsel %vm363, %v1548, %v1550
      %v1554 = vshrl.u32 %v1542, 16
      %v1556 = vrot.slane %v1554, 7
      %v1557 = vrot.slane %v1556, 1
      %v1559 = vshll.u32 %v1543, 16
      %v1561 = vsel %vm363, %v1557, %v1559
      %s1562 = scalar_lea.vmem %s1, 120
      %v1563 = vld [vmem:[%s1562] sm:$0xf]
      %v1564 = vld [vmem:[%s1562 + $0x4] sm:$0xf]
      %v1565 = vcombine.low %v1552, %v1561
      %v1567 = vunpack.c.l.s4 1966171168
      %v1568 = vunpack.c.0.s8 %v1567
      %v1569 = vlaneseq
      %v1570 = vshrl.u32 %v1569, 7
      %v1571 = vsub.s32 %v1568, %v1570
      %v1572 = vrot.slane %v1565, %v1571
      %v1574 = vunpack.c.l.s4 1966171168
      %v1575 = vunpack.c.0.s8 %v1574
      %v1576 = vlaneseq
      %v1577 = vshrl.u32 %v1576, 7
      %v1578 = vsub.s32 %v1575, %v1577
      %v1579 = vrot.slane %v1572, %v1578
      %v1582 = vunpack.c.l.b16 %v1563
      %v1583 = vunpack.c.l.b16 %v1564
      %v1584 = vpack.c.b16 %v1583, %v1582
      %v1587 = vsel %vm219, %v1579, 0
      %1589 = vmatprep.subr.bf16.mxu0 0
      %1590 = vmatpush1.bf16.msra.mxu0 %v1584
      %1591 = vmatprep.subr.bf16.mxu0 0
      %1592 = vmatpush1.bf16.msra.mxu0 0
      %1593 = vmatprep.subr.bf16.mxu0 0
      %1594 = vmatpush1.bf16.msra.mxu0 0
      %1595 = vmatprep.subr.bf16.mxu0 0
      %1596 = vmatpush1.bf16.msra.mxu0 0
      %1597 = vmatprep.subr.bf16.mxu0 0
      %1598 = vmatpush1.bf16.msra.mxu0 0
      %1599 = vmatprep.subr.bf16.mxu0 0
      %1600 = vmatpush1.bf16.msra.mxu0 0
      %1601 = vmatprep.subr.bf16.mxu0 0
      %1602 = vmatpush1.bf16.msra.mxu0 0
      %1603 = vmatprep.subr.bf16.mxu0 0
      %1604 = vmatpush1.bf16.msra.mxu0 0
      %1605 = vmatprep.subr.bf16.mxu0 0
      %1606 = vmatpush1.bf16.msra.mxu0 0
      %1607 = vmatprep.subr.bf16.mxu0 0
      %1608 = vmatpush1.bf16.msra.mxu0 0
      %1609 = vmatprep.subr.bf16.mxu0 0
      %1610 = vmatpush1.bf16.msra.mxu0 0
      %1611 = vmatprep.subr.bf16.mxu0 0
      %1612 = vmatpush1.bf16.msra.mxu0 0
      %1613 = vmatprep.subr.bf16.mxu0 0
      %1614 = vmatpush1.bf16.msra.mxu0 0
      %1615 = vmatprep.subr.bf16.mxu0 0
      %1616 = vmatpush1.bf16.msra.mxu0 0
      %1617 = vmatprep.subr.bf16.mxu0 0
      %1618 = vmatpush1.bf16.msra.mxu0 0
      %1619 = vmatprep.subr.bf16.mxu0 0
      %1620 = vmatpush1.bf16.msra.mxu0 0
      %1621 = vmatprep.mubr.bf16.mxu0 0
      %1622 = vmatmul.mubr.bf16.gmra.mrb[0].mxu0 %v1587
      %v1623 = vpop.f32.mrb[0].mxu0
      %v1624 = vadd.f32 0.0, %v1623
      %v1625 = vpop.f32.mrb[0].mxu0
      %v1626 = vpop.f32.mrb[0].mxu0
      %v1627 = vpop.f32.mrb[0].mxu0
      %1628 = vdwg.mxu0
      %v1629 = vadd.f32 %v1523, %v1624
      %1630 = vst [vmem:[%s180] sm:$0xf] %v1629
      %vm1631 = vcmask 1043456
      %v1632 = vsel %vm1631, %v1629, 0.0
      %v1633 = vrot.slane %v1632, 4
      %v1634 = vadd.f32 %v1632, %v1633
      %v1635 = vrot.slane %v1634, 2
      %v1636 = vadd.f32 %v1634, %v1635
      %v1637 = vrot.slane %v1636, 1
      %v1638 = vadd.f32 %v1636, %v1637
      %v1639 = vmul.f32 %v1629, %v1629
      %v1640 = vsel %vm1631, %v1639, 0.0
      %v1641 = vrot.slane %v1640, 4
      %v1642 = vadd.f32 %v1640, %v1641
      %v1643 = vrot.slane %v1642, 2
      %v1644 = vadd.f32 %v1642, %v1643
      %v1645 = vrot.slane %v1644, 1
      %v1646 = vadd.f32 %v1644, %v1645
      %vm1647 = vcmask 1040384
      %v1648 = vsel %vm1647, %v1638, %v1646
      %1649 = vst [vmem:[%s184] sm:$0x3] %v1648
      %p1650 = scmp.lt.s32.totalorder %s15, 1
      %s1651 = scalar_select %p1650, %s15, 1
      %s1652 = smul.addr %s1651, 4
      %s1653 = scalar_lea.vmem %s2, %s1652
      %p1654 = scmp.lt.s32.totalorder %s15, 1
      %s1655 = scalar_select %p1654, %s15, 1
      %s1656 = smul.addr %s1655, 2
      %s1657 = scalar_lea.vmem %s3, %s1656
      // Predicated region
      $region29: #{dcgan_discriminator_forward.7} parent=27 // pred_check
        %p1658 = pneg %p80
      $region30: #{dcgan_discriminator_forward.7} parent=27 // pred_check_branch
        %1660 = sbr.rel (%p1658) target = $region32
      $region31: #{dcgan_discriminator_forward.7} parent=27 // pred_region
        _
      $region32: #{dcgan_discriminator_forward.7} parent=27 // pred_fallthru
        _
      // Predicated region
      $region33: #{dcgan_discriminator_forward.7} parent=27 // pred_check
        %p1661 = pneg %p106
      $region34: #{dcgan_discriminator_forward.7} parent=27 // pred_check_branch
        %1663 = sbr.rel (%p1661) target = $region36
      $region35: #{dcgan_discriminator_forward.7} parent=27 // pred_region
        _
      $region36: #{dcgan_discriminator_forward.7} parent=27 // pred_fallthru
        _
    $region28: #{dcgan_discriminator_forward.7} parent=5 // pred_fallthru
      _
    %p1664 = scmp.le.s32.totalorder 2, %s10
    // Predicated region
    $region37: #{dcgan_discriminator_forward.7} parent=5 // pred_check
      %p1665 = pneg %p1664
    $region38: #{dcgan_discriminator_forward.7} parent=5 // pred_check_branch
      %1667 = sbr.rel (%p1665) target = $region40
    $region39: #{dcgan_discriminator_forward.7} parent=5 // pred_region
      %s1668 = ssub.s32 %s10, 2
      // Predicated region
      $region41: #{dcgan_discriminator_forward.7} parent=39 // pred_check
        %p1669 = pneg %p86
      $region42: #{dcgan_discriminator_forward.7} parent=39 // pred_check_branch
        %1671 = sbr.rel (%p1669) target = $region44
      $region43: #{dcgan_discriminator_forward.7} parent=39 // pred_region
        %p1672 = scmp.lt.s32.totalorder %s16, 1
        %s1673 = scalar_select %p1672, %s16, 1
        %s1674 = smul.addr %s1673, 4
        %s1675 = scalar_lea.vmem %s2, %s1674
      $region44: #{dcgan_discriminator_forward.7} parent=39 // pred_fallthru
        _
      // Predicated region
      $region45: #{dcgan_discriminator_forward.7} parent=39 // pred_check
        %p1676 = pneg %p112
      $region46: #{dcgan_discriminator_forward.7} parent=39 // pred_check_branch
        %1678 = sbr.rel (%p1676) target = $region48
      $region47: #{dcgan_discriminator_forward.7} parent=39 // pred_region
        %p1679 = scmp.lt.s32.totalorder %s16, 1
        %s1680 = scalar_select %p1679, %s16, 1
        %s1681 = smul.addr %s1680, 2
        %s1682 = scalar_lea.vmem %s3, %s1681
      $region48: #{dcgan_discriminator_forward.7} parent=39 // pred_fallthru
        _
    $region40: #{dcgan_discriminator_forward.7} parent=5 // pred_fallthru
      _
  $region6: #{dcgan_discriminator_forward.7} parent=0 // loop_footer
    %s14 = sadd.s32 1, %s10
  $region7: #{dcgan_discriminator_forward.7} parent=0 // loop_footer_branch
    %9 = sbr.rel target = $region3
  $region8: #{dcgan_discriminator_forward.7} parent=0 // loop_exit
    _

// kernel: dcgan_discriminator_forward.9
$region0: #{dcgan_discriminator_forward.9}
  #allocation0 [shape = 'u32[]', space=smem, size = 0x4, offset = 0x4, fixed_abs, tag = 'smem constant byte address 0x4 - core index']
  #allocation1 [shape = 'u32[144,128]{1,0:T(1,128)}', space=vmem, size = 0x12000, scoped, tag = 'internal scratch']
  %s0 = inlined_call_operand.vmem [shape: bf16[2,128], index: 0, kind: input, shape index: {}]
  %s1 = inlined_call_operand.vmem [shape: bf16[128,128], index: 1, kind: input, shape index: {}]
  %s2 = inlined_call_operand.vmem [shape: f32[1,128], index: 2, kind: input, shape index: {}]
  %s3 = inlined_call_operand.vmem [shape: f32[2,128], index: 3, kind: output, shape index: {}]
  %s4 = sld [smem:[#allocation0]]
  $region22: #{dcgan_discriminator_forward.9} parent=0
    _
  %s6 = ssub.s32 1, %s4
  %s7 = scalar_select 0, %s6, %s4
  // Predicated region
  $region2: #{dcgan_discriminator_forward.9} parent=0 // pred_check
    _
  $region3: #{dcgan_discriminator_forward.9} parent=0 // pred_check_branch
    %9 = sbr.rel (0) target = $region5
  $region4: #{dcgan_discriminator_forward.9} parent=0 // pred_region
    _
  $region5: #{dcgan_discriminator_forward.9} parent=0 // pred_fallthru
    _
  // Predicated region
  $region6: #{dcgan_discriminator_forward.9} parent=0 // pred_check
    _
  $region7: #{dcgan_discriminator_forward.9} parent=0 // pred_check_branch
    %11 = sbr.rel (0) target = $region9
  $region8: #{dcgan_discriminator_forward.9} parent=0 // pred_region
    _
  $region9: #{dcgan_discriminator_forward.9} parent=0 // pred_fallthru
    _
  // Predicated region
  $region10: #{dcgan_discriminator_forward.9} parent=0 // pred_check
    _
  $region11: #{dcgan_discriminator_forward.9} parent=0 // pred_check_branch
    %13 = sbr.rel (0) target = $region13
  $region12: #{dcgan_discriminator_forward.9} parent=0 // pred_region
    _
  $region13: #{dcgan_discriminator_forward.9} parent=0 // pred_fallthru
    _
  %v15 = vld [vmem:[%s0] sm:$0x1]
  %v16 = vld [vmem:[%s1] sm:$0xf]
  %v17 = vld [vmem:[%s1 + $0x4] sm:$0xf]
  %v18 = vld [vmem:[%s1 + $0x8] sm:$0xf]
  %v19 = vld [vmem:[%s1 + $0xc] sm:$0xf]
  %v20 = vld [vmem:[%s1 + $0x10] sm:$0xf]
  %v21 = vld [vmem:[%s1 + $0x14] sm:$0xf]
  %v22 = vld [vmem:[%s1 + $0x18] sm:$0xf]
  %v23 = vld [vmem:[%s1 + $0x1c] sm:$0xf]
  %v24 = vld [vmem:[%s1 + $0x20] sm:$0xf]
  %v25 = vld [vmem:[%s1 + $0x24] sm:$0xf]
  %v26 = vld [vmem:[%s1 + $0x28] sm:$0xf]
  %v27 = vld [vmem:[%s1 + $0x2c] sm:$0xf]
  %v28 = vld [vmem:[%s1 + $0x30] sm:$0xf]
  %v29 = vld [vmem:[%s1 + $0x34] sm:$0xf]
  %v30 = vld [vmem:[%s1 + $0x38] sm:$0xf]
  %v31 = vld [vmem:[%s1 + $0x3c] sm:$0xf]
  %v32 = vld [vmem:[%s2] sm:$0x1]
  %v34 = vlaneseq
  %v35 = vshrl.u32 %v34, 7
  %v36 = vsub.s32 0, %v35
  %v37 = vrot.slane %v32, %v36
  %v55 = vunpack.c.l.b16 %v16
  %v56 = vunpack.c.l.b16 %v17
  %v57 = vunpack.c.l.b16 %v18
  %v58 = vunpack.c.l.b16 %v19
  %v59 = vunpack.c.l.b16 %v20
  %v60 = vunpack.c.l.b16 %v21
  %v61 = vunpack.c.l.b16 %v22
  %v62 = vunpack.c.l.b16 %v23
  %v63 = vunpack.c.l.b16 %v24
  %v64 = vunpack.c.l.b16 %v25
  %v65 = vunpack.c.l.b16 %v26
  %v66 = vunpack.c.l.b16 %v27
  %v67 = vunpack.c.l.b16 %v28
  %v68 = vunpack.c.l.b16 %v29
  %v69 = vunpack.c.l.b16 %v30
  %v70 = vunpack.c.l.b16 %v31
  %v71 = vpack.c.b16 %v56, %v55
  %v72 = vpack.c.b16 %v58, %v57
  %v73 = vpack.c.b16 %v60, %v59
  %v74 = vpack.c.b16 %v62, %v61
  %v75 = vpack.c.b16 %v64, %v63
  %v76 = vpack.c.b16 %v66, %v65
  %v77 = vpack.c.b16 %v68, %v67
  %v78 = vpack.c.b16 %v70, %v69
  %87 = vmatprep.subr.bf16.mxu0 0
  %88 = vmatpush1.bf16.msra.mxu0 %v71
  %89 = vmatprep.subr.bf16.mxu0 0
  %90 = vmatpush1.bf16.msra.mxu0 %v72
  %91 = vmatprep.subr.bf16.mxu0 0
  %92 = vmatpush1.bf16.msra.mxu0 %v73
  %93 = vmatprep.subr.bf16.mxu0 0
  %94 = vmatpush1.bf16.msra.mxu0 %v74
  %95 = vmatprep.subr.bf16.mxu0 0
  %96 = vmatpush1.bf16.msra.mxu0 %v75
  %97 = vmatprep.subr.bf16.mxu0 0
  %98 = vmatpush1.bf16.msra.mxu0 %v76
  %99 = vmatprep.subr.bf16.mxu0 0
  %100 = vmatpush1.bf16.msra.mxu0 %v77
  %101 = vmatprep.subr.bf16.mxu0 0
  %102 = vmatpush1.bf16.msra.mxu0 %v78
  %103 = vmatprep.subr.bf16.mxu0 0
  %104 = vmatpush1.bf16.msra.mxu0 0
  %105 = vmatprep.subr.bf16.mxu0 0
  %106 = vmatpush1.bf16.msra.mxu0 0
  %107 = vmatprep.subr.bf16.mxu0 0
  %108 = vmatpush1.bf16.msra.mxu0 0
  %109 = vmatprep.subr.bf16.mxu0 0
  %110 = vmatpush1.bf16.msra.mxu0 0
  %111 = vmatprep.subr.bf16.mxu0 0
  %112 = vmatpush1.bf16.msra.mxu0 0
  %113 = vmatprep.subr.bf16.mxu0 0
  %114 = vmatpush1.bf16.msra.mxu0 0
  %115 = vmatprep.subr.bf16.mxu0 0
  %116 = vmatpush1.bf16.msra.mxu0 0
  %117 = vmatprep.subr.bf16.mxu0 0
  %118 = vmatpush1.bf16.msra.mxu0 0
  %119 = vmatprep.mubr.bf16.mxu0 0
  %120 = vmatmul.mubr.bf16.gmra.mrb[0].mxu0 %v15
  %v121 = vpop.f32.mrb[0].mxu0
  %v122 = vadd.f32 %v37, %v121
  %v123 = vpop.f32.mrb[0].mxu0
  %v124 = vpop.f32.mrb[0].mxu0
  %v125 = vpop.f32.mrb[0].mxu0
  %126 = vdwg.mxu0
  %v127 = vand.u32 2147483647, %v122
  %v128 = vsub.f32 0.0, %v127
  %v129 = vmul.f32 %v128, 1.442695
  %v130 = vpow.pop %v129
  %v131 = vadd.f32 %v130, 1.0
  %v132 = vrcp.pop %v131
  %vm133 = vcmp.ge.f32.partialorder %v122, 0.0
  %v134 = vmul.f32 %v130, %v132
  %v135 = vsel %vm133, %v132, %v134
  %136 = vst [vmem:[%s3] sm:$0x3] %v135
  // Predicated region
  $region14: #{dcgan_discriminator_forward.9} parent=0 // pred_check
    _
  $region15: #{dcgan_discriminator_forward.9} parent=0 // pred_check_branch
    %138 = sbr.rel (0) target = $region17
  $region16: #{dcgan_discriminator_forward.9} parent=0 // pred_region
    _
  $region17: #{dcgan_discriminator_forward.9} parent=0 // pred_fallthru
    _
  // Predicated region
  $region18: #{dcgan_discriminator_forward.9} parent=0 // pred_check
    _
  $region19: #{dcgan_discriminator_forward.9} parent=0 // pred_check_branch
    %140 = sbr.rel (0) target = $region21
  $region20: #{dcgan_discriminator_forward.9} parent=0 // pred_region
    _
  $region21: #{dcgan_discriminator_forward.9} parent=0 // pred_fallthru
    _

// kernel: dcgan_discriminator_forward.5
$region0: #{dcgan_discriminator_forward.5}
  #allocation0 [shape = 'u32[]', space=smem, size = 0x4, offset = 0x4, fixed_abs, tag = 'smem constant byte address 0x4 - core index']
  #allocation1 [shape = 'u32[144,128]{1,0:T(1,128)}', space=vmem, size = 0x12000, scoped, tag = 'internal scratch']
  %s0 = inlined_call_operand.vmem [shape: bf16[8,9,9,3], index: 0, kind: input, shape index: {}]
  %s1 = inlined_call_operand.vmem [shape: bf16[16,3,128], index: 1, kind: input, shape index: {}]
  %s2 = inlined_call_operand.vmem [shape: f32[1,128], index: 2, kind: input, shape index: {}]
  %s3 = inlined_call_operand.vmem [shape: bf16[2,64,128], index: 3, kind: output, shape index: {}]
  %s4 = sld [smem:[#allocation0]]
  $region45: #{dcgan_discriminator_forward.5} parent=0
    _
  %s6 = ssub.s32 1, %s4
  %s7 = scalar_select 0, %s6, %s4
  loop: start=0, step=1, limit=4
  $region2: #{dcgan_discriminator_forward.5} parent=0 // loop_pre_header
    _
  $region3: #{dcgan_discriminator_forward.5} parent=0 // loop_header
    %s9 = sphi 0, %s13
    %p10 = scmp.ge.s32.totalorder %s9, 4
    %s19 = sphi 0, %s21
    %s22 = sphi 0, %s19
    %s23 = sphi 0, %s22
    %s39 = sphi 0, %s23
    %s43 = sphi 0, %s43
    %s45 = sphi 0, %s43
    %s46 = sphi 0, %s45
    %s60 = sphi 0, %s46
    %s64 = sphi 0, %s64
    %s66 = sphi 0, %s64
    %s67 = sphi 0, %s66
    %s81 = sphi 0, %s67
    %s87 = sphi 0, %s89
    %s90 = sphi 0, %s87
    %s91 = sphi 0, %s90
    %s107 = sphi 0, %s91
  $region4: #{dcgan_discriminator_forward.5} parent=0 // loop_header_branch
    %12 = sbr.rel (%p10) target = $region8
  $region5: #{dcgan_discriminator_forward.5} parent=0 // loop_body
    %s14 = ssub.s32 %s9, 1
    %s15 = ssub.s32 %s9, 2
    %s16 = sadd.s32 %s9, 1
    %s17 = ssub.s32 %s9, %s16
    %p18 = scmp.eq.s32.totalorder %s17, 0
    %s20 = sadd.s32 %s19, 1
    %s21 = scalar_select %p18, %s19, %s20
    %p24 = pneg %p18
    %p25 = scmp.eq.s32.totalorder %s9, 1
    %p26 = por %p24, %p25
    %p27 = scmp.ne.s32.totalorder %s19, %s22
    %p28 = scmp.eq.s32.totalorder %s9, 0
    %p29 = por %p27, %p28
    %p30 = scmp.ne.s32.totalorder %s19, %s22
    %p31 = scmp.eq.s32.totalorder %s14, 1
    %p32 = por %p30, %p31
    %p33 = scmp.ne.s32.totalorder %s22, %s23
    %p34 = scmp.eq.s32.totalorder %s14, 0
    %p35 = por %p33, %p34
    %p36 = scmp.ne.s32.totalorder %s22, %s23
    %p37 = scmp.eq.s32.totalorder %s15, 1
    %p38 = por %p36, %p37
    %p40 = scmp.ne.s32.totalorder %s23, %s39
    %p41 = scmp.eq.s32.totalorder %s15, 0
    %p42 = por %p40, %p41
    %s44 = sadd.s32 %s43, 1
    %p47 = scmp.eq.s32.totalorder %s9, 1
    %p48 = scmp.ne.s32.totalorder %s43, %s45
    %p49 = scmp.eq.s32.totalorder %s9, 0
    %p50 = por %p48, %p49
    %p51 = scmp.ne.s32.totalorder %s43, %s45
    %p52 = scmp.eq.s32.totalorder %s14, 1
    %p53 = por %p51, %p52
    %p54 = scmp.ne.s32.totalorder %s45, %s46
    %p55 = scmp.eq.s32.totalorder %s14, 0
    %p56 = por %p54, %p55
    %p57 = scmp.ne.s32.totalorder %s45, %s46
    %p58 = scmp.eq.s32.totalorder %s15, 1
    %p59 = por %p57, %p58
    %p61 = scmp.ne.s32.totalorder %s46, %s60
    %p62 = scmp.eq.s32.totalorder %s15, 0
    %p63 = por %p61, %p62
    %s65 = sadd.s32 %s64, 1
    %p68 = scmp.eq.s32.totalorder %s9, 1
    %p69 = scmp.ne.s32.totalorder %s64, %s66
    %p70 = scmp.eq.s32.totalorder %s9, 0
    %p71 = por %p69, %p70
    %p72 = scmp.ne.s32.totalorder %s64, %s66
    %p73 = scmp.eq.s32.totalorder %s14, 1
    %p74 = por %p72, %p73
    %p75 = scmp.ne.s32.totalorder %s66, %s67
    %p76 = scmp.eq.s32.totalorder %s14, 0
    %p77 = por %p75, %p76
    %p78 = scmp.ne.s32.totalorder %s66, %s67
    %p79 = scmp.eq.s32.totalorder %s15, 1
    %p80 = por %p78, %p79
    %p82 = scmp.ne.s32.totalorder %s67, %s81
    %p83 = scmp.eq.s32.totalorder %s15, 0
    %p84 = por %p82, %p83
    %s85 = ssub.s32 %s9, %s16
    %p86 = scmp.eq.s32.totalorder %s85, 0
    %s88 = sadd.s32 %s87, 1
    %s89 = scalar_select %p86, %s87, %s88
    %p92 = pneg %p86
    %p93 = scmp.eq.s32.totalorder %s9, 1
    %p94 = por %p92, %p93
    %p95 = scmp.ne.s32.totalorder %s87, %s90
    %p96 = scmp.eq.s32.totalorder %s9, 0
    %p97 = por %p95, %p96
    %p98 = scmp.ne.s32.totalorder %s87, %s90
    %p99 = scmp.eq.s32.totalorder %s14, 1
    %p100 = por %p98, %p99
    %p101 = scmp.ne.s32.totalorder %s90, %s91
    %p102 = scmp.eq.s32.totalorder %s14, 0
    %p103 = por %p101, %p102
    %p104 = scmp.ne.s32.totalorder %s90, %s91
    %p105 = scmp.eq.s32.totalorder %s15, 1
    %p106 = por %p104, %p105
    %p108 = scmp.ne.s32.totalorder %s91, %s107
    %p109 = scmp.eq.s32.totalorder %s15, 0
    %p110 = por %p108, %p109
    %p111 = scmp.le.s32.totalorder 1, %s9
    %p112 = scmp.lt.s32.totalorder %s9, 3
    %p113 = pnand %p111, %p112
    %p114 = pneg %p113
    // Predicated region
    $region9: #{dcgan_discriminator_forward.5} parent=5 // pred_check
      _
    $region10: #{dcgan_discriminator_forward.5} parent=5 // pred_check_branch
      %116 = sbr.rel (%p113) target = $region12
    $region11: #{dcgan_discriminator_forward.5} parent=5 // pred_region
      %s117 = ssub.s32 %s9, 1
      // Predicated region
      $region13: #{dcgan_discriminator_forward.5} parent=11 // pred_check
        %p118 = pneg %p56
      $region14: #{dcgan_discriminator_forward.5} parent=11 // pred_check_branch
        %120 = sbr.rel (%p118) target = $region16
      $region15: #{dcgan_discriminator_forward.5} parent=11 // pred_region
        _
      $region16: #{dcgan_discriminator_forward.5} parent=11 // pred_fallthru
        _
      // Predicated region
      $region17: #{dcgan_discriminator_forward.5} parent=11 // pred_check
        %p121 = pneg %p77
      $region18: #{dcgan_discriminator_forward.5} parent=11 // pred_check_branch
        %123 = sbr.rel (%p121) target = $region20
      $region19: #{dcgan_discriminator_forward.5} parent=11 // pred_region
        _
      $region20: #{dcgan_discriminator_forward.5} parent=11 // pred_fallthru
        _
    $region12: #{dcgan_discriminator_forward.5} parent=5 // pred_fallthru
      _
    %p124 = scmp.lt.s32.totalorder %s9, 2
    // Predicated region
    $region21: #{dcgan_discriminator_forward.5} parent=5 // pred_check
      %p125 = pneg %p124
    $region22: #{dcgan_discriminator_forward.5} parent=5 // pred_check_branch
      %127 = sbr.rel (%p125) target = $region24
    $region23: #{dcgan_discriminator_forward.5} parent=5 // pred_region
      // Predicated region
      $region25: #{dcgan_discriminator_forward.5} parent=23 // pred_check
        %p128 = pneg %p29
      $region26: #{dcgan_discriminator_forward.5} parent=23 // pred_check_branch
        %130 = sbr.rel (%p128) target = $region28
      $region27: #{dcgan_discriminator_forward.5} parent=23 // pred_region
        %s131 = smul.u32 4, %s9
        %p132 = scmp.lt.s32.totalorder %s131, 7
        %s133 = scalar_select %p132, %s131, 7
        %s134 = smul.addr %s133, 18
        %s135 = smul.addr %s134, 4
        %s136 = scalar_lea.vmem %s0, %s135
        %s137 = smul.u32 4, %s9
      $region28: #{dcgan_discriminator_forward.5} parent=23 // pred_fallthru
        _
    $region24: #{dcgan_discriminator_forward.5} parent=5 // pred_fallthru
      _
    %p138 = scmp.le.s32.totalorder 1, %s9
    %p139 = scmp.lt.s32.totalorder %s9, 3
    %p140 = pnand %p138, %p139
    %p141 = pneg %p140
    // Predicated region
    $region29: #{dcgan_discriminator_forward.5} parent=5 // pred_check
      _
    $region30: #{dcgan_discriminator_forward.5} parent=5 // pred_check_branch
      %143 = sbr.rel (%p140) target = $region32
    $region31: #{dcgan_discriminator_forward.5} parent=5 // pred_region
      %s144 = ssub.s32 %s9, 1
      %s145 = smul.u32 4, %s14
      %p146 = scmp.lt.s32.totalorder %s145, 7
      %s147 = scalar_select %p146, %s145, 7
      %s148 = smul.addr %s147, 18
      %s149 = smul.addr %s148, 4
      %s150 = scalar_lea.vmem %s0, %s149
      %p151 = pneg %p35
      %p152 = pneg %p32
      %p153 = pneg %p56
      %p154 = pneg %p53
      %p155 = pneg %p77
      %p156 = pneg %p74
      %p157 = pneg %p103
      %p158 = pneg %p100
      %p159 = scmp.lt.s32.totalorder %s14, 1
      %s160 = scalar_select %p159, %s14, 1
      %s161 = smul.addr %s160, 8
      %s162 = smul.addr %s161, 4
      %s163 = scalar_lea.vmem %s3, %s162
      %s164 = smul.u32 4, %s14
      %p165 = scmp.lt.s32.totalorder %s164, 7
      %s166 = scalar_select %p165, %s164, 7
      %s167 = smul.addr %s166, 18
      %s168 = smul.addr %s167, 4
      %s169 = scalar_lea.vmem %s0, %s168
      %s170 = smul.u32 4, %s14
      %p171 = scmp.lt.s32.totalorder %s14, 1
      %s172 = scalar_select %p171, %s14, 1
      %s173 = smul.addr %s172, 8
      %s174 = smul.addr %s173, 4
      %s175 = scalar_lea.vmem %s3, %s174
      %v177 = vld [vmem:[%s169] sm:$0xf]
      %v178 = vld [vmem:[%s169 + $0x8] sm:$0xf]
      %v179 = vld [vmem:[%s169 + $0x10] sm:$0xf]
      %v180 = vld [vmem:[%s169 + $0x18] sm:$0xf]
      %v181 = vld [vmem:[%s169 + $0x20] sm:$0xf]
      %v182 = vld [vmem:[%s169 + $0x28] sm:$0xf]
      %v183 = vld [vmem:[%s169 + $0x30] sm:$0xf]
      %v184 = vld [vmem:[%s169 + $0x38] sm:$0xf]
      %v185 = vld [vmem:[%s1] sm:$0x3]
      %s186 = scalar_lea.vmem %s169, 72
      %v187 = vld [vmem:[%s186] sm:$0xf]
      %v188 = vld [vmem:[%s186 + $0x8] sm:$0xf]
      %v189 = vld [vmem:[%s186 + $0x10] sm:$0xf]
      %v190 = vld [vmem:[%s186 + $0x18] sm:$0xf]
      %v191 = vld [vmem:[%s186 + $0x20] sm:$0xf]
      %v192 = vld [vmem:[%s186 + $0x28] sm:$0xf]
      %v193 = vld [vmem:[%s186 + $0x30] sm:$0xf]
      %v194 = vld [vmem:[%s186 + $0x38] sm:$0xf]
      %s195 = scalar_lea.vmem %s1, 2
      %v196 = vld [vmem:[%s195] sm:$0x3]
      %v205 = vunpack.c.l.b16 %v187
      %v206 = vunpack.c.l.b16 %v188
      %v207 = vunpack.c.l.b16 %v189
      %v208 = vunpack.c.l.b16 %v190
      %v209 = vunpack.c.l.b16 %v191
      %v210 = vunpack.c.l.b16 %v192
      %v211 = vunpack.c.l.b16 %v193
      %v212 = vunpack.c.l.b16 %v194
      %v213 = vpack.c.b16 %v206, %v205
      %v214 = vpack.c.b16 %v208, %v207
      %v215 = vpack.c.b16 %v210, %v209
      %v216 = vpack.c.b16 %v212, %v211
      %vm217 = vcmask 23552
      %v219 = vsel %vm217, %v213, 0
      %v222 = vsel %vm217, %v214, 0
      %v225 = vsel %vm217, %v215, 0
      %v228 = vsel %vm217, %v216, 0
      %vm230 = vcmask 1040384
      %vm231 = vcmask 1041408
      %v232 = vsel %vm230, 4294967295, 65535
      %v233 = vsel %vm231, %v232, 0
      %v235 = vand.u32 %v196, %v233
      %237 = vmatprep.subr.bf16.mxu0 0
      %238 = vmatpush1.bf16.msra.mxu0 %v235
      %239 = vmatprep.subr.bf16.mxu0 0
      %240 = vmatpush1.bf16.msra.mxu0 0
      %241 = vmatprep.subr.bf16.mxu0 0
      %242 = vmatpush1.bf16.msra.mxu0 0
      %243 = vmatprep.subr.bf16.mxu0 0
      %244 = vmatpush1.bf16.msra.mxu0 0
      %245 = vmatprep.subr.bf16.mxu0 0
      %246 = vmatpush1.bf16.msra.mxu0 0
      %247 = vmatprep.subr.bf16.mxu0 0
      %248 = vmatpush1.bf16.msra.mxu0 0
      %249 = vmatprep.subr.bf16.mxu0 0
      %250 = vmatpush1.bf16.msra.mxu0 0
      %251 = vmatprep.subr.bf16.mxu0 0
      %252 = vmatpush1.bf16.msra.mxu0 0
      %253 = vmatprep.subr.bf16.mxu0 0
      %254 = vmatpush1.bf16.msra.mxu0 0
      %255 = vmatprep.subr.bf16.mxu0 0
      %256 = vmatpush1.bf16.msra.mxu0 0
      %257 = vmatprep.subr.bf16.mxu0 0
      %258 = vmatpush1.bf16.msra.mxu0 0
      %259 = vmatprep.subr.bf16.mxu0 0
      %260 = vmatpush1.bf16.msra.mxu0 0
      %261 = vmatprep.subr.bf16.mxu0 0
      %262 = vmatpush1.bf16.msra.mxu0 0
      %263 = vmatprep.subr.bf16.mxu0 0
      %264 = vmatpush1.bf16.msra.mxu0 0
      %265 = vmatprep.subr.bf16.mxu0 0
      %266 = vmatpush1.bf16.msra.mxu0 0
      %267 = vmatprep.subr.bf16.mxu0 0
      %268 = vmatpush1.bf16.msra.mxu0 0
      %269 = vmatprep.mubr.bf16.mxu0 0
      %270 = vmatmul.mubr.bf16.gmra.mrb[0].mxu0 %v219
      %v271 = vpop.f32.mrb[0].mxu0
      %v272 = vadd.f32 0.0, %v271
      %v273 = vpop.f32.mrb[0].mxu0
      %v274 = vpop.f32.mrb[0].mxu0
      %v275 = vadd.f32 0.0, %v274
      %v276 = vpop.f32.mrb[0].mxu0
      %277 = vmatprep.mubr.bf16.mxu0 0
      %278 = vmatmul.mubr.bf16.gmra.mrb[0].mxu0 %v222
      %v279 = vpop.f32.mrb[0].mxu0
      %v280 = vadd.f32 0.0, %v279
      %v281 = vpop.f32.mrb[0].mxu0
      %v282 = vpop.f32.mrb[0].mxu0
      %v283 = vadd.f32 0.0, %v282
      %v284 = vpop.f32.mrb[0].mxu0
      %285 = vmatprep.mubr.bf16.mxu0 0
      %286 = vmatmul.mubr.bf16.gmra.mrb[0].mxu0 %v225
      %v287 = vpop.f32.mrb[0].mxu0
      %v288 = vadd.f32 0.0, %v287
      %v289 = vpop.f32.mrb[0].mxu0
      %v290 = vpop.f32.mrb[0].mxu0
      %v291 = vadd.f32 0.0, %v290
      %v292 = vpop.f32.mrb[0].mxu0
      %293 = vmatprep.mubr.bf16.mxu0 0
      %294 = vmatmul.mubr.bf16.gmra.mrb[0].mxu0 %v228
      %v295 = vpop.f32.mrb[0].mxu0
      %v296 = vadd.f32 0.0, %v295
      %v297 = vpop.f32.mrb[0].mxu0
      %v298 = vpop.f32.mrb[0].mxu0
      %v299 = vadd.f32 0.0, %v298
      %v300 = vpop.f32.mrb[0].mxu0
      %301 = vdwg.mxu0
      %v310 = vunpack.c.l.b16 %v177
      %v311 = vunpack.c.l.b16 %v178
      %v312 = vunpack.c.l.b16 %v179
      %v313 = vunpack.c.l.b16 %v180
      %v314 = vunpack.c.l.b16 %v181
      %v315 = vunpack.c.l.b16 %v182
      %v316 = vunpack.c.l.b16 %v183
      %v317 = vunpack.c.l.b16 %v184
      %v318 = vpack.c.b16 %v311, %v310
      %v319 = vpack.c.b16 %v313, %v312
      %v320 = vpack.c.b16 %v315, %v314
      %v321 = vpack.c.b16 %v317, %v316
      %v323 = vsel %vm217, %v318, 0
      %v326 = vsel %vm217, %v319, 0
      %v329 = vsel %vm217, %v320, 0
      %v332 = vsel %vm217, %v321, 0
      %v335 = vand.u32 %v185, %v233
      %337 = vmatprep.subr.bf16.mxu0 0
      %338 = vmatpush1.bf16.msra.mxu0 %v335
      %339 = vmatprep.subr.bf16.mxu0 0
      %340 = vmatpush1.bf16.msra.mxu0 0
      %341 = vmatprep.subr.bf16.mxu0 0
      %342 = vmatpush1.bf16.msra.mxu0 0
      %343 = vmatprep.subr.bf16.mxu0 0
      %344 = vmatpush1.bf16.msra.mxu0 0
      %345 = vmatprep.subr.bf16.mxu0 0
      %346 = vmatpush1.bf16.msra.mxu0 0
      %347 = vmatprep.subr.bf16.mxu0 0
      %348 = vmatpush1.bf16.msra.mxu0 0
      %349 = vmatprep.subr.bf16.mxu0 0
      %350 = vmatpush1.bf16.msra.mxu0 0
      %351 = vmatprep.subr.bf16.mxu0 0
      %352 = vmatpush1.bf16.msra.mxu0 0
      %353 = vmatprep.subr.bf16.mxu0 0
      %354 = vmatpush1.bf16.msra.mxu0 0
      %355 = vmatprep.subr.bf16.mxu0 0
      %356 = vmatpush1.bf16.msra.mxu0 0
      %357 = vmatprep.subr.bf16.mxu0 0
      %358 = vmatpush1.bf16.msra.mxu0 0
      %359 = vmatprep.subr.bf16.mxu0 0
      %360 = vmatpush1.bf16.msra.mxu0 0
      %361 = vmatprep.subr.bf16.mxu0 0
      %362 = vmatpush1.bf16.msra.mxu0 0
      %363 = vmatprep.subr.bf16.mxu0 0
      %364 = vmatpush1.bf16.msra.mxu0 0
      %365 = vmatprep.subr.bf16.mxu0 0
      %366 = vmatpush1.bf16.msra.mxu0 0
      %367 = vmatprep.subr.bf16.mxu0 0
      %368 = vmatpush1.bf16.msra.mxu0 0
      %369 = vmatprep.mubr.bf16.mxu0 0
      %370 = vmatmul.mubr.bf16.gmra.mrb[0].mxu0 %v323
      %v371 = vpop.f32.mrb[0].mxu0
      %v372 = vadd.f32 %v272, %v371
      %v373 = vpop.f32.mrb[0].mxu0
      %v374 = vpop.f32.mrb[0].mxu0
      %v375 = vadd.f32 %v275, %v374
      %v376 = vpop.f32.mrb[0].mxu0
      %377 = vmatprep.mubr.bf16.mxu0 0
      %378 = vmatmul.mubr.bf16.gmra.mrb[0].mxu0 %v326
      %v379 = vpop.f32.mrb[0].mxu0
      %v380 = vadd.f32 %v280, %v379
      %v381 = vpop.f32.mrb[0].mxu0
      %v382 = vpop.f32.mrb[0].mxu0
      %v383 = vadd.f32 %v283, %v382
      %v384 = vpop.f32.mrb[0].mxu0
      %385 = vmatprep.mubr.bf16.mxu0 0
      %386 = vmatmul.mubr.bf16.gmra.mrb[0].mxu0 %v329
      %v387 = vpop.f32.mrb[0].mxu0
      %v388 = vadd.f32 %v288, %v387
      %v389 = vpop.f32.mrb[0].mxu0
      %v390 = vpop.f32.mrb[0].mxu0
      %v391 = vadd.f32 %v291, %v390
      %v392 = vpop.f32.mrb[0].mxu0
      %393 = vmatprep.mubr.bf16.mxu0 0
      %394 = vmatmul.mubr.bf16.gmra.mrb[0].mxu0 %v332
      %v395 = vpop.f32.mrb[0].mxu0
      %v396 = vadd.f32 %v296, %v395
      %v397 = vpop.f32.mrb[0].mxu0
      %v398 = vpop.f32.mrb[0].mxu0
      %v399 = vadd.f32 %v299, %v398
      %v400 = vpop.f32.mrb[0].mxu0
      %401 = vdwg.mxu0
      %v402 = vld [vmem:[%s169] sm:$0xf]
      %v403 = vld [vmem:[%s169 + $0x4] sm:$0x1]
      %v404 = vld [vmem:[%s169 + $0x8] sm:$0xf]
      %v405 = vld [vmem:[%s169 + $0xc] sm:$0x1]
      %v406 = vld [vmem:[%s169 + $0x10] sm:$0xf]
      %v407 = vld [vmem:[%s169 + $0x14] sm:$0x1]
      %v408 = vld [vmem:[%s169 + $0x18] sm:$0xf]
      %v409 = vld [vmem:[%s169 + $0x1c] sm:$0x1]
      %v410 = vld [vmem:[%s169 + $0x20] sm:$0xf]
      %v411 = vld [vmem:[%s169 + $0x24] sm:$0x1]
      %v412 = vld [vmem:[%s169 + $0x28] sm:$0xf]
      %v413 = vld [vmem:[%s169 + $0x2c] sm:$0x1]
      %v414 = vld [vmem:[%s169 + $0x30] sm:$0xf]
      %v415 = vld [vmem:[%s169 + $0x34] sm:$0x1]
      %v416 = vld [vmem:[%s169 + $0x38] sm:$0xf]
      %v417 = vld [vmem:[%s169 + $0x3c] sm:$0x1]
      %vm418 = vsmask.f32 3328
      %vm419 = vsmask.f32 7440
      %vm420 = vmor %vm418, %vm419
      %v422 = vshrl.u32 %v402, 16
      %v424 = vrot.slane %v422, 4
      %v425 = vshll.u32 %v402, 16
      %v427 = vrot.slane %v425, 5
      %v428 = vor.u32 %v424, %v427
      %v429 = vrot.slane %v428, 4
      %v431 = vshll.u32 %v403, 16
      %v433 = vrot.slane %v431, 5
      %v434 = vsel %vm420, %v429, %v433
      %v436 = vshrl.u32 %v404, 16
      %v438 = vrot.slane %v436, 4
      %v439 = vshll.u32 %v404, 16
      %v441 = vrot.slane %v439, 5
      %v442 = vor.u32 %v438, %v441
      %v443 = vrot.slane %v442, 4
      %v445 = vshll.u32 %v405, 16
      %v447 = vrot.slane %v445, 5
      %v448 = vsel %vm420, %v443, %v447
      %v450 = vshrl.u32 %v406, 16
      %v452 = vrot.slane %v450, 4
      %v453 = vshll.u32 %v406, 16
      %v455 = vrot.slane %v453, 5
      %v456 = vor.u32 %v452, %v455
      %v457 = vrot.slane %v456, 4
      %v459 = vshll.u32 %v407, 16
      %v461 = vrot.slane %v459, 5
      %v462 = vsel %vm420, %v457, %v461
      %v464 = vshrl.u32 %v408, 16
      %v466 = vrot.slane %v464, 4
      %v467 = vshll.u32 %v408, 16
      %v469 = vrot.slane %v467, 5
      %v470 = vor.u32 %v466, %v469
      %v471 = vrot.slane %v470, 4
      %v473 = vshll.u32 %v409, 16
      %v475 = vrot.slane %v473, 5
      %v476 = vsel %vm420, %v471, %v475
      %v478 = vshrl.u32 %v410, 16
      %v480 = vrot.slane %v478, 4
      %v481 = vshll.u32 %v410, 16
      %v483 = vrot.slane %v481, 5
      %v484 = vor.u32 %v480, %v483
      %v485 = vrot.slane %v484, 4
      %v487 = vshll.u32 %v411, 16
      %v489 = vrot.slane %v487, 5
      %v490 = vsel %vm420, %v485, %v489
      %v492 = vshrl.u32 %v412, 16
      %v494 = vrot.slane %v492, 4
      %v495 = vshll.u32 %v412, 16
      %v497 = vrot.slane %v495, 5
      %v498 = vor.u32 %v494, %v497
      %v499 = vrot.slane %v498, 4
      %v501 = vshll.u32 %v413, 16
      %v503 = vrot.slane %v501, 5
      %v504 = vsel %vm420, %v499, %v503
      %v506 = vshrl.u32 %v414, 16
      %v508 = vrot.slane %v506, 4
      %v509 = vshll.u32 %v414, 16
      %v511 = vrot.slane %v509, 5
      %v512 = vor.u32 %v508, %v511
      %v513 = vrot.slane %v512, 4
      %v515 = vshll.u32 %v415, 16
      %v517 = vrot.slane %v515, 5
      %v518 = vsel %vm420, %v513, %v517
      %v520 = vshrl.u32 %v416, 16
      %v522 = vrot.slane %v520, 4
      %v523 = vshll.u32 %v416, 16
      %v525 = vrot.slane %v523, 5
      %v526 = vor.u32 %v522, %v525
      %v527 = vrot.slane %v526, 4
      %v529 = vshll.u32 %v417, 16
      %v531 = vrot.slane %v529, 5
      %v532 = vsel %vm420, %v527, %v531
      %s533 = scalar_lea.vmem %s1, 4
      %v534 = vld [vmem:[%s533] sm:$0x3]
      %v535 = vunpack.c.l.b16 %v434
      %v536 = vunpack.c.l.b16 %v448
      %v537 = vunpack.c.l.b16 %v462
      %v538 = vunpack.c.l.b16 %v476
      %v539 = vunpack.c.l.b16 %v490
      %v540 = vunpack.c.l.b16 %v504
      %v541 = vunpack.c.l.b16 %v518
      %v542 = vunpack.c.l.b16 %v532
      %v543 = vpack.c.b16 %v536, %v535
      %v544 = vpack.c.b16 %v538, %v537
      %v545 = vpack.c.b16 %v540, %v539
      %v546 = vpack.c.b16 %v542, %v541
      %v548 = vsel %vm217, %v543, 0
      %v551 = vsel %vm217, %v544, 0
      %v554 = vsel %vm217, %v545, 0
      %v557 = vsel %vm217, %v546, 0
      %v560 = vand.u32 %v534, %v233
      %562 = vmatprep.subr.bf16.mxu0 0
      %563 = vmatpush1.bf16.msra.mxu0 %v560
      %564 = vmatprep.subr.bf16.mxu0 0
      %565 = vmatpush1.bf16.msra.mxu0 0
      %566 = vmatprep.subr.bf16.mxu0 0
      %567 = vmatpush1.bf16.msra.mxu0 0
      %568 = vmatprep.subr.bf16.mxu0 0
      %569 = vmatpush1.bf16.msra.mxu0 0
      %570 = vmatprep.subr.bf16.mxu0 0
      %571 = vmatpush1.bf16.msra.mxu0 0
      %572 = vmatprep.subr.bf16.mxu0 0
      %573 = vmatpush1.bf16.msra.mxu0 0
      %574 = vmatprep.subr.bf16.mxu0 0
      %575 = vmatpush1.bf16.msra.mxu0 0
      %576 = vmatprep.subr.bf16.mxu0 0
      %577 = vmatpush1.bf16.msra.mxu0 0
      %578 = vmatprep.subr.bf16.mxu0 0
      %579 = vmatpush1.bf16.msra.mxu0 0
      %580 = vmatprep.subr.bf16.mxu0 0
      %581 = vmatpush1.bf16.msra.mxu0 0
      %582 = vmatprep.subr.bf16.mxu0 0
      %583 = vmatpush1.bf16.msra.mxu0 0
      %584 = vmatprep.subr.bf16.mxu0 0
      %585 = vmatpush1.bf16.msra.mxu0 0
      %586 = vmatprep.subr.bf16.mxu0 0
      %587 = vmatpush1.bf16.msra.mxu0 0
      %588 = vmatprep.subr.bf16.mxu0 0
      %589 = vmatpush1.bf16.msra.mxu0 0
      %590 = vmatprep.subr.bf16.mxu0 0
      %591 = vmatpush1.bf16.msra.mxu0 0
      %592 = vmatprep.subr.bf16.mxu0 0
      %593 = vmatpush1.bf16.msra.mxu0 0
      %594 = vmatprep.mubr.bf16.mxu0 0
      %595 = vmatmul.mubr.bf16.gmra.mrb[0].mxu0 %v548
      %v596 = vpop.f32.mrb[0].mxu0
      %v597 = vadd.f32 0.0, %v596
      %v598 = vpop.f32.mrb[0].mxu0
      %v599 = vpop.f32.mrb[0].mxu0
      %v600 = vadd.f32 0.0, %v599
      %v601 = vpop.f32.mrb[0].mxu0
      %602 = vmatprep.mubr.bf16.mxu0 0
      %603 = vmatmul.mubr.bf16.gmra.mrb[0].mxu0 %v551
      %v604 = vpop.f32.mrb[0].mxu0
      %v605 = vadd.f32 0.0, %v604
      %v606 = vpop.f32.mrb[0].mxu0
      %v607 = vpop.f32.mrb[0].mxu0
      %v608 = vadd.f32 0.0, %v607
      %v609 = vpop.f32.mrb[0].mxu0
      %610 = vmatprep.mubr.bf16.mxu0 0
      %611 = vmatmul.mubr.bf16.gmra.mrb[0].mxu0 %v554
      %v612 = vpop.f32.mrb[0].mxu0
      %v613 = vadd.f32 0.0, %v612
      %v614 = vpop.f32.mrb[0].mxu0
      %v615 = vpop.f32.mrb[0].mxu0
      %v616 = vadd.f32 0.0, %v615
      %v617 = vpop.f32.mrb[0].mxu0
      %618 = vmatprep.mubr.bf16.mxu0 0
      %619 = vmatmul.mubr.bf16.gmra.mrb[0].mxu0 %v557
      %v620 = vpop.f32.mrb[0].mxu0
      %v621 = vadd.f32 0.0, %v620
      %v622 = vpop.f32.mrb[0].mxu0
      %v623 = vpop.f32.mrb[0].mxu0
      %v624 = vadd.f32 0.0, %v623
      %v625 = vpop.f32.mrb[0].mxu0
      %626 = vdwg.mxu0
      %v627 = vadd.f32 %v372, %v597
      %v628 = vadd.f32 %v375, %v600
      %v629 = vadd.f32 %v380, %v605
      %v630 = vadd.f32 %v383, %v608
      %v631 = vadd.f32 %v388, %v613
      %v632 = vadd.f32 %v391, %v616
      %v633 = vadd.f32 %v396, %v621
      %v634 = vadd.f32 %v399, %v624
      %v635 = vld [vmem:[%s186] sm:$0xf]
      %v636 = vld [vmem:[%s186 + $0x4] sm:$0x1]
      %v637 = vld [vmem:[%s186 + $0x8] sm:$0xf]
      %v638 = vld [vmem:[%s186 + $0xc] sm:$0x1]
      %v639 = vld [vmem:[%s186 + $0x10] sm:$0xf]
      %v640 = vld [vmem:[%s186 + $0x14] sm:$0x1]
      %v641 = vld [vmem:[%s186 + $0x18] sm:$0xf]
      %v642 = vld [vmem:[%s186 + $0x1c] sm:$0x1]
      %v643 = vld [vmem:[%s186 + $0x20] sm:$0xf]
      %v644 = vld [vmem:[%s186 + $0x24] sm:$0x1]
      %v645 = vld [vmem:[%s186 + $0x28] sm:$0xf]
      %v646 = vld [vmem:[%s186 + $0x2c] sm:$0x1]
      %v647 = vld [vmem:[%s186 + $0x30] sm:$0xf]
      %v648 = vld [vmem:[%s186 + $0x34] sm:$0x1]
      %v649 = vld [vmem:[%s186 + $0x38] sm:$0xf]
      %v650 = vld [vmem:[%s186 + $0x3c] sm:$0x1]
      %v652 = vshrl.u32 %v635, 16
      %v654 = vrot.slane %v652, 4
      %v655 = vshll.u32 %v635, 16
      %v657 = vrot.slane %v655, 5
      %v658 = vor.u32 %v654, %v657
      %v659 = vrot.slane %v658, 4
      %v661 = vshll.u32 %v636, 16
      %v663 = vrot.slane %v661, 5
      %v664 = vsel %vm420, %v659, %v663
      %v666 = vshrl.u32 %v637, 16
      %v668 = vrot.slane %v666, 4
      %v669 = vshll.u32 %v637, 16
      %v671 = vrot.slane %v669, 5
      %v672 = vor.u32 %v668, %v671
      %v673 = vrot.slane %v672, 4
      %v675 = vshll.u32 %v638, 16
      %v677 = vrot.slane %v675, 5
      %v678 = vsel %vm420, %v673, %v677
      %v680 = vshrl.u32 %v639, 16
      %v682 = vrot.slane %v680, 4
      %v683 = vshll.u32 %v639, 16
      %v685 = vrot.slane %v683, 5
      %v686 = vor.u32 %v682, %v685
      %v687 = vrot.slane %v686, 4
      %v689 = vshll.u32 %v640, 16
      %v691 = vrot.slane %v689, 5
      %v692 = vsel %vm420, %v687, %v691
      %v694 = vshrl.u32 %v641, 16
      %v696 = vrot.slane %v694, 4
      %v697 = vshll.u32 %v641, 16
      %v699 = vrot.slane %v697, 5
      %v700 = vor.u32 %v696, %v699
      %v701 = vrot.slane %v700, 4
      %v703 = vshll.u32 %v642, 16
      %v705 = vrot.slane %v703, 5
      %v706 = vsel %vm420, %v701, %v705
      %v708 = vshrl.u32 %v643, 16
      %v710 = vrot.slane %v708, 4
      %v711 = vshll.u32 %v643, 16
      %v713 = vrot.slane %v711, 5
      %v714 = vor.u32 %v710, %v713
      %v715 = vrot.slane %v714, 4
      %v717 = vshll.u32 %v644, 16
      %v719 = vrot.slane %v717, 5
      %v720 = vsel %vm420, %v715, %v719
      %v722 = vshrl.u32 %v645, 16
      %v724 = vrot.slane %v722, 4
      %v725 = vshll.u32 %v645, 16
      %v727 = vrot.slane %v725, 5
      %v728 = vor.u32 %v724, %v727
      %v729 = vrot.slane %v728, 4
      %v731 = vshll.u32 %v646, 16
      %v733 = vrot.slane %v731, 5
      %v734 = vsel %vm420, %v729, %v733
      %v736 = vshrl.u32 %v647, 16
      %v738 = vrot.slane %v736, 4
      %v739 = vshll.u32 %v647, 16
      %v741 = vrot.slane %v739, 5
      %v742 = vor.u32 %v738, %v741
      %v743 = vrot.slane %v742, 4
      %v745 = vshll.u32 %v648, 16
      %v747 = vrot.slane %v745, 5
      %v748 = vsel %vm420, %v743, %v747
      %v750 = vshrl.u32 %v649, 16
      %v752 = vrot.slane %v750, 4
      %v753 = vshll.u32 %v649, 16
      %v755 = vrot.slane %v753, 5
      %v756 = vor.u32 %v752, %v755
      %v757 = vrot.slane %v756, 4
      %v759 = vshll.u32 %v650, 16
      %v761 = vrot.slane %v759, 5
      %v762 = vsel %vm420, %v757, %v761
      %s763 = scalar_lea.vmem %s1, 6
      %v764 = vld [vmem:[%s763] sm:$0x3]
      %v765 = vunpack.c.l.b16 %v664
      %v766 = vunpack.c.l.b16 %v678
      %v767 = vunpack.c.l.b16 %v692
      %v768 = vunpack.c.l.b16 %v706
      %v769 = vunpack.c.l.b16 %v720
      %v770 = vunpack.c.l.b16 %v734
      %v771 = vunpack.c.l.b16 %v748
      %v772 = vunpack.c.l.b16 %v762
      %v773 = vpack.c.b16 %v766, %v765
      %v774 = vpack.c.b16 %v768, %v767
      %v775 = vpack.c.b16 %v770, %v769
      %v776 = vpack.c.b16 %v772, %v771
      %v778 = vsel %vm217, %v773, 0
      %v781 = vsel %vm217, %v774, 0
      %v784 = vsel %vm217, %v775, 0
      %v787 = vsel %vm217, %v776, 0
      %v790 = vand.u32 %v764, %v233
      %792 = vmatprep.subr.bf16.mxu0 0
      %793 = vmatpush1.bf16.msra.mxu0 %v790
      %794 = vmatprep.subr.bf16.mxu0 0
      %795 = vmatpush1.bf16.msra.mxu0 0
      %796 = vmatprep.subr.bf16.mxu0 0
      %797 = vmatpush1.bf16.msra.mxu0 0
      %798 = vmatprep.subr.bf16.mxu0 0
      %799 = vmatpush1.bf16.msra.mxu0 0
      %800 = vmatprep.subr.bf16.mxu0 0
      %801 = vmatpush1.bf16.msra.mxu0 0
      %802 = vmatprep.subr.bf16.mxu0 0
      %803 = vmatpush1.bf16.msra.mxu0 0
      %804 = vmatprep.subr.bf16.mxu0 0
      %805 = vmatpush1.bf16.msra.mxu0 0
      %806 = vmatprep.subr.bf16.mxu0 0
      %807 = vmatpush1.bf16.msra.mxu0 0
      %808 = vmatprep.subr.bf16.mxu0 0
      %809 = vmatpush1.bf16.msra.mxu0 0
      %810 = vmatprep.subr.bf16.mxu0 0
      %811 = vmatpush1.bf16.msra.mxu0 0
      %812 = vmatprep.subr.bf16.mxu0 0
      %813 = vmatpush1.bf16.msra.mxu0 0
      %814 = vmatprep.subr.bf16.mxu0 0
      %815 = vmatpush1.bf16.msra.mxu0 0
      %816 = vmatprep.subr.bf16.mxu0 0
      %817 = vmatpush1.bf16.msra.mxu0 0
      %818 = vmatprep.subr.bf16.mxu0 0
      %819 = vmatpush1.bf16.msra.mxu0 0
      %820 = vmatprep.subr.bf16.mxu0 0
      %821 = vmatpush1.bf16.msra.mxu0 0
      %822 = vmatprep.subr.bf16.mxu0 0
      %823 = vmatpush1.bf16.msra.mxu0 0
      %824 = vmatprep.mubr.bf16.mxu0 0
      %825 = vmatmul.mubr.bf16.gmra.mrb[0].mxu0 %v778
      %v826 = vpop.f32.mrb[0].mxu0
      %v827 = vadd.f32 0.0, %v826
      %v828 = vpop.f32.mrb[0].mxu0
      %v829 = vpop.f32.mrb[0].mxu0
      %v830 = vadd.f32 0.0, %v829
      %v831 = vpop.f32.mrb[0].mxu0
      %832 = vmatprep.mubr.bf16.mxu0 0
      %833 = vmatmul.mubr.bf16.gmra.mrb[0].mxu0 %v781
      %v834 = vpop.f32.mrb[0].mxu0
      %v835 = vadd.f32 0.0, %v834
      %v836 = vpop.f32.mrb[0].mxu0
      %v837 = vpop.f32.mrb[0].mxu0
      %v838 = vadd.f32 0.0, %v837
      %v839 = vpop.f32.mrb[0].mxu0
      %840 = vmatprep.mubr.bf16.mxu0 0
      %841 = vmatmul.mubr.bf16.gmra.mrb[0].mxu0 %v784
      %v842 = vpop.f32.mrb[0].mxu0
      %v843 = vadd.f32 0.0, %v842
      %v844 = vpop.f32.mrb[0].mxu0
      %v845 = vpop.f32.mrb[0].mxu0
      %v846 = vadd.f32 0.0, %v845
      %v847 = vpop.f32.mrb[0].mxu0
      %848 = vmatprep.mubr.bf16.mxu0 0
      %849 = vmatmul.mubr.bf16.gmra.mrb[0].mxu0 %v787
      %v850 = vpop.f32.mrb[0].mxu0
      %v851 = vadd.f32 0.0, %v850
      %v852 = vpop.f32.mrb[0].mxu0
      %v853 = vpop.f32.mrb[0].mxu0
      %v854 = vadd.f32 0.0, %v853
      %v855 = vpop.f32.mrb[0].mxu0
      %856 = vdwg.mxu0
      %v857 = vadd.f32 %v627, %v827
      %v858 = vadd.f32 %v628, %v830
      %v859 = vadd.f32 %v629, %v835
      %v860 = vadd.f32 %v630, %v838
      %v861 = vadd.f32 %v631, %v843
      %v862 = vadd.f32 %v632, %v846
      %v863 = vadd.f32 %v633, %v851
      %v864 = vadd.f32 %v634, %v854
      %s865 = scalar_lea.vmem %s169, 144
      %v866 = vld [vmem:[%s865] sm:$0xf]
      %v867 = vld [vmem:[%s865 + $0x8] sm:$0xf]
      %v868 = vld [vmem:[%s865 + $0x10] sm:$0xf]
      %v869 = vld [vmem:[%s865 + $0x18] sm:$0xf]
      %v870 = vld [vmem:[%s865 + $0x20] sm:$0xf]
      %v871 = vld [vmem:[%s865 + $0x28] sm:$0xf]
      %v872 = vld [vmem:[%s865 + $0x30] sm:$0xf]
      %v873 = vld [vmem:[%s865 + $0x38] sm:$0xf]
      %s874 = scalar_lea.vmem %s1, 8
      %v875 = vld [vmem:[%s874] sm:$0x3]
      %v884 = vunpack.c.l.b16 %v866
      %v885 = vunpack.c.l.b16 %v867
      %v886 = vunpack.c.l.b16 %v868
      %v887 = vunpack.c.l.b16 %v869
      %v888 = vunpack.c.l.b16 %v870
      %v889 = vunpack.c.l.b16 %v871
      %v890 = vunpack.c.l.b16 %v872
      %v891 = vunpack.c.l.b16 %v873
      %v892 = vpack.c.b16 %v885, %v884
      %v893 = vpack.c.b16 %v887, %v886
      %v894 = vpack.c.b16 %v889, %v888
      %v895 = vpack.c.b16 %v891, %v890
      %v897 = vsel %vm217, %v892, 0
      %v900 = vsel %vm217, %v893, 0
      %v903 = vsel %vm217, %v894, 0
      %v906 = vsel %vm217, %v895, 0
      %v909 = vand.u32 %v875, %v233
      %911 = vmatprep.subr.bf16.mxu0 0
      %912 = vmatpush1.bf16.msra.mxu0 %v909
      %913 = vmatprep.subr.bf16.mxu0 0
      %914 = vmatpush1.bf16.msra.mxu0 0
      %915 = vmatprep.subr.bf16.mxu0 0
      %916 = vmatpush1.bf16.msra.mxu0 0
      %917 = vmatprep.subr.bf16.mxu0 0
      %918 = vmatpush1.bf16.msra.mxu0 0
      %919 = vmatprep.subr.bf16.mxu0 0
      %920 = vmatpush1.bf16.msra.mxu0 0
      %921 = vmatprep.subr.bf16.mxu0 0
      %922 = vmatpush1.bf16.msra.mxu0 0
      %923 = vmatprep.subr.bf16.mxu0 0
      %924 = vmatpush1.bf16.msra.mxu0 0
      %925 = vmatprep.subr.bf16.mxu0 0
      %926 = vmatpush1.bf16.msra.mxu0 0
      %927 = vmatprep.subr.bf16.mxu0 0
      %928 = vmatpush1.bf16.msra.mxu0 0
      %929 = vmatprep.subr.bf16.mxu0 0
      %930 = vmatpush1.bf16.msra.mxu0 0
      %931 = vmatprep.subr.bf16.mxu0 0
      %932 = vmatpush1.bf16.msra.mxu0 0
      %933 = vmatprep.subr.bf16.mxu0 0
      %934 = vmatpush1.bf16.msra.mxu0 0
      %935 = vmatprep.subr.bf16.mxu0 0
      %936 = vmatpush1.bf16.msra.mxu0 0
      %937 = vmatprep.subr.bf16.mxu0 0
      %938 = vmatpush1.bf16.msra.mxu0 0
      %939 = vmatprep.subr.bf16.mxu0 0
      %940 = vmatpush1.bf16.msra.mxu0 0
      %941 = vmatprep.subr.bf16.mxu0 0
      %942 = vmatpush1.bf16.msra.mxu0 0
      %943 = vmatprep.mubr.bf16.mxu0 0
      %944 = vmatmul.mubr.bf16.gmra.mrb[0].mxu0 %v897
      %v945 = vpop.f32.mrb[0].mxu0
      %v946 = vadd.f32 0.0, %v945
      %v947 = vpop.f32.mrb[0].mxu0
      %v948 = vpop.f32.mrb[0].mxu0
      %v949 = vadd.f32 0.0, %v948
      %v950 = vpop.f32.mrb[0].mxu0
      %951 = vmatprep.mubr.bf16.mxu0 0
      %952 = vmatmul.mubr.bf16.gmra.mrb[0].mxu0 %v900
      %v953 = vpop.f32.mrb[0].mxu0
      %v954 = vadd.f32 0.0, %v953
      %v955 = vpop.f32.mrb[0].mxu0
      %v956 = vpop.f32.mrb[0].mxu0
      %v957 = vadd.f32 0.0, %v956
      %v958 = vpop.f32.mrb[0].mxu0
      %959 = vmatprep.mubr.bf16.mxu0 0
      %960 = vmatmul.mubr.bf16.gmra.mrb[0].mxu0 %v903
      %v961 = vpop.f32.mrb[0].mxu0
      %v962 = vadd.f32 0.0, %v961
      %v963 = vpop.f32.mrb[0].mxu0
      %v964 = vpop.f32.mrb[0].mxu0
      %v965 = vadd.f32 0.0, %v964
      %v966 = vpop.f32.mrb[0].mxu0
      %967 = vmatprep.mubr.bf16.mxu0 0
      %968 = vmatmul.mubr.bf16.gmra.mrb[0].mxu0 %v906
      %v969 = vpop.f32.mrb[0].mxu0
      %v970 = vadd.f32 0.0, %v969
      %v971 = vpop.f32.mrb[0].mxu0
      %v972 = vpop.f32.mrb[0].mxu0
      %v973 = vadd.f32 0.0, %v972
      %v974 = vpop.f32.mrb[0].mxu0
      %975 = vdwg.mxu0
      %v976 = vadd.f32 %v857, %v946
      %v977 = vadd.f32 %v858, %v949
      %v978 = vadd.f32 %v859, %v954
      %v979 = vadd.f32 %v860, %v957
      %v980 = vadd.f32 %v861, %v962
      %v981 = vadd.f32 %v862, %v965
      %v982 = vadd.f32 %v863, %v970
      %v983 = vadd.f32 %v864, %v973
      %s984 = scalar_lea.vmem %s169, 216
      %v985 = vld [vmem:[%s984] sm:$0xf]
      %v986 = vld [vmem:[%s984 + $0x8] sm:$0xf]
      %v987 = vld [vmem:[%s984 + $0x10] sm:$0xf]
      %v988 = vld [vmem:[%s984 + $0x18] sm:$0xf]
      %v989 = vld [vmem:[%s984 + $0x20] sm:$0xf]
      %v990 = vld [vmem:[%s984 + $0x28] sm:$0xf]
      %v991 = vld [vmem:[%s984 + $0x30] sm:$0xf]
      %v992 = vld [vmem:[%s984 + $0x38] sm:$0xf]
      %s993 = scalar_lea.vmem %s1, 10
      %v994 = vld [vmem:[%s993] sm:$0x3]
      %v1003 = vunpack.c.l.b16 %v985
      %v1004 = vunpack.c.l.b16 %v986
      %v1005 = vunpack.c.l.b16 %v987
      %v1006 = vunpack.c.l.b16 %v988
      %v1007 = vunpack.c.l.b16 %v989
      %v1008 = vunpack.c.l.b16 %v990
      %v1009 = vunpack.c.l.b16 %v991
      %v1010 = vunpack.c.l.b16 %v992
      %v1011 = vpack.c.b16 %v1004, %v1003
      %v1012 = vpack.c.b16 %v1006, %v1005
      %v1013 = vpack.c.b16 %v1008, %v1007
      %v1014 = vpack.c.b16 %v1010, %v1009
      %v1016 = vsel %vm217, %v1011, 0
      %v1019 = vsel %vm217, %v1012, 0
      %v1022 = vsel %vm217, %v1013, 0
      %v1025 = vsel %vm217, %v1014, 0
      %v1028 = vand.u32 %v994, %v233
      %1030 = vmatprep.subr.bf16.mxu0 0
      %1031 = vmatpush1.bf16.msra.mxu0 %v1028
      %1032 = vmatprep.subr.bf16.mxu0 0
      %1033 = vmatpush1.bf16.msra.mxu0 0
      %1034 = vmatprep.subr.bf16.mxu0 0
      %1035 = vmatpush1.bf16.msra.mxu0 0
      %1036 = vmatprep.subr.bf16.mxu0 0
      %1037 = vmatpush1.bf16.msra.mxu0 0
      %1038 = vmatprep.subr.bf16.mxu0 0
      %1039 = vmatpush1.bf16.msra.mxu0 0
      %1040 = vmatprep.subr.bf16.mxu0 0
      %1041 = vmatpush1.bf16.msra.mxu0 0
      %1042 = vmatprep.subr.bf16.mxu0 0
      %1043 = vmatpush1.bf16.msra.mxu0 0
      %1044 = vmatprep.subr.bf16.mxu0 0
      %1045 = vmatpush1.bf16.msra.mxu0 0
      %1046 = vmatprep.subr.bf16.mxu0 0
      %1047 = vmatpush1.bf16.msra.mxu0 0
      %1048 = vmatprep.subr.bf16.mxu0 0
      %1049 = vmatpush1.bf16.msra.mxu0 0
      %1050 = vmatprep.subr.bf16.mxu0 0
      %1051 = vmatpush1.bf16.msra.mxu0 0
      %1052 = vmatprep.subr.bf16.mxu0 0
      %1053 = vmatpush1.bf16.msra.mxu0 0
      %1054 = vmatprep.subr.bf16.mxu0 0
      %1055 = vmatpush1.bf16.msra.mxu0 0
      %1056 = vmatprep.subr.bf16.mxu0 0
      %1057 = vmatpush1.bf16.msra.mxu0 0
      %1058 = vmatprep.subr.bf16.mxu0 0
      %1059 = vmatpush1.bf16.msra.mxu0 0
      %1060 = vmatprep.subr.bf16.mxu0 0
      %1061 = vmatpush1.bf16.msra.mxu0 0
      %1062 = vmatprep.mubr.bf16.mxu0 0
      %1063 = vmatmul.mubr.bf16.gmra.mrb[0].mxu0 %v1016
      %v1064 = vpop.f32.mrb[0].mxu0
      %v1065 = vadd.f32 0.0, %v1064
      %v1066 = vpop.f32.mrb[0].mxu0
      %v1067 = vpop.f32.mrb[0].mxu0
      %v1068 = vadd.f32 0.0, %v1067
      %v1069 = vpop.f32.mrb[0].mxu0
      %1070 = vmatprep.mubr.bf16.mxu0 0
      %1071 = vmatmul.mubr.bf16.gmra.mrb[0].mxu0 %v1019
      %v1072 = vpop.f32.mrb[0].mxu0
      %v1073 = vadd.f32 0.0, %v1072
      %v1074 = vpop.f32.mrb[0].mxu0
      %v1075 = vpop.f32.mrb[0].mxu0
      %v1076 = vadd.f32 0.0, %v1075
      %v1077 = vpop.f32.mrb[0].mxu0
      %1078 = vmatprep.mubr.bf16.mxu0 0
      %1079 = vmatmul.mubr.bf16.gmra.mrb[0].mxu0 %v1022
      %v1080 = vpop.f32.mrb[0].mxu0
      %v1081 = vadd.f32 0.0, %v1080
      %v1082 = vpop.f32.mrb[0].mxu0
      %v1083 = vpop.f32.mrb[0].mxu0
      %v1084 = vadd.f32 0.0, %v1083
      %v1085 = vpop.f32.mrb[0].mxu0
      %1086 = vmatprep.mubr.bf16.mxu0 0
      %1087 = vmatmul.mubr.bf16.gmra.mrb[0].mxu0 %v1025
      %v1088 = vpop.f32.mrb[0].mxu0
      %v1089 = vadd.f32 0.0, %v1088
      %v1090 = vpop.f32.mrb[0].mxu0
      %v1091 = vpop.f32.mrb[0].mxu0
      %v1092 = vadd.f32 0.0, %v1091
      %v1093 = vpop.f32.mrb[0].mxu0
      %1094 = vdwg.mxu0
      %v1095 = vadd.f32 %v976, %v1065
      %v1096 = vadd.f32 %v977, %v1068
      %v1097 = vadd.f32 %v978, %v1073
      %v1098 = vadd.f32 %v979, %v1076
      %v1099 = vadd.f32 %v980, %v1081
      %v1100 = vadd.f32 %v981, %v1084
      %v1101 = vadd.f32 %v982, %v1089
      %v1102 = vadd.f32 %v983, %v1092
      %v1103 = vld [vmem:[%s865] sm:$0xf]
      %v1104 = vld [vmem:[%s865 + $0x4] sm:$0x1]
      %v1105 = vld [vmem:[%s865 + $0x8] sm:$0xf]
      %v1106 = vld [vmem:[%s865 + $0xc] sm:$0x1]
      %v1107 = vld [vmem:[%s865 + $0x10] sm:$0xf]
      %v1108 = vld [vmem:[%s865 + $0x14] sm:$0x1]
      %v1109 = vld [vmem:[%s865 + $0x18] sm:$0xf]
      %v1110 = vld [vmem:[%s865 + $0x1c] sm:$0x1]
      %v1111 = vld [vmem:[%s865 + $0x20] sm:$0xf]
      %v1112 = vld [vmem:[%s865 + $0x24] sm:$0x1]
      %v1113 = vld [vmem:[%s865 + $0x28] sm:$0xf]
      %v1114 = vld [vmem:[%s865 + $0x2c] sm:$0x1]
      %v1115 = vld [vmem:[%s865 + $0x30] sm:$0xf]
      %v1116 = vld [vmem:[%s865 + $0x34] sm:$0x1]
      %v1117 = vld [vmem:[%s865 + $0x38] sm:$0xf]
      %v1118 = vld [vmem:[%s865 + $0x3c] sm:$0x1]
      %v1120 = vshrl.u32 %v1103, 16
      %v1122 = vrot.slane %v1120, 4
      %v1123 = vshll.u32 %v1103, 16
      %v1125 = vrot.slane %v1123, 5
      %v1126 = vor.u32 %v1122, %v1125
      %v1127 = vrot.slane %v1126, 4
      %v1129 = vshll.u32 %v1104, 16
      %v1131 = vrot.slane %v1129, 5
      %v1132 = vsel %vm420, %v1127, %v1131
      %v1134 = vshrl.u32 %v1105, 16
      %v1136 = vrot.slane %v1134, 4
      %v1137 = vshll.u32 %v1105, 16
      %v1139 = vrot.slane %v1137, 5
      %v1140 = vor.u32 %v1136, %v1139
      %v1141 = vrot.slane %v1140, 4
      %v1143 = vshll.u32 %v1106, 16
      %v1145 = vrot.slane %v1143, 5
      %v1146 = vsel %vm420, %v1141, %v1145
      %v1148 = vshrl.u32 %v1107, 16
      %v1150 = vrot.slane %v1148, 4
      %v1151 = vshll.u32 %v1107, 16
      %v1153 = vrot.slane %v1151, 5
      %v1154 = vor.u32 %v1150, %v1153
      %v1155 = vrot.slane %v1154, 4
      %v1157 = vshll.u32 %v1108, 16
      %v1159 = vrot.slane %v1157, 5
      %v1160 = vsel %vm420, %v1155, %v1159
      %v1162 = vshrl.u32 %v1109, 16
      %v1164 = vrot.slane %v1162, 4
      %v1165 = vshll.u32 %v1109, 16
      %v1167 = vrot.slane %v1165, 5
      %v1168 = vor.u32 %v1164, %v1167
      %v1169 = vrot.slane %v1168, 4
      %v1171 = vshll.u32 %v1110, 16
      %v1173 = vrot.slane %v1171, 5
      %v1174 = vsel %vm420, %v1169, %v1173
      %v1176 = vshrl.u32 %v1111, 16
      %v1178 = vrot.slane %v1176, 4
      %v1179 = vshll.u32 %v1111, 16
      %v1181 = vrot.slane %v1179, 5
      %v1182 = vor.u32 %v1178, %v1181
      %v1183 = vrot.slane %v1182, 4
      %v1185 = vshll.u32 %v1112, 16
      %v1187 = vrot.slane %v1185, 5
      %v1188 = vsel %vm420, %v1183, %v1187
      %v1190 = vshrl.u32 %v1113, 16
      %v1192 = vrot.slane %v1190, 4
      %v1193 = vshll.u32 %v1113, 16
      %v1195 = vrot.slane %v1193, 5
      %v1196 = vor.u32 %v1192, %v1195
      %v1197 = vrot.slane %v1196, 4
      %v1199 = vshll.u32 %v1114, 16
      %v1201 = vrot.slane %v1199, 5
      %v1202 = vsel %vm420, %v1197, %v1201
      %v1204 = vshrl.u32 %v1115, 16
      %v1206 = vrot.slane %v1204, 4
      %v1207 = vshll.u32 %v1115, 16
      %v1209 = vrot.slane %v1207, 5
      %v1210 = vor.u32 %v1206, %v1209
      %v1211 = vrot.slane %v1210, 4
      %v1213 = vshll.u32 %v1116, 16
      %v1215 = vrot.slane %v1213, 5
      %v1216 = vsel %vm420, %v1211, %v1215
      %v1218 = vshrl.u32 %v1117, 16
      %v1220 = vrot.slane %v1218, 4
      %v1221 = vshll.u32 %v1117, 16
      %v1223 = vrot.slane %v1221, 5
      %v1224 = vor.u32 %v1220, %v1223
      %v1225 = vrot.slane %v1224, 4
      %v1227 = vshll.u32 %v1118, 16
      %v1229 = vrot.slane %v1227, 5
      %v1230 = vsel %vm420, %v1225, %v1229
      %s1231 = scalar_lea.vmem %s1, 12
      %v1232 = vld [vmem:[%s1231] sm:$0x3]
      %v1233 = vunpack.c.l.b16 %v1132
      %v1234 = vunpack.c.l.b16 %v1146
      %v1235 = vunpack.c.l.b16 %v1160
      %v1236 = vunpack.c.l.b16 %v1174
      %v1237 = vunpack.c.l.b16 %v1188
      %v1238 = vunpack.c.l.b16 %v1202
      %v1239 = vunpack.c.l.b16 %v1216
      %v1240 = vunpack.c.l.b16 %v1230
      %v1241 = vpack.c.b16 %v1234, %v1233
      %v1242 = vpack.c.b16 %v1236, %v1235
      %v1243 = vpack.c.b16 %v1238, %v1237
      %v1244 = vpack.c.b16 %v1240, %v1239
      %v1246 = vsel %vm217, %v1241, 0
      %v1249 = vsel %vm217, %v1242, 0
      %v1252 = vsel %vm217, %v1243, 0
      %v1255 = vsel %vm217, %v1244, 0
      %v1258 = vand.u32 %v1232, %v233
      %1260 = vmatprep.subr.bf16.mxu0 0
      %1261 = vmatpush1.bf16.msra.mxu0 %v1258
      %1262 = vmatprep.subr.bf16.mxu0 0
      %1263 = vmatpush1.bf16.msra.mxu0 0
      %1264 = vmatprep.subr.bf16.mxu0 0
      %1265 = vmatpush1.bf16.msra.mxu0 0
      %1266 = vmatprep.subr.bf16.mxu0 0
      %1267 = vmatpush1.bf16.msra.mxu0 0
      %1268 = vmatprep.subr.bf16.mxu0 0
      %1269 = vmatpush1.bf16.msra.mxu0 0
      %1270 = vmatprep.subr.bf16.mxu0 0
      %1271 = vmatpush1.bf16.msra.mxu0 0
      %1272 = vmatprep.subr.bf16.mxu0 0
      %1273 = vmatpush1.bf16.msra.mxu0 0
      %1274 = vmatprep.subr.bf16.mxu0 0
      %1275 = vmatpush1.bf16.msra.mxu0 0
      %1276 = vmatprep.subr.bf16.mxu0 0
      %1277 = vmatpush1.bf16.msra.mxu0 0
      %1278 = vmatprep.subr.bf16.mxu0 0
      %1279 = vmatpush1.bf16.msra.mxu0 0
      %1280 = vmatprep.subr.bf16.mxu0 0
      %1281 = vmatpush1.bf16.msra.mxu0 0
      %1282 = vmatprep.subr.bf16.mxu0 0
      %1283 = vmatpush1.bf16.msra.mxu0 0
      %1284 = vmatprep.subr.bf16.mxu0 0
      %1285 = vmatpush1.bf16.msra.mxu0 0
      %1286 = vmatprep.subr.bf16.mxu0 0
      %1287 = vmatpush1.bf16.msra.mxu0 0
      %1288 = vmatprep.subr.bf16.mxu0 0
      %1289 = vmatpush1.bf16.msra.mxu0 0
      %1290 = vmatprep.subr.bf16.mxu0 0
      %1291 = vmatpush1.bf16.msra.mxu0 0
      %1292 = vmatprep.mubr.bf16.mxu0 0
      %1293 = vmatmul.mubr.bf16.gmra.mrb[0].mxu0 %v1246
      %v1294 = vpop.f32.mrb[0].mxu0
      %v1295 = vadd.f32 0.0, %v1294
      %v1296 = vpop.f32.mrb[0].mxu0
      %v1297 = vpop.f32.mrb[0].mxu0
      %v1298 = vadd.f32 0.0, %v1297
      %v1299 = vpop.f32.mrb[0].mxu0
      %1300 = vmatprep.mubr.bf16.mxu0 0
      %1301 = vmatmul.mubr.bf16.gmra.mrb[0].mxu0 %v1249
      %v1302 = vpop.f32.mrb[0].mxu0
      %v1303 = vadd.f32 0.0, %v1302
      %v1304 = vpop.f32.mrb[0].mxu0
      %v1305 = vpop.f32.mrb[0].mxu0
      %v1306 = vadd.f32 0.0, %v1305
      %v1307 = vpop.f32.mrb[0].mxu0
      %1308 = vmatprep.mubr.bf16.mxu0 0
      %1309 = vmatmul.mubr.bf16.gmra.mrb[0].mxu0 %v1252
      %v1310 = vpop.f32.mrb[0].mxu0
      %v1311 = vadd.f32 0.0, %v1310
      %v1312 = vpop.f32.mrb[0].mxu0
      %v1313 = vpop.f32.mrb[0].mxu0
      %v1314 = vadd.f32 0.0, %v1313
      %v1315 = vpop.f32.mrb[0].mxu0
      %1316 = vmatprep.mubr.bf16.mxu0 0
      %1317 = vmatmul.mubr.bf16.gmra.mrb[0].mxu0 %v1255
      %v1318 = vpop.f32.mrb[0].mxu0
      %v1319 = vadd.f32 0.0, %v1318
      %v1320 = vpop.f32.mrb[0].mxu0
      %v1321 = vpop.f32.mrb[0].mxu0
      %v1322 = vadd.f32 0.0, %v1321
      %v1323 = vpop.f32.mrb[0].mxu0
      %1324 = vdwg.mxu0
      %v1325 = vadd.f32 %v1095, %v1295
      %v1326 = vadd.f32 %v1096, %v1298
      %v1327 = vadd.f32 %v1097, %v1303
      %v1328 = vadd.f32 %v1098, %v1306
      %v1329 = vadd.f32 %v1099, %v1311
      %v1330 = vadd.f32 %v1100, %v1314
      %v1331 = vadd.f32 %v1101, %v1319
      %v1332 = vadd.f32 %v1102, %v1322
      %v1333 = vld [vmem:[%s984] sm:$0xf]
      %v1334 = vld [vmem:[%s984 + $0x4] sm:$0x1]
      %v1335 = vld [vmem:[%s984 + $0x8] sm:$0xf]
      %v1336 = vld [vmem:[%s984 + $0xc] sm:$0x1]
      %v1337 = vld [vmem:[%s984 + $0x10] sm:$0xf]
      %v1338 = vld [vmem:[%s984 + $0x14] sm:$0x1]
      %v1339 = vld [vmem:[%s984 + $0x18] sm:$0xf]
      %v1340 = vld [vmem:[%s984 + $0x1c] sm:$0x1]
      %v1341 = vld [vmem:[%s984 + $0x20] sm:$0xf]
      %v1342 = vld [vmem:[%s984 + $0x24] sm:$0x1]
      %v1343 = vld [vmem:[%s984 + $0x28] sm:$0xf]
      %v1344 = vld [vmem:[%s984 + $0x2c] sm:$0x1]
      %v1345 = vld [vmem:[%s984 + $0x30] sm:$0xf]
      %v1346 = vld [vmem:[%s984 + $0x34] sm:$0x1]
      %v1347 = vld [vmem:[%s984 + $0x38] sm:$0xf]
      %v1348 = vld [vmem:[%s984 + $0x3c] sm:$0x1]
      %v1350 = vshrl.u32 %v1333, 16
      %v1352 = vrot.slane %v1350, 4
      %v1353 = vshll.u32 %v1333, 16
      %v1355 = vrot.slane %v1353, 5
      %v1356 = vor.u32 %v1352, %v1355
      %v1357 = vrot.slane %v1356, 4
      %v1359 = vshll.u32 %v1334, 16
      %v1361 = vrot.slane %v1359, 5
      %v1362 = vsel %vm420, %v1357, %v1361
      %v1364 = vshrl.u32 %v1335, 16
      %v1366 = vrot.slane %v1364, 4
      %v1367 = vshll.u32 %v1335, 16
      %v1369 = vrot.slane %v1367, 5
      %v1370 = vor.u32 %v1366, %v1369
      %v1371 = vrot.slane %v1370, 4
      %v1373 = vshll.u32 %v1336, 16
      %v1375 = vrot.slane %v1373, 5
      %v1376 = vsel %vm420, %v1371, %v1375
      %v1378 = vshrl.u32 %v1337, 16
      %v1380 = vrot.slane %v1378, 4
      %v1381 = vshll.u32 %v1337, 16
      %v1383 = vrot.slane %v1381, 5
      %v1384 = vor.u32 %v1380, %v1383
      %v1385 = vrot.slane %v1384, 4
      %v1387 = vshll.u32 %v1338, 16
      %v1389 = vrot.slane %v1387, 5
      %v1390 = vsel %vm420, %v1385, %v1389
      %v1392 = vshrl.u32 %v1339, 16
      %v1394 = vrot.slane %v1392, 4
      %v1395 = vshll.u32 %v1339, 16
      %v1397 = vrot.slane %v1395, 5
      %v1398 = vor.u32 %v1394, %v1397
      %v1399 = vrot.slane %v1398, 4
      %v1401 = vshll.u32 %v1340, 16
      %v1403 = vrot.slane %v1401, 5
      %v1404 = vsel %vm420, %v1399, %v1403
      %v1406 = vshrl.u32 %v1341, 16
      %v1408 = vrot.slane %v1406, 4
      %v1409 = vshll.u32 %v1341, 16
      %v1411 = vrot.slane %v1409, 5
      %v1412 = vor.u32 %v1408, %v1411
      %v1413 = vrot.slane %v1412, 4
      %v1415 = vshll.u32 %v1342, 16
      %v1417 = vrot.slane %v1415, 5
      %v1418 = vsel %vm420, %v1413, %v1417
      %v1420 = vshrl.u32 %v1343, 16
      %v1422 = vrot.slane %v1420, 4
      %v1423 = vshll.u32 %v1343, 16
      %v1425 = vrot.slane %v1423, 5
      %v1426 = vor.u32 %v1422, %v1425
      %v1427 = vrot.slane %v1426, 4
      %v1429 = vshll.u32 %v1344, 16
      %v1431 = vrot.slane %v1429, 5
      %v1432 = vsel %vm420, %v1427, %v1431
      %v1434 = vshrl.u32 %v1345, 16
      %v1436 = vrot.slane %v1434, 4
      %v1437 = vshll.u32 %v1345, 16
      %v1439 = vrot.slane %v1437, 5
      %v1440 = vor.u32 %v1436, %v1439
      %v1441 = vrot.slane %v1440, 4
      %v1443 = vshll.u32 %v1346, 16
      %v1445 = vrot.slane %v1443, 5
      %v1446 = vsel %vm420, %v1441, %v1445
      %v1448 = vshrl.u32 %v1347, 16
      %v1450 = vrot.slane %v1448, 4
      %v1451 = vshll.u32 %v1347, 16
      %v1453 = vrot.slane %v1451, 5
      %v1454 = vor.u32 %v1450, %v1453
      %v1455 = vrot.slane %v1454, 4
      %v1457 = vshll.u32 %v1348, 16
      %v1459 = vrot.slane %v1457, 5
      %v1460 = vsel %vm420, %v1455, %v1459
      %s1461 = scalar_lea.vmem %s1, 14
      %v1462 = vld [vmem:[%s1461] sm:$0x3]
      %v1463 = vunpack.c.l.b16 %v1362
      %v1464 = vunpack.c.l.b16 %v1376
      %v1465 = vunpack.c.l.b16 %v1390
      %v1466 = vunpack.c.l.b16 %v1404
      %v1467 = vunpack.c.l.b16 %v1418
      %v1468 = vunpack.c.l.b16 %v1432
      %v1469 = vunpack.c.l.b16 %v1446
      %v1470 = vunpack.c.l.b16 %v1460
      %v1471 = vpack.c.b16 %v1464, %v1463
      %v1472 = vpack.c.b16 %v1466, %v1465
      %v1473 = vpack.c.b16 %v1468, %v1467
      %v1474 = vpack.c.b16 %v1470, %v1469
      %v1476 = vsel %vm217, %v1471, 0
      %v1479 = vsel %vm217, %v1472, 0
      %v1482 = vsel %vm217, %v1473, 0
      %v1485 = vsel %vm217, %v1474, 0
      %v1488 = vand.u32 %v1462, %v233
      %1490 = vmatprep.subr.bf16.mxu0 0
      %1491 = vmatpush1.bf16.msra.mxu0 %v1488
      %1492 = vmatprep.subr.bf16.mxu0 0
      %1493 = vmatpush1.bf16.msra.mxu0 0
      %1494 = vmatprep.subr.bf16.mxu0 0
      %1495 = vmatpush1.bf16.msra.mxu0 0
      %1496 = vmatprep.subr.bf16.mxu0 0
      %1497 = vmatpush1.bf16.msra.mxu0 0
      %1498 = vmatprep.subr.bf16.mxu0 0
      %1499 = vmatpush1.bf16.msra.mxu0 0
      %1500 = vmatprep.subr.bf16.mxu0 0
      %1501 = vmatpush1.bf16.msra.mxu0 0
      %1502 = vmatprep.subr.bf16.mxu0 0
      %1503 = vmatpush1.bf16.msra.mxu0 0
      %1504 = vmatprep.subr.bf16.mxu0 0
      %1505 = vmatpush1.bf16.msra.mxu0 0
      %1506 = vmatprep.subr.bf16.mxu0 0
      %1507 = vmatpush1.bf16.msra.mxu0 0
      %1508 = vmatprep.subr.bf16.mxu0 0
      %1509 = vmatpush1.bf16.msra.mxu0 0
      %1510 = vmatprep.subr.bf16.mxu0 0
      %1511 = vmatpush1.bf16.msra.mxu0 0
      %1512 = vmatprep.subr.bf16.mxu0 0
      %1513 = vmatpush1.bf16.msra.mxu0 0
      %1514 = vmatprep.subr.bf16.mxu0 0
      %1515 = vmatpush1.bf16.msra.mxu0 0
      %1516 = vmatprep.subr.bf16.mxu0 0
      %1517 = vmatpush1.bf16.msra.mxu0 0
      %1518 = vmatprep.subr.bf16.mxu0 0
      %1519 = vmatpush1.bf16.msra.mxu0 0
      %1520 = vmatprep.subr.bf16.mxu0 0
      %1521 = vmatpush1.bf16.msra.mxu0 0
      %1522 = vmatprep.mubr.bf16.mxu0 0
      %1523 = vmatmul.mubr.bf16.gmra.mrb[0].mxu0 %v1476
      %v1524 = vpop.f32.mrb[0].mxu0
      %v1525 = vadd.f32 0.0, %v1524
      %v1526 = vpop.f32.mrb[0].mxu0
      %v1527 = vpop.f32.mrb[0].mxu0
      %v1528 = vadd.f32 0.0, %v1527
      %v1529 = vpop.f32.mrb[0].mxu0
      %1530 = vmatprep.mubr.bf16.mxu0 0
      %1531 = vmatmul.mubr.bf16.gmra.mrb[0].mxu0 %v1479
      %v1532 = vpop.f32.mrb[0].mxu0
      %v1533 = vadd.f32 0.0, %v1532
      %v1534 = vpop.f32.mrb[0].mxu0
      %v1535 = vpop.f32.mrb[0].mxu0
      %v1536 = vadd.f32 0.0, %v1535
      %v1537 = vpop.f32.mrb[0].mxu0
      %1538 = vmatprep.mubr.bf16.mxu0 0
      %1539 = vmatmul.mubr.bf16.gmra.mrb[0].mxu0 %v1482
      %v1540 = vpop.f32.mrb[0].mxu0
      %v1541 = vadd.f32 0.0, %v1540
      %v1542 = vpop.f32.mrb[0].mxu0
      %v1543 = vpop.f32.mrb[0].mxu0
      %v1544 = vadd.f32 0.0, %v1543
      %v1545 = vpop.f32.mrb[0].mxu0
      %1546 = vmatprep.mubr.bf16.mxu0 0
      %1547 = vmatmul.mubr.bf16.gmra.mrb[0].mxu0 %v1485
      %v1548 = vpop.f32.mrb[0].mxu0
      %v1549 = vadd.f32 0.0, %v1548
      %v1550 = vpop.f32.mrb[0].mxu0
      %v1551 = vpop.f32.mrb[0].mxu0
      %v1552 = vadd.f32 0.0, %v1551
      %v1553 = vpop.f32.mrb[0].mxu0
      %1554 = vdwg.mxu0
      %v1555 = vadd.f32 %v1325, %v1525
      %v1556 = vadd.f32 %v1326, %v1528
      %v1557 = vadd.f32 %v1327, %v1533
      %v1558 = vadd.f32 %v1328, %v1536
      %v1559 = vadd.f32 %v1329, %v1541
      %v1560 = vadd.f32 %v1330, %v1544
      %v1561 = vadd.f32 %v1331, %v1549
      %v1562 = vadd.f32 %v1332, %v1552
      %s1563 = scalar_lea.vmem %s169, 8
      %v1564 = vld [vmem:[%s1563] sm:$0xf]
      %v1565 = vld [vmem:[%s1563 + $0x8] sm:$0xf]
      %v1566 = vld [vmem:[%s1563 + $0x10] sm:$0xf]
      %v1567 = vld [vmem:[%s1563 + $0x18] sm:$0xf]
      %v1568 = vld [vmem:[%s1563 + $0x20] sm:$0xf]
      %v1569 = vld [vmem:[%s1563 + $0x28] sm:$0xf]
      %v1570 = vld [vmem:[%s1563 + $0x30] sm:$0xf]
      %v1571 = vld [vmem:[%s1563 + $0x38] sm:$0xf]
      %s1572 = scalar_lea.vmem %s1, 16
      %v1573 = vld [vmem:[%s1572] sm:$0x3]
      %v1582 = vunpack.c.l.b16 %v1564
      %v1583 = vunpack.c.l.b16 %v1565
      %v1584 = vunpack.c.l.b16 %v1566
      %v1585 = vunpack.c.l.b16 %v1567
      %v1586 = vunpack.c.l.b16 %v1568
      %v1587 = vunpack.c.l.b16 %v1569
      %v1588 = vunpack.c.l.b16 %v1570
      %v1589 = vunpack.c.l.b16 %v1571
      %v1590 = vpack.c.b16 %v1583, %v1582
      %v1591 = vpack.c.b16 %v1585, %v1584
      %v1592 = vpack.c.b16 %v1587, %v1586
      %v1593 = vpack.c.b16 %v1589, %v1588
      %v1595 = vsel %vm217, %v1590, 0
      %v1598 = vsel %vm217, %v1591, 0
      %v1601 = vsel %vm217, %v1592, 0
      %v1604 = vsel %vm217, %v1593, 0
      %v1607 = vand.u32 %v1573, %v233
      %1609 = vmatprep.subr.bf16.mxu0 0
      %1610 = vmatpush1.bf16.msra.mxu0 %v1607
      %1611 = vmatprep.subr.bf16.mxu0 0
      %1612 = vmatpush1.bf16.msra.mxu0 0
      %1613 = vmatprep.subr.bf16.mxu0 0
      %1614 = vmatpush1.bf16.msra.mxu0 0
      %1615 = vmatprep.subr.bf16.mxu0 0
      %1616 = vmatpush1.bf16.msra.mxu0 0
      %1617 = vmatprep.subr.bf16.mxu0 0
      %1618 = vmatpush1.bf16.msra.mxu0 0
      %1619 = vmatprep.subr.bf16.mxu0 0
      %1620 = vmatpush1.bf16.msra.mxu0 0
      %1621 = vmatprep.subr.bf16.mxu0 0
      %1622 = vmatpush1.bf16.msra.mxu0 0
      %1623 = vmatprep.subr.bf16.mxu0 0
      %1624 = vmatpush1.bf16.msra.mxu0 0
      %1625 = vmatprep.subr.bf16.mxu0 0
      %1626 = vmatpush1.bf16.msra.mxu0 0
      %1627 = vmatprep.subr.bf16.mxu0 0
      %1628 = vmatpush1.bf16.msra.mxu0 0
      %1629 = vmatprep.subr.bf16.mxu0 0
      %1630 = vmatpush1.bf16.msra.mxu0 0
      %1631 = vmatprep.subr.bf16.mxu0 0
      %1632 = vmatpush1.bf16.msra.mxu0 0
      %1633 = vmatprep.subr.bf16.mxu0 0
      %1634 = vmatpush1.bf16.msra.mxu0 0
      %1635 = vmatprep.subr.bf16.mxu0 0
      %1636 = vmatpush1.bf16.msra.mxu0 0
      %1637 = vmatprep.subr.bf16.mxu0 0
      %1638 = vmatpush1.bf16.msra.mxu0 0
      %1639 = vmatprep.subr.bf16.mxu0 0
      %1640 = vmatpush1.bf16.msra.mxu0 0
      %1641 = vmatprep.mubr.bf16.mxu0 0
      %1642 = vmatmul.mubr.bf16.gmra.mrb[0].mxu0 %v1595
      %v1643 = vpop.f32.mrb[0].mxu0
      %v1644 = vadd.f32 0.0, %v1643
      %v1645 = vpop.f32.mrb[0].mxu0
      %v1646 = vpop.f32.mrb[0].mxu0
      %v1647 = vadd.f32 0.0, %v1646
      %v1648 = vpop.f32.mrb[0].mxu0
      %1649 = vmatprep.mubr.bf16.mxu0 0
      %1650 = vmatmul.mubr.bf16.gmra.mrb[0].mxu0 %v1598
      %v1651 = vpop.f32.mrb[0].mxu0
      %v1652 = vadd.f32 0.0, %v1651
      %v1653 = vpop.f32.mrb[0].mxu0
      %v1654 = vpop.f32.mrb[0].mxu0
      %v1655 = vadd.f32 0.0, %v1654
      %v1656 = vpop.f32.mrb[0].mxu0
      %1657 = vmatprep.mubr.bf16.mxu0 0
      %1658 = vmatmul.mubr.bf16.gmra.mrb[0].mxu0 %v1601
      %v1659 = vpop.f32.mrb[0].mxu0
      %v1660 = vadd.f32 0.0, %v1659
      %v1661 = vpop.f32.mrb[0].mxu0
      %v1662 = vpop.f32.mrb[0].mxu0
      %v1663 = vadd.f32 0.0, %v1662
      %v1664 = vpop.f32.mrb[0].mxu0
      %1665 = vmatprep.mubr.bf16.mxu0 0
      %1666 = vmatmul.mubr.bf16.gmra.mrb[0].mxu0 %v1604
      %v1667 = vpop.f32.mrb[0].mxu0
      %v1668 = vadd.f32 0.0, %v1667
      %v1669 = vpop.f32.mrb[0].mxu0
      %v1670 = vpop.f32.mrb[0].mxu0
      %v1671 = vadd.f32 0.0, %v1670
      %v1672 = vpop.f32.mrb[0].mxu0
      %1673 = vdwg.mxu0
      %v1674 = vadd.f32 %v1555, %v1644
      %v1675 = vadd.f32 %v1556, %v1647
      %v1676 = vadd.f32 %v1557, %v1652
      %v1677 = vadd.f32 %v1558, %v1655
      %v1678 = vadd.f32 %v1559, %v1660
      %v1679 = vadd.f32 %v1560, %v1663
      %v1680 = vadd.f32 %v1561, %v1668
      %v1681 = vadd.f32 %v1562, %v1671
      %s1682 = scalar_lea.vmem %s169, 80
      %v1683 = vld [vmem:[%s1682] sm:$0xf]
      %v1684 = vld [vmem:[%s1682 + $0x8] sm:$0xf]
      %v1685 = vld [vmem:[%s1682 + $0x10] sm:$0xf]
      %v1686 = vld [vmem:[%s1682 + $0x18] sm:$0xf]
      %v1687 = vld [vmem:[%s1682 + $0x20] sm:$0xf]
      %v1688 = vld [vmem:[%s1682 + $0x28] sm:$0xf]
      %v1689 = vld [vmem:[%s1682 + $0x30] sm:$0xf]
      %v1690 = vld [vmem:[%s1682 + $0x38] sm:$0xf]
      %s1691 = scalar_lea.vmem %s1, 18
      %v1692 = vld [vmem:[%s1691] sm:$0x3]
      %v1701 = vunpack.c.l.b16 %v1683
      %v1702 = vunpack.c.l.b16 %v1684
      %v1703 = vunpack.c.l.b16 %v1685
      %v1704 = vunpack.c.l.b16 %v1686
      %v1705 = vunpack.c.l.b16 %v1687
      %v1706 = vunpack.c.l.b16 %v1688
      %v1707 = vunpack.c.l.b16 %v1689
      %v1708 = vunpack.c.l.b16 %v1690
      %v1709 = vpack.c.b16 %v1702, %v1701
      %v1710 = vpack.c.b16 %v1704, %v1703
      %v1711 = vpack.c.b16 %v1706, %v1705
      %v1712 = vpack.c.b16 %v1708, %v1707
      %v1714 = vsel %vm217, %v1709, 0
      %v1717 = vsel %vm217, %v1710, 0
      %v1720 = vsel %vm217, %v1711, 0
      %v1723 = vsel %vm217, %v1712, 0
      %v1726 = vand.u32 %v1692, %v233
      %1728 = vmatprep.subr.bf16.mxu0 0
      %1729 = vmatpush1.bf16.msra.mxu0 %v1726
      %1730 = vmatprep.subr.bf16.mxu0 0
      %1731 = vmatpush1.bf16.msra.mxu0 0
      %1732 = vmatprep.subr.bf16.mxu0 0
      %1733 = vmatpush1.bf16.msra.mxu0 0
      %1734 = vmatprep.subr.bf16.mxu0 0
      %1735 = vmatpush1.bf16.msra.mxu0 0
      %1736 = vmatprep.subr.bf16.mxu0 0
      %1737 = vmatpush1.bf16.msra.mxu0 0
      %1738 = vmatprep.subr.bf16.mxu0 0
      %1739 = vmatpush1.bf16.msra.mxu0 0
      %1740 = vmatprep.subr.bf16.mxu0 0
      %1741 = vmatpush1.bf16.msra.mxu0 0
      %1742 = vmatprep.subr.bf16.mxu0 0
      %1743 = vmatpush1.bf16.msra.mxu0 0
      %1744 = vmatprep.subr.bf16.mxu0 0
      %1745 = vmatpush1.bf16.msra.mxu0 0
      %1746 = vmatprep.subr.bf16.mxu0 0
      %1747 = vmatpush1.bf16.msra.mxu0 0
      %1748 = vmatprep.subr.bf16.mxu0 0
      %1749 = vmatpush1.bf16.msra.mxu0 0
      %1750 = vmatprep.subr.bf16.mxu0 0
      %1751 = vmatpush1.bf16.msra.mxu0 0
      %1752 = vmatprep.subr.bf16.mxu0 0
      %1753 = vmatpush1.bf16.msra.mxu0 0
      %1754 = vmatprep.subr.bf16.mxu0 0
      %1755 = vmatpush1.bf16.msra.mxu0 0
      %1756 = vmatprep.subr.bf16.mxu0 0
      %1757 = vmatpush1.bf16.msra.mxu0 0
      %1758 = vmatprep.subr.bf16.mxu0 0
      %1759 = vmatpush1.bf16.msra.mxu0 0
      %1760 = vmatprep.mubr.bf16.mxu0 0
      %1761 = vmatmul.mubr.bf16.gmra.mrb[0].mxu0 %v1714
      %v1762 = vpop.f32.mrb[0].mxu0
      %v1763 = vadd.f32 0.0, %v1762
      %v1764 = vpop.f32.mrb[0].mxu0
      %v1765 = vpop.f32.mrb[0].mxu0
      %v1766 = vadd.f32 0.0, %v1765
      %v1767 = vpop.f32.mrb[0].mxu0
      %1768 = vmatprep.mubr.bf16.mxu0 0
      %1769 = vmatmul.mubr.bf16.gmra.mrb[0].mxu0 %v1717
      %v1770 = vpop.f32.mrb[0].mxu0
      %v1771 = vadd.f32 0.0, %v1770
      %v1772 = vpop.f32.mrb[0].mxu0
      %v1773 = vpop.f32.mrb[0].mxu0
      %v1774 = vadd.f32 0.0, %v1773
      %v1775 = vpop.f32.mrb[0].mxu0
      %1776 = vmatprep.mubr.bf16.mxu0 0
      %1777 = vmatmul.mubr.bf16.gmra.mrb[0].mxu0 %v1720
      %v1778 = vpop.f32.mrb[0].mxu0
      %v1779 = vadd.f32 0.0, %v1778
      %v1780 = vpop.f32.mrb[0].mxu0
      %v1781 = vpop.f32.mrb[0].mxu0
      %v1782 = vadd.f32 0.0, %v1781
      %v1783 = vpop.f32.mrb[0].mxu0
      %1784 = vmatprep.mubr.bf16.mxu0 0
      %1785 = vmatmul.mubr.bf16.gmra.mrb[0].mxu0 %v1723
      %v1786 = vpop.f32.mrb[0].mxu0
      %v1787 = vadd.f32 0.0, %v1786
      %v1788 = vpop.f32.mrb[0].mxu0
      %v1789 = vpop.f32.mrb[0].mxu0
      %v1790 = vadd.f32 0.0, %v1789
      %v1791 = vpop.f32.mrb[0].mxu0
      %1792 = vdwg.mxu0
      %v1793 = vadd.f32 %v1674, %v1763
      %v1794 = vadd.f32 %v1675, %v1766
      %v1795 = vadd.f32 %v1676, %v1771
      %v1796 = vadd.f32 %v1677, %v1774
      %v1797 = vadd.f32 %v1678, %v1779
      %v1798 = vadd.f32 %v1679, %v1782
      %v1799 = vadd.f32 %v1680, %v1787
      %v1800 = vadd.f32 %v1681, %v1790
      %v1801 = vld [vmem:[%s1563] sm:$0xf]
      %v1802 = vld [vmem:[%s1563 + $0x4] sm:$0x1]
      %v1803 = vld [vmem:[%s1563 + $0x8] sm:$0xf]
      %v1804 = vld [vmem:[%s1563 + $0xc] sm:$0x1]
      %v1805 = vld [vmem:[%s1563 + $0x10] sm:$0xf]
      %v1806 = vld [vmem:[%s1563 + $0x14] sm:$0x1]
      %v1807 = vld [vmem:[%s1563 + $0x18] sm:$0xf]
      %v1808 = vld [vmem:[%s1563 + $0x1c] sm:$0x1]
      %v1809 = vld [vmem:[%s1563 + $0x20] sm:$0xf]
      %v1810 = vld [vmem:[%s1563 + $0x24] sm:$0x1]
      %v1811 = vld [vmem:[%s1563 + $0x28] sm:$0xf]
      %v1812 = vld [vmem:[%s1563 + $0x2c] sm:$0x1]
      %v1813 = vld [vmem:[%s1563 + $0x30] sm:$0xf]
      %v1814 = vld [vmem:[%s1563 + $0x34] sm:$0x1]
      %v1815 = vld [vmem:[%s1563 + $0x38] sm:$0xf]
      %v1816 = vld [vmem:[%s1563 + $0x3c] sm:$0x1]
      %v1818 = vshrl.u32 %v1801, 16
      %v1820 = vrot.slane %v1818, 4
      %v1821 = vshll.u32 %v1801, 16
      %v1823 = vrot.slane %v1821, 5
      %v1824 = vor.u32 %v1820, %v1823
      %v1825 = vrot.slane %v1824, 4
      %v1827 = vshll.u32 %v1802, 16
      %v1829 = vrot.slane %v1827, 5
      %v1830 = vsel %vm420, %v1825, %v1829
      %v1832 = vshrl.u32 %v1803, 16
      %v1834 = vrot.slane %v1832, 4
      %v1835 = vshll.u32 %v1803, 16
      %v1837 = vrot.slane %v1835, 5
      %v1838 = vor.u32 %v1834, %v1837
      %v1839 = vrot.slane %v1838, 4
      %v1841 = vshll.u32 %v1804, 16
      %v1843 = vrot.slane %v1841, 5
      %v1844 = vsel %vm420, %v1839, %v1843
      %v1846 = vshrl.u32 %v1805, 16
      %v1848 = vrot.slane %v1846, 4
      %v1849 = vshll.u32 %v1805, 16
      %v1851 = vrot.slane %v1849, 5
      %v1852 = vor.u32 %v1848, %v1851
      %v1853 = vrot.slane %v1852, 4
      %v1855 = vshll.u32 %v1806, 16
      %v1857 = vrot.slane %v1855, 5
      %v1858 = vsel %vm420, %v1853, %v1857
      %v1860 = vshrl.u32 %v1807, 16
      %v1862 = vrot.slane %v1860, 4
      %v1863 = vshll.u32 %v1807, 16
      %v1865 = vrot.slane %v1863, 5
      %v1866 = vor.u32 %v1862, %v1865
      %v1867 = vrot.slane %v1866, 4
      %v1869 = vshll.u32 %v1808, 16
      %v1871 = vrot.slane %v1869, 5
      %v1872 = vsel %vm420, %v1867, %v1871
      %v1874 = vshrl.u32 %v1809, 16
      %v1876 = vrot.slane %v1874, 4
      %v1877 = vshll.u32 %v1809, 16
      %v1879 = vrot.slane %v1877, 5
      %v1880 = vor.u32 %v1876, %v1879
      %v1881 = vrot.slane %v1880, 4
      %v1883 = vshll.u32 %v1810, 16
      %v1885 = vrot.slane %v1883, 5
      %v1886 = vsel %vm420, %v1881, %v1885
      %v1888 = vshrl.u32 %v1811, 16
      %v1890 = vrot.slane %v1888, 4
      %v1891 = vshll.u32 %v1811, 16
      %v1893 = vrot.slane %v1891, 5
      %v1894 = vor.u32 %v1890, %v1893
      %v1895 = vrot.slane %v1894, 4
      %v1897 = vshll.u32 %v1812, 16
      %v1899 = vrot.slane %v1897, 5
      %v1900 = vsel %vm420, %v1895, %v1899
      %v1902 = vshrl.u32 %v1813, 16
      %v1904 = vrot.slane %v1902, 4
      %v1905 = vshll.u32 %v1813, 16
      %v1907 = vrot.slane %v1905, 5
      %v1908 = vor.u32 %v1904, %v1907
      %v1909 = vrot.slane %v1908, 4
      %v1911 = vshll.u32 %v1814, 16
      %v1913 = vrot.slane %v1911, 5
      %v1914 = vsel %vm420, %v1909, %v1913
      %v1916 = vshrl.u32 %v1815, 16
      %v1918 = vrot.slane %v1916, 4
      %v1919 = vshll.u32 %v1815, 16
      %v1921 = vrot.slane %v1919, 5
      %v1922 = vor.u32 %v1918, %v1921
      %v1923 = vrot.slane %v1922, 4
      %v1925 = vshll.u32 %v1816, 16
      %v1927 = vrot.slane %v1925, 5
      %v1928 = vsel %vm420, %v1923, %v1927
      %s1929 = scalar_lea.vmem %s1, 20
      %v1930 = vld [vmem:[%s1929] sm:$0x3]
      %v1931 = vunpack.c.l.b16 %v1830
      %v1932 = vunpack.c.l.b16 %v1844
      %v1933 = vunpack.c.l.b16 %v1858
      %v1934 = vunpack.c.l.b16 %v1872
      %v1935 = vunpack.c.l.b16 %v1886
      %v1936 = vunpack.c.l.b16 %v1900
      %v1937 = vunpack.c.l.b16 %v1914
      %v1938 = vunpack.c.l.b16 %v1928
      %v1939 = vpack.c.b16 %v1932, %v1931
      %v1940 = vpack.c.b16 %v1934, %v1933
      %v1941 = vpack.c.b16 %v1936, %v1935
      %v1942 = vpack.c.b16 %v1938, %v1937
      %v1944 = vsel %vm217, %v1939, 0
      %v1947 = vsel %vm217, %v1940, 0
      %v1950 = vsel %vm217, %v1941, 0
      %v1953 = vsel %vm217, %v1942, 0
      %v1956 = vand.u32 %v1930, %v233
      %1958 = vmatprep.subr.bf16.mxu0 0
      %1959 = vmatpush1.bf16.msra.mxu0 %v1956
      %1960 = vmatprep.subr.bf16.mxu0 0
      %1961 = vmatpush1.bf16.msra.mxu0 0
      %1962 = vmatprep.subr.bf16.mxu0 0
      %1963 = vmatpush1.bf16.msra.mxu0 0
      %1964 = vmatprep.subr.bf16.mxu0 0
      %1965 = vmatpush1.bf16.msra.mxu0 0
      %1966 = vmatprep.subr.bf16.mxu0 0
      %1967 = vmatpush1.bf16.msra.mxu0 0
      %1968 = vmatprep.subr.bf16.mxu0 0
      %1969 = vmatpush1.bf16.msra.mxu0 0
      %1970 = vmatprep.subr.bf16.mxu0 0
      %1971 = vmatpush1.bf16.msra.mxu0 0
      %1972 = vmatprep.subr.bf16.mxu0 0
      %1973 = vmatpush1.bf16.msra.mxu0 0
      %1974 = vmatprep.subr.bf16.mxu0 0
      %1975 = vmatpush1.bf16.msra.mxu0 0
      %1976 = vmatprep.subr.bf16.mxu0 0
      %1977 = vmatpush1.bf16.msra.mxu0 0
      %1978 = vmatprep.subr.bf16.mxu0 0
      %1979 = vmatpush1.bf16.msra.mxu0 0
      %1980 = vmatprep.subr.bf16.mxu0 0
      %1981 = vmatpush1.bf16.msra.mxu0 0
      %1982 = vmatprep.subr.bf16.mxu0 0
      %1983 = vmatpush1.bf16.msra.mxu0 0
      %1984 = vmatprep.subr.bf16.mxu0 0
      %1985 = vmatpush1.bf16.msra.mxu0 0
      %1986 = vmatprep.subr.bf16.mxu0 0
      %1987 = vmatpush1.bf16.msra.mxu0 0
      %1988 = vmatprep.subr.bf16.mxu0 0
      %1989 = vmatpush1.bf16.msra.mxu0 0
      %1990 = vmatprep.mubr.bf16.mxu0 0
      %1991 = vmatmul.mubr.bf16.gmra.mrb[0].mxu0 %v1944
      %v1992 = vpop.f32.mrb[0].mxu0
      %v1993 = vadd.f32 0.0, %v1992
      %v1994 = vpop.f32.mrb[0].mxu0
      %v1995 = vpop.f32.mrb[0].mxu0
      %v1996 = vadd.f32 0.0, %v1995
      %v1997 = vpop.f32.mrb[0].mxu0
      %1998 = vmatprep.mubr.bf16.mxu0 0
      %1999 = vmatmul.mubr.bf16.gmra.mrb[0].mxu0 %v1947
      %v2000 = vpop.f32.mrb[0].mxu0
      %v2001 = vadd.f32 0.0, %v2000
      %v2002 = vpop.f32.mrb[0].mxu0
      %v2003 = vpop.f32.mrb[0].mxu0
      %v2004 = vadd.f32 0.0, %v2003
      %v2005 = vpop.f32.mrb[0].mxu0
      %2006 = vmatprep.mubr.bf16.mxu0 0
      %2007 = vmatmul.mubr.bf16.gmra.mrb[0].mxu0 %v1950
      %v2008 = vpop.f32.mrb[0].mxu0
      %v2009 = vadd.f32 0.0, %v2008
      %v2010 = vpop.f32.mrb[0].mxu0
      %v2011 = vpop.f32.mrb[0].mxu0
      %v2012 = vadd.f32 0.0, %v2011
      %v2013 = vpop.f32.mrb[0].mxu0
      %2014 = vmatprep.mubr.bf16.mxu0 0
      %2015 = vmatmul.mubr.bf16.gmra.mrb[0].mxu0 %v1953
      %v2016 = vpop.f32.mrb[0].mxu0
      %v2017 = vadd.f32 0.0, %v2016
      %v2018 = vpop.f32.mrb[0].mxu0
      %v2019 = vpop.f32.mrb[0].mxu0
      %v2020 = vadd.f32 0.0, %v2019
      %v2021 = vpop.f32.mrb[0].mxu0
      %2022 = vdwg.mxu0
      %v2023 = vadd.f32 %v1793, %v1993
      %v2024 = vadd.f32 %v1794, %v1996
      %v2025 = vadd.f32 %v1795, %v2001
      %v2026 = vadd.f32 %v1796, %v2004
      %v2027 = vadd.f32 %v1797, %v2009
      %v2028 = vadd.f32 %v1798, %v2012
      %v2029 = vadd.f32 %v1799, %v2017
      %v2030 = vadd.f32 %v1800, %v2020
      %v2031 = vld [vmem:[%s1682] sm:$0xf]
      %v2032 = vld [vmem:[%s1682 + $0x4] sm:$0x1]
      %v2033 = vld [vmem:[%s1682 + $0x8] sm:$0xf]
      %v2034 = vld [vmem:[%s1682 + $0xc] sm:$0x1]
      %v2035 = vld [vmem:[%s1682 + $0x10] sm:$0xf]
      %v2036 = vld [vmem:[%s1682 + $0x14] sm:$0x1]
      %v2037 = vld [vmem:[%s1682 + $0x18] sm:$0xf]
      %v2038 = vld [vmem:[%s1682 + $0x1c] sm:$0x1]
      %v2039 = vld [vmem:[%s1682 + $0x20] sm:$0xf]
      %v2040 = vld [vmem:[%s1682 + $0x24] sm:$0x1]
      %v2041 = vld [vmem:[%s1682 + $0x28] sm:$0xf]
      %v2042 = vld [vmem:[%s1682 + $0x2c] sm:$0x1]
      %v2043 = vld [vmem:[%s1682 + $0x30] sm:$0xf]
      %v2044 = vld [vmem:[%s1682 + $0x34] sm:$0x1]
      %v2045 = vld [vmem:[%s1682 + $0x38] sm:$0xf]
      %v2046 = vld [vmem:[%s1682 + $0x3c] sm:$0x1]
      %v2048 = vshrl.u32 %v2031, 16
      %v2050 = vrot.slane %v2048, 4
      %v2051 = vshll.u32 %v2031, 16
      %v2053 = vrot.slane %v2051, 5
      %v2054 = vor.u32 %v2050, %v2053
      %v2055 = vrot.slane %v2054, 4
      %v2057 = vshll.u32 %v2032, 16
      %v2059 = vrot.slane %v2057, 5
      %v2060 = vsel %vm420, %v2055, %v2059
      %v2062 = vshrl.u32 %v2033, 16
      %v2064 = vrot.slane %v2062, 4
      %v2065 = vshll.u32 %v2033, 16
      %v2067 = vrot.slane %v2065, 5
      %v2068 = vor.u32 %v2064, %v2067
      %v2069 = vrot.slane %v2068, 4
      %v2071 = vshll.u32 %v2034, 16
      %v2073 = vrot.slane %v2071, 5
      %v2074 = vsel %vm420, %v2069, %v2073
      %v2076 = vshrl.u32 %v2035, 16
      %v2078 = vrot.slane %v2076, 4
      %v2079 = vshll.u32 %v2035, 16
      %v2081 = vrot.slane %v2079, 5
      %v2082 = vor.u32 %v2078, %v2081
      %v2083 = vrot.slane %v2082, 4
      %v2085 = vshll.u32 %v2036, 16
      %v2087 = vrot.slane %v2085, 5
      %v2088 = vsel %vm420, %v2083, %v2087
      %v2090 = vshrl.u32 %v2037, 16
      %v2092 = vrot.slane %v2090, 4
      %v2093 = vshll.u32 %v2037, 16
      %v2095 = vrot.slane %v2093, 5
      %v2096 = vor.u32 %v2092, %v2095
      %v2097 = vrot.slane %v2096, 4
      %v2099 = vshll.u32 %v2038, 16
      %v2101 = vrot.slane %v2099, 5
      %v2102 = vsel %vm420, %v2097, %v2101
      %v2104 = vshrl.u32 %v2039, 16
      %v2106 = vrot.slane %v2104, 4
      %v2107 = vshll.u32 %v2039, 16
      %v2109 = vrot.slane %v2107, 5
      %v2110 = vor.u32 %v2106, %v2109
      %v2111 = vrot.slane %v2110, 4
      %v2113 = vshll.u32 %v2040, 16
      %v2115 = vrot.slane %v2113, 5
      %v2116 = vsel %vm420, %v2111, %v2115
      %v2118 = vshrl.u32 %v2041, 16
      %v2120 = vrot.slane %v2118, 4
      %v2121 = vshll.u32 %v2041, 16
      %v2123 = vrot.slane %v2121, 5
      %v2124 = vor.u32 %v2120, %v2123
      %v2125 = vrot.slane %v2124, 4
      %v2127 = vshll.u32 %v2042, 16
      %v2129 = vrot.slane %v2127, 5
      %v2130 = vsel %vm420, %v2125, %v2129
      %v2132 = vshrl.u32 %v2043, 16
      %v2134 = vrot.slane %v2132, 4
      %v2135 = vshll.u32 %v2043, 16
      %v2137 = vrot.slane %v2135, 5
      %v2138 = vor.u32 %v2134, %v2137
      %v2139 = vrot.slane %v2138, 4
      %v2141 = vshll.u32 %v2044, 16
      %v2143 = vrot.slane %v2141, 5
      %v2144 = vsel %vm420, %v2139, %v2143
      %v2146 = vshrl.u32 %v2045, 16
      %v2148 = vrot.slane %v2146, 4
      %v2149 = vshll.u32 %v2045, 16
      %v2151 = vrot.slane %v2149, 5
      %v2152 = vor.u32 %v2148, %v2151
      %v2153 = vrot.slane %v2152, 4
      %v2155 = vshll.u32 %v2046, 16
      %v2157 = vrot.slane %v2155, 5
      %v2158 = vsel %vm420, %v2153, %v2157
      %s2159 = scalar_lea.vmem %s1, 22
      %v2160 = vld [vmem:[%s2159] sm:$0x3]
      %v2161 = vunpack.c.l.b16 %v2060
      %v2162 = vunpack.c.l.b16 %v2074
      %v2163 = vunpack.c.l.b16 %v2088
      %v2164 = vunpack.c.l.b16 %v2102
      %v2165 = vunpack.c.l.b16 %v2116
      %v2166 = vunpack.c.l.b16 %v2130
      %v2167 = vunpack.c.l.b16 %v2144
      %v2168 = vunpack.c.l.b16 %v2158
      %v2169 = vpack.c.b16 %v2162, %v2161
      %v2170 = vpack.c.b16 %v2164, %v2163
      %v2171 = vpack.c.b16 %v2166, %v2165
      %v2172 = vpack.c.b16 %v2168, %v2167
      %v2174 = vsel %vm217, %v2169, 0
      %v2177 = vsel %vm217, %v2170, 0
      %v2180 = vsel %vm217, %v2171, 0
      %v2183 = vsel %vm217, %v2172, 0
      %v2186 = vand.u32 %v2160, %v233
      %2188 = vmatprep.subr.bf16.mxu0 0
      %2189 = vmatpush1.bf16.msra.mxu0 %v2186
      %2190 = vmatprep.subr.bf16.mxu0 0
      %2191 = vmatpush1.bf16.msra.mxu0 0
      %2192 = vmatprep.subr.bf16.mxu0 0
      %2193 = vmatpush1.bf16.msra.mxu0 0
      %2194 = vmatprep.subr.bf16.mxu0 0
      %2195 = vmatpush1.bf16.msra.mxu0 0
      %2196 = vmatprep.subr.bf16.mxu0 0
      %2197 = vmatpush1.bf16.msra.mxu0 0
      %2198 = vmatprep.subr.bf16.mxu0 0
      %2199 = vmatpush1.bf16.msra.mxu0 0
      %2200 = vmatprep.subr.bf16.mxu0 0
      %2201 = vmatpush1.bf16.msra.mxu0 0
      %2202 = vmatprep.subr.bf16.mxu0 0
      %2203 = vmatpush1.bf16.msra.mxu0 0
      %2204 = vmatprep.subr.bf16.mxu0 0
      %2205 = vmatpush1.bf16.msra.mxu0 0
      %2206 = vmatprep.subr.bf16.mxu0 0
      %2207 = vmatpush1.bf16.msra.mxu0 0
      %2208 = vmatprep.subr.bf16.mxu0 0
      %2209 = vmatpush1.bf16.msra.mxu0 0
      %2210 = vmatprep.subr.bf16.mxu0 0
      %2211 = vmatpush1.bf16.msra.mxu0 0
      %2212 = vmatprep.subr.bf16.mxu0 0
      %2213 = vmatpush1.bf16.msra.mxu0 0
      %2214 = vmatprep.subr.bf16.mxu0 0
      %2215 = vmatpush1.bf16.msra.mxu0 0
      %2216 = vmatprep.subr.bf16.mxu0 0
      %2217 = vmatpush1.bf16.msra.mxu0 0
      %2218 = vmatprep.subr.bf16.mxu0 0
      %2219 = vmatpush1.bf16.msra.mxu0 0
      %2220 = vmatprep.mubr.bf16.mxu0 0
      %2221 = vmatmul.mubr.bf16.gmra.mrb[0].mxu0 %v2174
      %v2222 = vpop.f32.mrb[0].mxu0
      %v2223 = vadd.f32 0.0, %v2222
      %v2224 = vpop.f32.mrb[0].mxu0
      %v2225 = vpop.f32.mrb[0].mxu0
      %v2226 = vadd.f32 0.0, %v2225
      %v2227 = vpop.f32.mrb[0].mxu0
      %2228 = vmatprep.mubr.bf16.mxu0 0
      %2229 = vmatmul.mubr.bf16.gmra.mrb[0].mxu0 %v2177
      %v2230 = vpop.f32.mrb[0].mxu0
      %v2231 = vadd.f32 0.0, %v2230
      %v2232 = vpop.f32.mrb[0].mxu0
      %v2233 = vpop.f32.mrb[0].mxu0
      %v2234 = vadd.f32 0.0, %v2233
      %v2235 = vpop.f32.mrb[0].mxu0
      %2236 = vmatprep.mubr.bf16.mxu0 0
      %2237 = vmatmul.mubr.bf16.gmra.mrb[0].mxu0 %v2180
      %v2238 = vpop.f32.mrb[0].mxu0
      %v2239 = vadd.f32 0.0, %v2238
      %v2240 = vpop.f32.mrb[0].mxu0
      %v2241 = vpop.f32.mrb[0].mxu0
      %v2242 = vadd.f32 0.0, %v2241
      %v2243 = vpop.f32.mrb[0].mxu0
      %2244 = vmatprep.mubr.bf16.mxu0 0
      %2245 = vmatmul.mubr.bf16.gmra.mrb[0].mxu0 %v2183
      %v2246 = vpop.f32.mrb[0].mxu0
      %v2247 = vadd.f32 0.0, %v2246
      %v2248 = vpop.f32.mrb[0].mxu0
      %v2249 = vpop.f32.mrb[0].mxu0
      %v2250 = vadd.f32 0.0, %v2249
      %v2251 = vpop.f32.mrb[0].mxu0
      %2252 = vdwg.mxu0
      %v2253 = vadd.f32 %v2023, %v2223
      %v2254 = vadd.f32 %v2024, %v2226
      %v2255 = vadd.f32 %v2025, %v2231
      %v2256 = vadd.f32 %v2026, %v2234
      %v2257 = vadd.f32 %v2027, %v2239
      %v2258 = vadd.f32 %v2028, %v2242
      %v2259 = vadd.f32 %v2029, %v2247
      %v2260 = vadd.f32 %v2030, %v2250
      %s2261 = scalar_lea.vmem %s169, 152
      %v2262 = vld [vmem:[%s2261] sm:$0xf]
      %v2263 = vld [vmem:[%s2261 + $0x8] sm:$0xf]
      %v2264 = vld [vmem:[%s2261 + $0x10] sm:$0xf]
      %v2265 = vld [vmem:[%s2261 + $0x18] sm:$0xf]
      %v2266 = vld [vmem:[%s2261 + $0x20] sm:$0xf]
      %v2267 = vld [vmem:[%s2261 + $0x28] sm:$0xf]
      %v2268 = vld [vmem:[%s2261 + $0x30] sm:$0xf]
      %v2269 = vld [vmem:[%s2261 + $0x38] sm:$0xf]
      %s2270 = scalar_lea.vmem %s1, 24
      %v2271 = vld [vmem:[%s2270] sm:$0x3]
      %v2280 = vunpack.c.l.b16 %v2262
      %v2281 = vunpack.c.l.b16 %v2263
      %v2282 = vunpack.c.l.b16 %v2264
      %v2283 = vunpack.c.l.b16 %v2265
      %v2284 = vunpack.c.l.b16 %v2266
      %v2285 = vunpack.c.l.b16 %v2267
      %v2286 = vunpack.c.l.b16 %v2268
      %v2287 = vunpack.c.l.b16 %v2269
      %v2288 = vpack.c.b16 %v2281, %v2280
      %v2289 = vpack.c.b16 %v2283, %v2282
      %v2290 = vpack.c.b16 %v2285, %v2284
      %v2291 = vpack.c.b16 %v2287, %v2286
      %v2293 = vsel %vm217, %v2288, 0
      %v2296 = vsel %vm217, %v2289, 0
      %v2299 = vsel %vm217, %v2290, 0
      %v2302 = vsel %vm217, %v2291, 0
      %v2305 = vand.u32 %v2271, %v233
      %2307 = vmatprep.subr.bf16.mxu0 0
      %2308 = vmatpush1.bf16.msra.mxu0 %v2305
      %2309 = vmatprep.subr.bf16.mxu0 0
      %2310 = vmatpush1.bf16.msra.mxu0 0
      %2311 = vmatprep.subr.bf16.mxu0 0
      %2312 = vmatpush1.bf16.msra.mxu0 0
      %2313 = vmatprep.subr.bf16.mxu0 0
      %2314 = vmatpush1.bf16.msra.mxu0 0
      %2315 = vmatprep.subr.bf16.mxu0 0
      %2316 = vmatpush1.bf16.msra.mxu0 0
      %2317 = vmatprep.subr.bf16.mxu0 0
      %2318 = vmatpush1.bf16.msra.mxu0 0
      %2319 = vmatprep.subr.bf16.mxu0 0
      %2320 = vmatpush1.bf16.msra.mxu0 0
      %2321 = vmatprep.subr.bf16.mxu0 0
      %2322 = vmatpush1.bf16.msra.mxu0 0
      %2323 = vmatprep.subr.bf16.mxu0 0
      %2324 = vmatpush1.bf16.msra.mxu0 0
      %2325 = vmatprep.subr.bf16.mxu0 0
      %2326 = vmatpush1.bf16.msra.mxu0 0
      %2327 = vmatprep.subr.bf16.mxu0 0
      %2328 = vmatpush1.bf16.msra.mxu0 0
      %2329 = vmatprep.subr.bf16.mxu0 0
      %2330 = vmatpush1.bf16.msra.mxu0 0
      %2331 = vmatprep.subr.bf16.mxu0 0
      %2332 = vmatpush1.bf16.msra.mxu0 0
      %2333 = vmatprep.subr.bf16.mxu0 0
      %2334 = vmatpush1.bf16.msra.mxu0 0
      %2335 = vmatprep.subr.bf16.mxu0 0
      %2336 = vmatpush1.bf16.msra.mxu0 0
      %2337 = vmatprep.subr.bf16.mxu0 0
      %2338 = vmatpush1.bf16.msra.mxu0 0
      %2339 = vmatprep.mubr.bf16.mxu0 0
      %2340 = vmatmul.mubr.bf16.gmra.mrb[0].mxu0 %v2293
      %v2341 = vpop.f32.mrb[0].mxu0
      %v2342 = vadd.f32 0.0, %v2341
      %v2343 = vpop.f32.mrb[0].mxu0
      %v2344 = vpop.f32.mrb[0].mxu0
      %v2345 = vadd.f32 0.0, %v2344
      %v2346 = vpop.f32.mrb[0].mxu0
      %2347 = vmatprep.mubr.bf16.mxu0 0
      %2348 = vmatmul.mubr.bf16.gmra.mrb[0].mxu0 %v2296
      %v2349 = vpop.f32.mrb[0].mxu0
      %v2350 = vadd.f32 0.0, %v2349
      %v2351 = vpop.f32.mrb[0].mxu0
      %v2352 = vpop.f32.mrb[0].mxu0
      %v2353 = vadd.f32 0.0, %v2352
      %v2354 = vpop.f32.mrb[0].mxu0
      %2355 = vmatprep.mubr.bf16.mxu0 0
      %2356 = vmatmul.mubr.bf16.gmra.mrb[0].mxu0 %v2299
      %v2357 = vpop.f32.mrb[0].mxu0
      %v2358 = vadd.f32 0.0, %v2357
      %v2359 = vpop.f32.mrb[0].mxu0
      %v2360 = vpop.f32.mrb[0].mxu0
      %v2361 = vadd.f32 0.0, %v2360
      %v2362 = vpop.f32.mrb[0].mxu0
      %2363 = vmatprep.mubr.bf16.mxu0 0
      %2364 = vmatmul.mubr.bf16.gmra.mrb[0].mxu0 %v2302
      %v2365 = vpop.f32.mrb[0].mxu0
      %v2366 = vadd.f32 0.0, %v2365
      %v2367 = vpop.f32.mrb[0].mxu0
      %v2368 = vpop.f32.mrb[0].mxu0
      %v2369 = vadd.f32 0.0, %v2368
      %v2370 = vpop.f32.mrb[0].mxu0
      %2371 = vdwg.mxu0
      %v2372 = vadd.f32 %v2253, %v2342
      %v2373 = vadd.f32 %v2254, %v2345
      %v2374 = vadd.f32 %v2255, %v2350
      %v2375 = vadd.f32 %v2256, %v2353
      %v2376 = vadd.f32 %v2257, %v2358
      %v2377 = vadd.f32 %v2258, %v2361
      %v2378 = vadd.f32 %v2259, %v2366
      %v2379 = vadd.f32 %v2260, %v2369
      %s2380 = scalar_lea.vmem %s169, 224
      %v2381 = vld [vmem:[%s2380] sm:$0xf]
      %v2382 = vld [vmem:[%s2380 + $0x8] sm:$0xf]
      %v2383 = vld [vmem:[%s2380 + $0x10] sm:$0xf]
      %v2384 = vld [vmem:[%s2380 + $0x18] sm:$0xf]
      %v2385 = vld [vmem:[%s2380 + $0x20] sm:$0xf]
      %v2386 = vld [vmem:[%s2380 + $0x28] sm:$0xf]
      %v2387 = vld [vmem:[%s2380 + $0x30] sm:$0xf]
      %v2388 = vld [vmem:[%s2380 + $0x38] sm:$0xf]
      %s2389 = scalar_lea.vmem %s1, 26
      %v2390 = vld [vmem:[%s2389] sm:$0x3]
      %v2399 = vunpack.c.l.b16 %v2381
      %v2400 = vunpack.c.l.b16 %v2382
      %v2401 = vunpack.c.l.b16 %v2383
      %v2402 = vunpack.c.l.b16 %v2384
      %v2403 = vunpack.c.l.b16 %v2385
      %v2404 = vunpack.c.l.b16 %v2386
      %v2405 = vunpack.c.l.b16 %v2387
      %v2406 = vunpack.c.l.b16 %v2388
      %v2407 = vpack.c.b16 %v2400, %v2399
      %v2408 = vpack.c.b16 %v2402, %v2401
      %v2409 = vpack.c.b16 %v2404, %v2403
      %v2410 = vpack.c.b16 %v2406, %v2405
      %v2412 = vsel %vm217, %v2407, 0
      %v2415 = vsel %vm217, %v2408, 0
      %v2418 = vsel %vm217, %v2409, 0
      %v2421 = vsel %vm217, %v2410, 0
      %v2424 = vand.u32 %v2390, %v233
      %2426 = vmatprep.subr.bf16.mxu0 0
      %2427 = vmatpush1.bf16.msra.mxu0 %v2424
      %2428 = vmatprep.subr.bf16.mxu0 0
      %2429 = vmatpush1.bf16.msra.mxu0 0
      %2430 = vmatprep.subr.bf16.mxu0 0
      %2431 = vmatpush1.bf16.msra.mxu0 0
      %2432 = vmatprep.subr.bf16.mxu0 0
      %2433 = vmatpush1.bf16.msra.mxu0 0
      %2434 = vmatprep.subr.bf16.mxu0 0
      %2435 = vmatpush1.bf16.msra.mxu0 0
      %2436 = vmatprep.subr.bf16.mxu0 0
      %2437 = vmatpush1.bf16.msra.mxu0 0
      %2438 = vmatprep.subr.bf16.mxu0 0
      %2439 = vmatpush1.bf16.msra.mxu0 0
      %2440 = vmatprep.subr.bf16.mxu0 0
      %2441 = vmatpush1.bf16.msra.mxu0 0
      %2442 = vmatprep.subr.bf16.mxu0 0
      %2443 = vmatpush1.bf16.msra.mxu0 0
      %2444 = vmatprep.subr.bf16.mxu0 0
      %2445 = vmatpush1.bf16.msra.mxu0 0
      %2446 = vmatprep.subr.bf16.mxu0 0
      %2447 = vmatpush1.bf16.msra.mxu0 0
      %2448 = vmatprep.subr.bf16.mxu0 0
      %2449 = vmatpush1.bf16.msra.mxu0 0
      %2450 = vmatprep.subr.bf16.mxu0 0
      %2451 = vmatpush1.bf16.msra.mxu0 0
      %2452 = vmatprep.subr.bf16.mxu0 0
      %2453 = vmatpush1.bf16.msra.mxu0 0
      %2454 = vmatprep.subr.bf16.mxu0 0
      %2455 = vmatpush1.bf16.msra.mxu0 0
      %2456 = vmatprep.subr.bf16.mxu0 0
      %2457 = vmatpush1.bf16.msra.mxu0 0
      %2458 = vmatprep.mubr.bf16.mxu0 0
      %2459 = vmatmul.mubr.bf16.gmra.mrb[0].mxu0 %v2412
      %v2460 = vpop.f32.mrb[0].mxu0
      %v2461 = vadd.f32 0.0, %v2460
      %v2462 = vpop.f32.mrb[0].mxu0
      %v2463 = vpop.f32.mrb[0].mxu0
      %v2464 = vadd.f32 0.0, %v2463
      %v2465 = vpop.f32.mrb[0].mxu0
      %2466 = vmatprep.mubr.bf16.mxu0 0
      %2467 = vmatmul.mubr.bf16.gmra.mrb[0].mxu0 %v2415
      %v2468 = vpop.f32.mrb[0].mxu0
      %v2469 = vadd.f32 0.0, %v2468
      %v2470 = vpop.f32.mrb[0].mxu0
      %v2471 = vpop.f32.mrb[0].mxu0
      %v2472 = vadd.f32 0.0, %v2471
      %v2473 = vpop.f32.mrb[0].mxu0
      %2474 = vmatprep.mubr.bf16.mxu0 0
      %2475 = vmatmul.mubr.bf16.gmra.mrb[0].mxu0 %v2418
      %v2476 = vpop.f32.mrb[0].mxu0
      %v2477 = vadd.f32 0.0, %v2476
      %v2478 = vpop.f32.mrb[0].mxu0
      %v2479 = vpop.f32.mrb[0].mxu0
      %v2480 = vadd.f32 0.0, %v2479
      %v2481 = vpop.f32.mrb[0].mxu0
      %2482 = vmatprep.mubr.bf16.mxu0 0
      %2483 = vmatmul.mubr.bf16.gmra.mrb[0].mxu0 %v2421
      %v2484 = vpop.f32.mrb[0].mxu0
      %v2485 = vadd.f32 0.0, %v2484
      %v2486 = vpop.f32.mrb[0].mxu0
      %v2487 = vpop.f32.mrb[0].mxu0
      %v2488 = vadd.f32 0.0, %v2487
      %v2489 = vpop.f32.mrb[0].mxu0
      %2490 = vdwg.mxu0
      %v2491 = vadd.f32 %v2372, %v2461
      %v2492 = vadd.f32 %v2373, %v2464
      %v2493 = vadd.f32 %v2374, %v2469
      %v2494 = vadd.f32 %v2375, %v2472
      %v2495 = vadd.f32 %v2376, %v2477
      %v2496 = vadd.f32 %v2377, %v2480
      %v2497 = vadd.f32 %v2378, %v2485
      %v2498 = vadd.f32 %v2379, %v2488
      %v2499 = vld [vmem:[%s2261] sm:$0xf]
      %v2500 = vld [vmem:[%s2261 + $0x4] sm:$0x1]
      %v2501 = vld [vmem:[%s2261 + $0x8] sm:$0xf]
      %v2502 = vld [vmem:[%s2261 + $0xc] sm:$0x1]
      %v2503 = vld [vmem:[%s2261 + $0x10] sm:$0xf]
      %v2504 = vld [vmem:[%s2261 + $0x14] sm:$0x1]
      %v2505 = vld [vmem:[%s2261 + $0x18] sm:$0xf]
      %v2506 = vld [vmem:[%s2261 + $0x1c] sm:$0x1]
      %v2507 = vld [vmem:[%s2261 + $0x20] sm:$0xf]
      %v2508 = vld [vmem:[%s2261 + $0x24] sm:$0x1]
      %v2509 = vld [vmem:[%s2261 + $0x28] sm:$0xf]
      %v2510 = vld [vmem:[%s2261 + $0x2c] sm:$0x1]
      %v2511 = vld [vmem:[%s2261 + $0x30] sm:$0xf]
      %v2512 = vld [vmem:[%s2261 + $0x34] sm:$0x1]
      %v2513 = vld [vmem:[%s2261 + $0x38] sm:$0xf]
      %v2514 = vld [vmem:[%s2261 + $0x3c] sm:$0x1]
      %v2516 = vshrl.u32 %v2499, 16
      %v2518 = vrot.slane %v2516, 4
      %v2519 = vshll.u32 %v2499, 16
      %v2521 = vrot.slane %v2519, 5
      %v2522 = vor.u32 %v2518, %v2521
      %v2523 = vrot.slane %v2522, 4
      %v2525 = vshll.u32 %v2500, 16
      %v2527 = vrot.slane %v2525, 5
      %v2528 = vsel %vm420, %v2523, %v2527
      %v2530 = vshrl.u32 %v2501, 16
      %v2532 = vrot.slane %v2530, 4
      %v2533 = vshll.u32 %v2501, 16
      %v2535 = vrot.slane %v2533, 5
      %v2536 = vor.u32 %v2532, %v2535
      %v2537 = vrot.slane %v2536, 4
      %v2539 = vshll.u32 %v2502, 16
      %v2541 = vrot.slane %v2539, 5
      %v2542 = vsel %vm420, %v2537, %v2541
      %v2544 = vshrl.u32 %v2503, 16
      %v2546 = vrot.slane %v2544, 4
      %v2547 = vshll.u32 %v2503, 16
      %v2549 = vrot.slane %v2547, 5
      %v2550 = vor.u32 %v2546, %v2549
      %v2551 = vrot.slane %v2550, 4
      %v2553 = vshll.u32 %v2504, 16
      %v2555 = vrot.slane %v2553, 5
      %v2556 = vsel %vm420, %v2551, %v2555
      %v2558 = vshrl.u32 %v2505, 16
      %v2560 = vrot.slane %v2558, 4
      %v2561 = vshll.u32 %v2505, 16
      %v2563 = vrot.slane %v2561, 5
      %v2564 = vor.u32 %v2560, %v2563
      %v2565 = vrot.slane %v2564, 4
      %v2567 = vshll.u32 %v2506, 16
      %v2569 = vrot.slane %v2567, 5
      %v2570 = vsel %vm420, %v2565, %v2569
      %v2572 = vshrl.u32 %v2507, 16
      %v2574 = vrot.slane %v2572, 4
      %v2575 = vshll.u32 %v2507, 16
      %v2577 = vrot.slane %v2575, 5
      %v2578 = vor.u32 %v2574, %v2577
      %v2579 = vrot.slane %v2578, 4
      %v2581 = vshll.u32 %v2508, 16
      %v2583 = vrot.slane %v2581, 5
      %v2584 = vsel %vm420, %v2579, %v2583
      %v2586 = vshrl.u32 %v2509, 16
      %v2588 = vrot.slane %v2586, 4
      %v2589 = vshll.u32 %v2509, 16
      %v2591 = vrot.slane %v2589, 5
      %v2592 = vor.u32 %v2588, %v2591
      %v2593 = vrot.slane %v2592, 4
      %v2595 = vshll.u32 %v2510, 16
      %v2597 = vrot.slane %v2595, 5
      %v2598 = vsel %vm420, %v2593, %v2597
      %v2600 = vshrl.u32 %v2511, 16
      %v2602 = vrot.slane %v2600, 4
      %v2603 = vshll.u32 %v2511, 16
      %v2605 = vrot.slane %v2603, 5
      %v2606 = vor.u32 %v2602, %v2605
      %v2607 = vrot.slane %v2606, 4
      %v2609 = vshll.u32 %v2512, 16
      %v2611 = vrot.slane %v2609, 5
      %v2612 = vsel %vm420, %v2607, %v2611
      %v2614 = vshrl.u32 %v2513, 16
      %v2616 = vrot.slane %v2614, 4
      %v2617 = vshll.u32 %v2513, 16
      %v2619 = vrot.slane %v2617, 5
      %v2620 = vor.u32 %v2616, %v2619
      %v2621 = vrot.slane %v2620, 4
      %v2623 = vshll.u32 %v2514, 16
      %v2625 = vrot.slane %v2623, 5
      %v2626 = vsel %vm420, %v2621, %v2625
      %s2627 = scalar_lea.vmem %s1, 28
      %v2628 = vld [vmem:[%s2627] sm:$0x3]
      %v2629 = vunpack.c.l.b16 %v2528
      %v2630 = vunpack.c.l.b16 %v2542
      %v2631 = vunpack.c.l.b16 %v2556
      %v2632 = vunpack.c.l.b16 %v2570
      %v2633 = vunpack.c.l.b16 %v2584
      %v2634 = vunpack.c.l.b16 %v2598
      %v2635 = vunpack.c.l.b16 %v2612
      %v2636 = vunpack.c.l.b16 %v2626
      %v2637 = vpack.c.b16 %v2630, %v2629
      %v2638 = vpack.c.b16 %v2632, %v2631
      %v2639 = vpack.c.b16 %v2634, %v2633
      %v2640 = vpack.c.b16 %v2636, %v2635
      %v2642 = vsel %vm217, %v2637, 0
      %v2645 = vsel %vm217, %v2638, 0
      %v2648 = vsel %vm217, %v2639, 0
      %v2651 = vsel %vm217, %v2640, 0
      %v2654 = vand.u32 %v2628, %v233
      %2656 = vmatprep.subr.bf16.mxu0 0
      %2657 = vmatpush1.bf16.msra.mxu0 %v2654
      %2658 = vmatprep.subr.bf16.mxu0 0
      %2659 = vmatpush1.bf16.msra.mxu0 0
      %2660 = vmatprep.subr.bf16.mxu0 0
      %2661 = vmatpush1.bf16.msra.mxu0 0
      %2662 = vmatprep.subr.bf16.mxu0 0
      %2663 = vmatpush1.bf16.msra.mxu0 0
      %2664 = vmatprep.subr.bf16.mxu0 0
      %2665 = vmatpush1.bf16.msra.mxu0 0
      %2666 = vmatprep.subr.bf16.mxu0 0
      %2667 = vmatpush1.bf16.msra.mxu0 0
      %2668 = vmatprep.subr.bf16.mxu0 0
      %2669 = vmatpush1.bf16.msra.mxu0 0
      %2670 = vmatprep.subr.bf16.mxu0 0
      %2671 = vmatpush1.bf16.msra.mxu0 0
      %2672 = vmatprep.subr.bf16.mxu0 0
      %2673 = vmatpush1.bf16.msra.mxu0 0
      %2674 = vmatprep.subr.bf16.mxu0 0
      %2675 = vmatpush1.bf16.msra.mxu0 0
      %2676 = vmatprep.subr.bf16.mxu0 0
      %2677 = vmatpush1.bf16.msra.mxu0 0
      %2678 = vmatprep.subr.bf16.mxu0 0
      %2679 = vmatpush1.bf16.msra.mxu0 0
      %2680 = vmatprep.subr.bf16.mxu0 0
      %2681 = vmatpush1.bf16.msra.mxu0 0
      %2682 = vmatprep.subr.bf16.mxu0 0
      %2683 = vmatpush1.bf16.msra.mxu0 0
      %2684 = vmatprep.subr.bf16.mxu0 0
      %2685 = vmatpush1.bf16.msra.mxu0 0
      %2686 = vmatprep.subr.bf16.mxu0 0
      %2687 = vmatpush1.bf16.msra.mxu0 0
      %2688 = vmatprep.mubr.bf16.mxu0 0
      %2689 = vmatmul.mubr.bf16.gmra.mrb[0].mxu0 %v2642
      %v2690 = vpop.f32.mrb[0].mxu0
      %v2691 = vadd.f32 0.0, %v2690
      %v2692 = vpop.f32.mrb[0].mxu0
      %v2693 = vpop.f32.mrb[0].mxu0
      %v2694 = vadd.f32 0.0, %v2693
      %v2695 = vpop.f32.mrb[0].mxu0
      %2696 = vmatprep.mubr.bf16.mxu0 0
      %2697 = vmatmul.mubr.bf16.gmra.mrb[0].mxu0 %v2645
      %v2698 = vpop.f32.mrb[0].mxu0
      %v2699 = vadd.f32 0.0, %v2698
      %v2700 = vpop.f32.mrb[0].mxu0
      %v2701 = vpop.f32.mrb[0].mxu0
      %v2702 = vadd.f32 0.0, %v2701
      %v2703 = vpop.f32.mrb[0].mxu0
      %2704 = vmatprep.mubr.bf16.mxu0 0
      %2705 = vmatmul.mubr.bf16.gmra.mrb[0].mxu0 %v2648
      %v2706 = vpop.f32.mrb[0].mxu0
      %v2707 = vadd.f32 0.0, %v2706
      %v2708 = vpop.f32.mrb[0].mxu0
      %v2709 = vpop.f32.mrb[0].mxu0
      %v2710 = vadd.f32 0.0, %v2709
      %v2711 = vpop.f32.mrb[0].mxu0
      %2712 = vmatprep.mubr.bf16.mxu0 0
      %2713 = vmatmul.mubr.bf16.gmra.mrb[0].mxu0 %v2651
      %v2714 = vpop.f32.mrb[0].mxu0
      %v2715 = vadd.f32 0.0, %v2714
      %v2716 = vpop.f32.mrb[0].mxu0
      %v2717 = vpop.f32.mrb[0].mxu0
      %v2718 = vadd.f32 0.0, %v2717
      %v2719 = vpop.f32.mrb[0].mxu0
      %2720 = vdwg.mxu0
      %v2721 = vadd.f32 %v2491, %v2691
      %v2722 = vadd.f32 %v2492, %v2694
      %v2723 = vadd.f32 %v2493, %v2699
      %v2724 = vadd.f32 %v2494, %v2702
      %v2725 = vadd.f32 %v2495, %v2707
      %v2726 = vadd.f32 %v2496, %v2710
      %v2727 = vadd.f32 %v2497, %v2715
      %v2728 = vadd.f32 %v2498, %v2718
      %v2729 = vld [vmem:[%s2380] sm:$0xf]
      %v2730 = vld [vmem:[%s2380 + $0x4] sm:$0x1]
      %v2731 = vld [vmem:[%s2380 + $0x8] sm:$0xf]
      %v2732 = vld [vmem:[%s2380 + $0xc] sm:$0x1]
      %v2733 = vld [vmem:[%s2380 + $0x10] sm:$0xf]
      %v2734 = vld [vmem:[%s2380 + $0x14] sm:$0x1]
      %v2735 = vld [vmem:[%s2380 + $0x18] sm:$0xf]
      %v2736 = vld [vmem:[%s2380 + $0x1c] sm:$0x1]
      %v2737 = vld [vmem:[%s2380 + $0x20] sm:$0xf]
      %v2738 = vld [vmem:[%s2380 + $0x24] sm:$0x1]
      %v2739 = vld [vmem:[%s2380 + $0x28] sm:$0xf]
      %v2740 = vld [vmem:[%s2380 + $0x2c] sm:$0x1]
      %v2741 = vld [vmem:[%s2380 + $0x30] sm:$0xf]
      %v2742 = vld [vmem:[%s2380 + $0x34] sm:$0x1]
      %v2743 = vld [vmem:[%s2380 + $0x38] sm:$0xf]
      %v2744 = vld [vmem:[%s2380 + $0x3c] sm:$0x1]
      %v2746 = vshrl.u32 %v2729, 16
      %v2748 = vrot.slane %v2746, 4
      %v2749 = vshll.u32 %v2729, 16
      %v2751 = vrot.slane %v2749, 5
      %v2752 = vor.u32 %v2748, %v2751
      %v2753 = vrot.slane %v2752, 4
      %v2755 = vshll.u32 %v2730, 16
      %v2757 = vrot.slane %v2755, 5
      %v2758 = vsel %vm420, %v2753, %v2757
      %v2760 = vshrl.u32 %v2731, 16
      %v2762 = vrot.slane %v2760, 4
      %v2763 = vshll.u32 %v2731, 16
      %v2765 = vrot.slane %v2763, 5
      %v2766 = vor.u32 %v2762, %v2765
      %v2767 = vrot.slane %v2766, 4
      %v2769 = vshll.u32 %v2732, 16
      %v2771 = vrot.slane %v2769, 5
      %v2772 = vsel %vm420, %v2767, %v2771
      %v2774 = vshrl.u32 %v2733, 16
      %v2776 = vrot.slane %v2774, 4
      %v2777 = vshll.u32 %v2733, 16
      %v2779 = vrot.slane %v2777, 5
      %v2780 = vor.u32 %v2776, %v2779
      %v2781 = vrot.slane %v2780, 4
      %v2783 = vshll.u32 %v2734, 16
      %v2785 = vrot.slane %v2783, 5
      %v2786 = vsel %vm420, %v2781, %v2785
      %v2788 = vshrl.u32 %v2735, 16
      %v2790 = vrot.slane %v2788, 4
      %v2791 = vshll.u32 %v2735, 16
      %v2793 = vrot.slane %v2791, 5
      %v2794 = vor.u32 %v2790, %v2793
      %v2795 = vrot.slane %v2794, 4
      %v2797 = vshll.u32 %v2736, 16
      %v2799 = vrot.slane %v2797, 5
      %v2800 = vsel %vm420, %v2795, %v2799
      %v2802 = vshrl.u32 %v2737, 16
      %v2804 = vrot.slane %v2802, 4
      %v2805 = vshll.u32 %v2737, 16
      %v2807 = vrot.slane %v2805, 5
      %v2808 = vor.u32 %v2804, %v2807
      %v2809 = vrot.slane %v2808, 4
      %v2811 = vshll.u32 %v2738, 16
      %v2813 = vrot.slane %v2811, 5
      %v2814 = vsel %vm420, %v2809, %v2813
      %v2816 = vshrl.u32 %v2739, 16
      %v2818 = vrot.slane %v2816, 4
      %v2819 = vshll.u32 %v2739, 16
      %v2821 = vrot.slane %v2819, 5
      %v2822 = vor.u32 %v2818, %v2821
      %v2823 = vrot.slane %v2822, 4
      %v2825 = vshll.u32 %v2740, 16
      %v2827 = vrot.slane %v2825, 5
      %v2828 = vsel %vm420, %v2823, %v2827
      %v2830 = vshrl.u32 %v2741, 16
      %v2832 = vrot.slane %v2830, 4
      %v2833 = vshll.u32 %v2741, 16
      %v2835 = vrot.slane %v2833, 5
      %v2836 = vor.u32 %v2832, %v2835
      %v2837 = vrot.slane %v2836, 4
      %v2839 = vshll.u32 %v2742, 16
      %v2841 = vrot.slane %v2839, 5
      %v2842 = vsel %vm420, %v2837, %v2841
      %v2844 = vshrl.u32 %v2743, 16
      %v2846 = vrot.slane %v2844, 4
      %v2847 = vshll.u32 %v2743, 16
      %v2849 = vrot.slane %v2847, 5
      %v2850 = vor.u32 %v2846, %v2849
      %v2851 = vrot.slane %v2850, 4
      %v2853 = vshll.u32 %v2744, 16
      %v2855 = vrot.slane %v2853, 5
      %v2856 = vsel %vm420, %v2851, %v2855
      %s2857 = scalar_lea.vmem %s1, 30
      %v2858 = vld [vmem:[%s2857] sm:$0x3]
      %v2859 = vunpack.c.l.b16 %v2758
      %v2860 = vunpack.c.l.b16 %v2772
      %v2861 = vunpack.c.l.b16 %v2786
      %v2862 = vunpack.c.l.b16 %v2800
      %v2863 = vunpack.c.l.b16 %v2814
      %v2864 = vunpack.c.l.b16 %v2828
      %v2865 = vunpack.c.l.b16 %v2842
      %v2866 = vunpack.c.l.b16 %v2856
      %v2867 = vpack.c.b16 %v2860, %v2859
      %v2868 = vpack.c.b16 %v2862, %v2861
      %v2869 = vpack.c.b16 %v2864, %v2863
      %v2870 = vpack.c.b16 %v2866, %v2865
      %v2872 = vsel %vm217, %v2867, 0
      %v2875 = vsel %vm217, %v2868, 0
      %v2878 = vsel %vm217, %v2869, 0
      %v2881 = vsel %vm217, %v2870, 0
      %v2884 = vand.u32 %v2858, %v233
      %2886 = vmatprep.subr.bf16.mxu0 0
      %2887 = vmatpush1.bf16.msra.mxu0 %v2884
      %2888 = vmatprep.subr.bf16.mxu0 0
      %2889 = vmatpush1.bf16.msra.mxu0 0
      %2890 = vmatprep.subr.bf16.mxu0 0
      %2891 = vmatpush1.bf16.msra.mxu0 0
      %2892 = vmatprep.subr.bf16.mxu0 0
      %2893 = vmatpush1.bf16.msra.mxu0 0
      %2894 = vmatprep.subr.bf16.mxu0 0
      %2895 = vmatpush1.bf16.msra.mxu0 0
      %2896 = vmatprep.subr.bf16.mxu0 0
      %2897 = vmatpush1.bf16.msra.mxu0 0
      %2898 = vmatprep.subr.bf16.mxu0 0
      %2899 = vmatpush1.bf16.msra.mxu0 0
      %2900 = vmatprep.subr.bf16.mxu0 0
      %2901 = vmatpush1.bf16.msra.mxu0 0
      %2902 = vmatprep.subr.bf16.mxu0 0
      %2903 = vmatpush1.bf16.msra.mxu0 0
      %2904 = vmatprep.subr.bf16.mxu0 0
      %2905 = vmatpush1.bf16.msra.mxu0 0
      %2906 = vmatprep.subr.bf16.mxu0 0
      %2907 = vmatpush1.bf16.msra.mxu0 0
      %2908 = vmatprep.subr.bf16.mxu0 0
      %2909 = vmatpush1.bf16.msra.mxu0 0
      %2910 = vmatprep.subr.bf16.mxu0 0
      %2911 = vmatpush1.bf16.msra.mxu0 0
      %2912 = vmatprep.subr.bf16.mxu0 0
      %2913 = vmatpush1.bf16.msra.mxu0 0
      %2914 = vmatprep.subr.bf16.mxu0 0
      %2915 = vmatpush1.bf16.msra.mxu0 0
      %2916 = vmatprep.subr.bf16.mxu0 0
      %2917 = vmatpush1.bf16.msra.mxu0 0
      %2918 = vmatprep.mubr.bf16.mxu0 0
      %2919 = vmatmul.mubr.bf16.gmra.mrb[0].mxu0 %v2872
      %v2920 = vpop.f32.mrb[0].mxu0
      %v2921 = vadd.f32 0.0, %v2920
      %v2922 = vpop.f32.mrb[0].mxu0
      %v2923 = vpop.f32.mrb[0].mxu0
      %v2924 = vadd.f32 0.0, %v2923
      %v2925 = vpop.f32.mrb[0].mxu0
      %2926 = vmatprep.mubr.bf16.mxu0 0
      %2927 = vmatmul.mubr.bf16.gmra.mrb[0].mxu0 %v2875
      %v2928 = vpop.f32.mrb[0].mxu0
      %v2929 = vadd.f32 0.0, %v2928
      %v2930 = vpop.f32.mrb[0].mxu0
      %v2931 = vpop.f32.mrb[0].mxu0
      %v2932 = vadd.f32 0.0, %v2931
      %v2933 = vpop.f32.mrb[0].mxu0
      %2934 = vmatprep.mubr.bf16.mxu0 0
      %2935 = vmatmul.mubr.bf16.gmra.mrb[0].mxu0 %v2878
      %v2936 = vpop.f32.mrb[0].mxu0
      %v2937 = vadd.f32 0.0, %v2936
      %v2938 = vpop.f32.mrb[0].mxu0
      %v2939 = vpop.f32.mrb[0].mxu0
      %v2940 = vadd.f32 0.0, %v2939
      %v2941 = vpop.f32.mrb[0].mxu0
      %2942 = vmatprep.mubr.bf16.mxu0 0
      %2943 = vmatmul.mubr.bf16.gmra.mrb[0].mxu0 %v2881
      %v2944 = vpop.f32.mrb[0].mxu0
      %v2945 = vadd.f32 0.0, %v2944
      %v2946 = vpop.f32.mrb[0].mxu0
      %v2947 = vpop.f32.mrb[0].mxu0
      %v2948 = vadd.f32 0.0, %v2947
      %v2949 = vpop.f32.mrb[0].mxu0
      %2950 = vdwg.mxu0
      %v2951 = vadd.f32 %v2721, %v2921
      %v2952 = vadd.f32 %v2722, %v2924
      %v2953 = vadd.f32 %v2723, %v2929
      %v2954 = vadd.f32 %v2724, %v2932
      %v2955 = vadd.f32 %v2725, %v2937
      %v2956 = vadd.f32 %v2726, %v2940
      %v2957 = vadd.f32 %v2727, %v2945
      %v2958 = vadd.f32 %v2728, %v2948
      %v2959 = vld [vmem:[%s2] sm:$0x1]
      %v2961 = vlaneseq
      %v2962 = vshrl.u32 %v2961, 7
      %v2963 = vsub.s32 0, %v2962
      %v2964 = vrot.slane %v2959, %v2963
      %v2966 = vadd.f32 %v2951, %v2964
      %v2967 = vadd.f32 %v2952, %v2964
      %v2968 = vadd.f32 %v2953, %v2964
      %v2969 = vadd.f32 %v2954, %v2964
      %v2970 = vadd.f32 %v2955, %v2964
      %v2971 = vadd.f32 %v2956, %v2964
      %v2972 = vadd.f32 %v2957, %v2964
      %v2973 = vadd.f32 %v2958, %v2964
      %vm2974 = vcmp.ge.f32.partialorder %v2966, 0.0
      %vm2975 = vcmp.ge.f32.partialorder %v2967, 0.0
      %vm2976 = vcmp.ge.f32.partialorder %v2968, 0.0
      %vm2977 = vcmp.ge.f32.partialorder %v2969, 0.0
      %vm2978 = vcmp.ge.f32.partialorder %v2970, 0.0
      %vm2979 = vcmp.ge.f32.partialorder %v2971, 0.0
      %vm2980 = vcmp.ge.f32.partialorder %v2972, 0.0
      %vm2981 = vcmp.ge.f32.partialorder %v2973, 0.0
      %v2982 = vmul.f32 %v2966, 0.2
      %v2983 = vmul.f32 %v2967, 0.2
      %v2984 = vmul.f32 %v2968, 0.2
      %v2985 = vmul.f32 %v2969, 0.2
      %v2986 = vmul.f32 %v2970, 0.2
      %v2987 = vmul.f32 %v2971, 0.2
      %v2988 = vmul.f32 %v2972, 0.2
      %v2989 = vmul.f32 %v2973, 0.2
      %v2990 = vsel %vm2974, %v2966, %v2982
      %v2991 = vsel %vm2975, %v2967, %v2983
      %v2992 = vsel %vm2976, %v2968, %v2984
      %v2993 = vsel %vm2977, %v2969, %v2985
      %v2994 = vsel %vm2978, %v2970, %v2986
      %v2995 = vsel %vm2979, %v2971, %v2987
      %v2996 = vsel %vm2980, %v2972, %v2988
      %v2997 = vsel %vm2981, %v2973, %v2989
      %v2998 = vpack.c.bf16 %v2991, %v2990
      %v2999 = vpack.c.bf16 %v2993, %v2992
      %v3000 = vpack.c.bf16 %v2995, %v2994
      %v3001 = vpack.c.bf16 %v2997, %v2996
      %v3006 = vunpack.c.l.b16 %v2998
      %v3007 = vunpack.c.h.b16 %v2998
      %v3008 = vunpack.c.l.b16 %v2999
      %v3009 = vunpack.c.h.b16 %v2999
      %v3010 = vunpack.c.l.b16 %v3000
      %v3011 = vunpack.c.h.b16 %v3000
      %v3012 = vunpack.c.l.b16 %v3001
      %v3013 = vunpack.c.h.b16 %v3001
      %v3014 = vpack.c.b16 %v3006, %v3006
      %v3015 = vpack.c.b16 %v3007, %v3007
      %v3016 = vpack.c.b16 %v3008, %v3008
      %v3017 = vpack.c.b16 %v3009, %v3009
      %v3018 = vpack.c.b16 %v3010, %v3010
      %v3019 = vpack.c.b16 %v3011, %v3011
      %v3020 = vpack.c.b16 %v3012, %v3012
      %v3021 = vpack.c.b16 %v3013, %v3013
      %3030 = vst [vmem:[%s175] sm:$0xf] %v3014
      %3031 = vst [vmem:[%s175 + $0x4] sm:$0xf] %v3015
      %3032 = vst [vmem:[%s175 + $0x8] sm:$0xf] %v3016
      %3033 = vst [vmem:[%s175 + $0xc] sm:$0xf] %v3017
      %3034 = vst [vmem:[%s175 + $0x10] sm:$0xf] %v3018
      %3035 = vst [vmem:[%s175 + $0x14] sm:$0xf] %v3019
      %3036 = vst [vmem:[%s175 + $0x18] sm:$0xf] %v3020
      %3037 = vst [vmem:[%s175 + $0x1c] sm:$0xf] %v3021
      %p3038 = scmp.lt.s32.totalorder %s14, 1
      %s3039 = scalar_select %p3038, %s14, 1
      %s3040 = smul.addr %s3039, 8
      %s3041 = smul.addr %s3040, 4
      %s3042 = scalar_lea.vmem %s3, %s3041
      // Predicated region
      $region33: #{dcgan_discriminator_forward.5} parent=31 // pred_check
        %p3043 = pneg %p100
      $region34: #{dcgan_discriminator_forward.5} parent=31 // pred_check_branch
        %3045 = sbr.rel (%p3043) target = $region36
      $region35: #{dcgan_discriminator_forward.5} parent=31 // pred_region
        _
      $region36: #{dcgan_discriminator_forward.5} parent=31 // pred_fallthru
        _
    $region32: #{dcgan_discriminator_forward.5} parent=5 // pred_fallthru
      _
    %p3046 = scmp.le.s32.totalorder 2, %s9
    // Predicated region
    $region37: #{dcgan_discriminator_forward.5} parent=5 // pred_check
      %p3047 = pneg %p3046
    $region38: #{dcgan_discriminator_forward.5} parent=5 // pred_check_branch
      %3049 = sbr.rel (%p3047) target = $region40
    $region39: #{dcgan_discriminator_forward.5} parent=5 // pred_region
      %s3050 = ssub.s32 %s9, 2
      // Predicated region
      $region41: #{dcgan_discriminator_forward.5} parent=39 // pred_check
        %p3051 = pneg %p106
      $region42: #{dcgan_discriminator_forward.5} parent=39 // pred_check_branch
        %3053 = sbr.rel (%p3051) target = $region44
      $region43: #{dcgan_discriminator_forward.5} parent=39 // pred_region
        %p3054 = scmp.lt.s32.totalorder %s15, 1
        %s3055 = scalar_select %p3054, %s15, 1
        %s3056 = smul.addr %s3055, 8
        %s3057 = smul.addr %s3056, 4
        %s3058 = scalar_lea.vmem %s3, %s3057
      $region44: #{dcgan_discriminator_forward.5} parent=39 // pred_fallthru
        _
    $region40: #{dcgan_discriminator_forward.5} parent=5 // pred_fallthru
      _
  $region6: #{dcgan_discriminator_forward.5} parent=0 // loop_footer
    %s13 = sadd.s32 1, %s9
  $region7: #{dcgan_discriminator_forward.5} parent=0 // loop_footer_branch
    %8 = sbr.rel target = $region3
  $region8: #{dcgan_discriminator_forward.5} parent=0 // loop_exit
    _

// kernel: dcgan_discriminator_forward.8
$region0: #{dcgan_discriminator_forward.8}
  #allocation0 [shape = 'u32[]', space=smem, size = 0x4, offset = 0x4, fixed_abs, tag = 'smem constant byte address 0x4 - core index']
  #allocation1 [shape = 'u32[144,128]{1,0:T(1,128)}', space=vmem, size = 0x12000, scoped, tag = 'internal scratch']
  %s0 = inlined_call_operand.vmem [shape: bf16[8,2,2,32], index: 0, kind: input, shape index: {}]
  %s1 = inlined_call_operand.vmem [shape: bf16[16,32,128], index: 1, kind: input, shape index: {}]
  %s2 = inlined_call_operand.vmem [shape: f32[2,1,128], index: 2, kind: output, shape index: {0}]
  %s3 = inlined_call_operand.vmem [shape: f32[2,2,128], index: 3, kind: output, shape index: {1}]
  %4 = xla_tuple %s2, %s3
  %s5 = sld [smem:[#allocation0]]
  $region49: #{dcgan_discriminator_forward.8} parent=0
    _
  %s7 = ssub.s32 1, %s5
  %s8 = scalar_select 0, %s7, %s5
  loop: start=0, step=1, limit=4
  $region2: #{dcgan_discriminator_forward.8} parent=0 // loop_pre_header
    _
  $region3: #{dcgan_discriminator_forward.8} parent=0 // loop_header
    %s10 = sphi 0, %s14
    %p11 = scmp.ge.s32.totalorder %s10, 4
    %s20 = sphi 0, %s22
    %s23 = sphi 0, %s20
    %s24 = sphi 0, %s23
    %s40 = sphi 0, %s24
    %s44 = sphi 0, %s44
    %s46 = sphi 0, %s44
    %s47 = sphi 0, %s46
    %s61 = sphi 0, %s47
    %s67 = sphi 0, %s69
    %s70 = sphi 0, %s67
    %s71 = sphi 0, %s70
    %s87 = sphi 0, %s71
    %s93 = sphi 0, %s95
    %s96 = sphi 0, %s93
    %s97 = sphi 0, %s96
    %s113 = sphi 0, %s97
  $region4: #{dcgan_discriminator_forward.8} parent=0 // loop_header_branch
    %13 = sbr.rel (%p11) target = $region8
  $region5: #{dcgan_discriminator_forward.8} parent=0 // loop_body
    %s15 = ssub.s32 %s10, 1
    %s16 = ssub.s32 %s10, 2
    %s17 = sadd.s32 %s10, 1
    %s18 = ssub.s32 %s10, %s17
    %p19 = scmp.eq.s32.totalorder %s18, 0
    %s21 = sadd.s32 %s20, 1
    %s22 = scalar_select %p19, %s20, %s21
    %p25 = pneg %p19
    %p26 = scmp.eq.s32.totalorder %s10, 1
    %p27 = por %p25, %p26
    %p28 = scmp.ne.s32.totalorder %s20, %s23
    %p29 = scmp.eq.s32.totalorder %s10, 0
    %p30 = por %p28, %p29
    %p31 = scmp.ne.s32.totalorder %s20, %s23
    %p32 = scmp.eq.s32.totalorder %s15, 1
    %p33 = por %p31, %p32
    %p34 = scmp.ne.s32.totalorder %s23, %s24
    %p35 = scmp.eq.s32.totalorder %s15, 0
    %p36 = por %p34, %p35
    %p37 = scmp.ne.s32.totalorder %s23, %s24
    %p38 = scmp.eq.s32.totalorder %s16, 1
    %p39 = por %p37, %p38
    %p41 = scmp.ne.s32.totalorder %s24, %s40
    %p42 = scmp.eq.s32.totalorder %s16, 0
    %p43 = por %p41, %p42
    %s45 = sadd.s32 %s44, 1
    %p48 = scmp.eq.s32.totalorder %s10, 1
    %p49 = scmp.ne.s32.totalorder %s44, %s46
    %p50 = scmp.eq.s32.totalorder %s10, 0
    %p51 = por %p49, %p50
    %p52 = scmp.ne.s32.totalorder %s44, %s46
    %p53 = scmp.eq.s32.totalorder %s15, 1
    %p54 = por %p52, %p53
    %p55 = scmp.ne.s32.totalorder %s46, %s47
    %p56 = scmp.eq.s32.totalorder %s15, 0
    %p57 = por %p55, %p56
    %p58 = scmp.ne.s32.totalorder %s46, %s47
    %p59 = scmp.eq.s32.totalorder %s16, 1
    %p60 = por %p58, %p59
    %p62 = scmp.ne.s32.totalorder %s47, %s61
    %p63 = scmp.eq.s32.totalorder %s16, 0
    %p64 = por %p62, %p63
    %s65 = ssub.s32 %s10, %s17
    %p66 = scmp.eq.s32.totalorder %s65, 0
    %s68 = sadd.s32 %s67, 1
    %s69 = scalar_select %p66, %s67, %s68
    %p72 = pneg %p66
    %p73 = scmp.eq.s32.totalorder %s10, 1
    %p74 = por %p72, %p73
    %p75 = scmp.ne.s32.totalorder %s67, %s70
    %p76 = scmp.eq.s32.totalorder %s10, 0
    %p77 = por %p75, %p76
    %p78 = scmp.ne.s32.totalorder %s67, %s70
    %p79 = scmp.eq.s32.totalorder %s15, 1
    %p80 = por %p78, %p79
    %p81 = scmp.ne.s32.totalorder %s70, %s71
    %p82 = scmp.eq.s32.totalorder %s15, 0
    %p83 = por %p81, %p82
    %p84 = scmp.ne.s32.totalorder %s70, %s71
    %p85 = scmp.eq.s32.totalorder %s16, 1
    %p86 = por %p84, %p85
    %p88 = scmp.ne.s32.totalorder %s71, %s87
    %p89 = scmp.eq.s32.totalorder %s16, 0
    %p90 = por %p88, %p89
    %s91 = ssub.s32 %s10, %s17
    %p92 = scmp.eq.s32.totalorder %s91, 0
    %s94 = sadd.s32 %s93, 1
    %s95 = scalar_select %p92, %s93, %s94
    %p98 = pneg %p92
    %p99 = scmp.eq.s32.totalorder %s10, 1
    %p100 = por %p98, %p99
    %p101 = scmp.ne.s32.totalorder %s93, %s96
    %p102 = scmp.eq.s32.totalorder %s10, 0
    %p103 = por %p101, %p102
    %p104 = scmp.ne.s32.totalorder %s93, %s96
    %p105 = scmp.eq.s32.totalorder %s15, 1
    %p106 = por %p104, %p105
    %p107 = scmp.ne.s32.totalorder %s96, %s97
    %p108 = scmp.eq.s32.totalorder %s15, 0
    %p109 = por %p107, %p108
    %p110 = scmp.ne.s32.totalorder %s96, %s97
    %p111 = scmp.eq.s32.totalorder %s16, 1
    %p112 = por %p110, %p111
    %p114 = scmp.ne.s32.totalorder %s97, %s113
    %p115 = scmp.eq.s32.totalorder %s16, 0
    %p116 = por %p114, %p115
    %p117 = scmp.le.s32.totalorder 1, %s10
    %p118 = scmp.lt.s32.totalorder %s10, 3
    %p119 = pnand %p117, %p118
    %p120 = pneg %p119
    // Predicated region
    $region9: #{dcgan_discriminator_forward.8} parent=5 // pred_check
      _
    $region10: #{dcgan_discriminator_forward.8} parent=5 // pred_check_branch
      %122 = sbr.rel (%p119) target = $region12
    $region11: #{dcgan_discriminator_forward.8} parent=5 // pred_region
      %s123 = ssub.s32 %s10, 1
      // Predicated region
      $region13: #{dcgan_discriminator_forward.8} parent=11 // pred_check
        %p124 = pneg %p57
      $region14: #{dcgan_discriminator_forward.8} parent=11 // pred_check_branch
        %126 = sbr.rel (%p124) target = $region16
      $region15: #{dcgan_discriminator_forward.8} parent=11 // pred_region
        _
      $region16: #{dcgan_discriminator_forward.8} parent=11 // pred_fallthru
        _
    $region12: #{dcgan_discriminator_forward.8} parent=5 // pred_fallthru
      _
    %p127 = scmp.lt.s32.totalorder %s10, 2
    // Predicated region
    $region17: #{dcgan_discriminator_forward.8} parent=5 // pred_check
      %p128 = pneg %p127
    $region18: #{dcgan_discriminator_forward.8} parent=5 // pred_check_branch
      %130 = sbr.rel (%p128) target = $region20
    $region19: #{dcgan_discriminator_forward.8} parent=5 // pred_region
      // Predicated region
      $region21: #{dcgan_discriminator_forward.8} parent=19 // pred_check
        %p131 = pneg %p30
      $region22: #{dcgan_discriminator_forward.8} parent=19 // pred_check_branch
        %133 = sbr.rel (%p131) target = $region24
      $region23: #{dcgan_discriminator_forward.8} parent=19 // pred_region
        %s134 = smul.u32 4, %s10
        %p135 = scmp.lt.s32.totalorder %s134, 7
        %s136 = scalar_select %p135, %s134, 7
        %s137 = smul.addr %s136, 2
        %s138 = scalar_lea.vmem %s0, %s137
        %s139 = smul.u32 4, %s10
      $region24: #{dcgan_discriminator_forward.8} parent=19 // pred_fallthru
        _
    $region20: #{dcgan_discriminator_forward.8} parent=5 // pred_fallthru
      _
    %p140 = scmp.le.s32.totalorder 1, %s10
    %p141 = scmp.lt.s32.totalorder %s10, 3
    %p142 = pnand %p140, %p141
    %p143 = pneg %p142
    // Predicated region
    $region25: #{dcgan_discriminator_forward.8} parent=5 // pred_check
      _
    $region26: #{dcgan_discriminator_forward.8} parent=5 // pred_check_branch
      %145 = sbr.rel (%p142) target = $region28
    $region27: #{dcgan_discriminator_forward.8} parent=5 // pred_region
      %s146 = ssub.s32 %s10, 1
      %s147 = smul.u32 4, %s15
      %p148 = scmp.lt.s32.totalorder %s147, 7
      %s149 = scalar_select %p148, %s147, 7
      %s150 = smul.addr %s149, 2
      %s151 = scalar_lea.vmem %s0, %s150
      %p152 = pneg %p36
      %p153 = pneg %p33
      %p154 = pneg %p57
      %p155 = pneg %p54
      %p156 = pneg %p83
      %p157 = pneg %p80
      %p158 = scmp.lt.s32.totalorder %s15, 1
      %s159 = scalar_select %p158, %s15, 1
      %s160 = scalar_lea.vmem %s2, %s159
      %p161 = pneg %p109
      %p162 = pneg %p106
      %p163 = scmp.lt.s32.totalorder %s15, 1
      %s164 = scalar_select %p163, %s15, 1
      %s165 = smul.addr %s164, 2
      %s166 = scalar_lea.vmem %s3, %s165
      %s167 = smul.u32 4, %s15
      %p168 = scmp.lt.s32.totalorder %s167, 7
      %s169 = scalar_select %p168, %s167, 7
      %s170 = smul.addr %s169, 2
      %s171 = scalar_lea.vmem %s0, %s170
      %s172 = smul.u32 4, %s15
      %p173 = scmp.lt.s32.totalorder %s15, 1
      %s174 = scalar_select %p173, %s15, 1
      %s175 = scalar_lea.vmem %s2, %s174
      %p176 = scmp.lt.s32.totalorder %s15, 1
      %s177 = scalar_select %p176, %s15, 1
      %s178 = smul.addr %s177, 2
      %s179 = scalar_lea.vmem %s3, %s178
      %v181 = vld [vmem:[%s171] sm:$0x1]
      %v182 = vld [vmem:[%s1] sm:$0xf]
      %v183 = vld [vmem:[%s1 + $0x4] sm:$0xf]
      %v184 = vld [vmem:[%s1 + $0x8] sm:$0xf]
      %v185 = vld [vmem:[%s1 + $0xc] sm:$0xf]
      %s186 = scalar_lea.vmem %s171, 2
      %v187 = vld [vmem:[%s186] sm:$0x1]
      %s188 = scalar_lea.vmem %s1, 16
      %v189 = vld [vmem:[%s188] sm:$0xf]
      %v190 = vld [vmem:[%s188 + $0x4] sm:$0xf]
      %v191 = vld [vmem:[%s188 + $0x8] sm:$0xf]
      %v192 = vld [vmem:[%s188 + $0xc] sm:$0xf]
      %v197 = vunpack.c.l.b16 %v189
      %v198 = vunpack.c.l.b16 %v190
      %v199 = vunpack.c.l.b16 %v191
      %v200 = vunpack.c.l.b16 %v192
      %v201 = vpack.c.b16 %v198, %v197
      %v202 = vpack.c.b16 %v200, %v199
      %vm205 = vcmask 261120
      %v207 = vsel %vm205, %v187, 0
      %209 = vmatprep.subr.bf16.mxu0 0
      %210 = vmatpush1.bf16.msra.mxu0 %v201
      %211 = vmatprep.subr.bf16.mxu0 0
      %212 = vmatpush1.bf16.msra.mxu0 %v202
      %213 = vmatprep.subr.bf16.mxu0 0
      %214 = vmatpush1.bf16.msra.mxu0 0
      %215 = vmatprep.subr.bf16.mxu0 0
      %216 = vmatpush1.bf16.msra.mxu0 0
      %217 = vmatprep.subr.bf16.mxu0 0
      %218 = vmatpush1.bf16.msra.mxu0 0
      %219 = vmatprep.subr.bf16.mxu0 0
      %220 = vmatpush1.bf16.msra.mxu0 0
      %221 = vmatprep.subr.bf16.mxu0 0
      %222 = vmatpush1.bf16.msra.mxu0 0
      %223 = vmatprep.subr.bf16.mxu0 0
      %224 = vmatpush1.bf16.msra.mxu0 0
      %225 = vmatprep.subr.bf16.mxu0 0
      %226 = vmatpush1.bf16.msra.mxu0 0
      %227 = vmatprep.subr.bf16.mxu0 0
      %228 = vmatpush1.bf16.msra.mxu0 0
      %229 = vmatprep.subr.bf16.mxu0 0
      %230 = vmatpush1.bf16.msra.mxu0 0
      %231 = vmatprep.subr.bf16.mxu0 0
      %232 = vmatpush1.bf16.msra.mxu0 0
      %233 = vmatprep.subr.bf16.mxu0 0
      %234 = vmatpush1.bf16.msra.mxu0 0
      %235 = vmatprep.subr.bf16.mxu0 0
      %236 = vmatpush1.bf16.msra.mxu0 0
      %237 = vmatprep.subr.bf16.mxu0 0
      %238 = vmatpush1.bf16.msra.mxu0 0
      %239 = vmatprep.subr.bf16.mxu0 0
      %240 = vmatpush1.bf16.msra.mxu0 0
      %241 = vmatprep.mubr.bf16.mxu0 0
      %242 = vmatmul.mubr.bf16.gmra.mrb[0].mxu0 %v207
      %v243 = vpop.f32.mrb[0].mxu0
      %v244 = vadd.f32 0.0, %v243
      %v245 = vpop.f32.mrb[0].mxu0
      %v246 = vpop.f32.mrb[0].mxu0
      %v247 = vpop.f32.mrb[0].mxu0
      %248 = vdwg.mxu0
      %v253 = vunpack.c.l.b16 %v182
      %v254 = vunpack.c.l.b16 %v183
      %v255 = vunpack.c.l.b16 %v184
      %v256 = vunpack.c.l.b16 %v185
      %v257 = vpack.c.b16 %v254, %v253
      %v258 = vpack.c.b16 %v256, %v255
      %v262 = vsel %vm205, %v181, 0
      %264 = vmatprep.subr.bf16.mxu0 0
      %265 = vmatpush1.bf16.msra.mxu0 %v257
      %266 = vmatprep.subr.bf16.mxu0 0
      %267 = vmatpush1.bf16.msra.mxu0 %v258
      %268 = vmatprep.subr.bf16.mxu0 0
      %269 = vmatpush1.bf16.msra.mxu0 0
      %270 = vmatprep.subr.bf16.mxu0 0
      %271 = vmatpush1.bf16.msra.mxu0 0
      %272 = vmatprep.subr.bf16.mxu0 0
      %273 = vmatpush1.bf16.msra.mxu0 0
      %274 = vmatprep.subr.bf16.mxu0 0
      %275 = vmatpush1.bf16.msra.mxu0 0
      %276 = vmatprep.subr.bf16.mxu0 0
      %277 = vmatpush1.bf16.msra.mxu0 0
      %278 = vmatprep.subr.bf16.mxu0 0
      %279 = vmatpush1.bf16.msra.mxu0 0
      %280 = vmatprep.subr.bf16.mxu0 0
      %281 = vmatpush1.bf16.msra.mxu0 0
      %282 = vmatprep.subr.bf16.mxu0 0
      %283 = vmatpush1.bf16.msra.mxu0 0
      %284 = vmatprep.subr.bf16.mxu0 0
      %285 = vmatpush1.bf16.msra.mxu0 0
      %286 = vmatprep.subr.bf16.mxu0 0
      %287 = vmatpush1.bf16.msra.mxu0 0
      %288 = vmatprep.subr.bf16.mxu0 0
      %289 = vmatpush1.bf16.msra.mxu0 0
      %290 = vmatprep.subr.bf16.mxu0 0
      %291 = vmatpush1.bf16.msra.mxu0 0
      %292 = vmatprep.subr.bf16.mxu0 0
      %293 = vmatpush1.bf16.msra.mxu0 0
      %294 = vmatprep.subr.bf16.mxu0 0
      %295 = vmatpush1.bf16.msra.mxu0 0
      %296 = vmatprep.mubr.bf16.mxu0 0
      %297 = vmatmul.mubr.bf16.gmra.mrb[0].mxu0 %v262
      %v298 = vpop.f32.mrb[0].mxu0
      %v299 = vadd.f32 %v244, %v298
      %v300 = vpop.f32.mrb[0].mxu0
      %v301 = vpop.f32.mrb[0].mxu0
      %v302 = vpop.f32.mrb[0].mxu0
      %303 = vdwg.mxu0
      %s304 = scalar_lea.vmem %s1, 32
      %v305 = vld [vmem:[%s304] sm:$0xf]
      %v306 = vld [vmem:[%s304 + $0x4] sm:$0xf]
      %v307 = vld [vmem:[%s304 + $0x8] sm:$0xf]
      %v308 = vld [vmem:[%s304 + $0xc] sm:$0xf]
      %v311 = vunpack.c.l.s4 1966171168
      %v312 = vunpack.c.0.s8 %v311
      %v313 = vlaneseq
      %v314 = vshrl.u32 %v313, 7
      %v315 = vsub.s32 %v312, %v314
      %v316 = vrot.slane %v181, %v315
      %v318 = vunpack.c.l.s4 1966171168
      %v319 = vunpack.c.0.s8 %v318
      %v320 = vlaneseq
      %v321 = vshrl.u32 %v320, 7
      %v322 = vsub.s32 %v319, %v321
      %v323 = vrot.slane %v316, %v322
      %v325 = vshrl.u32 %v323, 16
      %v331 = vunpack.c.l.b16 %v305
      %v332 = vunpack.c.l.b16 %v306
      %v333 = vunpack.c.l.b16 %v307
      %v334 = vunpack.c.l.b16 %v308
      %v335 = vpack.c.b16 %v332, %v331
      %v336 = vpack.c.b16 %v334, %v333
      %v340 = vsel %vm205, %v325, 0
      %342 = vmatprep.subr.bf16.mxu0 0
      %343 = vmatpush1.bf16.msra.mxu0 %v335
      %344 = vmatprep.subr.bf16.mxu0 0
      %345 = vmatpush1.bf16.msra.mxu0 %v336
      %346 = vmatprep.subr.bf16.mxu0 0
      %347 = vmatpush1.bf16.msra.mxu0 0
      %348 = vmatprep.subr.bf16.mxu0 0
      %349 = vmatpush1.bf16.msra.mxu0 0
      %350 = vmatprep.subr.bf16.mxu0 0
      %351 = vmatpush1.bf16.msra.mxu0 0
      %352 = vmatprep.subr.bf16.mxu0 0
      %353 = vmatpush1.bf16.msra.mxu0 0
      %354 = vmatprep.subr.bf16.mxu0 0
      %355 = vmatpush1.bf16.msra.mxu0 0
      %356 = vmatprep.subr.bf16.mxu0 0
      %357 = vmatpush1.bf16.msra.mxu0 0
      %358 = vmatprep.subr.bf16.mxu0 0
      %359 = vmatpush1.bf16.msra.mxu0 0
      %360 = vmatprep.subr.bf16.mxu0 0
      %361 = vmatpush1.bf16.msra.mxu0 0
      %362 = vmatprep.subr.bf16.mxu0 0
      %363 = vmatpush1.bf16.msra.mxu0 0
      %364 = vmatprep.subr.bf16.mxu0 0
      %365 = vmatpush1.bf16.msra.mxu0 0
      %366 = vmatprep.subr.bf16.mxu0 0
      %367 = vmatpush1.bf16.msra.mxu0 0
      %368 = vmatprep.subr.bf16.mxu0 0
      %369 = vmatpush1.bf16.msra.mxu0 0
      %370 = vmatprep.subr.bf16.mxu0 0
      %371 = vmatpush1.bf16.msra.mxu0 0
      %372 = vmatprep.subr.bf16.mxu0 0
      %373 = vmatpush1.bf16.msra.mxu0 0
      %374 = vmatprep.mubr.bf16.mxu0 0
      %375 = vmatmul.mubr.bf16.gmra.mrb[0].mxu0 %v340
      %v376 = vpop.f32.mrb[0].mxu0
      %v377 = vadd.f32 0.0, %v376
      %v378 = vpop.f32.mrb[0].mxu0
      %v379 = vpop.f32.mrb[0].mxu0
      %v380 = vpop.f32.mrb[0].mxu0
      %381 = vdwg.mxu0
      %v382 = vadd.f32 %v299, %v377
      %v383 = vld [vmem:[%s186] sm:$0x1]
      %s384 = scalar_lea.vmem %s1, 48
      %v385 = vld [vmem:[%s384] sm:$0xf]
      %v386 = vld [vmem:[%s384 + $0x4] sm:$0xf]
      %v387 = vld [vmem:[%s384 + $0x8] sm:$0xf]
      %v388 = vld [vmem:[%s384 + $0xc] sm:$0xf]
      %v391 = vunpack.c.l.s4 1966171168
      %v392 = vunpack.c.0.s8 %v391
      %v393 = vlaneseq
      %v394 = vshrl.u32 %v393, 7
      %v395 = vsub.s32 %v392, %v394
      %v396 = vrot.slane %v383, %v395
      %v398 = vunpack.c.l.s4 1966171168
      %v399 = vunpack.c.0.s8 %v398
      %v400 = vlaneseq
      %v401 = vshrl.u32 %v400, 7
      %v402 = vsub.s32 %v399, %v401
      %v403 = vrot.slane %v396, %v402
      %v405 = vshrl.u32 %v403, 16
      %v411 = vunpack.c.l.b16 %v385
      %v412 = vunpack.c.l.b16 %v386
      %v413 = vunpack.c.l.b16 %v387
      %v414 = vunpack.c.l.b16 %v388
      %v415 = vpack.c.b16 %v412, %v411
      %v416 = vpack.c.b16 %v414, %v413
      %v420 = vsel %vm205, %v405, 0
      %422 = vmatprep.subr.bf16.mxu0 0
      %423 = vmatpush1.bf16.msra.mxu0 %v415
      %424 = vmatprep.subr.bf16.mxu0 0
      %425 = vmatpush1.bf16.msra.mxu0 %v416
      %426 = vmatprep.subr.bf16.mxu0 0
      %427 = vmatpush1.bf16.msra.mxu0 0
      %428 = vmatprep.subr.bf16.mxu0 0
      %429 = vmatpush1.bf16.msra.mxu0 0
      %430 = vmatprep.subr.bf16.mxu0 0
      %431 = vmatpush1.bf16.msra.mxu0 0
      %432 = vmatprep.subr.bf16.mxu0 0
      %433 = vmatpush1.bf16.msra.mxu0 0
      %434 = vmatprep.subr.bf16.mxu0 0
      %435 = vmatpush1.bf16.msra.mxu0 0
      %436 = vmatprep.subr.bf16.mxu0 0
      %437 = vmatpush1.bf16.msra.mxu0 0
      %438 = vmatprep.subr.bf16.mxu0 0
      %439 = vmatpush1.bf16.msra.mxu0 0
      %440 = vmatprep.subr.bf16.mxu0 0
      %441 = vmatpush1.bf16.msra.mxu0 0
      %442 = vmatprep.subr.bf16.mxu0 0
      %443 = vmatpush1.bf16.msra.mxu0 0
      %444 = vmatprep.subr.bf16.mxu0 0
      %445 = vmatpush1.bf16.msra.mxu0 0
      %446 = vmatprep.subr.bf16.mxu0 0
      %447 = vmatpush1.bf16.msra.mxu0 0
      %448 = vmatprep.subr.bf16.mxu0 0
      %449 = vmatpush1.bf16.msra.mxu0 0
      %450 = vmatprep.subr.bf16.mxu0 0
      %451 = vmatpush1.bf16.msra.mxu0 0
      %452 = vmatprep.subr.bf16.mxu0 0
      %453 = vmatpush1.bf16.msra.mxu0 0
      %454 = vmatprep.mubr.bf16.mxu0 0
      %455 = vmatmul.mubr.bf16.gmra.mrb[0].mxu0 %v420
      %v456 = vpop.f32.mrb[0].mxu0
      %v457 = vadd.f32 0.0, %v456
      %v458 = vpop.f32.mrb[0].mxu0
      %v459 = vpop.f32.mrb[0].mxu0
      %v460 = vpop.f32.mrb[0].mxu0
      %461 = vdwg.mxu0
      %v462 = vadd.f32 %v382, %v457
      %s463 = scalar_lea.vmem %s171, 4
      %v464 = vld [vmem:[%s463] sm:$0x1]
      %s465 = scalar_lea.vmem %s1, 64
      %v466 = vld [vmem:[%s465] sm:$0xf]
      %v467 = vld [vmem:[%s465 + $0x4] sm:$0xf]
      %v468 = vld [vmem:[%s465 + $0x8] sm:$0xf]
      %v469 = vld [vmem:[%s465 + $0xc] sm:$0xf]
      %v474 = vunpack.c.l.b16 %v466
      %v475 = vunpack.c.l.b16 %v467
      %v476 = vunpack.c.l.b16 %v468
      %v477 = vunpack.c.l.b16 %v469
      %v478 = vpack.c.b16 %v475, %v474
      %v479 = vpack.c.b16 %v477, %v476
      %v483 = vsel %vm205, %v464, 0
      %485 = vmatprep.subr.bf16.mxu0 0
      %486 = vmatpush1.bf16.msra.mxu0 %v478
      %487 = vmatprep.subr.bf16.mxu0 0
      %488 = vmatpush1.bf16.msra.mxu0 %v479
      %489 = vmatprep.subr.bf16.mxu0 0
      %490 = vmatpush1.bf16.msra.mxu0 0
      %491 = vmatprep.subr.bf16.mxu0 0
      %492 = vmatpush1.bf16.msra.mxu0 0
      %493 = vmatprep.subr.bf16.mxu0 0
      %494 = vmatpush1.bf16.msra.mxu0 0
      %495 = vmatprep.subr.bf16.mxu0 0
      %496 = vmatpush1.bf16.msra.mxu0 0
      %497 = vmatprep.subr.bf16.mxu0 0
      %498 = vmatpush1.bf16.msra.mxu0 0
      %499 = vmatprep.subr.bf16.mxu0 0
      %500 = vmatpush1.bf16.msra.mxu0 0
      %501 = vmatprep.subr.bf16.mxu0 0
      %502 = vmatpush1.bf16.msra.mxu0 0
      %503 = vmatprep.subr.bf16.mxu0 0
      %504 = vmatpush1.bf16.msra.mxu0 0
      %505 = vmatprep.subr.bf16.mxu0 0
      %506 = vmatpush1.bf16.msra.mxu0 0
      %507 = vmatprep.subr.bf16.mxu0 0
      %508 = vmatpush1.bf16.msra.mxu0 0
      %509 = vmatprep.subr.bf16.mxu0 0
      %510 = vmatpush1.bf16.msra.mxu0 0
      %511 = vmatprep.subr.bf16.mxu0 0
      %512 = vmatpush1.bf16.msra.mxu0 0
      %513 = vmatprep.subr.bf16.mxu0 0
      %514 = vmatpush1.bf16.msra.mxu0 0
      %515 = vmatprep.subr.bf16.mxu0 0
      %516 = vmatpush1.bf16.msra.mxu0 0
      %517 = vmatprep.mubr.bf16.mxu0 0
      %518 = vmatmul.mubr.bf16.gmra.mrb[0].mxu0 %v483
      %v519 = vpop.f32.mrb[0].mxu0
      %v520 = vadd.f32 0.0, %v519
      %v521 = vpop.f32.mrb[0].mxu0
      %v522 = vpop.f32.mrb[0].mxu0
      %v523 = vpop.f32.mrb[0].mxu0
      %524 = vdwg.mxu0
      %v525 = vadd.f32 %v462, %v520
      %s526 = scalar_lea.vmem %s171, 6
      %v527 = vld [vmem:[%s526] sm:$0x1]
      %s528 = scalar_lea.vmem %s1, 80
      %v529 = vld [vmem:[%s528] sm:$0xf]
      %v530 = vld [vmem:[%s528 + $0x4] sm:$0xf]
      %v531 = vld [vmem:[%s528 + $0x8] sm:$0xf]
      %v532 = vld [vmem:[%s528 + $0xc] sm:$0xf]
      %v537 = vunpack.c.l.b16 %v529
      %v538 = vunpack.c.l.b16 %v530
      %v539 = vunpack.c.l.b16 %v531
      %v540 = vunpack.c.l.b16 %v532
      %v541 = vpack.c.b16 %v538, %v537
      %v542 = vpack.c.b16 %v540, %v539
      %v546 = vsel %vm205, %v527, 0
      %548 = vmatprep.subr.bf16.mxu0 0
      %549 = vmatpush1.bf16.msra.mxu0 %v541
      %550 = vmatprep.subr.bf16.mxu0 0
      %551 = vmatpush1.bf16.msra.mxu0 %v542
      %552 = vmatprep.subr.bf16.mxu0 0
      %553 = vmatpush1.bf16.msra.mxu0 0
      %554 = vmatprep.subr.bf16.mxu0 0
      %555 = vmatpush1.bf16.msra.mxu0 0
      %556 = vmatprep.subr.bf16.mxu0 0
      %557 = vmatpush1.bf16.msra.mxu0 0
      %558 = vmatprep.subr.bf16.mxu0 0
      %559 = vmatpush1.bf16.msra.mxu0 0
      %560 = vmatprep.subr.bf16.mxu0 0
      %561 = vmatpush1.bf16.msra.mxu0 0
      %562 = vmatprep.subr.bf16.mxu0 0
      %563 = vmatpush1.bf16.msra.mxu0 0
      %564 = vmatprep.subr.bf16.mxu0 0
      %565 = vmatpush1.bf16.msra.mxu0 0
      %566 = vmatprep.subr.bf16.mxu0 0
      %567 = vmatpush1.bf16.msra.mxu0 0
      %568 = vmatprep.subr.bf16.mxu0 0
      %569 = vmatpush1.bf16.msra.mxu0 0
      %570 = vmatprep.subr.bf16.mxu0 0
      %571 = vmatpush1.bf16.msra.mxu0 0
      %572 = vmatprep.subr.bf16.mxu0 0
      %573 = vmatpush1.bf16.msra.mxu0 0
      %574 = vmatprep.subr.bf16.mxu0 0
      %575 = vmatpush1.bf16.msra.mxu0 0
      %576 = vmatprep.subr.bf16.mxu0 0
      %577 = vmatpush1.bf16.msra.mxu0 0
      %578 = vmatprep.subr.bf16.mxu0 0
      %579 = vmatpush1.bf16.msra.mxu0 0
      %580 = vmatprep.mubr.bf16.mxu0 0
      %581 = vmatmul.mubr.bf16.gmra.mrb[0].mxu0 %v546
      %v582 = vpop.f32.mrb[0].mxu0
      %v583 = vadd.f32 0.0, %v582
      %v584 = vpop.f32.mrb[0].mxu0
      %v585 = vpop.f32.mrb[0].mxu0
      %v586 = vpop.f32.mrb[0].mxu0
      %587 = vdwg.mxu0
      %v588 = vadd.f32 %v525, %v583
      %s589 = scalar_lea.vmem %s1, 96
      %v590 = vld [vmem:[%s589] sm:$0xf]
      %v591 = vld [vmem:[%s589 + $0x4] sm:$0xf]
      %v592 = vld [vmem:[%s589 + $0x8] sm:$0xf]
      %v593 = vld [vmem:[%s589 + $0xc] sm:$0xf]
      %v596 = vunpack.c.l.s4 1966171168
      %v597 = vunpack.c.0.s8 %v596
      %v598 = vlaneseq
      %v599 = vshrl.u32 %v598, 7
      %v600 = vsub.s32 %v597, %v599
      %v601 = vrot.slane %v464, %v600
      %v603 = vunpack.c.l.s4 1966171168
      %v604 = vunpack.c.0.s8 %v603
      %v605 = vlaneseq
      %v606 = vshrl.u32 %v605, 7
      %v607 = vsub.s32 %v604, %v606
      %v608 = vrot.slane %v601, %v607
      %v610 = vshrl.u32 %v608, 16
      %v616 = vunpack.c.l.b16 %v590
      %v617 = vunpack.c.l.b16 %v591
      %v618 = vunpack.c.l.b16 %v592
      %v619 = vunpack.c.l.b16 %v593
      %v620 = vpack.c.b16 %v617, %v616
      %v621 = vpack.c.b16 %v619, %v618
      %v625 = vsel %vm205, %v610, 0
      %627 = vmatprep.subr.bf16.mxu0 0
      %628 = vmatpush1.bf16.msra.mxu0 %v620
      %629 = vmatprep.subr.bf16.mxu0 0
      %630 = vmatpush1.bf16.msra.mxu0 %v621
      %631 = vmatprep.subr.bf16.mxu0 0
      %632 = vmatpush1.bf16.msra.mxu0 0
      %633 = vmatprep.subr.bf16.mxu0 0
      %634 = vmatpush1.bf16.msra.mxu0 0
      %635 = vmatprep.subr.bf16.mxu0 0
      %636 = vmatpush1.bf16.msra.mxu0 0
      %637 = vmatprep.subr.bf16.mxu0 0
      %638 = vmatpush1.bf16.msra.mxu0 0
      %639 = vmatprep.subr.bf16.mxu0 0
      %640 = vmatpush1.bf16.msra.mxu0 0
      %641 = vmatprep.subr.bf16.mxu0 0
      %642 = vmatpush1.bf16.msra.mxu0 0
      %643 = vmatprep.subr.bf16.mxu0 0
      %644 = vmatpush1.bf16.msra.mxu0 0
      %645 = vmatprep.subr.bf16.mxu0 0
      %646 = vmatpush1.bf16.msra.mxu0 0
      %647 = vmatprep.subr.bf16.mxu0 0
      %648 = vmatpush1.bf16.msra.mxu0 0
      %649 = vmatprep.subr.bf16.mxu0 0
      %650 = vmatpush1.bf16.msra.mxu0 0
      %651 = vmatprep.subr.bf16.mxu0 0
      %652 = vmatpush1.bf16.msra.mxu0 0
      %653 = vmatprep.subr.bf16.mxu0 0
      %654 = vmatpush1.bf16.msra.mxu0 0
      %655 = vmatprep.subr.bf16.mxu0 0
      %656 = vmatpush1.bf16.msra.mxu0 0
      %657 = vmatprep.subr.bf16.mxu0 0
      %658 = vmatpush1.bf16.msra.mxu0 0
      %659 = vmatprep.mubr.bf16.mxu0 0
      %660 = vmatmul.mubr.bf16.gmra.mrb[0].mxu0 %v625
      %v661 = vpop.f32.mrb[0].mxu0
      %v662 = vadd.f32 0.0, %v661
      %v663 = vpop.f32.mrb[0].mxu0
      %v664 = vpop.f32.mrb[0].mxu0
      %v665 = vpop.f32.mrb[0].mxu0
      %666 = vdwg.mxu0
      %v667 = vadd.f32 %v588, %v662
      %v668 = vld [vmem:[%s526] sm:$0x1]
      %s669 = scalar_lea.vmem %s1, 112
      %v670 = vld [vmem:[%s669] sm:$0xf]
      %v671 = vld [vmem:[%s669 + $0x4] sm:$0xf]
      %v672 = vld [vmem:[%s669 + $0x8] sm:$0xf]
      %v673 = vld [vmem:[%s669 + $0xc] sm:$0xf]
      %v676 = vunpack.c.l.s4 1966171168
      %v677 = vunpack.c.0.s8 %v676
      %v678 = vlaneseq
      %v679 = vshrl.u32 %v678, 7
      %v680 = vsub.s32 %v677, %v679
      %v681 = vrot.slane %v668, %v680
      %v683 = vunpack.c.l.s4 1966171168
      %v684 = vunpack.c.0.s8 %v683
      %v685 = vlaneseq
      %v686 = vshrl.u32 %v685, 7
      %v687 = vsub.s32 %v684, %v686
      %v688 = vrot.slane %v681, %v687
      %v690 = vshrl.u32 %v688, 16
      %v696 = vunpack.c.l.b16 %v670
      %v697 = vunpack.c.l.b16 %v671
      %v698 = vunpack.c.l.b16 %v672
      %v699 = vunpack.c.l.b16 %v673
      %v700 = vpack.c.b16 %v697, %v696
      %v701 = vpack.c.b16 %v699, %v698
      %v705 = vsel %vm205, %v690, 0
      %707 = vmatprep.subr.bf16.mxu0 0
      %708 = vmatpush1.bf16.msra.mxu0 %v700
      %709 = vmatprep.subr.bf16.mxu0 0
      %710 = vmatpush1.bf16.msra.mxu0 %v701
      %711 = vmatprep.subr.bf16.mxu0 0
      %712 = vmatpush1.bf16.msra.mxu0 0
      %713 = vmatprep.subr.bf16.mxu0 0
      %714 = vmatpush1.bf16.msra.mxu0 0
      %715 = vmatprep.subr.bf16.mxu0 0
      %716 = vmatpush1.bf16.msra.mxu0 0
      %717 = vmatprep.subr.bf16.mxu0 0
      %718 = vmatpush1.bf16.msra.mxu0 0
      %719 = vmatprep.subr.bf16.mxu0 0
      %720 = vmatpush1.bf16.msra.mxu0 0
      %721 = vmatprep.subr.bf16.mxu0 0
      %722 = vmatpush1.bf16.msra.mxu0 0
      %723 = vmatprep.subr.bf16.mxu0 0
      %724 = vmatpush1.bf16.msra.mxu0 0
      %725 = vmatprep.subr.bf16.mxu0 0
      %726 = vmatpush1.bf16.msra.mxu0 0
      %727 = vmatprep.subr.bf16.mxu0 0
      %728 = vmatpush1.bf16.msra.mxu0 0
      %729 = vmatprep.subr.bf16.mxu0 0
      %730 = vmatpush1.bf16.msra.mxu0 0
      %731 = vmatprep.subr.bf16.mxu0 0
      %732 = vmatpush1.bf16.msra.mxu0 0
      %733 = vmatprep.subr.bf16.mxu0 0
      %734 = vmatpush1.bf16.msra.mxu0 0
      %735 = vmatprep.subr.bf16.mxu0 0
      %736 = vmatpush1.bf16.msra.mxu0 0
      %737 = vmatprep.subr.bf16.mxu0 0
      %738 = vmatpush1.bf16.msra.mxu0 0
      %739 = vmatprep.mubr.bf16.mxu0 0
      %740 = vmatmul.mubr.bf16.gmra.mrb[0].mxu0 %v705
      %v741 = vpop.f32.mrb[0].mxu0
      %v742 = vadd.f32 0.0, %v741
      %v743 = vpop.f32.mrb[0].mxu0
      %v744 = vpop.f32.mrb[0].mxu0
      %v745 = vpop.f32.mrb[0].mxu0
      %746 = vdwg.mxu0
      %v747 = vadd.f32 %v667, %v742
      %s748 = scalar_lea.vmem %s171, 1
      %v749 = vld [vmem:[%s748] sm:$0x1]
      %s750 = scalar_lea.vmem %s1, 128
      %v751 = vld [vmem:[%s750] sm:$0xf]
      %v752 = vld [vmem:[%s750 + $0x4] sm:$0xf]
      %v753 = vld [vmem:[%s750 + $0x8] sm:$0xf]
      %v754 = vld [vmem:[%s750 + $0xc] sm:$0xf]
      %v759 = vunpack.c.l.b16 %v751
      %v760 = vunpack.c.l.b16 %v752
      %v761 = vunpack.c.l.b16 %v753
      %v762 = vunpack.c.l.b16 %v754
      %v763 = vpack.c.b16 %v760, %v759
      %v764 = vpack.c.b16 %v762, %v761
      %v768 = vsel %vm205, %v749, 0
      %770 = vmatprep.subr.bf16.mxu0 0
      %771 = vmatpush1.bf16.msra.mxu0 %v763
      %772 = vmatprep.subr.bf16.mxu0 0
      %773 = vmatpush1.bf16.msra.mxu0 %v764
      %774 = vmatprep.subr.bf16.mxu0 0
      %775 = vmatpush1.bf16.msra.mxu0 0
      %776 = vmatprep.subr.bf16.mxu0 0
      %777 = vmatpush1.bf16.msra.mxu0 0
      %778 = vmatprep.subr.bf16.mxu0 0
      %779 = vmatpush1.bf16.msra.mxu0 0
      %780 = vmatprep.subr.bf16.mxu0 0
      %781 = vmatpush1.bf16.msra.mxu0 0
      %782 = vmatprep.subr.bf16.mxu0 0
      %783 = vmatpush1.bf16.msra.mxu0 0
      %784 = vmatprep.subr.bf16.mxu0 0
      %785 = vmatpush1.bf16.msra.mxu0 0
      %786 = vmatprep.subr.bf16.mxu0 0
      %787 = vmatpush1.bf16.msra.mxu0 0
      %788 = vmatprep.subr.bf16.mxu0 0
      %789 = vmatpush1.bf16.msra.mxu0 0
      %790 = vmatprep.subr.bf16.mxu0 0
      %791 = vmatpush1.bf16.msra.mxu0 0
      %792 = vmatprep.subr.bf16.mxu0 0
      %793 = vmatpush1.bf16.msra.mxu0 0
      %794 = vmatprep.subr.bf16.mxu0 0
      %795 = vmatpush1.bf16.msra.mxu0 0
      %796 = vmatprep.subr.bf16.mxu0 0
      %797 = vmatpush1.bf16.msra.mxu0 0
      %798 = vmatprep.subr.bf16.mxu0 0
      %799 = vmatpush1.bf16.msra.mxu0 0
      %800 = vmatprep.subr.bf16.mxu0 0
      %801 = vmatpush1.bf16.msra.mxu0 0
      %802 = vmatprep.mubr.bf16.mxu0 0
      %803 = vmatmul.mubr.bf16.gmra.mrb[0].mxu0 %v768
      %v804 = vpop.f32.mrb[0].mxu0
      %v805 = vadd.f32 0.0, %v804
      %v806 = vpop.f32.mrb[0].mxu0
      %v807 = vpop.f32.mrb[0].mxu0
      %v808 = vpop.f32.mrb[0].mxu0
      %809 = vdwg.mxu0
      %v810 = vadd.f32 %v747, %v805
      %s811 = scalar_lea.vmem %s171, 3
      %v812 = vld [vmem:[%s811] sm:$0x1]
      %s813 = scalar_lea.vmem %s1, 144
      %v814 = vld [vmem:[%s813] sm:$0xf]
      %v815 = vld [vmem:[%s813 + $0x4] sm:$0xf]
      %v816 = vld [vmem:[%s813 + $0x8] sm:$0xf]
      %v817 = vld [vmem:[%s813 + $0xc] sm:$0xf]
      %v822 = vunpack.c.l.b16 %v814
      %v823 = vunpack.c.l.b16 %v815
      %v824 = vunpack.c.l.b16 %v816
      %v825 = vunpack.c.l.b16 %v817
      %v826 = vpack.c.b16 %v823, %v822
      %v827 = vpack.c.b16 %v825, %v824
      %v831 = vsel %vm205, %v812, 0
      %833 = vmatprep.subr.bf16.mxu0 0
      %834 = vmatpush1.bf16.msra.mxu0 %v826
      %835 = vmatprep.subr.bf16.mxu0 0
      %836 = vmatpush1.bf16.msra.mxu0 %v827
      %837 = vmatprep.subr.bf16.mxu0 0
      %838 = vmatpush1.bf16.msra.mxu0 0
      %839 = vmatprep.subr.bf16.mxu0 0
      %840 = vmatpush1.bf16.msra.mxu0 0
      %841 = vmatprep.subr.bf16.mxu0 0
      %842 = vmatpush1.bf16.msra.mxu0 0
      %843 = vmatprep.subr.bf16.mxu0 0
      %844 = vmatpush1.bf16.msra.mxu0 0
      %845 = vmatprep.subr.bf16.mxu0 0
      %846 = vmatpush1.bf16.msra.mxu0 0
      %847 = vmatprep.subr.bf16.mxu0 0
      %848 = vmatpush1.bf16.msra.mxu0 0
      %849 = vmatprep.subr.bf16.mxu0 0
      %850 = vmatpush1.bf16.msra.mxu0 0
      %851 = vmatprep.subr.bf16.mxu0 0
      %852 = vmatpush1.bf16.msra.mxu0 0
      %853 = vmatprep.subr.bf16.mxu0 0
      %854 = vmatpush1.bf16.msra.mxu0 0
      %855 = vmatprep.subr.bf16.mxu0 0
      %856 = vmatpush1.bf16.msra.mxu0 0
      %857 = vmatprep.subr.bf16.mxu0 0
      %858 = vmatpush1.bf16.msra.mxu0 0
      %859 = vmatprep.subr.bf16.mxu0 0
      %860 = vmatpush1.bf16.msra.mxu0 0
      %861 = vmatprep.subr.bf16.mxu0 0
      %862 = vmatpush1.bf16.msra.mxu0 0
      %863 = vmatprep.subr.bf16.mxu0 0
      %864 = vmatpush1.bf16.msra.mxu0 0
      %865 = vmatprep.mubr.bf16.mxu0 0
      %866 = vmatmul.mubr.bf16.gmra.mrb[0].mxu0 %v831
      %v867 = vpop.f32.mrb[0].mxu0
      %v868 = vadd.f32 0.0, %v867
      %v869 = vpop.f32.mrb[0].mxu0
      %v870 = vpop.f32.mrb[0].mxu0
      %v871 = vpop.f32.mrb[0].mxu0
      %872 = vdwg.mxu0
      %v873 = vadd.f32 %v810, %v868
      %s874 = scalar_lea.vmem %s1, 160
      %v875 = vld [vmem:[%s874] sm:$0xf]
      %v876 = vld [vmem:[%s874 + $0x4] sm:$0xf]
      %v877 = vld [vmem:[%s874 + $0x8] sm:$0xf]
      %v878 = vld [vmem:[%s874 + $0xc] sm:$0xf]
      %v881 = vunpack.c.l.s4 1966171168
      %v882 = vunpack.c.0.s8 %v881
      %v883 = vlaneseq
      %v884 = vshrl.u32 %v883, 7
      %v885 = vsub.s32 %v882, %v884
      %v886 = vrot.slane %v749, %v885
      %v888 = vunpack.c.l.s4 1966171168
      %v889 = vunpack.c.0.s8 %v888
      %v890 = vlaneseq
      %v891 = vshrl.u32 %v890, 7
      %v892 = vsub.s32 %v889, %v891
      %v893 = vrot.slane %v886, %v892
      %v895 = vshrl.u32 %v893, 16
      %v901 = vunpack.c.l.b16 %v875
      %v902 = vunpack.c.l.b16 %v876
      %v903 = vunpack.c.l.b16 %v877
      %v904 = vunpack.c.l.b16 %v878
      %v905 = vpack.c.b16 %v902, %v901
      %v906 = vpack.c.b16 %v904, %v903
      %v910 = vsel %vm205, %v895, 0
      %912 = vmatprep.subr.bf16.mxu0 0
      %913 = vmatpush1.bf16.msra.mxu0 %v905
      %914 = vmatprep.subr.bf16.mxu0 0
      %915 = vmatpush1.bf16.msra.mxu0 %v906
      %916 = vmatprep.subr.bf16.mxu0 0
      %917 = vmatpush1.bf16.msra.mxu0 0
      %918 = vmatprep.subr.bf16.mxu0 0
      %919 = vmatpush1.bf16.msra.mxu0 0
      %920 = vmatprep.subr.bf16.mxu0 0
      %921 = vmatpush1.bf16.msra.mxu0 0
      %922 = vmatprep.subr.bf16.mxu0 0
      %923 = vmatpush1.bf16.msra.mxu0 0
      %924 = vmatprep.subr.bf16.mxu0 0
      %925 = vmatpush1.bf16.msra.mxu0 0
      %926 = vmatprep.subr.bf16.mxu0 0
      %927 = vmatpush1.bf16.msra.mxu0 0
      %928 = vmatprep.subr.bf16.mxu0 0
      %929 = vmatpush1.bf16.msra.mxu0 0
      %930 = vmatprep.subr.bf16.mxu0 0
      %931 = vmatpush1.bf16.msra.mxu0 0
      %932 = vmatprep.subr.bf16.mxu0 0
      %933 = vmatpush1.bf16.msra.mxu0 0
      %934 = vmatprep.subr.bf16.mxu0 0
      %935 = vmatpush1.bf16.msra.mxu0 0
      %936 = vmatprep.subr.bf16.mxu0 0
      %937 = vmatpush1.bf16.msra.mxu0 0
      %938 = vmatprep.subr.bf16.mxu0 0
      %939 = vmatpush1.bf16.msra.mxu0 0
      %940 = vmatprep.subr.bf16.mxu0 0
      %941 = vmatpush1.bf16.msra.mxu0 0
      %942 = vmatprep.subr.bf16.mxu0 0
      %943 = vmatpush1.bf16.msra.mxu0 0
      %944 = vmatprep.mubr.bf16.mxu0 0
      %945 = vmatmul.mubr.bf16.gmra.mrb[0].mxu0 %v910
      %v946 = vpop.f32.mrb[0].mxu0
      %v947 = vadd.f32 0.0, %v946
      %v948 = vpop.f32.mrb[0].mxu0
      %v949 = vpop.f32.mrb[0].mxu0
      %v950 = vpop.f32.mrb[0].mxu0
      %951 = vdwg.mxu0
      %v952 = vadd.f32 %v873, %v947
      %v953 = vld [vmem:[%s811] sm:$0x1]
      %s954 = scalar_lea.vmem %s1, 176
      %v955 = vld [vmem:[%s954] sm:$0xf]
      %v956 = vld [vmem:[%s954 + $0x4] sm:$0xf]
      %v957 = vld [vmem:[%s954 + $0x8] sm:$0xf]
      %v958 = vld [vmem:[%s954 + $0xc] sm:$0xf]
      %v961 = vunpack.c.l.s4 1966171168
      %v962 = vunpack.c.0.s8 %v961
      %v963 = vlaneseq
      %v964 = vshrl.u32 %v963, 7
      %v965 = vsub.s32 %v962, %v964
      %v966 = vrot.slane %v953, %v965
      %v968 = vunpack.c.l.s4 1966171168
      %v969 = vunpack.c.0.s8 %v968
      %v970 = vlaneseq
      %v971 = vshrl.u32 %v970, 7
      %v972 = vsub.s32 %v969, %v971
      %v973 = vrot.slane %v966, %v972
      %v975 = vshrl.u32 %v973, 16
      %v981 = vunpack.c.l.b16 %v955
      %v982 = vunpack.c.l.b16 %v956
      %v983 = vunpack.c.l.b16 %v957
      %v984 = vunpack.c.l.b16 %v958
      %v985 = vpack.c.b16 %v982, %v981
      %v986 = vpack.c.b16 %v984, %v983
      %v990 = vsel %vm205, %v975, 0
      %992 = vmatprep.subr.bf16.mxu0 0
      %993 = vmatpush1.bf16.msra.mxu0 %v985
      %994 = vmatprep.subr.bf16.mxu0 0
      %995 = vmatpush1.bf16.msra.mxu0 %v986
      %996 = vmatprep.subr.bf16.mxu0 0
      %997 = vmatpush1.bf16.msra.mxu0 0
      %998 = vmatprep.subr.bf16.mxu0 0
      %999 = vmatpush1.bf16.msra.mxu0 0
      %1000 = vmatprep.subr.bf16.mxu0 0
      %1001 = vmatpush1.bf16.msra.mxu0 0
      %1002 = vmatprep.subr.bf16.mxu0 0
      %1003 = vmatpush1.bf16.msra.mxu0 0
      %1004 = vmatprep.subr.bf16.mxu0 0
      %1005 = vmatpush1.bf16.msra.mxu0 0
      %1006 = vmatprep.subr.bf16.mxu0 0
      %1007 = vmatpush1.bf16.msra.mxu0 0
      %1008 = vmatprep.subr.bf16.mxu0 0
      %1009 = vmatpush1.bf16.msra.mxu0 0
      %1010 = vmatprep.subr.bf16.mxu0 0
      %1011 = vmatpush1.bf16.msra.mxu0 0
      %1012 = vmatprep.subr.bf16.mxu0 0
      %1013 = vmatpush1.bf16.msra.mxu0 0
      %1014 = vmatprep.subr.bf16.mxu0 0
      %1015 = vmatpush1.bf16.msra.mxu0 0
      %1016 = vmatprep.subr.bf16.mxu0 0
      %1017 = vmatpush1.bf16.msra.mxu0 0
      %1018 = vmatprep.subr.bf16.mxu0 0
      %1019 = vmatpush1.bf16.msra.mxu0 0
      %1020 = vmatprep.subr.bf16.mxu0 0
      %1021 = vmatpush1.bf16.msra.mxu0 0
      %1022 = vmatprep.subr.bf16.mxu0 0
      %1023 = vmatpush1.bf16.msra.mxu0 0
      %1024 = vmatprep.mubr.bf16.mxu0 0
      %1025 = vmatmul.mubr.bf16.gmra.mrb[0].mxu0 %v990
      %v1026 = vpop.f32.mrb[0].mxu0
      %v1027 = vadd.f32 0.0, %v1026
      %v1028 = vpop.f32.mrb[0].mxu0
      %v1029 = vpop.f32.mrb[0].mxu0
      %v1030 = vpop.f32.mrb[0].mxu0
      %1031 = vdwg.mxu0
      %v1032 = vadd.f32 %v952, %v1027
      %s1033 = scalar_lea.vmem %s171, 5
      %v1034 = vld [vmem:[%s1033] sm:$0x1]
      %s1035 = scalar_lea.vmem %s1, 192
      %v1036 = vld [vmem:[%s1035] sm:$0xf]
      %v1037 = vld [vmem:[%s1035 + $0x4] sm:$0xf]
      %v1038 = vld [vmem:[%s1035 + $0x8] sm:$0xf]
      %v1039 = vld [vmem:[%s1035 + $0xc] sm:$0xf]
      %v1044 = vunpack.c.l.b16 %v1036
      %v1045 = vunpack.c.l.b16 %v1037
      %v1046 = vunpack.c.l.b16 %v1038
      %v1047 = vunpack.c.l.b16 %v1039
      %v1048 = vpack.c.b16 %v1045, %v1044
      %v1049 = vpack.c.b16 %v1047, %v1046
      %v1053 = vsel %vm205, %v1034, 0
      %1055 = vmatprep.subr.bf16.mxu0 0
      %1056 = vmatpush1.bf16.msra.mxu0 %v1048
      %1057 = vmatprep.subr.bf16.mxu0 0
      %1058 = vmatpush1.bf16.msra.mxu0 %v1049
      %1059 = vmatprep.subr.bf16.mxu0 0
      %1060 = vmatpush1.bf16.msra.mxu0 0
      %1061 = vmatprep.subr.bf16.mxu0 0
      %1062 = vmatpush1.bf16.msra.mxu0 0
      %1063 = vmatprep.subr.bf16.mxu0 0
      %1064 = vmatpush1.bf16.msra.mxu0 0
      %1065 = vmatprep.subr.bf16.mxu0 0
      %1066 = vmatpush1.bf16.msra.mxu0 0
      %1067 = vmatprep.subr.bf16.mxu0 0
      %1068 = vmatpush1.bf16.msra.mxu0 0
      %1069 = vmatprep.subr.bf16.mxu0 0
      %1070 = vmatpush1.bf16.msra.mxu0 0
      %1071 = vmatprep.subr.bf16.mxu0 0
      %1072 = vmatpush1.bf16.msra.mxu0 0
      %1073 = vmatprep.subr.bf16.mxu0 0
      %1074 = vmatpush1.bf16.msra.mxu0 0
      %1075 = vmatprep.subr.bf16.mxu0 0
      %1076 = vmatpush1.bf16.msra.mxu0 0
      %1077 = vmatprep.subr.bf16.mxu0 0
      %1078 = vmatpush1.bf16.msra.mxu0 0
      %1079 = vmatprep.subr.bf16.mxu0 0
      %1080 = vmatpush1.bf16.msra.mxu0 0
      %1081 = vmatprep.subr.bf16.mxu0 0
      %1082 = vmatpush1.bf16.msra.mxu0 0
      %1083 = vmatprep.subr.bf16.mxu0 0
      %1084 = vmatpush1.bf16.msra.mxu0 0
      %1085 = vmatprep.subr.bf16.mxu0 0
      %1086 = vmatpush1.bf16.msra.mxu0 0
      %1087 = vmatprep.mubr.bf16.mxu0 0
      %1088 = vmatmul.mubr.bf16.gmra.mrb[0].mxu0 %v1053
      %v1089 = vpop.f32.mrb[0].mxu0
      %v1090 = vadd.f32 0.0, %v1089
      %v1091 = vpop.f32.mrb[0].mxu0
      %v1092 = vpop.f32.mrb[0].mxu0
      %v1093 = vpop.f32.mrb[0].mxu0
      %1094 = vdwg.mxu0
      %v1095 = vadd.f32 %v1032, %v1090
      %s1096 = scalar_lea.vmem %s171, 7
      %v1097 = vld [vmem:[%s1096] sm:$0x1]
      %s1098 = scalar_lea.vmem %s1, 208
      %v1099 = vld [vmem:[%s1098] sm:$0xf]
      %v1100 = vld [vmem:[%s1098 + $0x4] sm:$0xf]
      %v1101 = vld [vmem:[%s1098 + $0x8] sm:$0xf]
      %v1102 = vld [vmem:[%s1098 + $0xc] sm:$0xf]
      %v1107 = vunpack.c.l.b16 %v1099
      %v1108 = vunpack.c.l.b16 %v1100
      %v1109 = vunpack.c.l.b16 %v1101
      %v1110 = vunpack.c.l.b16 %v1102
      %v1111 = vpack.c.b16 %v1108, %v1107
      %v1112 = vpack.c.b16 %v1110, %v1109
      %v1116 = vsel %vm205, %v1097, 0
      %1118 = vmatprep.subr.bf16.mxu0 0
      %1119 = vmatpush1.bf16.msra.mxu0 %v1111
      %1120 = vmatprep.subr.bf16.mxu0 0
      %1121 = vmatpush1.bf16.msra.mxu0 %v1112
      %1122 = vmatprep.subr.bf16.mxu0 0
      %1123 = vmatpush1.bf16.msra.mxu0 0
      %1124 = vmatprep.subr.bf16.mxu0 0
      %1125 = vmatpush1.bf16.msra.mxu0 0
      %1126 = vmatprep.subr.bf16.mxu0 0
      %1127 = vmatpush1.bf16.msra.mxu0 0
      %1128 = vmatprep.subr.bf16.mxu0 0
      %1129 = vmatpush1.bf16.msra.mxu0 0
      %1130 = vmatprep.subr.bf16.mxu0 0
      %1131 = vmatpush1.bf16.msra.mxu0 0
      %1132 = vmatprep.subr.bf16.mxu0 0
      %1133 = vmatpush1.bf16.msra.mxu0 0
      %1134 = vmatprep.subr.bf16.mxu0 0
      %1135 = vmatpush1.bf16.msra.mxu0 0
      %1136 = vmatprep.subr.bf16.mxu0 0
      %1137 = vmatpush1.bf16.msra.mxu0 0
      %1138 = vmatprep.subr.bf16.mxu0 0
      %1139 = vmatpush1.bf16.msra.mxu0 0
      %1140 = vmatprep.subr.bf16.mxu0 0
      %1141 = vmatpush1.bf16.msra.mxu0 0
      %1142 = vmatprep.subr.bf16.mxu0 0
      %1143 = vmatpush1.bf16.msra.mxu0 0
      %1144 = vmatprep.subr.bf16.mxu0 0
      %1145 = vmatpush1.bf16.msra.mxu0 0
      %1146 = vmatprep.subr.bf16.mxu0 0
      %1147 = vmatpush1.bf16.msra.mxu0 0
      %1148 = vmatprep.subr.bf16.mxu0 0
      %1149 = vmatpush1.bf16.msra.mxu0 0
      %1150 = vmatprep.mubr.bf16.mxu0 0
      %1151 = vmatmul.mubr.bf16.gmra.mrb[0].mxu0 %v1116
      %v1152 = vpop.f32.mrb[0].mxu0
      %v1153 = vadd.f32 0.0, %v1152
      %v1154 = vpop.f32.mrb[0].mxu0
      %v1155 = vpop.f32.mrb[0].mxu0
      %v1156 = vpop.f32.mrb[0].mxu0
      %1157 = vdwg.mxu0
      %v1158 = vadd.f32 %v1095, %v1153
      %s1159 = scalar_lea.vmem %s1, 224
      %v1160 = vld [vmem:[%s1159] sm:$0xf]
      %v1161 = vld [vmem:[%s1159 + $0x4] sm:$0xf]
      %v1162 = vld [vmem:[%s1159 + $0x8] sm:$0xf]
      %v1163 = vld [vmem:[%s1159 + $0xc] sm:$0xf]
      %v1166 = vunpack.c.l.s4 1966171168
      %v1167 = vunpack.c.0.s8 %v1166
      %v1168 = vlaneseq
      %v1169 = vshrl.u32 %v1168, 7
      %v1170 = vsub.s32 %v1167, %v1169
      %v1171 = vrot.slane %v1034, %v1170
      %v1173 = vunpack.c.l.s4 1966171168
      %v1174 = vunpack.c.0.s8 %v1173
      %v1175 = vlaneseq
      %v1176 = vshrl.u32 %v1175, 7
      %v1177 = vsub.s32 %v1174, %v1176
      %v1178 = vrot.slane %v1171, %v1177
      %v1180 = vshrl.u32 %v1178, 16
      %v1186 = vunpack.c.l.b16 %v1160
      %v1187 = vunpack.c.l.b16 %v1161
      %v1188 = vunpack.c.l.b16 %v1162
      %v1189 = vunpack.c.l.b16 %v1163
      %v1190 = vpack.c.b16 %v1187, %v1186
      %v1191 = vpack.c.b16 %v1189, %v1188
      %v1195 = vsel %vm205, %v1180, 0
      %1197 = vmatprep.subr.bf16.mxu0 0
      %1198 = vmatpush1.bf16.msra.mxu0 %v1190
      %1199 = vmatprep.subr.bf16.mxu0 0
      %1200 = vmatpush1.bf16.msra.mxu0 %v1191
      %1201 = vmatprep.subr.bf16.mxu0 0
      %1202 = vmatpush1.bf16.msra.mxu0 0
      %1203 = vmatprep.subr.bf16.mxu0 0
      %1204 = vmatpush1.bf16.msra.mxu0 0
      %1205 = vmatprep.subr.bf16.mxu0 0
      %1206 = vmatpush1.bf16.msra.mxu0 0
      %1207 = vmatprep.subr.bf16.mxu0 0
      %1208 = vmatpush1.bf16.msra.mxu0 0
      %1209 = vmatprep.subr.bf16.mxu0 0
      %1210 = vmatpush1.bf16.msra.mxu0 0
      %1211 = vmatprep.subr.bf16.mxu0 0
      %1212 = vmatpush1.bf16.msra.mxu0 0
      %1213 = vmatprep.subr.bf16.mxu0 0
      %1214 = vmatpush1.bf16.msra.mxu0 0
      %1215 = vmatprep.subr.bf16.mxu0 0
      %1216 = vmatpush1.bf16.msra.mxu0 0
      %1217 = vmatprep.subr.bf16.mxu0 0
      %1218 = vmatpush1.bf16.msra.mxu0 0
      %1219 = vmatprep.subr.bf16.mxu0 0
      %1220 = vmatpush1.bf16.msra.mxu0 0
      %1221 = vmatprep.subr.bf16.mxu0 0
      %1222 = vmatpush1.bf16.msra.mxu0 0
      %1223 = vmatprep.subr.bf16.mxu0 0
      %1224 = vmatpush1.bf16.msra.mxu0 0
      %1225 = vmatprep.subr.bf16.mxu0 0
      %1226 = vmatpush1.bf16.msra.mxu0 0
      %1227 = vmatprep.subr.bf16.mxu0 0
      %1228 = vmatpush1.bf16.msra.mxu0 0
      %1229 = vmatprep.mubr.bf16.mxu0 0
      %1230 = vmatmul.mubr.bf16.gmra.mrb[0].mxu0 %v1195
      %v1231 = vpop.f32.mrb[0].mxu0
      %v1232 = vadd.f32 0.0, %v1231
      %v1233 = vpop.f32.mrb[0].mxu0
      %v1234 = vpop.f32.mrb[0].mxu0
      %v1235 = vpop.f32.mrb[0].mxu0
      %1236 = vdwg.mxu0
      %v1237 = vadd.f32 %v1158, %v1232
      %v1238 = vld [vmem:[%s1096] sm:$0x1]
      %s1239 = scalar_lea.vmem %s1, 240
      %v1240 = vld [vmem:[%s1239] sm:$0xf]
      %v1241 = vld [vmem:[%s1239 + $0x4] sm:$0xf]
      %v1242 = vld [vmem:[%s1239 + $0x8] sm:$0xf]
      %v1243 = vld [vmem:[%s1239 + $0xc] sm:$0xf]
      %v1246 = vunpack.c.l.s4 1966171168
      %v1247 = vunpack.c.0.s8 %v1246
      %v1248 = vlaneseq
      %v1249 = vshrl.u32 %v1248, 7
      %v1250 = vsub.s32 %v1247, %v1249
      %v1251 = vrot.slane %v1238, %v1250
      %v1253 = vunpack.c.l.s4 1966171168
      %v1254 = vunpack.c.0.s8 %v1253
      %v1255 = vlaneseq
      %v1256 = vshrl.u32 %v1255, 7
      %v1257 = vsub.s32 %v1254, %v1256
      %v1258 = vrot.slane %v1251, %v1257
      %v1260 = vshrl.u32 %v1258, 16
      %v1266 = vunpack.c.l.b16 %v1240
      %v1267 = vunpack.c.l.b16 %v1241
      %v1268 = vunpack.c.l.b16 %v1242
      %v1269 = vunpack.c.l.b16 %v1243
      %v1270 = vpack.c.b16 %v1267, %v1266
      %v1271 = vpack.c.b16 %v1269, %v1268
      %v1275 = vsel %vm205, %v1260, 0
      %1277 = vmatprep.subr.bf16.mxu0 0
      %1278 = vmatpush1.bf16.msra.mxu0 %v1270
      %1279 = vmatprep.subr.bf16.mxu0 0
      %1280 = vmatpush1.bf16.msra.mxu0 %v1271
      %1281 = vmatprep.subr.bf16.mxu0 0
      %1282 = vmatpush1.bf16.msra.mxu0 0
      %1283 = vmatprep.subr.bf16.mxu0 0
      %1284 = vmatpush1.bf16.msra.mxu0 0
      %1285 = vmatprep.subr.bf16.mxu0 0
      %1286 = vmatpush1.bf16.msra.mxu0 0
      %1287 = vmatprep.subr.bf16.mxu0 0
      %1288 = vmatpush1.bf16.msra.mxu0 0
      %1289 = vmatprep.subr.bf16.mxu0 0
      %1290 = vmatpush1.bf16.msra.mxu0 0
      %1291 = vmatprep.subr.bf16.mxu0 0
      %1292 = vmatpush1.bf16.msra.mxu0 0
      %1293 = vmatprep.subr.bf16.mxu0 0
      %1294 = vmatpush1.bf16.msra.mxu0 0
      %1295 = vmatprep.subr.bf16.mxu0 0
      %1296 = vmatpush1.bf16.msra.mxu0 0
      %1297 = vmatprep.subr.bf16.mxu0 0
      %1298 = vmatpush1.bf16.msra.mxu0 0
      %1299 = vmatprep.subr.bf16.mxu0 0
      %1300 = vmatpush1.bf16.msra.mxu0 0
      %1301 = vmatprep.subr.bf16.mxu0 0
      %1302 = vmatpush1.bf16.msra.mxu0 0
      %1303 = vmatprep.subr.bf16.mxu0 0
      %1304 = vmatpush1.bf16.msra.mxu0 0
      %1305 = vmatprep.subr.bf16.mxu0 0
      %1306 = vmatpush1.bf16.msra.mxu0 0
      %1307 = vmatprep.subr.bf16.mxu0 0
      %1308 = vmatpush1.bf16.msra.mxu0 0
      %1309 = vmatprep.mubr.bf16.mxu0 0
      %1310 = vmatmul.mubr.bf16.gmra.mrb[0].mxu0 %v1275
      %v1311 = vpop.f32.mrb[0].mxu0
      %v1312 = vadd.f32 0.0, %v1311
      %v1313 = vpop.f32.mrb[0].mxu0
      %v1314 = vpop.f32.mrb[0].mxu0
      %v1315 = vpop.f32.mrb[0].mxu0
      %1316 = vdwg.mxu0
      %v1317 = vadd.f32 %v1237, %v1312
      %1318 = vst [vmem:[%s175] sm:$0x1] %v1317
      %v1319 = vadd.f32 %v1317, 0.0
      %v1320 = vmul.f32 %v1317, %v1317
      %v1321 = vadd.f32 %v1320, 0.0
      %v1323 = vrot.slane %v1321, 7
      %vm1325 = vcmask 1040384
      %v1326 = vsel %vm1325, %v1319, %v1323
      %1327 = vst [vmem:[%s179] sm:$0x3] %v1326
      %p1328 = scmp.lt.s32.totalorder %s15, 1
      %s1329 = scalar_select %p1328, %s15, 1
      %s1330 = scalar_lea.vmem %s2, %s1329
      %p1331 = scmp.lt.s32.totalorder %s15, 1
      %s1332 = scalar_select %p1331, %s15, 1
      %s1333 = smul.addr %s1332, 2
      %s1334 = scalar_lea.vmem %s3, %s1333
      // Predicated region
      $region29: #{dcgan_discriminator_forward.8} parent=27 // pred_check
        %p1335 = pneg %p80
      $region30: #{dcgan_discriminator_forward.8} parent=27 // pred_check_branch
        %1337 = sbr.rel (%p1335) target = $region32
      $region31: #{dcgan_discriminator_forward.8} parent=27 // pred_region
        _
      $region32: #{dcgan_discriminator_forward.8} parent=27 // pred_fallthru
        _
      // Predicated region
      $region33: #{dcgan_discriminator_forward.8} parent=27 // pred_check
        %p1338 = pneg %p106
      $region34: #{dcgan_discriminator_forward.8} parent=27 // pred_check_branch
        %1340 = sbr.rel (%p1338) target = $region36
      $region35: #{dcgan_discriminator_forward.8} parent=27 // pred_region
        _
      $region36: #{dcgan_discriminator_forward.8} parent=27 // pred_fallthru
        _
    $region28: #{dcgan_discriminator_forward.8} parent=5 // pred_fallthru
      _
    %p1341 = scmp.le.s32.totalorder 2, %s10
    // Predicated region
    $region37: #{dcgan_discriminator_forward.8} parent=5 // pred_check
      %p1342 = pneg %p1341
    $region38: #{dcgan_discriminator_forward.8} parent=5 // pred_check_branch
      %1344 = sbr.rel (%p1342) target = $region40
    $region39: #{dcgan_discriminator_forward.8} parent=5 // pred_region
      %s1345 = ssub.s32 %s10, 2
      // Predicated region
      $region41: #{dcgan_discriminator_forward.8} parent=39 // pred_check
        %p1346 = pneg %p86
      $region42: #{dcgan_discriminator_forward.8} parent=39 // pred_check_branch
        %1348 = sbr.rel (%p1346) target = $region44
      $region43: #{dcgan_discriminator_forward.8} parent=39 // pred_region
        %p1349 = scmp.lt.s32.totalorder %s16, 1
        %s1350 = scalar_select %p1349, %s16, 1
        %s1351 = scalar_lea.vmem %s2, %s1350
      $region44: #{dcgan_discriminator_forward.8} parent=39 // pred_fallthru
        _
      // Predicated region
      $region45: #{dcgan_discriminator_forward.8} parent=39 // pred_check
        %p1352 = pneg %p112
      $region46: #{dcgan_discriminator_forward.8} parent=39 // pred_check_branch
        %1354 = sbr.rel (%p1352) target = $region48
      $region47: #{dcgan_discriminator_forward.8} parent=39 // pred_region
        %p1355 = scmp.lt.s32.totalorder %s16, 1
        %s1356 = scalar_select %p1355, %s16, 1
        %s1357 = smul.addr %s1356, 2
        %s1358 = scalar_lea.vmem %s3, %s1357
      $region48: #{dcgan_discriminator_forward.8} parent=39 // pred_fallthru
        _
    $region40: #{dcgan_discriminator_forward.8} parent=5 // pred_fallthru
      _
  $region6: #{dcgan_discriminator_forward.8} parent=0 // loop_footer
    %s14 = sadd.s32 1, %s10
  $region7: #{dcgan_discriminator_forward.8} parent=0 // loop_footer_branch
    %9 = sbr.rel target = $region3
  $region8: #{dcgan_discriminator_forward.8} parent=0 // loop_exit
    _

</llo_original>
